<compile_context>
chip_gen: v6e
topology: v6e:2x2x1
jax: 0.10.0
libtpu: 0.0.40
codegen_flags: <defaults>
</compile_context>

<pallas_src>
import functools

import numpy as np
import jax
import jax.numpy as jnp
from jax.experimental import pallas as pl
from jax.experimental.pallas import tpu as pltpu

# ---------------------------------------------------------------------------
# Module configuration (mirrors the shapes implied by LoTDSDF.__init__)
# ---------------------------------------------------------------------------
N_FREQS = 4                               # extra_pos_embed: sinusoidal, include_input
N_EXTRA_EMBED = 3 + 3 * 2 * N_FREQS       # 27
LEVEL_RES = (4, 8)                        # simplified LoTD: two dense levels
LEVEL_FEATS = (8, 8)
N_ENC_FEATS = sum(LEVEL_FEATS)            # encoding.out_features = 16
N_RGB_USED_OUTPUT = 15                    # if_extrafeat_from_output = True
DEC_HIDDEN = 64                           # decoder MLP hidden width
DEC_IN = N_ENC_FEATS + N_EXTRA_EMBED      # 43
DEC_OUT = 1 + N_RGB_USED_OUTPUT           # 16
TN_MAX = 512                              # max points per kernel tile (v7x-friendly)

# frequency-ladder matrix: xf[:, 3k+j] = 2^k * x_j  (built once, passed in)
_FREQ_MAT = np.zeros((3, 3 * N_FREQS), np.float32)
for _k in range(N_FREQS):
    for _j in range(3):
        _FREQ_MAT[_j, 3 * _k + _j] = 2.0 ** _k
# sin/cos fused: cos(v) = sin(v + pi/2) -> one phase slab of 24 lanes
_FREQ24 = np.concatenate([_FREQ_MAT, _FREQ_MAT], axis=1)                    # (3, 24)
_PHASE24 = np.concatenate([np.zeros((1, 12), np.float32),
                           np.full((1, 12), np.pi / 2, np.float32)], axis=1)  # (1, 24)

# layer-0 weight-row indices of the sin / cos embed features
# (h_embed ordering: [x, sin(f0), cos(f0), sin(f1), cos(f1), ...])
_SIN_ROWS = np.array(
    [N_ENC_FEATS + 3 + 6 * k + j for k in range(N_FREQS) for j in range(3)],
    dtype=np.int32)
_COS_ROWS = _SIN_ROWS + 3


# ---------------------------------------------------------------------------
# Pallas kernel: fused trilinear encode + sinusoidal embed + decoder MLP
# ---------------------------------------------------------------------------
def _lotd_sdf_kernel(x_ref, freq_ref, ph_ref, wx_ref, wsc_ref,
                     m0_ref, m1_ref, b0_ref, w1_ref, b1_ref, out_ref):
    f32 = jnp.float32
    bf16 = jnp.bfloat16
    x = x_ref[...]                                   # (TN, 3) f32, in [-1, 1]
    tn = x.shape[0]

    # --- decoder layer 0, algebraically split (no lane-sparse 9-piece concat)
    # identity part of the extra embed + bias
    z = jnp.dot(x.astype(bf16), wx_ref[...], preferred_element_type=f32)    # (TN, 64)
    z = z + b0_ref[...]

    # sinusoidal embed: one tiny f32 matmul builds the phase slab, then a
    # SINGLE sin on (TN, 24) covers both sin and cos (cos(v) = sin(v + pi/2)).
    phase = jnp.dot(x, freq_ref[...], preferred_element_type=f32) + ph_ref[...]
    emb = jnp.sin(phase)                                                    # (TN, 24)
    z += jnp.dot(emb.astype(bf16), wsc_ref[...], preferred_element_type=f32)

    # --- fused LoTD dense-grid trilinear encode (separable formulation) -----
    # Grid tables are pre-folded through the matching decoder-weight rows
    # (m_ref = grid_flat(res^3, F) @ w0_rows(F, 64)).  The trilinear weight is
    # built separably:  a (TN, res^2) yz two-hot (tiny iota compares), then a
    # static loop over the res x-slices -- each a small bf16 MXU dot scaled by
    # the per-point x weight.  No (TN, res^3) slab is ever materialized.
    def level_contrib(z, m_ref, res):
        t2 = res * res
        shift = res.bit_length() - 1                 # res is a power of two
        u = (x * 0.5 + 0.5) * (res - 1)
        u0 = jnp.clip(jnp.floor(u), 0.0, float(res - 2))
        t = u - u0
        u0i = u0.astype(jnp.int32)
        u0x, u0y, u0z = u0i[:, 0:1], u0i[:, 1:2], u0i[:, 2:3]               # (TN, 1)
        tx, ty, tz = t[:, 0:1], t[:, 1:2], t[:, 2:3]                        # (TN, 1)

        lanes = jax.lax.broadcasted_iota(jnp.int32, (tn, t2), 1)
        jy = lanes >> shift
        kz = lanes & (res - 1)
        wy = jnp.where(jy == u0y, 1.0 - ty, 0.0) + jnp.where(jy == u0y + 1, ty, 0.0)
        wz = jnp.where(kz == u0z, 1.0 - tz, 0.0) + jnp.where(kz == u0z + 1, tz, 0.0)
        wyz = (wy * wz).astype(bf16)                                        # (TN, t2)

        for gx in range(res):
            # per-point weight of x-grid-node gx (only two nodes active/point)
            sel = (jnp.where(u0x == gx, 1.0 - tx, 0.0)
                   + jnp.where(u0x == gx - 1, tx, 0.0))                     # (TN, 1)
            contrib = jnp.dot(wyz, m_ref[pl.ds(gx * t2, t2), :],
                              preferred_element_type=f32)                   # (TN, 64)
            z = z + sel * contrib
        return z

    z = level_contrib(z, m0_ref, LEVEL_RES[0])
    z = level_contrib(z, m1_ref, LEVEL_RES[1])

    # --- ReLU + layer 1, single lane-dense output store ----------------------
    h = jnp.maximum(z, 0.0).astype(bf16)
    out = jnp.dot(h, w1_ref[...], preferred_element_type=f32) + b1_ref[...]
    out_ref[...] = out.astype(out_ref.dtype)                                # (TN, 16)


def _choose_tile(n):
    """Biggest tile <= TN_MAX that still leaves >=2 grid steps when possible."""
    tn = TN_MAX
    while tn > 128 and n < 2 * tn:
        tn //= 2
    return tn


def _forward_pallas(x_flat, params):
    n = x_flat.shape[0]
    tn = _choose_tile(n)
    n_pad = ((n + tn - 1) // tn) * tn
    if n_pad != n:
        x_flat = jnp.pad(x_flat, ((0, n_pad - n), (0, 0)))

    bf16 = jnp.bfloat16
    w0, b0, w1, b1 = params["w0"], params["b0"], params["w1"], params["b1"]
    g0, g1 = params["grids"]

    # algebraic split of the layer-0 weight (rows reordered to match the
    # in-kernel [x | sin | cos] slabs), pre-cast to bf16 for the MXU
    w_x = w0[N_ENC_FEATS:N_ENC_FEATS + 3].astype(bf16)                       # (3, 64)
    w_sc = jnp.concatenate([w0[_SIN_ROWS], w0[_COS_ROWS]], axis=0).astype(bf16)  # (24, 64)
    # fold grid feature tables through the matching decoder-weight rows
    m0 = (g0.reshape(-1, LEVEL_FEATS[0]) @ w0[:LEVEL_FEATS[0]]).astype(bf16)           # (64, 64)
    m1 = (g1.reshape(-1, LEVEL_FEATS[1]) @ w0[LEVEL_FEATS[0]:N_ENC_FEATS]).astype(bf16)  # (512, 64)
    w1b = w1.astype(bf16)                                                    # (64, 16)
    freq24 = jnp.asarray(_FREQ24)                                            # (3, 24) f32
    ph24 = jnp.asarray(_PHASE24)                                             # (1, 24) f32

    def full_spec(a):
        nd = a.ndim
        return pl.BlockSpec(a.shape, lambda i, _nd=nd: (0,) * _nd)

    out = pl.pallas_call(
        _lotd_sdf_kernel,
        out_shape=jax.ShapeDtypeStruct((n_pad, DEC_OUT), jnp.float32),
        grid=(n_pad // tn,),
        in_specs=[
            pl.BlockSpec((tn, 3), lambda i: (i, 0)),
            full_spec(freq24), full_spec(ph24), full_spec(w_x), full_spec(w_sc),
            full_spec(m0), full_spec(m1), full_spec(b0), full_spec(w1b),
            full_spec(b1),
        ],
        out_specs=pl.BlockSpec((tn, DEC_OUT), lambda i: (i, 0)),
        compiler_params=pltpu.CompilerParams(
            dimension_semantics=("parallel",),
            vmem_limit_bytes=32 * 1024 * 1024),
    )(x_flat, freq24, ph24, w_x, w_sc, m0, m1, b0, w1b, b1)

    return out[:n, 0], out[:n, 1:]


# ---------------------------------------------------------------------------
# LoTDSDF.forward equivalent
# ---------------------------------------------------------------------------
@functools.partial(jax.jit, static_argnames=("return_h",))
def lotd_sdf_forward(x, params, return_h=True):
    """x: (..., 3) normalized coords in [-1, 1]. Returns dict(sdf=(...,), h=(..., 15))."""
    lead = x.shape[:-1]
    x_flat = x.reshape(-1, 3).astype(jnp.float32)
    sdf, h = _forward_pallas(x_flat, params)
    ret = {"sdf": sdf.reshape(lead)}
    if return_h:
        ret["h"] = h.reshape(*lead, N_RGB_USED_OUTPUT)   # if_extrafeat_from_output path
    return ret


# ---------------------------------------------------------------------------
# Pure-JAX f32 reference (same math, no Pallas) for correctness check
# ---------------------------------------------------------------------------
def _lotd_encode(x_flat, grids):
    feats = []
    for grid in grids:
        r = grid.shape[0]
        u = (x_flat * 0.5 + 0.5) * (r - 1)
        u0 = jnp.clip(jnp.floor(u), 0, r - 2).astype(jnp.int32)
        t = u - u0.astype(u.dtype)
        acc = jnp.zeros((x_flat.shape[0], grid.shape[-1]), x_flat.dtype)
        for dx in (0, 1):
            wx = t[:, 0] if dx else (1.0 - t[:, 0])
            for dy in (0, 1):
                wy = t[:, 1] if dy else (1.0 - t[:, 1])
                for dz in (0, 1):
                    wz = t[:, 2] if dz else (1.0 - t[:, 2])
                    c = grid[u0[:, 0] + dx, u0[:, 1] + dy, u0[:, 2] + dz]
                    acc = acc + (wx * wy * wz)[:, None] * c
        feats.append(acc)
    return jnp.concatenate(feats, axis=-1)


def _reference_forward(x, params):
    lead = x.shape[:-1]
    x_flat = x.reshape(-1, 3).astype(jnp.float32)
    h_enc = _lotd_encode(x_flat, params["grids"])
    feats = [x_flat]
    for k in range(N_FREQS):
        xf = x_flat * (2.0 ** k)
        feats.append(jnp.sin(xf))
        feats.append(jnp.cos(xf))
    h_embed = jnp.concatenate(feats, axis=-1)
    h_full = jnp.concatenate([h_enc, h_embed], axis=-1)
    z = jnp.maximum(h_full @ params["w0"] + params["b0"], 0.0)
    out = z @ params["w1"] + params["b1"]
    return {"sdf": out[:, 0].reshape(lead),
            "h": out[:, 1:].reshape(*lead, DEC_OUT - 1)}


def _init_params(key):
    kg0, kg1, kw0, kw1 = jax.random.split(key, 4)
    grids = [
        (jax.random.normal(kg0, (LEVEL_RES[0],) * 3 + (LEVEL_FEATS[0],), jnp.float32) * 1e-2),
        (jax.random.normal(kg1, (LEVEL_RES[1],) * 3 + (LEVEL_FEATS[1],), jnp.float32) * 1e-2),
    ]
    w0 = jax.random.normal(kw0, (DEC_IN, DEC_HIDDEN), jnp.float32) / np.sqrt(DEC_IN)
    b0 = jnp.zeros((1, DEC_HIDDEN), jnp.float32)
    w1 = jax.random.normal(kw1, (DEC_HIDDEN, DEC_OUT), jnp.float32) / np.sqrt(DEC_HIDDEN)
    # bias the sdf channel towards radius_init=0.5 (mimics geometric-style offset)
    b1 = jnp.zeros((1, DEC_OUT), jnp.float32).at[0, 0].set(-0.5)
    return {"grids": grids, "w0": w0, "b0": b0, "w1": w1, "b1": b1}


if __name__ == "__main__":
    key = jax.random.PRNGKey(0)
    kx, kp = jax.random.split(key)
    params = _init_params(kp)

    # tolerance reflects intentional bf16 quantization of MXU operands
    RTOL = ATOL = 2e-2

    # x: batch of query points in normalized object coords, shape (2, 128, 3)
    x = jax.random.uniform(kx, (2, 128, 3), jnp.float32, minval=-0.9, maxval=0.9)

    ret = lotd_sdf_forward(x, params, return_h=True)
    jax.block_until_ready(ret)

    ref = _reference_forward(x, params)
    np.testing.assert_allclose(np.asarray(ret["sdf"]), np.asarray(ref["sdf"]),
                               rtol=RTOL, atol=ATOL)
    np.testing.assert_allclose(np.asarray(ret["h"]), np.asarray(ref["h"]),
                               rtol=RTOL, atol=ATOL)
    assert ret["sdf"].shape == (2, 128)
    assert ret["h"].shape == (2, 128, N_RGB_USED_OUTPUT)

    # ragged point count: exercises the pad-to-tile / slice-off path
    x2 = jax.random.uniform(jax.random.PRNGKey(1), (3, 70, 3), jnp.float32,
                            minval=-0.9, maxval=0.9)
    ret2 = lotd_sdf_forward(x2, params, return_h=True)
    jax.block_until_ready(ret2)
    ref2 = _reference_forward(x2, params)
    np.testing.assert_allclose(np.asarray(ret2["sdf"]), np.asarray(ref2["sdf"]),
                               rtol=RTOL, atol=ATOL)
    np.testing.assert_allclose(np.asarray(ret2["h"]), np.asarray(ref2["h"]),
                               rtol=RTOL, atol=ATOL)
    assert ret2["sdf"].shape == (3, 70)
    assert ret2["h"].shape == (3, 70, N_RGB_USED_OUTPUT)

    print("KERNEL_OK")
</pallas_src>

<mosaic_0001>
module attributes {stable_mosaic.version = 11 : i64} {
  func.func @_lotd_sdf_kernel(%arg0: i32, %arg1: memref<128x3xf32, #tpu.memory_space<vmem>>, %arg2: memref<3x24xf32, #tpu.memory_space<vmem>>, %arg3: memref<1x24xf32, #tpu.memory_space<vmem>>, %arg4: memref<3x64xbf16, #tpu.memory_space<vmem>>, %arg5: memref<24x64xbf16, #tpu.memory_space<vmem>>, %arg6: memref<64x64xbf16, #tpu.memory_space<vmem>>, %arg7: memref<512x64xbf16, #tpu.memory_space<vmem>>, %arg8: memref<1x64xf32, #tpu.memory_space<vmem>>, %arg9: memref<64x16xbf16, #tpu.memory_space<vmem>>, %arg10: memref<1x16xf32, #tpu.memory_space<vmem>>, %arg11: memref<128x16xf32, #tpu.memory_space<vmem>>) attributes {dimension_semantics = [#tpu.dimension_semantics<parallel>], iteration_bounds = array<i64: 2>, scalar_prefetch = 0 : i64, scratch_operands = 0 : i64, tpu.core_type = #tpu.core_type<tc>, window_params = [{transform_indices = @transform_0, window_bounds = array<i64: 128, 3>}, {pipeline_mode = #tpu.pipeline_mode<synchronous>, transform_indices = @transform_1, window_bounds = array<i64: 3, 24>}, {pipeline_mode = #tpu.pipeline_mode<synchronous>, transform_indices = @transform_2, window_bounds = array<i64: 1, 24>}, {pipeline_mode = #tpu.pipeline_mode<synchronous>, transform_indices = @transform_3, window_bounds = array<i64: 3, 64>}, {pipeline_mode = #tpu.pipeline_mode<synchronous>, transform_indices = @transform_4, window_bounds = array<i64: 24, 64>}, {pipeline_mode = #tpu.pipeline_mode<synchronous>, transform_indices = @transform_5, window_bounds = array<i64: 64, 64>}, {pipeline_mode = #tpu.pipeline_mode<synchronous>, transform_indices = @transform_6, window_bounds = array<i64: 512, 64>}, {pipeline_mode = #tpu.pipeline_mode<synchronous>, transform_indices = @transform_7, window_bounds = array<i64: 1, 64>}, {pipeline_mode = #tpu.pipeline_mode<synchronous>, transform_indices = @transform_8, window_bounds = array<i64: 64, 16>}, {pipeline_mode = #tpu.pipeline_mode<synchronous>, transform_indices = @transform_9, window_bounds = array<i64: 1, 16>}, {transform_indices = @transform_10, window_bounds = array<i64: 128, 16>}]} {
    %c0 = arith.constant 0 : index
    %c0_0 = arith.constant 0 : index
    %0 = vector.load %arg1[%c0, %c0_0] : memref<128x3xf32, #tpu.memory_space<vmem>>, vector<128x3xf32>
    %1 = arith.truncf %0 : vector<128x3xf32> to vector<128x3xbf16>
    %c0_1 = arith.constant 0 : index
    %c0_2 = arith.constant 0 : index
    %2 = vector.load %arg4[%c0_1, %c0_2] : memref<3x64xbf16, #tpu.memory_space<vmem>>, vector<3x64xbf16>
    %cst = arith.constant dense<0.000000e+00> : vector<128x64xf32>
    %3 = tpu.matmul %1, %2, %cst {dimension_numbers = #tpu.dot_dimension_numbers<[1], [0], [0], [1], [0, 0, 1, 1], [], []>} : vector<128x3xbf16>, vector<3x64xbf16>, vector<128x64xf32> -> vector<128x64xf32>
    %c0_3 = arith.constant 0 : index
    %c0_4 = arith.constant 0 : index
    %4 = vector.load %arg8[%c0_3, %c0_4] : memref<1x64xf32, #tpu.memory_space<vmem>>, vector<1x64xf32>
    %5 = vector.broadcast %4 : vector<1x64xf32> to vector<128x64xf32>
    %6 = arith.addf %3, %5 : vector<128x64xf32>
    %c0_5 = arith.constant 0 : index
    %c0_6 = arith.constant 0 : index
    %7 = vector.load %arg2[%c0_5, %c0_6] : memref<3x24xf32, #tpu.memory_space<vmem>>, vector<3x24xf32>
    %cst_7 = arith.constant dense<0.000000e+00> : vector<128x24xf32>
    %8 = tpu.matmul %0, %7, %cst_7 {dimension_numbers = #tpu.dot_dimension_numbers<[1], [0], [0], [1], [0, 0, 1, 1], [], []>} : vector<128x3xf32>, vector<3x24xf32>, vector<128x24xf32> -> vector<128x24xf32>
    %c0_8 = arith.constant 0 : index
    %c0_9 = arith.constant 0 : index
    %9 = vector.load %arg3[%c0_8, %c0_9] : memref<1x24xf32, #tpu.memory_space<vmem>>, vector<1x24xf32>
    %10 = vector.broadcast %9 : vector<1x24xf32> to vector<128x24xf32>
    %11 = arith.addf %8, %10 : vector<128x24xf32>
    %12 = math.sin %11 : vector<128x24xf32>
    %13 = arith.truncf %12 : vector<128x24xf32> to vector<128x24xbf16>
    %c0_10 = arith.constant 0 : index
    %c0_11 = arith.constant 0 : index
    %14 = vector.load %arg5[%c0_10, %c0_11] : memref<24x64xbf16, #tpu.memory_space<vmem>>, vector<24x64xbf16>
    %cst_12 = arith.constant dense<0.000000e+00> : vector<128x64xf32>
    %15 = tpu.matmul %13, %14, %cst_12 {dimension_numbers = #tpu.dot_dimension_numbers<[1], [0], [0], [1], [0, 0, 1, 1], [], []>} : vector<128x24xbf16>, vector<24x64xbf16>, vector<128x64xf32> -> vector<128x64xf32>
    %16 = arith.addf %6, %15 : vector<128x64xf32>
    %cst_13 = arith.constant 5.000000e-01 : f32
    %17 = vector.broadcast %cst_13 : f32 to vector<128x3xf32>
    %18 = arith.mulf %0, %17 : vector<128x3xf32>
    %cst_14 = arith.constant 5.000000e-01 : f32
    %19 = vector.broadcast %cst_14 : f32 to vector<128x3xf32>
    %20 = arith.addf %18, %19 : vector<128x3xf32>
    %cst_15 = arith.constant 3.000000e+00 : f32
    %21 = vector.broadcast %cst_15 : f32 to vector<128x3xf32>
    %22 = arith.mulf %20, %21 : vector<128x3xf32>
    %23 = math.floor %22 : vector<128x3xf32>
    %cst_16 = arith.constant 0.000000e+00 : f32
    %cst_17 = arith.constant 2.000000e+00 : f32
    %24 = vector.broadcast %cst_16 : f32 to vector<128x3xf32>
    %25 = arith.maximumf %24, %23 : vector<128x3xf32>
    %26 = vector.broadcast %cst_17 : f32 to vector<128x3xf32>
    %27 = arith.minimumf %26, %25 : vector<128x3xf32>
    %28 = arith.subf %22, %27 : vector<128x3xf32>
    %29 = arith.fptosi %27 : vector<128x3xf32> to vector<128x3xi32>
    %30 = vector.extract_strided_slice %29 {offsets = [0, 0], sizes = [128, 1], strides = [1, 1]} : vector<128x3xi32> to vector<128x1xi32>
    %31 = vector.extract_strided_slice %29 {offsets = [0, 1], sizes = [128, 1], strides = [1, 1]} : vector<128x3xi32> to vector<128x1xi32>
    %32 = vector.extract_strided_slice %29 {offsets = [0, 2], sizes = [128, 1], strides = [1, 1]} : vector<128x3xi32> to vector<128x1xi32>
    %33 = vector.extract_strided_slice %28 {offsets = [0, 0], sizes = [128, 1], strides = [1, 1]} : vector<128x3xf32> to vector<128x1xf32>
    %34 = vector.extract_strided_slice %28 {offsets = [0, 1], sizes = [128, 1], strides = [1, 1]} : vector<128x3xf32> to vector<128x1xf32>
    %35 = vector.extract_strided_slice %28 {offsets = [0, 2], sizes = [128, 1], strides = [1, 1]} : vector<128x3xf32> to vector<128x1xf32>
    %36 = tpu.iota {dimensions = array<i32: 1>} : vector<128x16xi32>
    %c2_i32 = arith.constant 2 : i32
    %37 = vector.broadcast %c2_i32 : i32 to vector<128x16xi32>
    %38 = arith.shrsi %36, %37 : vector<128x16xi32>
    %c3_i32 = arith.constant 3 : i32
    %39 = vector.broadcast %c3_i32 : i32 to vector<128x16xi32>
    %40 = arith.andi %36, %39 : vector<128x16xi32>
    %41 = vector.broadcast %31 : vector<128x1xi32> to vector<128x16xi32>
    %42 = arith.cmpi eq, %38, %41 : vector<128x16xi32>
    %cst_18 = arith.constant 1.000000e+00 : f32
    %43 = vector.broadcast %cst_18 : f32 to vector<128x1xf32>
    %44 = arith.subf %43, %34 : vector<128x1xf32>
    %cst_19 = arith.constant 0.000000e+00 : f32
    %45 = vector.shape_cast %44 : vector<128x1xf32> to vector<128x1xf32>
    %46 = vector.broadcast %45 : vector<128x1xf32> to vector<128x16xf32>
    %47 = vector.broadcast %cst_19 : f32 to vector<128x16xf32>
    %48 = arith.select %42, %46, %47 : vector<128x16xi1>, vector<128x16xf32>
    %c1_i32 = arith.constant 1 : i32
    %49 = vector.broadcast %c1_i32 : i32 to vector<128x1xi32>
    %50 = arith.addi %31, %49 : vector<128x1xi32>
    %51 = vector.broadcast %50 : vector<128x1xi32> to vector<128x16xi32>
    %52 = arith.cmpi eq, %38, %51 : vector<128x16xi32>
    %cst_20 = arith.constant 0.000000e+00 : f32
    %53 = vector.shape_cast %34 : vector<128x1xf32> to vector<128x1xf32>
    %54 = vector.broadcast %53 : vector<128x1xf32> to vector<128x16xf32>
    %55 = vector.broadcast %cst_20 : f32 to vector<128x16xf32>
    %56 = arith.select %52, %54, %55 : vector<128x16xi1>, vector<128x16xf32>
    %57 = arith.addf %48, %56 : vector<128x16xf32>
    %58 = vector.broadcast %32 : vector<128x1xi32> to vector<128x16xi32>
    %59 = arith.cmpi eq, %40, %58 : vector<128x16xi32>
    %cst_21 = arith.constant 1.000000e+00 : f32
    %60 = vector.broadcast %cst_21 : f32 to vector<128x1xf32>
    %61 = arith.subf %60, %35 : vector<128x1xf32>
    %cst_22 = arith.constant 0.000000e+00 : f32
    %62 = vector.shape_cast %61 : vector<128x1xf32> to vector<128x1xf32>
    %63 = vector.broadcast %62 : vector<128x1xf32> to vector<128x16xf32>
    %64 = vector.broadcast %cst_22 : f32 to vector<128x16xf32>
    %65 = arith.select %59, %63, %64 : vector<128x16xi1>, vector<128x16xf32>
    %c1_i32_23 = arith.constant 1 : i32
    %66 = vector.broadcast %c1_i32_23 : i32 to vector<128x1xi32>
    %67 = arith.addi %32, %66 : vector<128x1xi32>
    %68 = vector.broadcast %67 : vector<128x1xi32> to vector<128x16xi32>
    %69 = arith.cmpi eq, %40, %68 : vector<128x16xi32>
    %cst_24 = arith.constant 0.000000e+00 : f32
    %70 = vector.shape_cast %35 : vector<128x1xf32> to vector<128x1xf32>
    %71 = vector.broadcast %70 : vector<128x1xf32> to vector<128x16xf32>
    %72 = vector.broadcast %cst_24 : f32 to vector<128x16xf32>
    %73 = arith.select %69, %71, %72 : vector<128x16xi1>, vector<128x16xf32>
    %74 = arith.addf %65, %73 : vector<128x16xf32>
    %75 = arith.mulf %57, %74 : vector<128x16xf32>
    %76 = arith.truncf %75 : vector<128x16xf32> to vector<128x16xbf16>
    %c0_i32 = arith.constant 0 : i32
    %77 = vector.broadcast %c0_i32 : i32 to vector<128x1xi32>
    %78 = arith.cmpi eq, %30, %77 : vector<128x1xi32>
    %cst_25 = arith.constant 1.000000e+00 : f32
    %79 = vector.broadcast %cst_25 : f32 to vector<128x1xf32>
    %80 = arith.subf %79, %33 : vector<128x1xf32>
    %cst_26 = arith.constant 0.000000e+00 : f32
    %81 = vector.broadcast %cst_26 : f32 to vector<128x1xf32>
    %82 = arith.select %78, %80, %81 : vector<128x1xi1>, vector<128x1xf32>
    %c-1_i32 = arith.constant -1 : i32
    %83 = vector.broadcast %c-1_i32 : i32 to vector<128x1xi32>
    %84 = arith.cmpi eq, %30, %83 : vector<128x1xi32>
    %cst_27 = arith.constant 0.000000e+00 : f32
    %85 = vector.broadcast %cst_27 : f32 to vector<128x1xf32>
    %86 = arith.select %84, %33, %85 : vector<128x1xi1>, vector<128x1xf32>
    %87 = arith.addf %82, %86 : vector<128x1xf32>
    %c0_28 = arith.constant 0 : index
    %c0_29 = arith.constant 0 : index
    %88 = vector.load %arg6[%c0_28, %c0_29] : memref<64x64xbf16, #tpu.memory_space<vmem>>, vector<16x64xbf16>
    %cst_30 = arith.constant dense<0.000000e+00> : vector<128x64xf32>
    %89 = tpu.matmul %76, %88, %cst_30 {dimension_numbers = #tpu.dot_dimension_numbers<[1], [0], [0], [1], [0, 0, 1, 1], [], []>} : vector<128x16xbf16>, vector<16x64xbf16>, vector<128x64xf32> -> vector<128x64xf32>
    %90 = vector.broadcast %87 : vector<128x1xf32> to vector<128x64xf32>
    %91 = arith.mulf %90, %89 : vector<128x64xf32>
    %92 = arith.addf %16, %91 : vector<128x64xf32>
    %c1_i32_31 = arith.constant 1 : i32
    %93 = vector.broadcast %c1_i32_31 : i32 to vector<128x1xi32>
    %94 = arith.cmpi eq, %30, %93 : vector<128x1xi32>
    %cst_32 = arith.constant 1.000000e+00 : f32
    %95 = vector.broadcast %cst_32 : f32 to vector<128x1xf32>
    %96 = arith.subf %95, %33 : vector<128x1xf32>
    %cst_33 = arith.constant 0.000000e+00 : f32
    %97 = vector.broadcast %cst_33 : f32 to vector<128x1xf32>
    %98 = arith.select %94, %96, %97 : vector<128x1xi1>, vector<128x1xf32>
    %c0_i32_34 = arith.constant 0 : i32
    %99 = vector.broadcast %c0_i32_34 : i32 to vector<128x1xi32>
    %100 = arith.cmpi eq, %30, %99 : vector<128x1xi32>
    %cst_35 = arith.constant 0.000000e+00 : f32
    %101 = vector.broadcast %cst_35 : f32 to vector<128x1xf32>
    %102 = arith.select %100, %33, %101 : vector<128x1xi1>, vector<128x1xf32>
    %103 = arith.addf %98, %102 : vector<128x1xf32>
    %c16 = arith.constant 16 : index
    %c0_36 = arith.constant 0 : index
    %104 = vector.load %arg6[%c16, %c0_36] : memref<64x64xbf16, #tpu.memory_space<vmem>>, vector<16x64xbf16>
    %cst_37 = arith.constant dense<0.000000e+00> : vector<128x64xf32>
    %105 = tpu.matmul %76, %104, %cst_37 {dimension_numbers = #tpu.dot_dimension_numbers<[1], [0], [0], [1], [0, 0, 1, 1], [], []>} : vector<128x16xbf16>, vector<16x64xbf16>, vector<128x64xf32> -> vector<128x64xf32>
    %106 = vector.broadcast %103 : vector<128x1xf32> to vector<128x64xf32>
    %107 = arith.mulf %106, %105 : vector<128x64xf32>
    %108 = arith.addf %92, %107 : vector<128x64xf32>
    %c2_i32_38 = arith.constant 2 : i32
    %109 = vector.broadcast %c2_i32_38 : i32 to vector<128x1xi32>
    %110 = arith.cmpi eq, %30, %109 : vector<128x1xi32>
    %cst_39 = arith.constant 1.000000e+00 : f32
    %111 = vector.broadcast %cst_39 : f32 to vector<128x1xf32>
    %112 = arith.subf %111, %33 : vector<128x1xf32>
    %cst_40 = arith.constant 0.000000e+00 : f32
    %113 = vector.broadcast %cst_40 : f32 to vector<128x1xf32>
    %114 = arith.select %110, %112, %113 : vector<128x1xi1>, vector<128x1xf32>
    %c1_i32_41 = arith.constant 1 : i32
    %115 = vector.broadcast %c1_i32_41 : i32 to vector<128x1xi32>
    %116 = arith.cmpi eq, %30, %115 : vector<128x1xi32>
    %cst_42 = arith.constant 0.000000e+00 : f32
    %117 = vector.broadcast %cst_42 : f32 to vector<128x1xf32>
    %118 = arith.select %116, %33, %117 : vector<128x1xi1>, vector<128x1xf32>
    %119 = arith.addf %114, %118 : vector<128x1xf32>
    %c32 = arith.constant 32 : index
    %c0_43 = arith.constant 0 : index
    %120 = vector.load %arg6[%c32, %c0_43] : memref<64x64xbf16, #tpu.memory_space<vmem>>, vector<16x64xbf16>
    %cst_44 = arith.constant dense<0.000000e+00> : vector<128x64xf32>
    %121 = tpu.matmul %76, %120, %cst_44 {dimension_numbers = #tpu.dot_dimension_numbers<[1], [0], [0], [1], [0, 0, 1, 1], [], []>} : vector<128x16xbf16>, vector<16x64xbf16>, vector<128x64xf32> -> vector<128x64xf32>
    %122 = vector.broadcast %119 : vector<128x1xf32> to vector<128x64xf32>
    %123 = arith.mulf %122, %121 : vector<128x64xf32>
    %124 = arith.addf %108, %123 : vector<128x64xf32>
    %c3_i32_45 = arith.constant 3 : i32
    %125 = vector.broadcast %c3_i32_45 : i32 to vector<128x1xi32>
    %126 = arith.cmpi eq, %30, %125 : vector<128x1xi32>
    %cst_46 = arith.constant 1.000000e+00 : f32
    %127 = vector.broadcast %cst_46 : f32 to vector<128x1xf32>
    %128 = arith.subf %127, %33 : vector<128x1xf32>
    %cst_47 = arith.constant 0.000000e+00 : f32
    %129 = vector.broadcast %cst_47 : f32 to vector<128x1xf32>
    %130 = arith.select %126, %128, %129 : vector<128x1xi1>, vector<128x1xf32>
    %c2_i32_48 = arith.constant 2 : i32
    %131 = vector.broadcast %c2_i32_48 : i32 to vector<128x1xi32>
    %132 = arith.cmpi eq, %30, %131 : vector<128x1xi32>
    %cst_49 = arith.constant 0.000000e+00 : f32
    %133 = vector.broadcast %cst_49 : f32 to vector<128x1xf32>
    %134 = arith.select %132, %33, %133 : vector<128x1xi1>, vector<128x1xf32>
    %135 = arith.addf %130, %134 : vector<128x1xf32>
    %c48 = arith.constant 48 : index
    %c0_50 = arith.constant 0 : index
    %136 = vector.load %arg6[%c48, %c0_50] : memref<64x64xbf16, #tpu.memory_space<vmem>>, vector<16x64xbf16>
    %cst_51 = arith.constant dense<0.000000e+00> : vector<128x64xf32>
    %137 = tpu.matmul %76, %136, %cst_51 {dimension_numbers = #tpu.dot_dimension_numbers<[1], [0], [0], [1], [0, 0, 1, 1], [], []>} : vector<128x16xbf16>, vector<16x64xbf16>, vector<128x64xf32> -> vector<128x64xf32>
    %138 = vector.broadcast %135 : vector<128x1xf32> to vector<128x64xf32>
    %139 = arith.mulf %138, %137 : vector<128x64xf32>
    %140 = arith.addf %124, %139 : vector<128x64xf32>
    %cst_52 = arith.constant 5.000000e-01 : f32
    %141 = vector.broadcast %cst_52 : f32 to vector<128x3xf32>
    %142 = arith.mulf %0, %141 : vector<128x3xf32>
    %cst_53 = arith.constant 5.000000e-01 : f32
    %143 = vector.broadcast %cst_53 : f32 to vector<128x3xf32>
    %144 = arith.addf %142, %143 : vector<128x3xf32>
    %cst_54 = arith.constant 7.000000e+00 : f32
    %145 = vector.broadcast %cst_54 : f32 to vector<128x3xf32>
    %146 = arith.mulf %144, %145 : vector<128x3xf32>
    %147 = math.floor %146 : vector<128x3xf32>
    %cst_55 = arith.constant 0.000000e+00 : f32
    %cst_56 = arith.constant 6.000000e+00 : f32
    %148 = vector.broadcast %cst_55 : f32 to vector<128x3xf32>
    %149 = arith.maximumf %148, %147 : vector<128x3xf32>
    %150 = vector.broadcast %cst_56 : f32 to vector<128x3xf32>
    %151 = arith.minimumf %150, %149 : vector<128x3xf32>
    %152 = arith.subf %146, %151 : vector<128x3xf32>
    %153 = arith.fptosi %151 : vector<128x3xf32> to vector<128x3xi32>
    %154 = vector.extract_strided_slice %153 {offsets = [0, 0], sizes = [128, 1], strides = [1, 1]} : vector<128x3xi32> to vector<128x1xi32>
    %155 = vector.extract_strided_slice %153 {offsets = [0, 1], sizes = [128, 1], strides = [1, 1]} : vector<128x3xi32> to vector<128x1xi32>
    %156 = vector.extract_strided_slice %153 {offsets = [0, 2], sizes = [128, 1], strides = [1, 1]} : vector<128x3xi32> to vector<128x1xi32>
    %157 = vector.extract_strided_slice %152 {offsets = [0, 0], sizes = [128, 1], strides = [1, 1]} : vector<128x3xf32> to vector<128x1xf32>
    %158 = vector.extract_strided_slice %152 {offsets = [0, 1], sizes = [128, 1], strides = [1, 1]} : vector<128x3xf32> to vector<128x1xf32>
    %159 = vector.extract_strided_slice %152 {offsets = [0, 2], sizes = [128, 1], strides = [1, 1]} : vector<128x3xf32> to vector<128x1xf32>
    %160 = tpu.iota {dimensions = array<i32: 1>} : vector<128x64xi32>
    %c3_i32_57 = arith.constant 3 : i32
    %161 = vector.broadcast %c3_i32_57 : i32 to vector<128x64xi32>
    %162 = arith.shrsi %160, %161 : vector<128x64xi32>
    %c7_i32 = arith.constant 7 : i32
    %163 = vector.broadcast %c7_i32 : i32 to vector<128x64xi32>
    %164 = arith.andi %160, %163 : vector<128x64xi32>
    %165 = vector.broadcast %155 : vector<128x1xi32> to vector<128x64xi32>
    %166 = arith.cmpi eq, %162, %165 : vector<128x64xi32>
    %cst_58 = arith.constant 1.000000e+00 : f32
    %167 = vector.broadcast %cst_58 : f32 to vector<128x1xf32>
    %168 = arith.subf %167, %158 : vector<128x1xf32>
    %cst_59 = arith.constant 0.000000e+00 : f32
    %169 = vector.shape_cast %168 : vector<128x1xf32> to vector<128x1xf32>
    %170 = vector.broadcast %169 : vector<128x1xf32> to vector<128x64xf32>
    %171 = vector.broadcast %cst_59 : f32 to vector<128x64xf32>
    %172 = arith.select %166, %170, %171 : vector<128x64xi1>, vector<128x64xf32>
    %c1_i32_60 = arith.constant 1 : i32
    %173 = vector.broadcast %c1_i32_60 : i32 to vector<128x1xi32>
    %174 = arith.addi %155, %173 : vector<128x1xi32>
    %175 = vector.broadcast %174 : vector<128x1xi32> to vector<128x64xi32>
    %176 = arith.cmpi eq, %162, %175 : vector<128x64xi32>
    %cst_61 = arith.constant 0.000000e+00 : f32
    %177 = vector.shape_cast %158 : vector<128x1xf32> to vector<128x1xf32>
    %178 = vector.broadcast %177 : vector<128x1xf32> to vector<128x64xf32>
    %179 = vector.broadcast %cst_61 : f32 to vector<128x64xf32>
    %180 = arith.select %176, %178, %179 : vector<128x64xi1>, vector<128x64xf32>
    %181 = arith.addf %172, %180 : vector<128x64xf32>
    %182 = vector.broadcast %156 : vector<128x1xi32> to vector<128x64xi32>
    %183 = arith.cmpi eq, %164, %182 : vector<128x64xi32>
    %cst_62 = arith.constant 1.000000e+00 : f32
    %184 = vector.broadcast %cst_62 : f32 to vector<128x1xf32>
    %185 = arith.subf %184, %159 : vector<128x1xf32>
    %cst_63 = arith.constant 0.000000e+00 : f32
    %186 = vector.shape_cast %185 : vector<128x1xf32> to vector<128x1xf32>
    %187 = vector.broadcast %186 : vector<128x1xf32> to vector<128x64xf32>
    %188 = vector.broadcast %cst_63 : f32 to vector<128x64xf32>
    %189 = arith.select %183, %187, %188 : vector<128x64xi1>, vector<128x64xf32>
    %c1_i32_64 = arith.constant 1 : i32
    %190 = vector.broadcast %c1_i32_64 : i32 to vector<128x1xi32>
    %191 = arith.addi %156, %190 : vector<128x1xi32>
    %192 = vector.broadcast %191 : vector<128x1xi32> to vector<128x64xi32>
    %193 = arith.cmpi eq, %164, %192 : vector<128x64xi32>
    %cst_65 = arith.constant 0.000000e+00 : f32
    %194 = vector.shape_cast %159 : vector<128x1xf32> to vector<128x1xf32>
    %195 = vector.broadcast %194 : vector<128x1xf32> to vector<128x64xf32>
    %196 = vector.broadcast %cst_65 : f32 to vector<128x64xf32>
    %197 = arith.select %193, %195, %196 : vector<128x64xi1>, vector<128x64xf32>
    %198 = arith.addf %189, %197 : vector<128x64xf32>
    %199 = arith.mulf %181, %198 : vector<128x64xf32>
    %200 = arith.truncf %199 : vector<128x64xf32> to vector<128x64xbf16>
    %c0_i32_66 = arith.constant 0 : i32
    %201 = vector.broadcast %c0_i32_66 : i32 to vector<128x1xi32>
    %202 = arith.cmpi eq, %154, %201 : vector<128x1xi32>
    %cst_67 = arith.constant 1.000000e+00 : f32
    %203 = vector.broadcast %cst_67 : f32 to vector<128x1xf32>
    %204 = arith.subf %203, %157 : vector<128x1xf32>
    %cst_68 = arith.constant 0.000000e+00 : f32
    %205 = vector.broadcast %cst_68 : f32 to vector<128x1xf32>
    %206 = arith.select %202, %204, %205 : vector<128x1xi1>, vector<128x1xf32>
    %c-1_i32_69 = arith.constant -1 : i32
    %207 = vector.broadcast %c-1_i32_69 : i32 to vector<128x1xi32>
    %208 = arith.cmpi eq, %154, %207 : vector<128x1xi32>
    %cst_70 = arith.constant 0.000000e+00 : f32
    %209 = vector.broadcast %cst_70 : f32 to vector<128x1xf32>
    %210 = arith.select %208, %157, %209 : vector<128x1xi1>, vector<128x1xf32>
    %211 = arith.addf %206, %210 : vector<128x1xf32>
    %c0_71 = arith.constant 0 : index
    %c0_72 = arith.constant 0 : index
    %212 = vector.load %arg7[%c0_71, %c0_72] : memref<512x64xbf16, #tpu.memory_space<vmem>>, vector<64x64xbf16>
    %cst_73 = arith.constant dense<0.000000e+00> : vector<128x64xf32>
    %213 = tpu.matmul %200, %212, %cst_73 {dimension_numbers = #tpu.dot_dimension_numbers<[1], [0], [0], [1], [0, 0, 1, 1], [], []>} : vector<128x64xbf16>, vector<64x64xbf16>, vector<128x64xf32> -> vector<128x64xf32>
    %214 = vector.broadcast %211 : vector<128x1xf32> to vector<128x64xf32>
    %215 = arith.mulf %214, %213 : vector<128x64xf32>
    %216 = arith.addf %140, %215 : vector<128x64xf32>
    %c1_i32_74 = arith.constant 1 : i32
    %217 = vector.broadcast %c1_i32_74 : i32 to vector<128x1xi32>
    %218 = arith.cmpi eq, %154, %217 : vector<128x1xi32>
    %cst_75 = arith.constant 1.000000e+00 : f32
    %219 = vector.broadcast %cst_75 : f32 to vector<128x1xf32>
    %220 = arith.subf %219, %157 : vector<128x1xf32>
    %cst_76 = arith.constant 0.000000e+00 : f32
    %221 = vector.broadcast %cst_76 : f32 to vector<128x1xf32>
    %222 = arith.select %218, %220, %221 : vector<128x1xi1>, vector<128x1xf32>
    %c0_i32_77 = arith.constant 0 : i32
    %223 = vector.broadcast %c0_i32_77 : i32 to vector<128x1xi32>
    %224 = arith.cmpi eq, %154, %223 : vector<128x1xi32>
    %cst_78 = arith.constant 0.000000e+00 : f32
    %225 = vector.broadcast %cst_78 : f32 to vector<128x1xf32>
    %226 = arith.select %224, %157, %225 : vector<128x1xi1>, vector<128x1xf32>
    %227 = arith.addf %222, %226 : vector<128x1xf32>
    %c64 = arith.constant 64 : index
    %c0_79 = arith.constant 0 : index
    %228 = vector.load %arg7[%c64, %c0_79] : memref<512x64xbf16, #tpu.memory_space<vmem>>, vector<64x64xbf16>
    %cst_80 = arith.constant dense<0.000000e+00> : vector<128x64xf32>
    %229 = tpu.matmul %200, %228, %cst_80 {dimension_numbers = #tpu.dot_dimension_numbers<[1], [0], [0], [1], [0, 0, 1, 1], [], []>} : vector<128x64xbf16>, vector<64x64xbf16>, vector<128x64xf32> -> vector<128x64xf32>
    %230 = vector.broadcast %227 : vector<128x1xf32> to vector<128x64xf32>
    %231 = arith.mulf %230, %229 : vector<128x64xf32>
    %232 = arith.addf %216, %231 : vector<128x64xf32>
    %c2_i32_81 = arith.constant 2 : i32
    %233 = vector.broadcast %c2_i32_81 : i32 to vector<128x1xi32>
    %234 = arith.cmpi eq, %154, %233 : vector<128x1xi32>
    %cst_82 = arith.constant 1.000000e+00 : f32
    %235 = vector.broadcast %cst_82 : f32 to vector<128x1xf32>
    %236 = arith.subf %235, %157 : vector<128x1xf32>
    %cst_83 = arith.constant 0.000000e+00 : f32
    %237 = vector.broadcast %cst_83 : f32 to vector<128x1xf32>
    %238 = arith.select %234, %236, %237 : vector<128x1xi1>, vector<128x1xf32>
    %c1_i32_84 = arith.constant 1 : i32
    %239 = vector.broadcast %c1_i32_84 : i32 to vector<128x1xi32>
    %240 = arith.cmpi eq, %154, %239 : vector<128x1xi32>
    %cst_85 = arith.constant 0.000000e+00 : f32
    %241 = vector.broadcast %cst_85 : f32 to vector<128x1xf32>
    %242 = arith.select %240, %157, %241 : vector<128x1xi1>, vector<128x1xf32>
    %243 = arith.addf %238, %242 : vector<128x1xf32>
    %c128 = arith.constant 128 : index
    %c0_86 = arith.constant 0 : index
    %244 = vector.load %arg7[%c128, %c0_86] : memref<512x64xbf16, #tpu.memory_space<vmem>>, vector<64x64xbf16>
    %cst_87 = arith.constant dense<0.000000e+00> : vector<128x64xf32>
    %245 = tpu.matmul %200, %244, %cst_87 {dimension_numbers = #tpu.dot_dimension_numbers<[1], [0], [0], [1], [0, 0, 1, 1], [], []>} : vector<128x64xbf16>, vector<64x64xbf16>, vector<128x64xf32> -> vector<128x64xf32>
    %246 = vector.broadcast %243 : vector<128x1xf32> to vector<128x64xf32>
    %247 = arith.mulf %246, %245 : vector<128x64xf32>
    %248 = arith.addf %232, %247 : vector<128x64xf32>
    %c3_i32_88 = arith.constant 3 : i32
    %249 = vector.broadcast %c3_i32_88 : i32 to vector<128x1xi32>
    %250 = arith.cmpi eq, %154, %249 : vector<128x1xi32>
    %cst_89 = arith.constant 1.000000e+00 : f32
    %251 = vector.broadcast %cst_89 : f32 to vector<128x1xf32>
    %252 = arith.subf %251, %157 : vector<128x1xf32>
    %cst_90 = arith.constant 0.000000e+00 : f32
    %253 = vector.broadcast %cst_90 : f32 to vector<128x1xf32>
    %254 = arith.select %250, %252, %253 : vector<128x1xi1>, vector<128x1xf32>
    %c2_i32_91 = arith.constant 2 : i32
    %255 = vector.broadcast %c2_i32_91 : i32 to vector<128x1xi32>
    %256 = arith.cmpi eq, %154, %255 : vector<128x1xi32>
    %cst_92 = arith.constant 0.000000e+00 : f32
    %257 = vector.broadcast %cst_92 : f32 to vector<128x1xf32>
    %258 = arith.select %256, %157, %257 : vector<128x1xi1>, vector<128x1xf32>
    %259 = arith.addf %254, %258 : vector<128x1xf32>
    %c192 = arith.constant 192 : index
    %c0_93 = arith.constant 0 : index
    %260 = vector.load %arg7[%c192, %c0_93] : memref<512x64xbf16, #tpu.memory_space<vmem>>, vector<64x64xbf16>
    %cst_94 = arith.constant dense<0.000000e+00> : vector<128x64xf32>
    %261 = tpu.matmul %200, %260, %cst_94 {dimension_numbers = #tpu.dot_dimension_numbers<[1], [0], [0], [1], [0, 0, 1, 1], [], []>} : vector<128x64xbf16>, vector<64x64xbf16>, vector<128x64xf32> -> vector<128x64xf32>
    %262 = vector.broadcast %259 : vector<128x1xf32> to vector<128x64xf32>
    %263 = arith.mulf %262, %261 : vector<128x64xf32>
    %264 = arith.addf %248, %263 : vector<128x64xf32>
    %c4_i32 = arith.constant 4 : i32
    %265 = vector.broadcast %c4_i32 : i32 to vector<128x1xi32>
    %266 = arith.cmpi eq, %154, %265 : vector<128x1xi32>
    %cst_95 = arith.constant 1.000000e+00 : f32
    %267 = vector.broadcast %cst_95 : f32 to vector<128x1xf32>
    %268 = arith.subf %267, %157 : vector<128x1xf32>
    %cst_96 = arith.constant 0.000000e+00 : f32
    %269 = vector.broadcast %cst_96 : f32 to vector<128x1xf32>
    %270 = arith.select %266, %268, %269 : vector<128x1xi1>, vector<128x1xf32>
    %c3_i32_97 = arith.constant 3 : i32
    %271 = vector.broadcast %c3_i32_97 : i32 to vector<128x1xi32>
    %272 = arith.cmpi eq, %154, %271 : vector<128x1xi32>
    %cst_98 = arith.constant 0.000000e+00 : f32
    %273 = vector.broadcast %cst_98 : f32 to vector<128x1xf32>
    %274 = arith.select %272, %157, %273 : vector<128x1xi1>, vector<128x1xf32>
    %275 = arith.addf %270, %274 : vector<128x1xf32>
    %c256 = arith.constant 256 : index
    %c0_99 = arith.constant 0 : index
    %276 = vector.load %arg7[%c256, %c0_99] : memref<512x64xbf16, #tpu.memory_space<vmem>>, vector<64x64xbf16>
    %cst_100 = arith.constant dense<0.000000e+00> : vector<128x64xf32>
    %277 = tpu.matmul %200, %276, %cst_100 {dimension_numbers = #tpu.dot_dimension_numbers<[1], [0], [0], [1], [0, 0, 1, 1], [], []>} : vector<128x64xbf16>, vector<64x64xbf16>, vector<128x64xf32> -> vector<128x64xf32>
    %278 = vector.broadcast %275 : vector<128x1xf32> to vector<128x64xf32>
    %279 = arith.mulf %278, %277 : vector<128x64xf32>
    %280 = arith.addf %264, %279 : vector<128x64xf32>
    %c5_i32 = arith.constant 5 : i32
    %281 = vector.broadcast %c5_i32 : i32 to vector<128x1xi32>
    %282 = arith.cmpi eq, %154, %281 : vector<128x1xi32>
    %cst_101 = arith.constant 1.000000e+00 : f32
    %283 = vector.broadcast %cst_101 : f32 to vector<128x1xf32>
    %284 = arith.subf %283, %157 : vector<128x1xf32>
    %cst_102 = arith.constant 0.000000e+00 : f32
    %285 = vector.broadcast %cst_102 : f32 to vector<128x1xf32>
    %286 = arith.select %282, %284, %285 : vector<128x1xi1>, vector<128x1xf32>
    %c4_i32_103 = arith.constant 4 : i32
    %287 = vector.broadcast %c4_i32_103 : i32 to vector<128x1xi32>
    %288 = arith.cmpi eq, %154, %287 : vector<128x1xi32>
    %cst_104 = arith.constant 0.000000e+00 : f32
    %289 = vector.broadcast %cst_104 : f32 to vector<128x1xf32>
    %290 = arith.select %288, %157, %289 : vector<128x1xi1>, vector<128x1xf32>
    %291 = arith.addf %286, %290 : vector<128x1xf32>
    %c320 = arith.constant 320 : index
    %c0_105 = arith.constant 0 : index
    %292 = vector.load %arg7[%c320, %c0_105] : memref<512x64xbf16, #tpu.memory_space<vmem>>, vector<64x64xbf16>
    %cst_106 = arith.constant dense<0.000000e+00> : vector<128x64xf32>
    %293 = tpu.matmul %200, %292, %cst_106 {dimension_numbers = #tpu.dot_dimension_numbers<[1], [0], [0], [1], [0, 0, 1, 1], [], []>} : vector<128x64xbf16>, vector<64x64xbf16>, vector<128x64xf32> -> vector<128x64xf32>
    %294 = vector.broadcast %291 : vector<128x1xf32> to vector<128x64xf32>
    %295 = arith.mulf %294, %293 : vector<128x64xf32>
    %296 = arith.addf %280, %295 : vector<128x64xf32>
    %c6_i32 = arith.constant 6 : i32
    %297 = vector.broadcast %c6_i32 : i32 to vector<128x1xi32>
    %298 = arith.cmpi eq, %154, %297 : vector<128x1xi32>
    %cst_107 = arith.constant 1.000000e+00 : f32
    %299 = vector.broadcast %cst_107 : f32 to vector<128x1xf32>
    %300 = arith.subf %299, %157 : vector<128x1xf32>
    %cst_108 = arith.constant 0.000000e+00 : f32
    %301 = vector.broadcast %cst_108 : f32 to vector<128x1xf32>
    %302 = arith.select %298, %300, %301 : vector<128x1xi1>, vector<128x1xf32>
    %c5_i32_109 = arith.constant 5 : i32
    %303 = vector.broadcast %c5_i32_109 : i32 to vector<128x1xi32>
    %304 = arith.cmpi eq, %154, %303 : vector<128x1xi32>
    %cst_110 = arith.constant 0.000000e+00 : f32
    %305 = vector.broadcast %cst_110 : f32 to vector<128x1xf32>
    %306 = arith.select %304, %157, %305 : vector<128x1xi1>, vector<128x1xf32>
    %307 = arith.addf %302, %306 : vector<128x1xf32>
    %c384 = arith.constant 384 : index
    %c0_111 = arith.constant 0 : index
    %308 = vector.load %arg7[%c384, %c0_111] : memref<512x64xbf16, #tpu.memory_space<vmem>>, vector<64x64xbf16>
    %cst_112 = arith.constant dense<0.000000e+00> : vector<128x64xf32>
    %309 = tpu.matmul %200, %308, %cst_112 {dimension_numbers = #tpu.dot_dimension_numbers<[1], [0], [0], [1], [0, 0, 1, 1], [], []>} : vector<128x64xbf16>, vector<64x64xbf16>, vector<128x64xf32> -> vector<128x64xf32>
    %310 = vector.broadcast %307 : vector<128x1xf32> to vector<128x64xf32>
    %311 = arith.mulf %310, %309 : vector<128x64xf32>
    %312 = arith.addf %296, %311 : vector<128x64xf32>
    %c7_i32_113 = arith.constant 7 : i32
    %313 = vector.broadcast %c7_i32_113 : i32 to vector<128x1xi32>
    %314 = arith.cmpi eq, %154, %313 : vector<128x1xi32>
    %cst_114 = arith.constant 1.000000e+00 : f32
    %315 = vector.broadcast %cst_114 : f32 to vector<128x1xf32>
    %316 = arith.subf %315, %157 : vector<128x1xf32>
    %cst_115 = arith.constant 0.000000e+00 : f32
    %317 = vector.broadcast %cst_115 : f32 to vector<128x1xf32>
    %318 = arith.select %314, %316, %317 : vector<128x1xi1>, vector<128x1xf32>
    %c6_i32_116 = arith.constant 6 : i32
    %319 = vector.broadcast %c6_i32_116 : i32 to vector<128x1xi32>
    %320 = arith.cmpi eq, %154, %319 : vector<128x1xi32>
    %cst_117 = arith.constant 0.000000e+00 : f32
    %321 = vector.broadcast %cst_117 : f32 to vector<128x1xf32>
    %322 = arith.select %320, %157, %321 : vector<128x1xi1>, vector<128x1xf32>
    %323 = arith.addf %318, %322 : vector<128x1xf32>
    %c448 = arith.constant 448 : index
    %c0_118 = arith.constant 0 : index
    %324 = vector.load %arg7[%c448, %c0_118] : memref<512x64xbf16, #tpu.memory_space<vmem>>, vector<64x64xbf16>
    %cst_119 = arith.constant dense<0.000000e+00> : vector<128x64xf32>
    %325 = tpu.matmul %200, %324, %cst_119 {dimension_numbers = #tpu.dot_dimension_numbers<[1], [0], [0], [1], [0, 0, 1, 1], [], []>} : vector<128x64xbf16>, vector<64x64xbf16>, vector<128x64xf32> -> vector<128x64xf32>
    %326 = vector.broadcast %323 : vector<128x1xf32> to vector<128x64xf32>
    %327 = arith.mulf %326, %325 : vector<128x64xf32>
    %328 = arith.addf %312, %327 : vector<128x64xf32>
    %cst_120 = arith.constant 0.000000e+00 : f32
    %329 = vector.broadcast %cst_120 : f32 to vector<128x64xf32>
    %330 = arith.maximumf %328, %329 : vector<128x64xf32>
    %331 = arith.truncf %330 : vector<128x64xf32> to vector<128x64xbf16>
    %c0_121 = arith.constant 0 : index
    %c0_122 = arith.constant 0 : index
    %332 = vector.load %arg9[%c0_121, %c0_122] : memref<64x16xbf16, #tpu.memory_space<vmem>>, vector<64x16xbf16>
    %cst_123 = arith.constant dense<0.000000e+00> : vector<128x16xf32>
    %333 = tpu.matmul %331, %332, %cst_123 {dimension_numbers = #tpu.dot_dimension_numbers<[1], [0], [0], [1], [0, 0, 1, 1], [], []>} : vector<128x64xbf16>, vector<64x16xbf16>, vector<128x16xf32> -> vector<128x16xf32>
    %c0_124 = arith.constant 0 : index
    %c0_125 = arith.constant 0 : index
    %334 = vector.load %arg10[%c0_124, %c0_125] : memref<1x16xf32, #tpu.memory_space<vmem>>, vector<1x16xf32>
    %335 = vector.broadcast %334 : vector<1x16xf32> to vector<128x16xf32>
    %336 = arith.addf %333, %335 : vector<128x16xf32>
    %c0_126 = arith.constant 0 : index
    %c0_127 = arith.constant 0 : index
    %337 = vector.load %arg11[%c0_126, %c0_127] : memref<128x16xf32, #tpu.memory_space<vmem>>, vector<128x16xf32>
    tpu.vector_store %arg11[%c0_126, %c0_127], %336 {strides = array<i32>} : memref<128x16xf32, #tpu.memory_space<vmem>>, vector<128x16xf32>,
    return
  }
  func.func @transform_0(%arg0: i32) -> (i32, i32) {
    %c0_i32 = arith.constant 0 : i32
    %c0_i32_0 = arith.constant 0 : i32
    return %arg0, %c0_i32 : i32, i32
  }
  func.func @transform_1(%arg0: i32) -> (i32, i32) {
    %c0_i32 = arith.constant 0 : i32
    %c0_i32_0 = arith.constant 0 : i32
    %c0_i32_1 = arith.constant 0 : i32
    return %c0_i32, %c0_i32_0 : i32, i32
  }
  func.func @transform_2(%arg0: i32) -> (i32, i32) {
    %c0_i32 = arith.constant 0 : i32
    %c0_i32_0 = arith.constant 0 : i32
    %c0_i32_1 = arith.constant 0 : i32
    return %c0_i32, %c0_i32_0 : i32, i32
  }
  func.func @transform_3(%arg0: i32) -> (i32, i32) {
    %c0_i32 = arith.constant 0 : i32
    %c0_i32_0 = arith.constant 0 : i32
    %c0_i32_1 = arith.constant 0 : i32
    return %c0_i32, %c0_i32_0 : i32, i32
  }
  func.func @transform_4(%arg0: i32) -> (i32, i32) {
    %c0_i32 = arith.constant 0 : i32
    %c0_i32_0 = arith.constant 0 : i32
    %c0_i32_1 = arith.constant 0 : i32
    return %c0_i32, %c0_i32_0 : i32, i32
  }
  func.func @transform_5(%arg0: i32) -> (i32, i32) {
    %c0_i32 = arith.constant 0 : i32
    %c0_i32_0 = arith.constant 0 : i32
    %c0_i32_1 = arith.constant 0 : i32
    return %c0_i32, %c0_i32_0 : i32, i32
  }
  func.func @transform_6(%arg0: i32) -> (i32, i32) {
    %c0_i32 = arith.constant 0 : i32
    %c0_i32_0 = arith.constant 0 : i32
    %c0_i32_1 = arith.constant 0 : i32
    return %c0_i32, %c0_i32_0 : i32, i32
  }
  func.func @transform_7(%arg0: i32) -> (i32, i32) {
    %c0_i32 = arith.constant 0 : i32
    %c0_i32_0 = arith.constant 0 : i32
    %c0_i32_1 = arith.constant 0 : i32
    return %c0_i32, %c0_i32_0 : i32, i32
  }
  func.func @transform_8(%arg0: i32) -> (i32, i32) {
    %c0_i32 = arith.constant 0 : i32
    %c0_i32_0 = arith.constant 0 : i32
    %c0_i32_1 = arith.constant 0 : i32
    return %c0_i32, %c0_i32_0 : i32, i32
  }
  func.func @transform_9(%arg0: i32) -> (i32, i32) {
    %c0_i32 = arith.constant 0 : i32
    %c0_i32_0 = arith.constant 0 : i32
    %c0_i32_1 = arith.constant 0 : i32
    return %c0_i32, %c0_i32_0 : i32, i32
  }
  func.func @transform_10(%arg0: i32) -> (i32, i32) {
    %c0_i32 = arith.constant 0 : i32
    %c0_i32_0 = arith.constant 0 : i32
    return %arg0, %c0_i32 : i32, i32
  }
}

</mosaic_0001>

<llo_original>
// kernel: lotd_sdf_forward.1
$region0: #{lotd_sdf_forward.1}
  #allocation0 [shape = 'u32[]', space=smem, size = 0x4, offset = 0x4, fixed_abs, tag = 'smem constant byte address 0x4 - core index']
  #allocation1 [shape = 'u32[144,128]{1,0:T(1,128)}', space=vmem, size = 0x12000, scoped, tag = 'internal scratch']
  %s0 = inlined_call_operand.vmem [shape: f32[256,3], index: 0, kind: input, shape index: {}]
  %s1 = inlined_call_operand.vmem [shape: f32[3,24], index: 1, kind: input, shape index: {}]
  %s2 = inlined_call_operand.vmem [shape: f32[1,24], index: 2, kind: input, shape index: {}]
  %s3 = inlined_call_operand.vmem [shape: bf16[3,64], index: 3, kind: input, shape index: {}]
  %s4 = inlined_call_operand.vmem [shape: bf16[24,64], index: 4, kind: input, shape index: {}]
  %s5 = inlined_call_operand.vmem [shape: bf16[64,64], index: 5, kind: input, shape index: {}]
  %s6 = inlined_call_operand.vmem [shape: bf16[512,64], index: 6, kind: input, shape index: {}]
  %s7 = inlined_call_operand.vmem [shape: f32[1,64], index: 7, kind: input, shape index: {}]
  %s8 = inlined_call_operand.vmem [shape: bf16[64,16], index: 8, kind: input, shape index: {}]
  %s9 = inlined_call_operand.vmem [shape: f32[1,16], index: 9, kind: input, shape index: {}]
  %s10 = inlined_call_operand.vmem [shape: f32[256,16], index: 10, kind: output, shape index: {}]
  %s11 = sld [smem:[#allocation0]]
  $region73: #{lotd_sdf_forward.1} parent=0
    _
  %s13 = ssub.s32 1, %s11
  %s14 = scalar_select 0, %s13, %s11
  loop: start=0, step=1, limit=4
  $region2: #{lotd_sdf_forward.1} parent=0 // loop_pre_header
    _
  $region3: #{lotd_sdf_forward.1} parent=0 // loop_header
    %s16 = sphi 0, %s20
    %p17 = scmp.ge.s32.totalorder %s16, 4
    %s26 = sphi 0, %s28
    %s29 = sphi 0, %s26
    %s30 = sphi 0, %s29
    %s46 = sphi 0, %s30
    %s50 = sphi 0, %s50
    %s52 = sphi 0, %s50
    %s53 = sphi 0, %s52
    %s67 = sphi 0, %s53
    %s71 = sphi 0, %s71
    %s73 = sphi 0, %s71
    %s74 = sphi 0, %s73
    %s88 = sphi 0, %s74
    %s92 = sphi 0, %s92
    %s94 = sphi 0, %s92
    %s95 = sphi 0, %s94
    %s109 = sphi 0, %s95
    %s113 = sphi 0, %s113
    %s115 = sphi 0, %s113
    %s116 = sphi 0, %s115
    %s130 = sphi 0, %s116
    %s134 = sphi 0, %s134
    %s136 = sphi 0, %s134
    %s137 = sphi 0, %s136
    %s151 = sphi 0, %s137
    %s155 = sphi 0, %s155
    %s157 = sphi 0, %s155
    %s158 = sphi 0, %s157
    %s172 = sphi 0, %s158
    %s176 = sphi 0, %s176
    %s178 = sphi 0, %s176
    %s179 = sphi 0, %s178
    %s193 = sphi 0, %s179
    %s197 = sphi 0, %s197
    %s199 = sphi 0, %s197
    %s200 = sphi 0, %s199
    %s214 = sphi 0, %s200
    %s218 = sphi 0, %s218
    %s220 = sphi 0, %s218
    %s221 = sphi 0, %s220
    %s235 = sphi 0, %s221
    %s241 = sphi 0, %s243
    %s244 = sphi 0, %s241
    %s245 = sphi 0, %s244
    %s261 = sphi 0, %s245
  $region4: #{lotd_sdf_forward.1} parent=0 // loop_header_branch
    %19 = sbr.rel (%p17) target = $region8
  $region5: #{lotd_sdf_forward.1} parent=0 // loop_body
    %s21 = ssub.s32 %s16, 1
    %s22 = ssub.s32 %s16, 2
    %s23 = sadd.s32 %s16, 1
    %s24 = ssub.s32 %s16, %s23
    %p25 = scmp.eq.s32.totalorder %s24, 0
    %s27 = sadd.s32 %s26, 1
    %s28 = scalar_select %p25, %s26, %s27
    %p31 = pneg %p25
    %p32 = scmp.eq.s32.totalorder %s16, 1
    %p33 = por %p31, %p32
    %p34 = scmp.ne.s32.totalorder %s26, %s29
    %p35 = scmp.eq.s32.totalorder %s16, 0
    %p36 = por %p34, %p35
    %p37 = scmp.ne.s32.totalorder %s26, %s29
    %p38 = scmp.eq.s32.totalorder %s21, 1
    %p39 = por %p37, %p38
    %p40 = scmp.ne.s32.totalorder %s29, %s30
    %p41 = scmp.eq.s32.totalorder %s21, 0
    %p42 = por %p40, %p41
    %p43 = scmp.ne.s32.totalorder %s29, %s30
    %p44 = scmp.eq.s32.totalorder %s22, 1
    %p45 = por %p43, %p44
    %p47 = scmp.ne.s32.totalorder %s30, %s46
    %p48 = scmp.eq.s32.totalorder %s22, 0
    %p49 = por %p47, %p48
    %s51 = sadd.s32 %s50, 1
    %p54 = scmp.eq.s32.totalorder %s16, 1
    %p55 = scmp.ne.s32.totalorder %s50, %s52
    %p56 = scmp.eq.s32.totalorder %s16, 0
    %p57 = por %p55, %p56
    %p58 = scmp.ne.s32.totalorder %s50, %s52
    %p59 = scmp.eq.s32.totalorder %s21, 1
    %p60 = por %p58, %p59
    %p61 = scmp.ne.s32.totalorder %s52, %s53
    %p62 = scmp.eq.s32.totalorder %s21, 0
    %p63 = por %p61, %p62
    %p64 = scmp.ne.s32.totalorder %s52, %s53
    %p65 = scmp.eq.s32.totalorder %s22, 1
    %p66 = por %p64, %p65
    %p68 = scmp.ne.s32.totalorder %s53, %s67
    %p69 = scmp.eq.s32.totalorder %s22, 0
    %p70 = por %p68, %p69
    %s72 = sadd.s32 %s71, 1
    %p75 = scmp.eq.s32.totalorder %s16, 1
    %p76 = scmp.ne.s32.totalorder %s71, %s73
    %p77 = scmp.eq.s32.totalorder %s16, 0
    %p78 = por %p76, %p77
    %p79 = scmp.ne.s32.totalorder %s71, %s73
    %p80 = scmp.eq.s32.totalorder %s21, 1
    %p81 = por %p79, %p80
    %p82 = scmp.ne.s32.totalorder %s73, %s74
    %p83 = scmp.eq.s32.totalorder %s21, 0
    %p84 = por %p82, %p83
    %p85 = scmp.ne.s32.totalorder %s73, %s74
    %p86 = scmp.eq.s32.totalorder %s22, 1
    %p87 = por %p85, %p86
    %p89 = scmp.ne.s32.totalorder %s74, %s88
    %p90 = scmp.eq.s32.totalorder %s22, 0
    %p91 = por %p89, %p90
    %s93 = sadd.s32 %s92, 1
    %p96 = scmp.eq.s32.totalorder %s16, 1
    %p97 = scmp.ne.s32.totalorder %s92, %s94
    %p98 = scmp.eq.s32.totalorder %s16, 0
    %p99 = por %p97, %p98
    %p100 = scmp.ne.s32.totalorder %s92, %s94
    %p101 = scmp.eq.s32.totalorder %s21, 1
    %p102 = por %p100, %p101
    %p103 = scmp.ne.s32.totalorder %s94, %s95
    %p104 = scmp.eq.s32.totalorder %s21, 0
    %p105 = por %p103, %p104
    %p106 = scmp.ne.s32.totalorder %s94, %s95
    %p107 = scmp.eq.s32.totalorder %s22, 1
    %p108 = por %p106, %p107
    %p110 = scmp.ne.s32.totalorder %s95, %s109
    %p111 = scmp.eq.s32.totalorder %s22, 0
    %p112 = por %p110, %p111
    %s114 = sadd.s32 %s113, 1
    %p117 = scmp.eq.s32.totalorder %s16, 1
    %p118 = scmp.ne.s32.totalorder %s113, %s115
    %p119 = scmp.eq.s32.totalorder %s16, 0
    %p120 = por %p118, %p119
    %p121 = scmp.ne.s32.totalorder %s113, %s115
    %p122 = scmp.eq.s32.totalorder %s21, 1
    %p123 = por %p121, %p122
    %p124 = scmp.ne.s32.totalorder %s115, %s116
    %p125 = scmp.eq.s32.totalorder %s21, 0
    %p126 = por %p124, %p125
    %p127 = scmp.ne.s32.totalorder %s115, %s116
    %p128 = scmp.eq.s32.totalorder %s22, 1
    %p129 = por %p127, %p128
    %p131 = scmp.ne.s32.totalorder %s116, %s130
    %p132 = scmp.eq.s32.totalorder %s22, 0
    %p133 = por %p131, %p132
    %s135 = sadd.s32 %s134, 1
    %p138 = scmp.eq.s32.totalorder %s16, 1
    %p139 = scmp.ne.s32.totalorder %s134, %s136
    %p140 = scmp.eq.s32.totalorder %s16, 0
    %p141 = por %p139, %p140
    %p142 = scmp.ne.s32.totalorder %s134, %s136
    %p143 = scmp.eq.s32.totalorder %s21, 1
    %p144 = por %p142, %p143
    %p145 = scmp.ne.s32.totalorder %s136, %s137
    %p146 = scmp.eq.s32.totalorder %s21, 0
    %p147 = por %p145, %p146
    %p148 = scmp.ne.s32.totalorder %s136, %s137
    %p149 = scmp.eq.s32.totalorder %s22, 1
    %p150 = por %p148, %p149
    %p152 = scmp.ne.s32.totalorder %s137, %s151
    %p153 = scmp.eq.s32.totalorder %s22, 0
    %p154 = por %p152, %p153
    %s156 = sadd.s32 %s155, 1
    %p159 = scmp.eq.s32.totalorder %s16, 1
    %p160 = scmp.ne.s32.totalorder %s155, %s157
    %p161 = scmp.eq.s32.totalorder %s16, 0
    %p162 = por %p160, %p161
    %p163 = scmp.ne.s32.totalorder %s155, %s157
    %p164 = scmp.eq.s32.totalorder %s21, 1
    %p165 = por %p163, %p164
    %p166 = scmp.ne.s32.totalorder %s157, %s158
    %p167 = scmp.eq.s32.totalorder %s21, 0
    %p168 = por %p166, %p167
    %p169 = scmp.ne.s32.totalorder %s157, %s158
    %p170 = scmp.eq.s32.totalorder %s22, 1
    %p171 = por %p169, %p170
    %p173 = scmp.ne.s32.totalorder %s158, %s172
    %p174 = scmp.eq.s32.totalorder %s22, 0
    %p175 = por %p173, %p174
    %s177 = sadd.s32 %s176, 1
    %p180 = scmp.eq.s32.totalorder %s16, 1
    %p181 = scmp.ne.s32.totalorder %s176, %s178
    %p182 = scmp.eq.s32.totalorder %s16, 0
    %p183 = por %p181, %p182
    %p184 = scmp.ne.s32.totalorder %s176, %s178
    %p185 = scmp.eq.s32.totalorder %s21, 1
    %p186 = por %p184, %p185
    %p187 = scmp.ne.s32.totalorder %s178, %s179
    %p188 = scmp.eq.s32.totalorder %s21, 0
    %p189 = por %p187, %p188
    %p190 = scmp.ne.s32.totalorder %s178, %s179
    %p191 = scmp.eq.s32.totalorder %s22, 1
    %p192 = por %p190, %p191
    %p194 = scmp.ne.s32.totalorder %s179, %s193
    %p195 = scmp.eq.s32.totalorder %s22, 0
    %p196 = por %p194, %p195
    %s198 = sadd.s32 %s197, 1
    %p201 = scmp.eq.s32.totalorder %s16, 1
    %p202 = scmp.ne.s32.totalorder %s197, %s199
    %p203 = scmp.eq.s32.totalorder %s16, 0
    %p204 = por %p202, %p203
    %p205 = scmp.ne.s32.totalorder %s197, %s199
    %p206 = scmp.eq.s32.totalorder %s21, 1
    %p207 = por %p205, %p206
    %p208 = scmp.ne.s32.totalorder %s199, %s200
    %p209 = scmp.eq.s32.totalorder %s21, 0
    %p210 = por %p208, %p209
    %p211 = scmp.ne.s32.totalorder %s199, %s200
    %p212 = scmp.eq.s32.totalorder %s22, 1
    %p213 = por %p211, %p212
    %p215 = scmp.ne.s32.totalorder %s200, %s214
    %p216 = scmp.eq.s32.totalorder %s22, 0
    %p217 = por %p215, %p216
    %s219 = sadd.s32 %s218, 1
    %p222 = scmp.eq.s32.totalorder %s16, 1
    %p223 = scmp.ne.s32.totalorder %s218, %s220
    %p224 = scmp.eq.s32.totalorder %s16, 0
    %p225 = por %p223, %p224
    %p226 = scmp.ne.s32.totalorder %s218, %s220
    %p227 = scmp.eq.s32.totalorder %s21, 1
    %p228 = por %p226, %p227
    %p229 = scmp.ne.s32.totalorder %s220, %s221
    %p230 = scmp.eq.s32.totalorder %s21, 0
    %p231 = por %p229, %p230
    %p232 = scmp.ne.s32.totalorder %s220, %s221
    %p233 = scmp.eq.s32.totalorder %s22, 1
    %p234 = por %p232, %p233
    %p236 = scmp.ne.s32.totalorder %s221, %s235
    %p237 = scmp.eq.s32.totalorder %s22, 0
    %p238 = por %p236, %p237
    %s239 = ssub.s32 %s16, %s23
    %p240 = scmp.eq.s32.totalorder %s239, 0
    %s242 = sadd.s32 %s241, 1
    %s243 = scalar_select %p240, %s241, %s242
    %p246 = pneg %p240
    %p247 = scmp.eq.s32.totalorder %s16, 1
    %p248 = por %p246, %p247
    %p249 = scmp.ne.s32.totalorder %s241, %s244
    %p250 = scmp.eq.s32.totalorder %s16, 0
    %p251 = por %p249, %p250
    %p252 = scmp.ne.s32.totalorder %s241, %s244
    %p253 = scmp.eq.s32.totalorder %s21, 1
    %p254 = por %p252, %p253
    %p255 = scmp.ne.s32.totalorder %s244, %s245
    %p256 = scmp.eq.s32.totalorder %s21, 0
    %p257 = por %p255, %p256
    %p258 = scmp.ne.s32.totalorder %s244, %s245
    %p259 = scmp.eq.s32.totalorder %s22, 1
    %p260 = por %p258, %p259
    %p262 = scmp.ne.s32.totalorder %s245, %s261
    %p263 = scmp.eq.s32.totalorder %s22, 0
    %p264 = por %p262, %p263
    %p265 = scmp.le.s32.totalorder 1, %s16
    %p266 = scmp.lt.s32.totalorder %s16, 3
    %p267 = pnand %p265, %p266
    %p268 = pneg %p267
    // Predicated region
    $region9: #{lotd_sdf_forward.1} parent=5 // pred_check
      _
    $region10: #{lotd_sdf_forward.1} parent=5 // pred_check_branch
      %270 = sbr.rel (%p267) target = $region12
    $region11: #{lotd_sdf_forward.1} parent=5 // pred_region
      %s271 = ssub.s32 %s16, 1
      // Predicated region
      $region13: #{lotd_sdf_forward.1} parent=11 // pred_check
        %p272 = pneg %p63
      $region14: #{lotd_sdf_forward.1} parent=11 // pred_check_branch
        %274 = sbr.rel (%p272) target = $region16
      $region15: #{lotd_sdf_forward.1} parent=11 // pred_region
        _
      $region16: #{lotd_sdf_forward.1} parent=11 // pred_fallthru
        _
      // Predicated region
      $region17: #{lotd_sdf_forward.1} parent=11 // pred_check
        %p275 = pneg %p84
      $region18: #{lotd_sdf_forward.1} parent=11 // pred_check_branch
        %277 = sbr.rel (%p275) target = $region20
      $region19: #{lotd_sdf_forward.1} parent=11 // pred_region
        _
      $region20: #{lotd_sdf_forward.1} parent=11 // pred_fallthru
        _
      // Predicated region
      $region21: #{lotd_sdf_forward.1} parent=11 // pred_check
        %p278 = pneg %p105
      $region22: #{lotd_sdf_forward.1} parent=11 // pred_check_branch
        %280 = sbr.rel (%p278) target = $region24
      $region23: #{lotd_sdf_forward.1} parent=11 // pred_region
        _
      $region24: #{lotd_sdf_forward.1} parent=11 // pred_fallthru
        _
      // Predicated region
      $region25: #{lotd_sdf_forward.1} parent=11 // pred_check
        %p281 = pneg %p126
      $region26: #{lotd_sdf_forward.1} parent=11 // pred_check_branch
        %283 = sbr.rel (%p281) target = $region28
      $region27: #{lotd_sdf_forward.1} parent=11 // pred_region
        _
      $region28: #{lotd_sdf_forward.1} parent=11 // pred_fallthru
        _
      // Predicated region
      $region29: #{lotd_sdf_forward.1} parent=11 // pred_check
        %p284 = pneg %p147
      $region30: #{lotd_sdf_forward.1} parent=11 // pred_check_branch
        %286 = sbr.rel (%p284) target = $region32
      $region31: #{lotd_sdf_forward.1} parent=11 // pred_region
        _
      $region32: #{lotd_sdf_forward.1} parent=11 // pred_fallthru
        _
      // Predicated region
      $region33: #{lotd_sdf_forward.1} parent=11 // pred_check
        %p287 = pneg %p168
      $region34: #{lotd_sdf_forward.1} parent=11 // pred_check_branch
        %289 = sbr.rel (%p287) target = $region36
      $region35: #{lotd_sdf_forward.1} parent=11 // pred_region
        _
      $region36: #{lotd_sdf_forward.1} parent=11 // pred_fallthru
        _
      // Predicated region
      $region37: #{lotd_sdf_forward.1} parent=11 // pred_check
        %p290 = pneg %p189
      $region38: #{lotd_sdf_forward.1} parent=11 // pred_check_branch
        %292 = sbr.rel (%p290) target = $region40
      $region39: #{lotd_sdf_forward.1} parent=11 // pred_region
        _
      $region40: #{lotd_sdf_forward.1} parent=11 // pred_fallthru
        _
      // Predicated region
      $region41: #{lotd_sdf_forward.1} parent=11 // pred_check
        %p293 = pneg %p210
      $region42: #{lotd_sdf_forward.1} parent=11 // pred_check_branch
        %295 = sbr.rel (%p293) target = $region44
      $region43: #{lotd_sdf_forward.1} parent=11 // pred_region
        _
      $region44: #{lotd_sdf_forward.1} parent=11 // pred_fallthru
        _
      // Predicated region
      $region45: #{lotd_sdf_forward.1} parent=11 // pred_check
        %p296 = pneg %p231
      $region46: #{lotd_sdf_forward.1} parent=11 // pred_check_branch
        %298 = sbr.rel (%p296) target = $region48
      $region47: #{lotd_sdf_forward.1} parent=11 // pred_region
        _
      $region48: #{lotd_sdf_forward.1} parent=11 // pred_fallthru
        _
    $region12: #{lotd_sdf_forward.1} parent=5 // pred_fallthru
      _
    %p299 = scmp.lt.s32.totalorder %s16, 2
    // Predicated region
    $region49: #{lotd_sdf_forward.1} parent=5 // pred_check
      %p300 = pneg %p299
    $region50: #{lotd_sdf_forward.1} parent=5 // pred_check_branch
      %302 = sbr.rel (%p300) target = $region52
    $region51: #{lotd_sdf_forward.1} parent=5 // pred_region
      // Predicated region
      $region53: #{lotd_sdf_forward.1} parent=51 // pred_check
        %p303 = pneg %p36
      $region54: #{lotd_sdf_forward.1} parent=51 // pred_check_branch
        %305 = sbr.rel (%p303) target = $region56
      $region55: #{lotd_sdf_forward.1} parent=51 // pred_region
        %s306 = smul.u32 16, %s16
        %p307 = scmp.lt.s32.totalorder %s306, 31
        %s308 = scalar_select %p307, %s306, 31
        %s309 = smul.addr %s308, 8
        %s310 = scalar_lea.vmem %s0, %s309
        %s311 = smul.u32 16, %s16
      $region56: #{lotd_sdf_forward.1} parent=51 // pred_fallthru
        _
    $region52: #{lotd_sdf_forward.1} parent=5 // pred_fallthru
      _
    %p312 = scmp.le.s32.totalorder 1, %s16
    %p313 = scmp.lt.s32.totalorder %s16, 3
    %p314 = pnand %p312, %p313
    %p315 = pneg %p314
    // Predicated region
    $region57: #{lotd_sdf_forward.1} parent=5 // pred_check
      _
    $region58: #{lotd_sdf_forward.1} parent=5 // pred_check_branch
      %317 = sbr.rel (%p314) target = $region60
    $region59: #{lotd_sdf_forward.1} parent=5 // pred_region
      %s318 = ssub.s32 %s16, 1
      %s319 = smul.u32 16, %s21
      %p320 = scmp.lt.s32.totalorder %s319, 31
      %s321 = scalar_select %p320, %s319, 31
      %s322 = smul.addr %s321, 8
      %s323 = scalar_lea.vmem %s0, %s322
      %p324 = pneg %p42
      %p325 = pneg %p39
      %p326 = pneg %p63
      %p327 = pneg %p60
      %p328 = pneg %p84
      %p329 = pneg %p81
      %p330 = pneg %p105
      %p331 = pneg %p102
      %p332 = pneg %p126
      %p333 = pneg %p123
      %p334 = pneg %p147
      %p335 = pneg %p144
      %p336 = pneg %p168
      %p337 = pneg %p165
      %p338 = pneg %p189
      %p339 = pneg %p186
      %p340 = pneg %p210
      %p341 = pneg %p207
      %p342 = pneg %p231
      %p343 = pneg %p228
      %p344 = pneg %p257
      %p345 = pneg %p254
      %s346 = smul.u32 16, %s21
      %p347 = scmp.lt.s32.totalorder %s346, 31
      %s348 = scalar_select %p347, %s346, 31
      %s349 = smul.addr %s348, 8
      %s350 = scalar_lea.vmem %s10, %s349
      %s351 = smul.u32 16, %s21
      %p352 = scmp.lt.s32.totalorder %s351, 31
      %s353 = scalar_select %p352, %s351, 31
      %s354 = smul.addr %s353, 8
      %s355 = scalar_lea.vmem %s0, %s354
      %s356 = smul.u32 16, %s21
      %s357 = smul.u32 16, %s21
      %p358 = scmp.lt.s32.totalorder %s357, 31
      %s359 = scalar_select %p358, %s357, 31
      %s360 = smul.addr %s359, 8
      %s361 = scalar_lea.vmem %s10, %s360
      %s362 = smul.u32 16, %s21
      %v364 = vld [vmem:[%s355] sm:$0xff]
      %v365 = vld [vmem:[%s355 + $0x8] sm:$0xff]
      %v366 = vld [vmem:[%s355 + $0x10] sm:$0xff]
      %v367 = vld [vmem:[%s355 + $0x18] sm:$0xff]
      %v368 = vld [vmem:[%s355 + $0x20] sm:$0xff]
      %v369 = vld [vmem:[%s355 + $0x28] sm:$0xff]
      %v370 = vld [vmem:[%s355 + $0x30] sm:$0xff]
      %v371 = vld [vmem:[%s355 + $0x38] sm:$0xff]
      %v372 = vld [vmem:[%s355 + $0x40] sm:$0xff]
      %v373 = vld [vmem:[%s355 + $0x48] sm:$0xff]
      %v374 = vld [vmem:[%s355 + $0x50] sm:$0xff]
      %v375 = vld [vmem:[%s355 + $0x58] sm:$0xff]
      %v376 = vld [vmem:[%s355 + $0x60] sm:$0xff]
      %v377 = vld [vmem:[%s355 + $0x68] sm:$0xff]
      %v378 = vld [vmem:[%s355 + $0x70] sm:$0xff]
      %v379 = vld [vmem:[%s355 + $0x78] sm:$0xff]
      %v380 = vpack.c.bf16 %v365, %v364
      %v381 = vpack.c.bf16 %v367, %v366
      %v382 = vpack.c.bf16 %v369, %v368
      %v383 = vpack.c.bf16 %v371, %v370
      %v384 = vpack.c.bf16 %v373, %v372
      %v385 = vpack.c.bf16 %v375, %v374
      %v386 = vpack.c.bf16 %v377, %v376
      %v387 = vpack.c.bf16 %v379, %v378
      %v388 = vld [vmem:[%s3] sm:$0x3]
      %v389 = vld [vmem:[%s7] sm:$0x1]
      %v391 = vlaneseq
      %v392 = vshrl.u32 %v391, 7
      %v393 = vsub.s32 0, %v392
      %v394 = vrot.slane %v389, %v393
      %vm396 = vcmask 23552
      %v398 = vsel %vm396, %v380, 0
      %v401 = vsel %vm396, %v381, 0
      %v404 = vsel %vm396, %v382, 0
      %v407 = vsel %vm396, %v383, 0
      %v410 = vsel %vm396, %v384, 0
      %v413 = vsel %vm396, %v385, 0
      %v416 = vsel %vm396, %v386, 0
      %v419 = vsel %vm396, %v387, 0
      %vm421 = vcmask 1040384
      %vm422 = vcmask 1041408
      %v423 = vsel %vm421, 4294967295, 65535
      %v424 = vsel %vm422, %v423, 0
      %v426 = vand.u32 %v388, %v424
      %428 = vmatprep.subr.bf16.mxu0 0
      %429 = vmatpush1.bf16.msra.mxu0 0
      %430 = vmatprep.subr.bf16.mxu0 0
      %431 = vmatpush1.bf16.msra.mxu0 0
      %432 = vmatprep.subr.bf16.mxu0 0
      %433 = vmatpush1.bf16.msra.mxu0 0
      %434 = vmatprep.subr.bf16.mxu0 0
      %435 = vmatpush1.bf16.msra.mxu0 0
      %436 = vmatprep.subr.bf16.mxu0 0
      %437 = vmatpush1.bf16.msra.mxu0 0
      %438 = vmatprep.subr.bf16.mxu0 0
      %439 = vmatpush1.bf16.msra.mxu0 0
      %440 = vmatprep.subr.bf16.mxu0 0
      %441 = vmatpush1.bf16.msra.mxu0 0
      %442 = vmatprep.subr.bf16.mxu0 0
      %443 = vmatpush1.bf16.msra.mxu0 %v426
      %444 = vmatprep.subr.bf16.mxu0 0
      %445 = vmatpush2.bf16.msra.mxu0 0
      %446 = vmatprep.subr.bf16.mxu0 0
      %447 = vmatpush2.bf16.msra.mxu0 0
      %448 = vmatprep.subr.bf16.mxu0 0
      %449 = vmatpush2.bf16.msra.mxu0 0
      %450 = vmatprep.subr.bf16.mxu0 0
      %451 = vmatpush2.bf16.msra.mxu0 0
      %452 = vmatprep.subr.bf16.mxu0 0
      %453 = vmatpush2.bf16.msra.mxu0 0
      %454 = vmatprep.subr.bf16.mxu0 0
      %455 = vmatpush2.bf16.msra.mxu0 0
      %456 = vmatprep.subr.bf16.mxu0 0
      %457 = vmatpush2.bf16.msra.mxu0 0
      %458 = vmatprep.subr.bf16.mxu0 0
      %459 = vmatpush2.bf16.msra.mxu0 0
      %460 = vmatprep.mubr.bf16.mxu0 0
      %461 = vmatmul.mubr.bf16.gmra.mxu0 %v398
      %v462 = vpop.f32.mrf.mxu0
      %v463 = vadd.f32 %v394, %v462
      %v464 = vpop.f32.mrf.mxu0
      %v465 = vpop.f32.mrf.mxu0
      %v466 = vadd.f32 %v394, %v465
      %v467 = vpop.f32.mrf.mxu0
      %468 = vmatprep.mubr.bf16.mxu0 0
      %469 = vmatmul.mubr.bf16.gmra.mxu0 %v401
      %v470 = vpop.f32.mrf.mxu0
      %v471 = vadd.f32 %v394, %v470
      %v472 = vpop.f32.mrf.mxu0
      %v473 = vpop.f32.mrf.mxu0
      %v474 = vadd.f32 %v394, %v473
      %v475 = vpop.f32.mrf.mxu0
      %476 = vmatprep.mubr.bf16.mxu0 0
      %477 = vmatmul.mubr.bf16.gmra.mxu0 %v404
      %v478 = vpop.f32.mrf.mxu0
      %v479 = vadd.f32 %v394, %v478
      %v480 = vpop.f32.mrf.mxu0
      %v481 = vpop.f32.mrf.mxu0
      %v482 = vadd.f32 %v394, %v481
      %v483 = vpop.f32.mrf.mxu0
      %484 = vmatprep.mubr.bf16.mxu0 0
      %485 = vmatmul.mubr.bf16.gmra.mxu0 %v407
      %v486 = vpop.f32.mrf.mxu0
      %v487 = vadd.f32 %v394, %v486
      %v488 = vpop.f32.mrf.mxu0
      %v489 = vpop.f32.mrf.mxu0
      %v490 = vadd.f32 %v394, %v489
      %v491 = vpop.f32.mrf.mxu0
      %492 = vmatprep.mubr.bf16.mxu0 0
      %493 = vmatmul.mubr.bf16.gmra.mxu0 %v410
      %v494 = vpop.f32.mrf.mxu0
      %v495 = vadd.f32 %v394, %v494
      %v496 = vpop.f32.mrf.mxu0
      %v497 = vpop.f32.mrf.mxu0
      %v498 = vadd.f32 %v394, %v497
      %v499 = vpop.f32.mrf.mxu0
      %500 = vmatprep.mubr.bf16.mxu0 0
      %501 = vmatmul.mubr.bf16.gmra.mxu0 %v413
      %v502 = vpop.f32.mrf.mxu0
      %v503 = vadd.f32 %v394, %v502
      %v504 = vpop.f32.mrf.mxu0
      %v505 = vpop.f32.mrf.mxu0
      %v506 = vadd.f32 %v394, %v505
      %v507 = vpop.f32.mrf.mxu0
      %508 = vmatprep.mubr.bf16.mxu0 0
      %509 = vmatmul.mubr.bf16.gmra.mxu0 %v416
      %v510 = vpop.f32.mrf.mxu0
      %v511 = vadd.f32 %v394, %v510
      %v512 = vpop.f32.mrf.mxu0
      %v513 = vpop.f32.mrf.mxu0
      %v514 = vadd.f32 %v394, %v513
      %v515 = vpop.f32.mrf.mxu0
      %516 = vmatprep.mubr.bf16.mxu0 0
      %517 = vmatmul.mubr.bf16.gmra.mxu0 %v419
      %v518 = vpop.f32.mrf.mxu0
      %v519 = vadd.f32 %v394, %v518
      %v520 = vpop.f32.mrf.mxu0
      %v521 = vpop.f32.mrf.mxu0
      %v522 = vadd.f32 %v394, %v521
      %v523 = vpop.f32.mrf.mxu0
      %524 = vdwg.mxu0
      %v525 = vld [vmem:[%s1] sm:$0x7]
      %v526 = vld [vmem:[%s2] sm:$0x1]
      %v528 = vlaneseq
      %v529 = vshrl.u32 %v528, 7
      %v530 = vsub.s32 0, %v529
      %v531 = vrot.slane %v526, %v530
      %v534 = vsel %vm396, %v364, 0
      %v537 = vsel %vm396, %v365, 0
      %v540 = vsel %vm396, %v366, 0
      %v543 = vsel %vm396, %v367, 0
      %v546 = vsel %vm396, %v368, 0
      %v549 = vsel %vm396, %v369, 0
      %v552 = vsel %vm396, %v370, 0
      %v555 = vsel %vm396, %v371, 0
      %v558 = vsel %vm396, %v372, 0
      %v561 = vsel %vm396, %v373, 0
      %v564 = vsel %vm396, %v374, 0
      %v567 = vsel %vm396, %v375, 0
      %v570 = vsel %vm396, %v376, 0
      %v573 = vsel %vm396, %v377, 0
      %v576 = vsel %vm396, %v378, 0
      %v579 = vsel %vm396, %v379, 0
      %vm581 = vcmask 1042432
      %v583 = vsel %vm581, %v525, 0
      %585 = vmatprep.subr.mxu0 0.0
      %586 = vmatpush1.msra.mxu0 0.0
      %587 = vmatprep.subr.mxu0 0.0
      %588 = vmatpush1.msra.mxu0 0.0
      %589 = vmatprep.subr.mxu0 0.0
      %590 = vmatpush1.msra.mxu0 0.0
      %591 = vmatprep.subr.mxu0 0.0
      %592 = vmatpush1.msra.mxu0 0.0
      %593 = vmatprep.subr.mxu0 0.0
      %594 = vmatpush1.msra.mxu0 0.0
      %595 = vmatprep.subr.mxu0 0.0
      %596 = vmatpush1.msra.mxu0 0.0
      %597 = vmatprep.subr.mxu0 0.0
      %598 = vmatpush1.msra.mxu0 0.0
      %599 = vmatprep.subr.mxu0 0.0
      %600 = vmatpush1.msra.mxu0 0.0
      %601 = vmatprep.subr.mxu0 0.0
      %602 = vmatpush1.msra.mxu0 0.0
      %603 = vmatprep.subr.mxu0 0.0
      %604 = vmatpush1.msra.mxu0 0.0
      %605 = vmatprep.subr.mxu0 0.0
      %606 = vmatpush1.msra.mxu0 0.0
      %607 = vmatprep.subr.mxu0 0.0
      %608 = vmatpush1.msra.mxu0 0.0
      %609 = vmatprep.subr.mxu0 0.0
      %610 = vmatpush1.msra.mxu0 0.0
      %611 = vmatprep.subr.mxu0 0.0
      %612 = vmatpush1.msra.mxu0 0.0
      %613 = vmatprep.subr.mxu0 0.0
      %614 = vmatpush1.msra.mxu0 0.0
      %615 = vmatprep.subr.mxu0 0.0
      %616 = vmatpush1.msra.mxu0 %v583
      %617 = vmatprep.subr.mxu0 0.0
      %618 = vmatpush2.msra.mxu0 0.0
      %619 = vmatprep.subr.mxu0 0.0
      %620 = vmatpush2.msra.mxu0 0.0
      %621 = vmatprep.subr.mxu0 0.0
      %622 = vmatpush2.msra.mxu0 0.0
      %623 = vmatprep.subr.mxu0 0.0
      %624 = vmatpush2.msra.mxu0 0.0
      %625 = vmatprep.subr.mxu0 0.0
      %626 = vmatpush2.msra.mxu0 0.0
      %627 = vmatprep.subr.mxu0 0.0
      %628 = vmatpush2.msra.mxu0 0.0
      %629 = vmatprep.subr.mxu0 0.0
      %630 = vmatpush2.msra.mxu0 0.0
      %631 = vmatprep.subr.mxu0 0.0
      %632 = vmatpush2.msra.mxu0 0.0
      %633 = vmatprep.subr.mxu0 0.0
      %634 = vmatpush2.msra.mxu0 0.0
      %635 = vmatprep.subr.mxu0 0.0
      %636 = vmatpush2.msra.mxu0 0.0
      %637 = vmatprep.subr.mxu0 0.0
      %638 = vmatpush2.msra.mxu0 0.0
      %639 = vmatprep.subr.mxu0 0.0
      %640 = vmatpush2.msra.mxu0 0.0
      %641 = vmatprep.subr.mxu0 0.0
      %642 = vmatpush2.msra.mxu0 0.0
      %643 = vmatprep.subr.mxu0 0.0
      %644 = vmatpush2.msra.mxu0 0.0
      %645 = vmatprep.subr.mxu0 0.0
      %646 = vmatpush2.msra.mxu0 0.0
      %647 = vmatprep.subr.mxu0 0.0
      %648 = vmatpush2.msra.mxu0 0.0
      %649 = vmatprep.mubr.f32.mxu0 0.0
      %650 = vmatmul.mubr.f32.gmra.mxu0 %v534
      %v651 = vpop.f32.mrf.mxu0
      %v652 = vadd.f32 %v531, %v651
      %v653 = vpop.f32.mrf.mxu0
      %654 = vmatprep.mubr.f32.mxu0 0.0
      %655 = vmatmul.mubr.f32.gmra.mxu0 %v537
      %v656 = vpop.f32.mrf.mxu0
      %v657 = vadd.f32 %v531, %v656
      %v658 = vpop.f32.mrf.mxu0
      %659 = vmatprep.mubr.f32.mxu0 0.0
      %660 = vmatmul.mubr.f32.gmra.mxu0 %v540
      %v661 = vpop.f32.mrf.mxu0
      %v662 = vadd.f32 %v531, %v661
      %v663 = vpop.f32.mrf.mxu0
      %664 = vmatprep.mubr.f32.mxu0 0.0
      %665 = vmatmul.mubr.f32.gmra.mxu0 %v543
      %v666 = vpop.f32.mrf.mxu0
      %v667 = vadd.f32 %v531, %v666
      %v668 = vpop.f32.mrf.mxu0
      %669 = vmatprep.mubr.f32.mxu0 0.0
      %670 = vmatmul.mubr.f32.gmra.mxu0 %v546
      %v671 = vpop.f32.mrf.mxu0
      %v672 = vadd.f32 %v531, %v671
      %v673 = vpop.f32.mrf.mxu0
      %674 = vmatprep.mubr.f32.mxu0 0.0
      %675 = vmatmul.mubr.f32.gmra.mxu0 %v549
      %v676 = vpop.f32.mrf.mxu0
      %v677 = vadd.f32 %v531, %v676
      %v678 = vpop.f32.mrf.mxu0
      %679 = vmatprep.mubr.f32.mxu0 0.0
      %680 = vmatmul.mubr.f32.gmra.mxu0 %v552
      %v681 = vpop.f32.mrf.mxu0
      %v682 = vadd.f32 %v531, %v681
      %v683 = vpop.f32.mrf.mxu0
      %684 = vmatprep.mubr.f32.mxu0 0.0
      %685 = vmatmul.mubr.f32.gmra.mxu0 %v555
      %v686 = vpop.f32.mrf.mxu0
      %v687 = vadd.f32 %v531, %v686
      %v688 = vpop.f32.mrf.mxu0
      %689 = vmatprep.mubr.f32.mxu0 0.0
      %690 = vmatmul.mubr.f32.gmra.mxu0 %v558
      %v691 = vpop.f32.mrf.mxu0
      %v692 = vadd.f32 %v531, %v691
      %v693 = vpop.f32.mrf.mxu0
      %694 = vmatprep.mubr.f32.mxu0 0.0
      %695 = vmatmul.mubr.f32.gmra.mxu0 %v561
      %v696 = vpop.f32.mrf.mxu0
      %v697 = vadd.f32 %v531, %v696
      %v698 = vpop.f32.mrf.mxu0
      %699 = vmatprep.mubr.f32.mxu0 0.0
      %700 = vmatmul.mubr.f32.gmra.mxu0 %v564
      %v701 = vpop.f32.mrf.mxu0
      %v702 = vadd.f32 %v531, %v701
      %v703 = vpop.f32.mrf.mxu0
      %704 = vmatprep.mubr.f32.mxu0 0.0
      %705 = vmatmul.mubr.f32.gmra.mxu0 %v567
      %v706 = vpop.f32.mrf.mxu0
      %v707 = vadd.f32 %v531, %v706
      %v708 = vpop.f32.mrf.mxu0
      %709 = vmatprep.mubr.f32.mxu0 0.0
      %710 = vmatmul.mubr.f32.gmra.mxu0 %v570
      %v711 = vpop.f32.mrf.mxu0
      %v712 = vadd.f32 %v531, %v711
      %v713 = vpop.f32.mrf.mxu0
      %714 = vmatprep.mubr.f32.mxu0 0.0
      %715 = vmatmul.mubr.f32.gmra.mxu0 %v573
      %v716 = vpop.f32.mrf.mxu0
      %v717 = vadd.f32 %v531, %v716
      %v718 = vpop.f32.mrf.mxu0
      %719 = vmatprep.mubr.f32.mxu0 0.0
      %720 = vmatmul.mubr.f32.gmra.mxu0 %v576
      %v721 = vpop.f32.mrf.mxu0
      %v722 = vadd.f32 %v531, %v721
      %v723 = vpop.f32.mrf.mxu0
      %724 = vmatprep.mubr.f32.mxu0 0.0
      %725 = vmatmul.mubr.f32.gmra.mxu0 %v579
      %v726 = vpop.f32.mrf.mxu0
      %v727 = vadd.f32 %v531, %v726
      %v728 = vpop.f32.mrf.mxu0
      %729 = vdwg.mxu0
      %v730 = vand.u32 2147483647, %v652
      %vm731 = vcmp.le.f32.partialorder %v730, 0.7853982
      %vm732 = vcmp.lt.s32.totalorder %v652, 0
      %v733 = vand.u32 %v652, 2139095040
      %v734 = vshrl.u32 %v733, 23
      %v735 = vsub.s32 %v734, 127
      %v736 = vand.u32 2147483647, %v652
      %v737 = vand.u32 %v736, 8388607
      %v738 = vor.u32 %v737, 8388608
      %v739 = vsub.s32 0, %v738
      %v740 = vadd.s32 %v735, 1
      %vm741 = vcmp.gt.s32.totalorder %v740, 0
      %v742 = vsel %vm741, %v740, 0
      %v743 = vshrl.u32 %v742, 5
      %v744 = vand.u32 %v742, 31
      %v745 = vsub.s32 32, %v744
      %v746 = vshrl.u32 683565275, %v745
      %v747 = vshll.u32 683565275, %v744
      %v748 = vshrl.u32 2475754826, %v745
      %v749 = vor.u32 %v747, %v748
      %v750 = vshll.u32 2475754826, %v744
      %v751 = vshrl.u32 2131351028, %v745
      %v752 = vor.u32 %v750, %v751
      %v753 = vshll.u32 2131351028, %v744
      %v754 = vshrl.u32 2102212464, %v745
      %v755 = vor.u32 %v753, %v754
      %v756 = vshll.u32 2102212464, %v744
      %v757 = vshrl.u32 920167782, %v745
      %v758 = vor.u32 %v756, %v757
      %v759 = vshll.u32 920167782, %v744
      %v760 = vshrl.u32 1326507024, %v745
      %v761 = vor.u32 %v759, %v760
      %vm762 = vcmp.lt.s32.totalorder %v743, 1
      %vm763 = vcmp.lt.s32.totalorder %v743, 2
      %vm764 = vcmp.lt.s32.totalorder %v743, 3
      %vm765 = vcmp.lt.s32.totalorder %v743, 4
      %v766 = vsel %vm762, %v746, %v749
      %v767 = vsel %vm765, %v755, 2102212464
      %v768 = vsel %vm764, %v752, %v767
      %v769 = vsel %vm763, %v766, %v768
      %v770 = vsel %vm762, %v749, %v752
      %v771 = vsel %vm765, %v758, 920167782
      %v772 = vsel %vm764, %v755, %v771
      %v773 = vsel %vm763, %v770, %v772
      %v774 = vsel %vm762, %v752, %v755
      %v775 = vsel %vm765, %v761, 1326507024
      %v776 = vsel %vm764, %v758, %v775
      %v777 = vsel %vm763, %v774, %v776
      %v778 = vshll.u32 %v738, 8
      %v779 = vmul.u32.u64.compose %v778, %v777
      %v780 = vextract.low.u32 %v779
      %v781 = vextract.high.u32 %v779
      %v782 = vmul.u32.u64.compose %v778, %v773
      %v783 = vextract.low.u32 %v782
      %v784 = vextract.high.u32 %v782
      %v785 = vmul.u32 %v778, %v769
      %v786 = vadd.s32 %v781, %v783
      %vm787 = vc.u32 %v781, %v783
      %v788 = vadd.s32 %v784, 1
      %v789 = vsel %vm787, %v788, %v784
      %v790 = vadd.s32 %v785, %v789
      %v791 = vadd.s32 %v790, 536870912
      %v792 = vshrl.u32 %v791, 30
      %v793 = vshll.u32 %v792, 30
      %v794 = vsub.s32 %v790, %v793
      %vm795 = vcmp.lt.s32.totalorder %v794, 0
      %v796 = vsub.s32 0, %v794
      %v797 = vsel %vm795, %v796, %v794
      %v798 = vclz %v797
      %v799 = vsub.s32 %v798, 2
      %vm800 = vcmp.gt.s32.totalorder 0, %v799
      %v801 = vsel %vm800, 0, %v799
      %v802 = vsub.s32 32, %v801
      %v803 = vshll.u32 %v794, %v801
      %v804 = vshrl.u32 %v786, %v802
      %v805 = vor.u32 %v803, %v804
      %v806 = vsub.s32 4294967266, %v801
      %v807 = vadd.s32 %v806, 127
      %v808 = vshll.u32 %v807, 23
      %v809 = vor.u32 4788187, %v808
      %v810 = vand.u32 2147483647, %v809
      %v812 = vcvt.s32.f32 %v805
      %v813 = vmul.f32 %v812, %v810
      %v814 = vxor.u32 %v813, 2147483648
      %v815 = vsel %vm732, %v814, %v813
      %v816 = vsub.s32 4, %v792
      %v817 = vsel %vm732, %v816, %v792
      %v818 = vsel %vm731, %v652, %v815
      %v819 = vsel %vm731, 0, %v817
      %v820 = vcosq.f32.pop %v818
      %v821 = vsinq.f32.pop %v818
      %vm822 = vweird.f32 %v652
      %v823 = vadd.s32 %v819, 3
      %v824 = vand.u32 %v823, 3
      %vm825 = vcmp.lt.s32.totalorder %v824, 2
      %vm826 = vcmp.eq.s32.totalorder %v824, 0
      %v827 = vxor.u32 %v821, 2147483648
      %v828 = vsel %vm826, %v820, %v827
      %vm829 = vcmp.eq.s32.totalorder %v824, 2
      %v830 = vxor.u32 %v820, 2147483648
      %v831 = vsel %vm829, %v830, %v821
      %v832 = vsel %vm825, %v828, %v831
      %v833 = vsel %vm822, nan, %v832
      %v834 = vand.u32 2147483647, %v657
      %vm835 = vcmp.le.f32.partialorder %v834, 0.7853982
      %vm836 = vcmp.lt.s32.totalorder %v657, 0
      %v837 = vand.u32 %v657, 2139095040
      %v838 = vshrl.u32 %v837, 23
      %v839 = vsub.s32 %v838, 127
      %v840 = vand.u32 2147483647, %v657
      %v841 = vand.u32 %v840, 8388607
      %v842 = vor.u32 %v841, 8388608
      %v843 = vsub.s32 0, %v842
      %v844 = vadd.s32 %v839, 1
      %vm845 = vcmp.gt.s32.totalorder %v844, 0
      %v846 = vsel %vm845, %v844, 0
      %v847 = vshrl.u32 %v846, 5
      %v848 = vand.u32 %v846, 31
      %v849 = vsub.s32 32, %v848
      %v850 = vshrl.u32 683565275, %v849
      %v851 = vshll.u32 683565275, %v848
      %v852 = vshrl.u32 2475754826, %v849
      %v853 = vor.u32 %v851, %v852
      %v854 = vshll.u32 2475754826, %v848
      %v855 = vshrl.u32 2131351028, %v849
      %v856 = vor.u32 %v854, %v855
      %v857 = vshll.u32 2131351028, %v848
      %v858 = vshrl.u32 2102212464, %v849
      %v859 = vor.u32 %v857, %v858
      %v860 = vshll.u32 2102212464, %v848
      %v861 = vshrl.u32 920167782, %v849
      %v862 = vor.u32 %v860, %v861
      %v863 = vshll.u32 920167782, %v848
      %v864 = vshrl.u32 1326507024, %v849
      %v865 = vor.u32 %v863, %v864
      %vm866 = vcmp.lt.s32.totalorder %v847, 1
      %vm867 = vcmp.lt.s32.totalorder %v847, 2
      %vm868 = vcmp.lt.s32.totalorder %v847, 3
      %vm869 = vcmp.lt.s32.totalorder %v847, 4
      %v870 = vsel %vm866, %v850, %v853
      %v871 = vsel %vm869, %v859, 2102212464
      %v872 = vsel %vm868, %v856, %v871
      %v873 = vsel %vm867, %v870, %v872
      %v874 = vsel %vm866, %v853, %v856
      %v875 = vsel %vm869, %v862, 920167782
      %v876 = vsel %vm868, %v859, %v875
      %v877 = vsel %vm867, %v874, %v876
      %v878 = vsel %vm866, %v856, %v859
      %v879 = vsel %vm869, %v865, 1326507024
      %v880 = vsel %vm868, %v862, %v879
      %v881 = vsel %vm867, %v878, %v880
      %v882 = vshll.u32 %v842, 8
      %v883 = vmul.u32.u64.compose %v882, %v881
      %v884 = vextract.low.u32 %v883
      %v885 = vextract.high.u32 %v883
      %v886 = vmul.u32.u64.compose %v882, %v877
      %v887 = vextract.low.u32 %v886
      %v888 = vextract.high.u32 %v886
      %v889 = vmul.u32 %v882, %v873
      %v890 = vadd.s32 %v885, %v887
      %vm891 = vc.u32 %v885, %v887
      %v892 = vadd.s32 %v888, 1
      %v893 = vsel %vm891, %v892, %v888
      %v894 = vadd.s32 %v889, %v893
      %v895 = vadd.s32 %v894, 536870912
      %v896 = vshrl.u32 %v895, 30
      %v897 = vshll.u32 %v896, 30
      %v898 = vsub.s32 %v894, %v897
      %vm899 = vcmp.lt.s32.totalorder %v898, 0
      %v900 = vsub.s32 0, %v898
      %v901 = vsel %vm899, %v900, %v898
      %v902 = vclz %v901
      %v903 = vsub.s32 %v902, 2
      %vm904 = vcmp.gt.s32.totalorder 0, %v903
      %v905 = vsel %vm904, 0, %v903
      %v906 = vsub.s32 32, %v905
      %v907 = vshll.u32 %v898, %v905
      %v908 = vshrl.u32 %v890, %v906
      %v909 = vor.u32 %v907, %v908
      %v910 = vsub.s32 4294967266, %v905
      %v911 = vadd.s32 %v910, 127
      %v912 = vshll.u32 %v911, 23
      %v913 = vor.u32 4788187, %v912
      %v914 = vand.u32 2147483647, %v913
      %v916 = vcvt.s32.f32 %v909
      %v917 = vmul.f32 %v916, %v914
      %v918 = vxor.u32 %v917, 2147483648
      %v919 = vsel %vm836, %v918, %v917
      %v920 = vsub.s32 4, %v896
      %v921 = vsel %vm836, %v920, %v896
      %v922 = vsel %vm835, %v657, %v919
      %v923 = vsel %vm835, 0, %v921
      %v924 = vcosq.f32.pop %v922
      %v925 = vsinq.f32.pop %v922
      %vm926 = vweird.f32 %v657
      %v927 = vadd.s32 %v923, 3
      %v928 = vand.u32 %v927, 3
      %vm929 = vcmp.lt.s32.totalorder %v928, 2
      %vm930 = vcmp.eq.s32.totalorder %v928, 0
      %v931 = vxor.u32 %v925, 2147483648
      %v932 = vsel %vm930, %v924, %v931
      %vm933 = vcmp.eq.s32.totalorder %v928, 2
      %v934 = vxor.u32 %v924, 2147483648
      %v935 = vsel %vm933, %v934, %v925
      %v936 = vsel %vm929, %v932, %v935
      %v937 = vsel %vm926, nan, %v936
      %v938 = vand.u32 2147483647, %v662
      %vm939 = vcmp.le.f32.partialorder %v938, 0.7853982
      %vm940 = vcmp.lt.s32.totalorder %v662, 0
      %v941 = vand.u32 %v662, 2139095040
      %v942 = vshrl.u32 %v941, 23
      %v943 = vsub.s32 %v942, 127
      %v944 = vand.u32 2147483647, %v662
      %v945 = vand.u32 %v944, 8388607
      %v946 = vor.u32 %v945, 8388608
      %v947 = vsub.s32 0, %v946
      %v948 = vadd.s32 %v943, 1
      %vm949 = vcmp.gt.s32.totalorder %v948, 0
      %v950 = vsel %vm949, %v948, 0
      %v951 = vshrl.u32 %v950, 5
      %v952 = vand.u32 %v950, 31
      %v953 = vsub.s32 32, %v952
      %v954 = vshrl.u32 683565275, %v953
      %v955 = vshll.u32 683565275, %v952
      %v956 = vshrl.u32 2475754826, %v953
      %v957 = vor.u32 %v955, %v956
      %v958 = vshll.u32 2475754826, %v952
      %v959 = vshrl.u32 2131351028, %v953
      %v960 = vor.u32 %v958, %v959
      %v961 = vshll.u32 2131351028, %v952
      %v962 = vshrl.u32 2102212464, %v953
      %v963 = vor.u32 %v961, %v962
      %v964 = vshll.u32 2102212464, %v952
      %v965 = vshrl.u32 920167782, %v953
      %v966 = vor.u32 %v964, %v965
      %v967 = vshll.u32 920167782, %v952
      %v968 = vshrl.u32 1326507024, %v953
      %v969 = vor.u32 %v967, %v968
      %vm970 = vcmp.lt.s32.totalorder %v951, 1
      %vm971 = vcmp.lt.s32.totalorder %v951, 2
      %vm972 = vcmp.lt.s32.totalorder %v951, 3
      %vm973 = vcmp.lt.s32.totalorder %v951, 4
      %v974 = vsel %vm970, %v954, %v957
      %v975 = vsel %vm973, %v963, 2102212464
      %v976 = vsel %vm972, %v960, %v975
      %v977 = vsel %vm971, %v974, %v976
      %v978 = vsel %vm970, %v957, %v960
      %v979 = vsel %vm973, %v966, 920167782
      %v980 = vsel %vm972, %v963, %v979
      %v981 = vsel %vm971, %v978, %v980
      %v982 = vsel %vm970, %v960, %v963
      %v983 = vsel %vm973, %v969, 1326507024
      %v984 = vsel %vm972, %v966, %v983
      %v985 = vsel %vm971, %v982, %v984
      %v986 = vshll.u32 %v946, 8
      %v987 = vmul.u32.u64.compose %v986, %v985
      %v988 = vextract.low.u32 %v987
      %v989 = vextract.high.u32 %v987
      %v990 = vmul.u32.u64.compose %v986, %v981
      %v991 = vextract.low.u32 %v990
      %v992 = vextract.high.u32 %v990
      %v993 = vmul.u32 %v986, %v977
      %v994 = vadd.s32 %v989, %v991
      %vm995 = vc.u32 %v989, %v991
      %v996 = vadd.s32 %v992, 1
      %v997 = vsel %vm995, %v996, %v992
      %v998 = vadd.s32 %v993, %v997
      %v999 = vadd.s32 %v998, 536870912
      %v1000 = vshrl.u32 %v999, 30
      %v1001 = vshll.u32 %v1000, 30
      %v1002 = vsub.s32 %v998, %v1001
      %vm1003 = vcmp.lt.s32.totalorder %v1002, 0
      %v1004 = vsub.s32 0, %v1002
      %v1005 = vsel %vm1003, %v1004, %v1002
      %v1006 = vclz %v1005
      %v1007 = vsub.s32 %v1006, 2
      %vm1008 = vcmp.gt.s32.totalorder 0, %v1007
      %v1009 = vsel %vm1008, 0, %v1007
      %v1010 = vsub.s32 32, %v1009
      %v1011 = vshll.u32 %v1002, %v1009
      %v1012 = vshrl.u32 %v994, %v1010
      %v1013 = vor.u32 %v1011, %v1012
      %v1014 = vsub.s32 4294967266, %v1009
      %v1015 = vadd.s32 %v1014, 127
      %v1016 = vshll.u32 %v1015, 23
      %v1017 = vor.u32 4788187, %v1016
      %v1018 = vand.u32 2147483647, %v1017
      %v1020 = vcvt.s32.f32 %v1013
      %v1021 = vmul.f32 %v1020, %v1018
      %v1022 = vxor.u32 %v1021, 2147483648
      %v1023 = vsel %vm940, %v1022, %v1021
      %v1024 = vsub.s32 4, %v1000
      %v1025 = vsel %vm940, %v1024, %v1000
      %v1026 = vsel %vm939, %v662, %v1023
      %v1027 = vsel %vm939, 0, %v1025
      %v1028 = vcosq.f32.pop %v1026
      %v1029 = vsinq.f32.pop %v1026
      %vm1030 = vweird.f32 %v662
      %v1031 = vadd.s32 %v1027, 3
      %v1032 = vand.u32 %v1031, 3
      %vm1033 = vcmp.lt.s32.totalorder %v1032, 2
      %vm1034 = vcmp.eq.s32.totalorder %v1032, 0
      %v1035 = vxor.u32 %v1029, 2147483648
      %v1036 = vsel %vm1034, %v1028, %v1035
      %vm1037 = vcmp.eq.s32.totalorder %v1032, 2
      %v1038 = vxor.u32 %v1028, 2147483648
      %v1039 = vsel %vm1037, %v1038, %v1029
      %v1040 = vsel %vm1033, %v1036, %v1039
      %v1041 = vsel %vm1030, nan, %v1040
      %v1042 = vand.u32 2147483647, %v667
      %vm1043 = vcmp.le.f32.partialorder %v1042, 0.7853982
      %vm1044 = vcmp.lt.s32.totalorder %v667, 0
      %v1045 = vand.u32 %v667, 2139095040
      %v1046 = vshrl.u32 %v1045, 23
      %v1047 = vsub.s32 %v1046, 127
      %v1048 = vand.u32 2147483647, %v667
      %v1049 = vand.u32 %v1048, 8388607
      %v1050 = vor.u32 %v1049, 8388608
      %v1051 = vsub.s32 0, %v1050
      %v1052 = vadd.s32 %v1047, 1
      %vm1053 = vcmp.gt.s32.totalorder %v1052, 0
      %v1054 = vsel %vm1053, %v1052, 0
      %v1055 = vshrl.u32 %v1054, 5
      %v1056 = vand.u32 %v1054, 31
      %v1057 = vsub.s32 32, %v1056
      %v1058 = vshrl.u32 683565275, %v1057
      %v1059 = vshll.u32 683565275, %v1056
      %v1060 = vshrl.u32 2475754826, %v1057
      %v1061 = vor.u32 %v1059, %v1060
      %v1062 = vshll.u32 2475754826, %v1056
      %v1063 = vshrl.u32 2131351028, %v1057
      %v1064 = vor.u32 %v1062, %v1063
      %v1065 = vshll.u32 2131351028, %v1056
      %v1066 = vshrl.u32 2102212464, %v1057
      %v1067 = vor.u32 %v1065, %v1066
      %v1068 = vshll.u32 2102212464, %v1056
      %v1069 = vshrl.u32 920167782, %v1057
      %v1070 = vor.u32 %v1068, %v1069
      %v1071 = vshll.u32 920167782, %v1056
      %v1072 = vshrl.u32 1326507024, %v1057
      %v1073 = vor.u32 %v1071, %v1072
      %vm1074 = vcmp.lt.s32.totalorder %v1055, 1
      %vm1075 = vcmp.lt.s32.totalorder %v1055, 2
      %vm1076 = vcmp.lt.s32.totalorder %v1055, 3
      %vm1077 = vcmp.lt.s32.totalorder %v1055, 4
      %v1078 = vsel %vm1074, %v1058, %v1061
      %v1079 = vsel %vm1077, %v1067, 2102212464
      %v1080 = vsel %vm1076, %v1064, %v1079
      %v1081 = vsel %vm1075, %v1078, %v1080
      %v1082 = vsel %vm1074, %v1061, %v1064
      %v1083 = vsel %vm1077, %v1070, 920167782
      %v1084 = vsel %vm1076, %v1067, %v1083
      %v1085 = vsel %vm1075, %v1082, %v1084
      %v1086 = vsel %vm1074, %v1064, %v1067
      %v1087 = vsel %vm1077, %v1073, 1326507024
      %v1088 = vsel %vm1076, %v1070, %v1087
      %v1089 = vsel %vm1075, %v1086, %v1088
      %v1090 = vshll.u32 %v1050, 8
      %v1091 = vmul.u32.u64.compose %v1090, %v1089
      %v1092 = vextract.low.u32 %v1091
      %v1093 = vextract.high.u32 %v1091
      %v1094 = vmul.u32.u64.compose %v1090, %v1085
      %v1095 = vextract.low.u32 %v1094
      %v1096 = vextract.high.u32 %v1094
      %v1097 = vmul.u32 %v1090, %v1081
      %v1098 = vadd.s32 %v1093, %v1095
      %vm1099 = vc.u32 %v1093, %v1095
      %v1100 = vadd.s32 %v1096, 1
      %v1101 = vsel %vm1099, %v1100, %v1096
      %v1102 = vadd.s32 %v1097, %v1101
      %v1103 = vadd.s32 %v1102, 536870912
      %v1104 = vshrl.u32 %v1103, 30
      %v1105 = vshll.u32 %v1104, 30
      %v1106 = vsub.s32 %v1102, %v1105
      %vm1107 = vcmp.lt.s32.totalorder %v1106, 0
      %v1108 = vsub.s32 0, %v1106
      %v1109 = vsel %vm1107, %v1108, %v1106
      %v1110 = vclz %v1109
      %v1111 = vsub.s32 %v1110, 2
      %vm1112 = vcmp.gt.s32.totalorder 0, %v1111
      %v1113 = vsel %vm1112, 0, %v1111
      %v1114 = vsub.s32 32, %v1113
      %v1115 = vshll.u32 %v1106, %v1113
      %v1116 = vshrl.u32 %v1098, %v1114
      %v1117 = vor.u32 %v1115, %v1116
      %v1118 = vsub.s32 4294967266, %v1113
      %v1119 = vadd.s32 %v1118, 127
      %v1120 = vshll.u32 %v1119, 23
      %v1121 = vor.u32 4788187, %v1120
      %v1122 = vand.u32 2147483647, %v1121
      %v1124 = vcvt.s32.f32 %v1117
      %v1125 = vmul.f32 %v1124, %v1122
      %v1126 = vxor.u32 %v1125, 2147483648
      %v1127 = vsel %vm1044, %v1126, %v1125
      %v1128 = vsub.s32 4, %v1104
      %v1129 = vsel %vm1044, %v1128, %v1104
      %v1130 = vsel %vm1043, %v667, %v1127
      %v1131 = vsel %vm1043, 0, %v1129
      %v1132 = vcosq.f32.pop %v1130
      %v1133 = vsinq.f32.pop %v1130
      %vm1134 = vweird.f32 %v667
      %v1135 = vadd.s32 %v1131, 3
      %v1136 = vand.u32 %v1135, 3
      %vm1137 = vcmp.lt.s32.totalorder %v1136, 2
      %vm1138 = vcmp.eq.s32.totalorder %v1136, 0
      %v1139 = vxor.u32 %v1133, 2147483648
      %v1140 = vsel %vm1138, %v1132, %v1139
      %vm1141 = vcmp.eq.s32.totalorder %v1136, 2
      %v1142 = vxor.u32 %v1132, 2147483648
      %v1143 = vsel %vm1141, %v1142, %v1133
      %v1144 = vsel %vm1137, %v1140, %v1143
      %v1145 = vsel %vm1134, nan, %v1144
      %v1146 = vand.u32 2147483647, %v672
      %vm1147 = vcmp.le.f32.partialorder %v1146, 0.7853982
      %vm1148 = vcmp.lt.s32.totalorder %v672, 0
      %v1149 = vand.u32 %v672, 2139095040
      %v1150 = vshrl.u32 %v1149, 23
      %v1151 = vsub.s32 %v1150, 127
      %v1152 = vand.u32 2147483647, %v672
      %v1153 = vand.u32 %v1152, 8388607
      %v1154 = vor.u32 %v1153, 8388608
      %v1155 = vsub.s32 0, %v1154
      %v1156 = vadd.s32 %v1151, 1
      %vm1157 = vcmp.gt.s32.totalorder %v1156, 0
      %v1158 = vsel %vm1157, %v1156, 0
      %v1159 = vshrl.u32 %v1158, 5
      %v1160 = vand.u32 %v1158, 31
      %v1161 = vsub.s32 32, %v1160
      %v1162 = vshrl.u32 683565275, %v1161
      %v1163 = vshll.u32 683565275, %v1160
      %v1164 = vshrl.u32 2475754826, %v1161
      %v1165 = vor.u32 %v1163, %v1164
      %v1166 = vshll.u32 2475754826, %v1160
      %v1167 = vshrl.u32 2131351028, %v1161
      %v1168 = vor.u32 %v1166, %v1167
      %v1169 = vshll.u32 2131351028, %v1160
      %v1170 = vshrl.u32 2102212464, %v1161
      %v1171 = vor.u32 %v1169, %v1170
      %v1172 = vshll.u32 2102212464, %v1160
      %v1173 = vshrl.u32 920167782, %v1161
      %v1174 = vor.u32 %v1172, %v1173
      %v1175 = vshll.u32 920167782, %v1160
      %v1176 = vshrl.u32 1326507024, %v1161
      %v1177 = vor.u32 %v1175, %v1176
      %vm1178 = vcmp.lt.s32.totalorder %v1159, 1
      %vm1179 = vcmp.lt.s32.totalorder %v1159, 2
      %vm1180 = vcmp.lt.s32.totalorder %v1159, 3
      %vm1181 = vcmp.lt.s32.totalorder %v1159, 4
      %v1182 = vsel %vm1178, %v1162, %v1165
      %v1183 = vsel %vm1181, %v1171, 2102212464
      %v1184 = vsel %vm1180, %v1168, %v1183
      %v1185 = vsel %vm1179, %v1182, %v1184
      %v1186 = vsel %vm1178, %v1165, %v1168
      %v1187 = vsel %vm1181, %v1174, 920167782
      %v1188 = vsel %vm1180, %v1171, %v1187
      %v1189 = vsel %vm1179, %v1186, %v1188
      %v1190 = vsel %vm1178, %v1168, %v1171
      %v1191 = vsel %vm1181, %v1177, 1326507024
      %v1192 = vsel %vm1180, %v1174, %v1191
      %v1193 = vsel %vm1179, %v1190, %v1192
      %v1194 = vshll.u32 %v1154, 8
      %v1195 = vmul.u32.u64.compose %v1194, %v1193
      %v1196 = vextract.low.u32 %v1195
      %v1197 = vextract.high.u32 %v1195
      %v1198 = vmul.u32.u64.compose %v1194, %v1189
      %v1199 = vextract.low.u32 %v1198
      %v1200 = vextract.high.u32 %v1198
      %v1201 = vmul.u32 %v1194, %v1185
      %v1202 = vadd.s32 %v1197, %v1199
      %vm1203 = vc.u32 %v1197, %v1199
      %v1204 = vadd.s32 %v1200, 1
      %v1205 = vsel %vm1203, %v1204, %v1200
      %v1206 = vadd.s32 %v1201, %v1205
      %v1207 = vadd.s32 %v1206, 536870912
      %v1208 = vshrl.u32 %v1207, 30
      %v1209 = vshll.u32 %v1208, 30
      %v1210 = vsub.s32 %v1206, %v1209
      %vm1211 = vcmp.lt.s32.totalorder %v1210, 0
      %v1212 = vsub.s32 0, %v1210
      %v1213 = vsel %vm1211, %v1212, %v1210
      %v1214 = vclz %v1213
      %v1215 = vsub.s32 %v1214, 2
      %vm1216 = vcmp.gt.s32.totalorder 0, %v1215
      %v1217 = vsel %vm1216, 0, %v1215
      %v1218 = vsub.s32 32, %v1217
      %v1219 = vshll.u32 %v1210, %v1217
      %v1220 = vshrl.u32 %v1202, %v1218
      %v1221 = vor.u32 %v1219, %v1220
      %v1222 = vsub.s32 4294967266, %v1217
      %v1223 = vadd.s32 %v1222, 127
      %v1224 = vshll.u32 %v1223, 23
      %v1225 = vor.u32 4788187, %v1224
      %v1226 = vand.u32 2147483647, %v1225
      %v1228 = vcvt.s32.f32 %v1221
      %v1229 = vmul.f32 %v1228, %v1226
      %v1230 = vxor.u32 %v1229, 2147483648
      %v1231 = vsel %vm1148, %v1230, %v1229
      %v1232 = vsub.s32 4, %v1208
      %v1233 = vsel %vm1148, %v1232, %v1208
      %v1234 = vsel %vm1147, %v672, %v1231
      %v1235 = vsel %vm1147, 0, %v1233
      %v1236 = vcosq.f32.pop %v1234
      %v1237 = vsinq.f32.pop %v1234
      %vm1238 = vweird.f32 %v672
      %v1239 = vadd.s32 %v1235, 3
      %v1240 = vand.u32 %v1239, 3
      %vm1241 = vcmp.lt.s32.totalorder %v1240, 2
      %vm1242 = vcmp.eq.s32.totalorder %v1240, 0
      %v1243 = vxor.u32 %v1237, 2147483648
      %v1244 = vsel %vm1242, %v1236, %v1243
      %vm1245 = vcmp.eq.s32.totalorder %v1240, 2
      %v1246 = vxor.u32 %v1236, 2147483648
      %v1247 = vsel %vm1245, %v1246, %v1237
      %v1248 = vsel %vm1241, %v1244, %v1247
      %v1249 = vsel %vm1238, nan, %v1248
      %v1250 = vand.u32 2147483647, %v677
      %vm1251 = vcmp.le.f32.partialorder %v1250, 0.7853982
      %vm1252 = vcmp.lt.s32.totalorder %v677, 0
      %v1253 = vand.u32 %v677, 2139095040
      %v1254 = vshrl.u32 %v1253, 23
      %v1255 = vsub.s32 %v1254, 127
      %v1256 = vand.u32 2147483647, %v677
      %v1257 = vand.u32 %v1256, 8388607
      %v1258 = vor.u32 %v1257, 8388608
      %v1259 = vsub.s32 0, %v1258
      %v1260 = vadd.s32 %v1255, 1
      %vm1261 = vcmp.gt.s32.totalorder %v1260, 0
      %v1262 = vsel %vm1261, %v1260, 0
      %v1263 = vshrl.u32 %v1262, 5
      %v1264 = vand.u32 %v1262, 31
      %v1265 = vsub.s32 32, %v1264
      %v1266 = vshrl.u32 683565275, %v1265
      %v1267 = vshll.u32 683565275, %v1264
      %v1268 = vshrl.u32 2475754826, %v1265
      %v1269 = vor.u32 %v1267, %v1268
      %v1270 = vshll.u32 2475754826, %v1264
      %v1271 = vshrl.u32 2131351028, %v1265
      %v1272 = vor.u32 %v1270, %v1271
      %v1273 = vshll.u32 2131351028, %v1264
      %v1274 = vshrl.u32 2102212464, %v1265
      %v1275 = vor.u32 %v1273, %v1274
      %v1276 = vshll.u32 2102212464, %v1264
      %v1277 = vshrl.u32 920167782, %v1265
      %v1278 = vor.u32 %v1276, %v1277
      %v1279 = vshll.u32 920167782, %v1264
      %v1280 = vshrl.u32 1326507024, %v1265
      %v1281 = vor.u32 %v1279, %v1280
      %vm1282 = vcmp.lt.s32.totalorder %v1263, 1
      %vm1283 = vcmp.lt.s32.totalorder %v1263, 2
      %vm1284 = vcmp.lt.s32.totalorder %v1263, 3
      %vm1285 = vcmp.lt.s32.totalorder %v1263, 4
      %v1286 = vsel %vm1282, %v1266, %v1269
      %v1287 = vsel %vm1285, %v1275, 2102212464
      %v1288 = vsel %vm1284, %v1272, %v1287
      %v1289 = vsel %vm1283, %v1286, %v1288
      %v1290 = vsel %vm1282, %v1269, %v1272
      %v1291 = vsel %vm1285, %v1278, 920167782
      %v1292 = vsel %vm1284, %v1275, %v1291
      %v1293 = vsel %vm1283, %v1290, %v1292
      %v1294 = vsel %vm1282, %v1272, %v1275
      %v1295 = vsel %vm1285, %v1281, 1326507024
      %v1296 = vsel %vm1284, %v1278, %v1295
      %v1297 = vsel %vm1283, %v1294, %v1296
      %v1298 = vshll.u32 %v1258, 8
      %v1299 = vmul.u32.u64.compose %v1298, %v1297
      %v1300 = vextract.low.u32 %v1299
      %v1301 = vextract.high.u32 %v1299
      %v1302 = vmul.u32.u64.compose %v1298, %v1293
      %v1303 = vextract.low.u32 %v1302
      %v1304 = vextract.high.u32 %v1302
      %v1305 = vmul.u32 %v1298, %v1289
      %v1306 = vadd.s32 %v1301, %v1303
      %vm1307 = vc.u32 %v1301, %v1303
      %v1308 = vadd.s32 %v1304, 1
      %v1309 = vsel %vm1307, %v1308, %v1304
      %v1310 = vadd.s32 %v1305, %v1309
      %v1311 = vadd.s32 %v1310, 536870912
      %v1312 = vshrl.u32 %v1311, 30
      %v1313 = vshll.u32 %v1312, 30
      %v1314 = vsub.s32 %v1310, %v1313
      %vm1315 = vcmp.lt.s32.totalorder %v1314, 0
      %v1316 = vsub.s32 0, %v1314
      %v1317 = vsel %vm1315, %v1316, %v1314
      %v1318 = vclz %v1317
      %v1319 = vsub.s32 %v1318, 2
      %vm1320 = vcmp.gt.s32.totalorder 0, %v1319
      %v1321 = vsel %vm1320, 0, %v1319
      %v1322 = vsub.s32 32, %v1321
      %v1323 = vshll.u32 %v1314, %v1321
      %v1324 = vshrl.u32 %v1306, %v1322
      %v1325 = vor.u32 %v1323, %v1324
      %v1326 = vsub.s32 4294967266, %v1321
      %v1327 = vadd.s32 %v1326, 127
      %v1328 = vshll.u32 %v1327, 23
      %v1329 = vor.u32 4788187, %v1328
      %v1330 = vand.u32 2147483647, %v1329
      %v1332 = vcvt.s32.f32 %v1325
      %v1333 = vmul.f32 %v1332, %v1330
      %v1334 = vxor.u32 %v1333, 2147483648
      %v1335 = vsel %vm1252, %v1334, %v1333
      %v1336 = vsub.s32 4, %v1312
      %v1337 = vsel %vm1252, %v1336, %v1312
      %v1338 = vsel %vm1251, %v677, %v1335
      %v1339 = vsel %vm1251, 0, %v1337
      %v1340 = vcosq.f32.pop %v1338
      %v1341 = vsinq.f32.pop %v1338
      %vm1342 = vweird.f32 %v677
      %v1343 = vadd.s32 %v1339, 3
      %v1344 = vand.u32 %v1343, 3
      %vm1345 = vcmp.lt.s32.totalorder %v1344, 2
      %vm1346 = vcmp.eq.s32.totalorder %v1344, 0
      %v1347 = vxor.u32 %v1341, 2147483648
      %v1348 = vsel %vm1346, %v1340, %v1347
      %vm1349 = vcmp.eq.s32.totalorder %v1344, 2
      %v1350 = vxor.u32 %v1340, 2147483648
      %v1351 = vsel %vm1349, %v1350, %v1341
      %v1352 = vsel %vm1345, %v1348, %v1351
      %v1353 = vsel %vm1342, nan, %v1352
      %v1354 = vand.u32 2147483647, %v682
      %vm1355 = vcmp.le.f32.partialorder %v1354, 0.7853982
      %vm1356 = vcmp.lt.s32.totalorder %v682, 0
      %v1357 = vand.u32 %v682, 2139095040
      %v1358 = vshrl.u32 %v1357, 23
      %v1359 = vsub.s32 %v1358, 127
      %v1360 = vand.u32 2147483647, %v682
      %v1361 = vand.u32 %v1360, 8388607
      %v1362 = vor.u32 %v1361, 8388608
      %v1363 = vsub.s32 0, %v1362
      %v1364 = vadd.s32 %v1359, 1
      %vm1365 = vcmp.gt.s32.totalorder %v1364, 0
      %v1366 = vsel %vm1365, %v1364, 0
      %v1367 = vshrl.u32 %v1366, 5
      %v1368 = vand.u32 %v1366, 31
      %v1369 = vsub.s32 32, %v1368
      %v1370 = vshrl.u32 683565275, %v1369
      %v1371 = vshll.u32 683565275, %v1368
      %v1372 = vshrl.u32 2475754826, %v1369
      %v1373 = vor.u32 %v1371, %v1372
      %v1374 = vshll.u32 2475754826, %v1368
      %v1375 = vshrl.u32 2131351028, %v1369
      %v1376 = vor.u32 %v1374, %v1375
      %v1377 = vshll.u32 2131351028, %v1368
      %v1378 = vshrl.u32 2102212464, %v1369
      %v1379 = vor.u32 %v1377, %v1378
      %v1380 = vshll.u32 2102212464, %v1368
      %v1381 = vshrl.u32 920167782, %v1369
      %v1382 = vor.u32 %v1380, %v1381
      %v1383 = vshll.u32 920167782, %v1368
      %v1384 = vshrl.u32 1326507024, %v1369
      %v1385 = vor.u32 %v1383, %v1384
      %vm1386 = vcmp.lt.s32.totalorder %v1367, 1
      %vm1387 = vcmp.lt.s32.totalorder %v1367, 2
      %vm1388 = vcmp.lt.s32.totalorder %v1367, 3
      %vm1389 = vcmp.lt.s32.totalorder %v1367, 4
      %v1390 = vsel %vm1386, %v1370, %v1373
      %v1391 = vsel %vm1389, %v1379, 2102212464
      %v1392 = vsel %vm1388, %v1376, %v1391
      %v1393 = vsel %vm1387, %v1390, %v1392
      %v1394 = vsel %vm1386, %v1373, %v1376
      %v1395 = vsel %vm1389, %v1382, 920167782
      %v1396 = vsel %vm1388, %v1379, %v1395
      %v1397 = vsel %vm1387, %v1394, %v1396
      %v1398 = vsel %vm1386, %v1376, %v1379
      %v1399 = vsel %vm1389, %v1385, 1326507024
      %v1400 = vsel %vm1388, %v1382, %v1399
      %v1401 = vsel %vm1387, %v1398, %v1400
      %v1402 = vshll.u32 %v1362, 8
      %v1403 = vmul.u32.u64.compose %v1402, %v1401
      %v1404 = vextract.low.u32 %v1403
      %v1405 = vextract.high.u32 %v1403
      %v1406 = vmul.u32.u64.compose %v1402, %v1397
      %v1407 = vextract.low.u32 %v1406
      %v1408 = vextract.high.u32 %v1406
      %v1409 = vmul.u32 %v1402, %v1393
      %v1410 = vadd.s32 %v1405, %v1407
      %vm1411 = vc.u32 %v1405, %v1407
      %v1412 = vadd.s32 %v1408, 1
      %v1413 = vsel %vm1411, %v1412, %v1408
      %v1414 = vadd.s32 %v1409, %v1413
      %v1415 = vadd.s32 %v1414, 536870912
      %v1416 = vshrl.u32 %v1415, 30
      %v1417 = vshll.u32 %v1416, 30
      %v1418 = vsub.s32 %v1414, %v1417
      %vm1419 = vcmp.lt.s32.totalorder %v1418, 0
      %v1420 = vsub.s32 0, %v1418
      %v1421 = vsel %vm1419, %v1420, %v1418
      %v1422 = vclz %v1421
      %v1423 = vsub.s32 %v1422, 2
      %vm1424 = vcmp.gt.s32.totalorder 0, %v1423
      %v1425 = vsel %vm1424, 0, %v1423
      %v1426 = vsub.s32 32, %v1425
      %v1427 = vshll.u32 %v1418, %v1425
      %v1428 = vshrl.u32 %v1410, %v1426
      %v1429 = vor.u32 %v1427, %v1428
      %v1430 = vsub.s32 4294967266, %v1425
      %v1431 = vadd.s32 %v1430, 127
      %v1432 = vshll.u32 %v1431, 23
      %v1433 = vor.u32 4788187, %v1432
      %v1434 = vand.u32 2147483647, %v1433
      %v1436 = vcvt.s32.f32 %v1429
      %v1437 = vmul.f32 %v1436, %v1434
      %v1438 = vxor.u32 %v1437, 2147483648
      %v1439 = vsel %vm1356, %v1438, %v1437
      %v1440 = vsub.s32 4, %v1416
      %v1441 = vsel %vm1356, %v1440, %v1416
      %v1442 = vsel %vm1355, %v682, %v1439
      %v1443 = vsel %vm1355, 0, %v1441
      %v1444 = vcosq.f32.pop %v1442
      %v1445 = vsinq.f32.pop %v1442
      %vm1446 = vweird.f32 %v682
      %v1447 = vadd.s32 %v1443, 3
      %v1448 = vand.u32 %v1447, 3
      %vm1449 = vcmp.lt.s32.totalorder %v1448, 2
      %vm1450 = vcmp.eq.s32.totalorder %v1448, 0
      %v1451 = vxor.u32 %v1445, 2147483648
      %v1452 = vsel %vm1450, %v1444, %v1451
      %vm1453 = vcmp.eq.s32.totalorder %v1448, 2
      %v1454 = vxor.u32 %v1444, 2147483648
      %v1455 = vsel %vm1453, %v1454, %v1445
      %v1456 = vsel %vm1449, %v1452, %v1455
      %v1457 = vsel %vm1446, nan, %v1456
      %v1458 = vand.u32 2147483647, %v687
      %vm1459 = vcmp.le.f32.partialorder %v1458, 0.7853982
      %vm1460 = vcmp.lt.s32.totalorder %v687, 0
      %v1461 = vand.u32 %v687, 2139095040
      %v1462 = vshrl.u32 %v1461, 23
      %v1463 = vsub.s32 %v1462, 127
      %v1464 = vand.u32 2147483647, %v687
      %v1465 = vand.u32 %v1464, 8388607
      %v1466 = vor.u32 %v1465, 8388608
      %v1467 = vsub.s32 0, %v1466
      %v1468 = vadd.s32 %v1463, 1
      %vm1469 = vcmp.gt.s32.totalorder %v1468, 0
      %v1470 = vsel %vm1469, %v1468, 0
      %v1471 = vshrl.u32 %v1470, 5
      %v1472 = vand.u32 %v1470, 31
      %v1473 = vsub.s32 32, %v1472
      %v1474 = vshrl.u32 683565275, %v1473
      %v1475 = vshll.u32 683565275, %v1472
      %v1476 = vshrl.u32 2475754826, %v1473
      %v1477 = vor.u32 %v1475, %v1476
      %v1478 = vshll.u32 2475754826, %v1472
      %v1479 = vshrl.u32 2131351028, %v1473
      %v1480 = vor.u32 %v1478, %v1479
      %v1481 = vshll.u32 2131351028, %v1472
      %v1482 = vshrl.u32 2102212464, %v1473
      %v1483 = vor.u32 %v1481, %v1482
      %v1484 = vshll.u32 2102212464, %v1472
      %v1485 = vshrl.u32 920167782, %v1473
      %v1486 = vor.u32 %v1484, %v1485
      %v1487 = vshll.u32 920167782, %v1472
      %v1488 = vshrl.u32 1326507024, %v1473
      %v1489 = vor.u32 %v1487, %v1488
      %vm1490 = vcmp.lt.s32.totalorder %v1471, 1
      %vm1491 = vcmp.lt.s32.totalorder %v1471, 2
      %vm1492 = vcmp.lt.s32.totalorder %v1471, 3
      %vm1493 = vcmp.lt.s32.totalorder %v1471, 4
      %v1494 = vsel %vm1490, %v1474, %v1477
      %v1495 = vsel %vm1493, %v1483, 2102212464
      %v1496 = vsel %vm1492, %v1480, %v1495
      %v1497 = vsel %vm1491, %v1494, %v1496
      %v1498 = vsel %vm1490, %v1477, %v1480
      %v1499 = vsel %vm1493, %v1486, 920167782
      %v1500 = vsel %vm1492, %v1483, %v1499
      %v1501 = vsel %vm1491, %v1498, %v1500
      %v1502 = vsel %vm1490, %v1480, %v1483
      %v1503 = vsel %vm1493, %v1489, 1326507024
      %v1504 = vsel %vm1492, %v1486, %v1503
      %v1505 = vsel %vm1491, %v1502, %v1504
      %v1506 = vshll.u32 %v1466, 8
      %v1507 = vmul.u32.u64.compose %v1506, %v1505
      %v1508 = vextract.low.u32 %v1507
      %v1509 = vextract.high.u32 %v1507
      %v1510 = vmul.u32.u64.compose %v1506, %v1501
      %v1511 = vextract.low.u32 %v1510
      %v1512 = vextract.high.u32 %v1510
      %v1513 = vmul.u32 %v1506, %v1497
      %v1514 = vadd.s32 %v1509, %v1511
      %vm1515 = vc.u32 %v1509, %v1511
      %v1516 = vadd.s32 %v1512, 1
      %v1517 = vsel %vm1515, %v1516, %v1512
      %v1518 = vadd.s32 %v1513, %v1517
      %v1519 = vadd.s32 %v1518, 536870912
      %v1520 = vshrl.u32 %v1519, 30
      %v1521 = vshll.u32 %v1520, 30
      %v1522 = vsub.s32 %v1518, %v1521
      %vm1523 = vcmp.lt.s32.totalorder %v1522, 0
      %v1524 = vsub.s32 0, %v1522
      %v1525 = vsel %vm1523, %v1524, %v1522
      %v1526 = vclz %v1525
      %v1527 = vsub.s32 %v1526, 2
      %vm1528 = vcmp.gt.s32.totalorder 0, %v1527
      %v1529 = vsel %vm1528, 0, %v1527
      %v1530 = vsub.s32 32, %v1529
      %v1531 = vshll.u32 %v1522, %v1529
      %v1532 = vshrl.u32 %v1514, %v1530
      %v1533 = vor.u32 %v1531, %v1532
      %v1534 = vsub.s32 4294967266, %v1529
      %v1535 = vadd.s32 %v1534, 127
      %v1536 = vshll.u32 %v1535, 23
      %v1537 = vor.u32 4788187, %v1536
      %v1538 = vand.u32 2147483647, %v1537
      %v1540 = vcvt.s32.f32 %v1533
      %v1541 = vmul.f32 %v1540, %v1538
      %v1542 = vxor.u32 %v1541, 2147483648
      %v1543 = vsel %vm1460, %v1542, %v1541
      %v1544 = vsub.s32 4, %v1520
      %v1545 = vsel %vm1460, %v1544, %v1520
      %v1546 = vsel %vm1459, %v687, %v1543
      %v1547 = vsel %vm1459, 0, %v1545
      %v1548 = vcosq.f32.pop %v1546
      %v1549 = vsinq.f32.pop %v1546
      %vm1550 = vweird.f32 %v687
      %v1551 = vadd.s32 %v1547, 3
      %v1552 = vand.u32 %v1551, 3
      %vm1553 = vcmp.lt.s32.totalorder %v1552, 2
      %vm1554 = vcmp.eq.s32.totalorder %v1552, 0
      %v1555 = vxor.u32 %v1549, 2147483648
      %v1556 = vsel %vm1554, %v1548, %v1555
      %vm1557 = vcmp.eq.s32.totalorder %v1552, 2
      %v1558 = vxor.u32 %v1548, 2147483648
      %v1559 = vsel %vm1557, %v1558, %v1549
      %v1560 = vsel %vm1553, %v1556, %v1559
      %v1561 = vsel %vm1550, nan, %v1560
      %v1562 = vand.u32 2147483647, %v692
      %vm1563 = vcmp.le.f32.partialorder %v1562, 0.7853982
      %vm1564 = vcmp.lt.s32.totalorder %v692, 0
      %v1565 = vand.u32 %v692, 2139095040
      %v1566 = vshrl.u32 %v1565, 23
      %v1567 = vsub.s32 %v1566, 127
      %v1568 = vand.u32 2147483647, %v692
      %v1569 = vand.u32 %v1568, 8388607
      %v1570 = vor.u32 %v1569, 8388608
      %v1571 = vsub.s32 0, %v1570
      %v1572 = vadd.s32 %v1567, 1
      %vm1573 = vcmp.gt.s32.totalorder %v1572, 0
      %v1574 = vsel %vm1573, %v1572, 0
      %v1575 = vshrl.u32 %v1574, 5
      %v1576 = vand.u32 %v1574, 31
      %v1577 = vsub.s32 32, %v1576
      %v1578 = vshrl.u32 683565275, %v1577
      %v1579 = vshll.u32 683565275, %v1576
      %v1580 = vshrl.u32 2475754826, %v1577
      %v1581 = vor.u32 %v1579, %v1580
      %v1582 = vshll.u32 2475754826, %v1576
      %v1583 = vshrl.u32 2131351028, %v1577
      %v1584 = vor.u32 %v1582, %v1583
      %v1585 = vshll.u32 2131351028, %v1576
      %v1586 = vshrl.u32 2102212464, %v1577
      %v1587 = vor.u32 %v1585, %v1586
      %v1588 = vshll.u32 2102212464, %v1576
      %v1589 = vshrl.u32 920167782, %v1577
      %v1590 = vor.u32 %v1588, %v1589
      %v1591 = vshll.u32 920167782, %v1576
      %v1592 = vshrl.u32 1326507024, %v1577
      %v1593 = vor.u32 %v1591, %v1592
      %vm1594 = vcmp.lt.s32.totalorder %v1575, 1
      %vm1595 = vcmp.lt.s32.totalorder %v1575, 2
      %vm1596 = vcmp.lt.s32.totalorder %v1575, 3
      %vm1597 = vcmp.lt.s32.totalorder %v1575, 4
      %v1598 = vsel %vm1594, %v1578, %v1581
      %v1599 = vsel %vm1597, %v1587, 2102212464
      %v1600 = vsel %vm1596, %v1584, %v1599
      %v1601 = vsel %vm1595, %v1598, %v1600
      %v1602 = vsel %vm1594, %v1581, %v1584
      %v1603 = vsel %vm1597, %v1590, 920167782
      %v1604 = vsel %vm1596, %v1587, %v1603
      %v1605 = vsel %vm1595, %v1602, %v1604
      %v1606 = vsel %vm1594, %v1584, %v1587
      %v1607 = vsel %vm1597, %v1593, 1326507024
      %v1608 = vsel %vm1596, %v1590, %v1607
      %v1609 = vsel %vm1595, %v1606, %v1608
      %v1610 = vshll.u32 %v1570, 8
      %v1611 = vmul.u32.u64.compose %v1610, %v1609
      %v1612 = vextract.low.u32 %v1611
      %v1613 = vextract.high.u32 %v1611
      %v1614 = vmul.u32.u64.compose %v1610, %v1605
      %v1615 = vextract.low.u32 %v1614
      %v1616 = vextract.high.u32 %v1614
      %v1617 = vmul.u32 %v1610, %v1601
      %v1618 = vadd.s32 %v1613, %v1615
      %vm1619 = vc.u32 %v1613, %v1615
      %v1620 = vadd.s32 %v1616, 1
      %v1621 = vsel %vm1619, %v1620, %v1616
      %v1622 = vadd.s32 %v1617, %v1621
      %v1623 = vadd.s32 %v1622, 536870912
      %v1624 = vshrl.u32 %v1623, 30
      %v1625 = vshll.u32 %v1624, 30
      %v1626 = vsub.s32 %v1622, %v1625
      %vm1627 = vcmp.lt.s32.totalorder %v1626, 0
      %v1628 = vsub.s32 0, %v1626
      %v1629 = vsel %vm1627, %v1628, %v1626
      %v1630 = vclz %v1629
      %v1631 = vsub.s32 %v1630, 2
      %vm1632 = vcmp.gt.s32.totalorder 0, %v1631
      %v1633 = vsel %vm1632, 0, %v1631
      %v1634 = vsub.s32 32, %v1633
      %v1635 = vshll.u32 %v1626, %v1633
      %v1636 = vshrl.u32 %v1618, %v1634
      %v1637 = vor.u32 %v1635, %v1636
      %v1638 = vsub.s32 4294967266, %v1633
      %v1639 = vadd.s32 %v1638, 127
      %v1640 = vshll.u32 %v1639, 23
      %v1641 = vor.u32 4788187, %v1640
      %v1642 = vand.u32 2147483647, %v1641
      %v1644 = vcvt.s32.f32 %v1637
      %v1645 = vmul.f32 %v1644, %v1642
      %v1646 = vxor.u32 %v1645, 2147483648
      %v1647 = vsel %vm1564, %v1646, %v1645
      %v1648 = vsub.s32 4, %v1624
      %v1649 = vsel %vm1564, %v1648, %v1624
      %v1650 = vsel %vm1563, %v692, %v1647
      %v1651 = vsel %vm1563, 0, %v1649
      %v1652 = vcosq.f32.pop %v1650
      %v1653 = vsinq.f32.pop %v1650
      %vm1654 = vweird.f32 %v692
      %v1655 = vadd.s32 %v1651, 3
      %v1656 = vand.u32 %v1655, 3
      %vm1657 = vcmp.lt.s32.totalorder %v1656, 2
      %vm1658 = vcmp.eq.s32.totalorder %v1656, 0
      %v1659 = vxor.u32 %v1653, 2147483648
      %v1660 = vsel %vm1658, %v1652, %v1659
      %vm1661 = vcmp.eq.s32.totalorder %v1656, 2
      %v1662 = vxor.u32 %v1652, 2147483648
      %v1663 = vsel %vm1661, %v1662, %v1653
      %v1664 = vsel %vm1657, %v1660, %v1663
      %v1665 = vsel %vm1654, nan, %v1664
      %v1666 = vand.u32 2147483647, %v697
      %vm1667 = vcmp.le.f32.partialorder %v1666, 0.7853982
      %vm1668 = vcmp.lt.s32.totalorder %v697, 0
      %v1669 = vand.u32 %v697, 2139095040
      %v1670 = vshrl.u32 %v1669, 23
      %v1671 = vsub.s32 %v1670, 127
      %v1672 = vand.u32 2147483647, %v697
      %v1673 = vand.u32 %v1672, 8388607
      %v1674 = vor.u32 %v1673, 8388608
      %v1675 = vsub.s32 0, %v1674
      %v1676 = vadd.s32 %v1671, 1
      %vm1677 = vcmp.gt.s32.totalorder %v1676, 0
      %v1678 = vsel %vm1677, %v1676, 0
      %v1679 = vshrl.u32 %v1678, 5
      %v1680 = vand.u32 %v1678, 31
      %v1681 = vsub.s32 32, %v1680
      %v1682 = vshrl.u32 683565275, %v1681
      %v1683 = vshll.u32 683565275, %v1680
      %v1684 = vshrl.u32 2475754826, %v1681
      %v1685 = vor.u32 %v1683, %v1684
      %v1686 = vshll.u32 2475754826, %v1680
      %v1687 = vshrl.u32 2131351028, %v1681
      %v1688 = vor.u32 %v1686, %v1687
      %v1689 = vshll.u32 2131351028, %v1680
      %v1690 = vshrl.u32 2102212464, %v1681
      %v1691 = vor.u32 %v1689, %v1690
      %v1692 = vshll.u32 2102212464, %v1680
      %v1693 = vshrl.u32 920167782, %v1681
      %v1694 = vor.u32 %v1692, %v1693
      %v1695 = vshll.u32 920167782, %v1680
      %v1696 = vshrl.u32 1326507024, %v1681
      %v1697 = vor.u32 %v1695, %v1696
      %vm1698 = vcmp.lt.s32.totalorder %v1679, 1
      %vm1699 = vcmp.lt.s32.totalorder %v1679, 2
      %vm1700 = vcmp.lt.s32.totalorder %v1679, 3
      %vm1701 = vcmp.lt.s32.totalorder %v1679, 4
      %v1702 = vsel %vm1698, %v1682, %v1685
      %v1703 = vsel %vm1701, %v1691, 2102212464
      %v1704 = vsel %vm1700, %v1688, %v1703
      %v1705 = vsel %vm1699, %v1702, %v1704
      %v1706 = vsel %vm1698, %v1685, %v1688
      %v1707 = vsel %vm1701, %v1694, 920167782
      %v1708 = vsel %vm1700, %v1691, %v1707
      %v1709 = vsel %vm1699, %v1706, %v1708
      %v1710 = vsel %vm1698, %v1688, %v1691
      %v1711 = vsel %vm1701, %v1697, 1326507024
      %v1712 = vsel %vm1700, %v1694, %v1711
      %v1713 = vsel %vm1699, %v1710, %v1712
      %v1714 = vshll.u32 %v1674, 8
      %v1715 = vmul.u32.u64.compose %v1714, %v1713
      %v1716 = vextract.low.u32 %v1715
      %v1717 = vextract.high.u32 %v1715
      %v1718 = vmul.u32.u64.compose %v1714, %v1709
      %v1719 = vextract.low.u32 %v1718
      %v1720 = vextract.high.u32 %v1718
      %v1721 = vmul.u32 %v1714, %v1705
      %v1722 = vadd.s32 %v1717, %v1719
      %vm1723 = vc.u32 %v1717, %v1719
      %v1724 = vadd.s32 %v1720, 1
      %v1725 = vsel %vm1723, %v1724, %v1720
      %v1726 = vadd.s32 %v1721, %v1725
      %v1727 = vadd.s32 %v1726, 536870912
      %v1728 = vshrl.u32 %v1727, 30
      %v1729 = vshll.u32 %v1728, 30
      %v1730 = vsub.s32 %v1726, %v1729
      %vm1731 = vcmp.lt.s32.totalorder %v1730, 0
      %v1732 = vsub.s32 0, %v1730
      %v1733 = vsel %vm1731, %v1732, %v1730
      %v1734 = vclz %v1733
      %v1735 = vsub.s32 %v1734, 2
      %vm1736 = vcmp.gt.s32.totalorder 0, %v1735
      %v1737 = vsel %vm1736, 0, %v1735
      %v1738 = vsub.s32 32, %v1737
      %v1739 = vshll.u32 %v1730, %v1737
      %v1740 = vshrl.u32 %v1722, %v1738
      %v1741 = vor.u32 %v1739, %v1740
      %v1742 = vsub.s32 4294967266, %v1737
      %v1743 = vadd.s32 %v1742, 127
      %v1744 = vshll.u32 %v1743, 23
      %v1745 = vor.u32 4788187, %v1744
      %v1746 = vand.u32 2147483647, %v1745
      %v1748 = vcvt.s32.f32 %v1741
      %v1749 = vmul.f32 %v1748, %v1746
      %v1750 = vxor.u32 %v1749, 2147483648
      %v1751 = vsel %vm1668, %v1750, %v1749
      %v1752 = vsub.s32 4, %v1728
      %v1753 = vsel %vm1668, %v1752, %v1728
      %v1754 = vsel %vm1667, %v697, %v1751
      %v1755 = vsel %vm1667, 0, %v1753
      %v1756 = vcosq.f32.pop %v1754
      %v1757 = vsinq.f32.pop %v1754
      %vm1758 = vweird.f32 %v697
      %v1759 = vadd.s32 %v1755, 3
      %v1760 = vand.u32 %v1759, 3
      %vm1761 = vcmp.lt.s32.totalorder %v1760, 2
      %vm1762 = vcmp.eq.s32.totalorder %v1760, 0
      %v1763 = vxor.u32 %v1757, 2147483648
      %v1764 = vsel %vm1762, %v1756, %v1763
      %vm1765 = vcmp.eq.s32.totalorder %v1760, 2
      %v1766 = vxor.u32 %v1756, 2147483648
      %v1767 = vsel %vm1765, %v1766, %v1757
      %v1768 = vsel %vm1761, %v1764, %v1767
      %v1769 = vsel %vm1758, nan, %v1768
      %v1770 = vand.u32 2147483647, %v702
      %vm1771 = vcmp.le.f32.partialorder %v1770, 0.7853982
      %vm1772 = vcmp.lt.s32.totalorder %v702, 0
      %v1773 = vand.u32 %v702, 2139095040
      %v1774 = vshrl.u32 %v1773, 23
      %v1775 = vsub.s32 %v1774, 127
      %v1776 = vand.u32 2147483647, %v702
      %v1777 = vand.u32 %v1776, 8388607
      %v1778 = vor.u32 %v1777, 8388608
      %v1779 = vsub.s32 0, %v1778
      %v1780 = vadd.s32 %v1775, 1
      %vm1781 = vcmp.gt.s32.totalorder %v1780, 0
      %v1782 = vsel %vm1781, %v1780, 0
      %v1783 = vshrl.u32 %v1782, 5
      %v1784 = vand.u32 %v1782, 31
      %v1785 = vsub.s32 32, %v1784
      %v1786 = vshrl.u32 683565275, %v1785
      %v1787 = vshll.u32 683565275, %v1784
      %v1788 = vshrl.u32 2475754826, %v1785
      %v1789 = vor.u32 %v1787, %v1788
      %v1790 = vshll.u32 2475754826, %v1784
      %v1791 = vshrl.u32 2131351028, %v1785
      %v1792 = vor.u32 %v1790, %v1791
      %v1793 = vshll.u32 2131351028, %v1784
      %v1794 = vshrl.u32 2102212464, %v1785
      %v1795 = vor.u32 %v1793, %v1794
      %v1796 = vshll.u32 2102212464, %v1784
      %v1797 = vshrl.u32 920167782, %v1785
      %v1798 = vor.u32 %v1796, %v1797
      %v1799 = vshll.u32 920167782, %v1784
      %v1800 = vshrl.u32 1326507024, %v1785
      %v1801 = vor.u32 %v1799, %v1800
      %vm1802 = vcmp.lt.s32.totalorder %v1783, 1
      %vm1803 = vcmp.lt.s32.totalorder %v1783, 2
      %vm1804 = vcmp.lt.s32.totalorder %v1783, 3
      %vm1805 = vcmp.lt.s32.totalorder %v1783, 4
      %v1806 = vsel %vm1802, %v1786, %v1789
      %v1807 = vsel %vm1805, %v1795, 2102212464
      %v1808 = vsel %vm1804, %v1792, %v1807
      %v1809 = vsel %vm1803, %v1806, %v1808
      %v1810 = vsel %vm1802, %v1789, %v1792
      %v1811 = vsel %vm1805, %v1798, 920167782
      %v1812 = vsel %vm1804, %v1795, %v1811
      %v1813 = vsel %vm1803, %v1810, %v1812
      %v1814 = vsel %vm1802, %v1792, %v1795
      %v1815 = vsel %vm1805, %v1801, 1326507024
      %v1816 = vsel %vm1804, %v1798, %v1815
      %v1817 = vsel %vm1803, %v1814, %v1816
      %v1818 = vshll.u32 %v1778, 8
      %v1819 = vmul.u32.u64.compose %v1818, %v1817
      %v1820 = vextract.low.u32 %v1819
      %v1821 = vextract.high.u32 %v1819
      %v1822 = vmul.u32.u64.compose %v1818, %v1813
      %v1823 = vextract.low.u32 %v1822
      %v1824 = vextract.high.u32 %v1822
      %v1825 = vmul.u32 %v1818, %v1809
      %v1826 = vadd.s32 %v1821, %v1823
      %vm1827 = vc.u32 %v1821, %v1823
      %v1828 = vadd.s32 %v1824, 1
      %v1829 = vsel %vm1827, %v1828, %v1824
      %v1830 = vadd.s32 %v1825, %v1829
      %v1831 = vadd.s32 %v1830, 536870912
      %v1832 = vshrl.u32 %v1831, 30
      %v1833 = vshll.u32 %v1832, 30
      %v1834 = vsub.s32 %v1830, %v1833
      %vm1835 = vcmp.lt.s32.totalorder %v1834, 0
      %v1836 = vsub.s32 0, %v1834
      %v1837 = vsel %vm1835, %v1836, %v1834
      %v1838 = vclz %v1837
      %v1839 = vsub.s32 %v1838, 2
      %vm1840 = vcmp.gt.s32.totalorder 0, %v1839
      %v1841 = vsel %vm1840, 0, %v1839
      %v1842 = vsub.s32 32, %v1841
      %v1843 = vshll.u32 %v1834, %v1841
      %v1844 = vshrl.u32 %v1826, %v1842
      %v1845 = vor.u32 %v1843, %v1844
      %v1846 = vsub.s32 4294967266, %v1841
      %v1847 = vadd.s32 %v1846, 127
      %v1848 = vshll.u32 %v1847, 23
      %v1849 = vor.u32 4788187, %v1848
      %v1850 = vand.u32 2147483647, %v1849
      %v1852 = vcvt.s32.f32 %v1845
      %v1853 = vmul.f32 %v1852, %v1850
      %v1854 = vxor.u32 %v1853, 2147483648
      %v1855 = vsel %vm1772, %v1854, %v1853
      %v1856 = vsub.s32 4, %v1832
      %v1857 = vsel %vm1772, %v1856, %v1832
      %v1858 = vsel %vm1771, %v702, %v1855
      %v1859 = vsel %vm1771, 0, %v1857
      %v1860 = vcosq.f32.pop %v1858
      %v1861 = vsinq.f32.pop %v1858
      %vm1862 = vweird.f32 %v702
      %v1863 = vadd.s32 %v1859, 3
      %v1864 = vand.u32 %v1863, 3
      %vm1865 = vcmp.lt.s32.totalorder %v1864, 2
      %vm1866 = vcmp.eq.s32.totalorder %v1864, 0
      %v1867 = vxor.u32 %v1861, 2147483648
      %v1868 = vsel %vm1866, %v1860, %v1867
      %vm1869 = vcmp.eq.s32.totalorder %v1864, 2
      %v1870 = vxor.u32 %v1860, 2147483648
      %v1871 = vsel %vm1869, %v1870, %v1861
      %v1872 = vsel %vm1865, %v1868, %v1871
      %v1873 = vsel %vm1862, nan, %v1872
      %v1874 = vand.u32 2147483647, %v707
      %vm1875 = vcmp.le.f32.partialorder %v1874, 0.7853982
      %vm1876 = vcmp.lt.s32.totalorder %v707, 0
      %v1877 = vand.u32 %v707, 2139095040
      %v1878 = vshrl.u32 %v1877, 23
      %v1879 = vsub.s32 %v1878, 127
      %v1880 = vand.u32 2147483647, %v707
      %v1881 = vand.u32 %v1880, 8388607
      %v1882 = vor.u32 %v1881, 8388608
      %v1883 = vsub.s32 0, %v1882
      %v1884 = vadd.s32 %v1879, 1
      %vm1885 = vcmp.gt.s32.totalorder %v1884, 0
      %v1886 = vsel %vm1885, %v1884, 0
      %v1887 = vshrl.u32 %v1886, 5
      %v1888 = vand.u32 %v1886, 31
      %v1889 = vsub.s32 32, %v1888
      %v1890 = vshrl.u32 683565275, %v1889
      %v1891 = vshll.u32 683565275, %v1888
      %v1892 = vshrl.u32 2475754826, %v1889
      %v1893 = vor.u32 %v1891, %v1892
      %v1894 = vshll.u32 2475754826, %v1888
      %v1895 = vshrl.u32 2131351028, %v1889
      %v1896 = vor.u32 %v1894, %v1895
      %v1897 = vshll.u32 2131351028, %v1888
      %v1898 = vshrl.u32 2102212464, %v1889
      %v1899 = vor.u32 %v1897, %v1898
      %v1900 = vshll.u32 2102212464, %v1888
      %v1901 = vshrl.u32 920167782, %v1889
      %v1902 = vor.u32 %v1900, %v1901
      %v1903 = vshll.u32 920167782, %v1888
      %v1904 = vshrl.u32 1326507024, %v1889
      %v1905 = vor.u32 %v1903, %v1904
      %vm1906 = vcmp.lt.s32.totalorder %v1887, 1
      %vm1907 = vcmp.lt.s32.totalorder %v1887, 2
      %vm1908 = vcmp.lt.s32.totalorder %v1887, 3
      %vm1909 = vcmp.lt.s32.totalorder %v1887, 4
      %v1910 = vsel %vm1906, %v1890, %v1893
      %v1911 = vsel %vm1909, %v1899, 2102212464
      %v1912 = vsel %vm1908, %v1896, %v1911
      %v1913 = vsel %vm1907, %v1910, %v1912
      %v1914 = vsel %vm1906, %v1893, %v1896
      %v1915 = vsel %vm1909, %v1902, 920167782
      %v1916 = vsel %vm1908, %v1899, %v1915
      %v1917 = vsel %vm1907, %v1914, %v1916
      %v1918 = vsel %vm1906, %v1896, %v1899
      %v1919 = vsel %vm1909, %v1905, 1326507024
      %v1920 = vsel %vm1908, %v1902, %v1919
      %v1921 = vsel %vm1907, %v1918, %v1920
      %v1922 = vshll.u32 %v1882, 8
      %v1923 = vmul.u32.u64.compose %v1922, %v1921
      %v1924 = vextract.low.u32 %v1923
      %v1925 = vextract.high.u32 %v1923
      %v1926 = vmul.u32.u64.compose %v1922, %v1917
      %v1927 = vextract.low.u32 %v1926
      %v1928 = vextract.high.u32 %v1926
      %v1929 = vmul.u32 %v1922, %v1913
      %v1930 = vadd.s32 %v1925, %v1927
      %vm1931 = vc.u32 %v1925, %v1927
      %v1932 = vadd.s32 %v1928, 1
      %v1933 = vsel %vm1931, %v1932, %v1928
      %v1934 = vadd.s32 %v1929, %v1933
      %v1935 = vadd.s32 %v1934, 536870912
      %v1936 = vshrl.u32 %v1935, 30
      %v1937 = vshll.u32 %v1936, 30
      %v1938 = vsub.s32 %v1934, %v1937
      %vm1939 = vcmp.lt.s32.totalorder %v1938, 0
      %v1940 = vsub.s32 0, %v1938
      %v1941 = vsel %vm1939, %v1940, %v1938
      %v1942 = vclz %v1941
      %v1943 = vsub.s32 %v1942, 2
      %vm1944 = vcmp.gt.s32.totalorder 0, %v1943
      %v1945 = vsel %vm1944, 0, %v1943
      %v1946 = vsub.s32 32, %v1945
      %v1947 = vshll.u32 %v1938, %v1945
      %v1948 = vshrl.u32 %v1930, %v1946
      %v1949 = vor.u32 %v1947, %v1948
      %v1950 = vsub.s32 4294967266, %v1945
      %v1951 = vadd.s32 %v1950, 127
      %v1952 = vshll.u32 %v1951, 23
      %v1953 = vor.u32 4788187, %v1952
      %v1954 = vand.u32 2147483647, %v1953
      %v1956 = vcvt.s32.f32 %v1949
      %v1957 = vmul.f32 %v1956, %v1954
      %v1958 = vxor.u32 %v1957, 2147483648
      %v1959 = vsel %vm1876, %v1958, %v1957
      %v1960 = vsub.s32 4, %v1936
      %v1961 = vsel %vm1876, %v1960, %v1936
      %v1962 = vsel %vm1875, %v707, %v1959
      %v1963 = vsel %vm1875, 0, %v1961
      %v1964 = vcosq.f32.pop %v1962
      %v1965 = vsinq.f32.pop %v1962
      %vm1966 = vweird.f32 %v707
      %v1967 = vadd.s32 %v1963, 3
      %v1968 = vand.u32 %v1967, 3
      %vm1969 = vcmp.lt.s32.totalorder %v1968, 2
      %vm1970 = vcmp.eq.s32.totalorder %v1968, 0
      %v1971 = vxor.u32 %v1965, 2147483648
      %v1972 = vsel %vm1970, %v1964, %v1971
      %vm1973 = vcmp.eq.s32.totalorder %v1968, 2
      %v1974 = vxor.u32 %v1964, 2147483648
      %v1975 = vsel %vm1973, %v1974, %v1965
      %v1976 = vsel %vm1969, %v1972, %v1975
      %v1977 = vsel %vm1966, nan, %v1976
      %v1978 = vand.u32 2147483647, %v712
      %vm1979 = vcmp.le.f32.partialorder %v1978, 0.7853982
      %vm1980 = vcmp.lt.s32.totalorder %v712, 0
      %v1981 = vand.u32 %v712, 2139095040
      %v1982 = vshrl.u32 %v1981, 23
      %v1983 = vsub.s32 %v1982, 127
      %v1984 = vand.u32 2147483647, %v712
      %v1985 = vand.u32 %v1984, 8388607
      %v1986 = vor.u32 %v1985, 8388608
      %v1987 = vsub.s32 0, %v1986
      %v1988 = vadd.s32 %v1983, 1
      %vm1989 = vcmp.gt.s32.totalorder %v1988, 0
      %v1990 = vsel %vm1989, %v1988, 0
      %v1991 = vshrl.u32 %v1990, 5
      %v1992 = vand.u32 %v1990, 31
      %v1993 = vsub.s32 32, %v1992
      %v1994 = vshrl.u32 683565275, %v1993
      %v1995 = vshll.u32 683565275, %v1992
      %v1996 = vshrl.u32 2475754826, %v1993
      %v1997 = vor.u32 %v1995, %v1996
      %v1998 = vshll.u32 2475754826, %v1992
      %v1999 = vshrl.u32 2131351028, %v1993
      %v2000 = vor.u32 %v1998, %v1999
      %v2001 = vshll.u32 2131351028, %v1992
      %v2002 = vshrl.u32 2102212464, %v1993
      %v2003 = vor.u32 %v2001, %v2002
      %v2004 = vshll.u32 2102212464, %v1992
      %v2005 = vshrl.u32 920167782, %v1993
      %v2006 = vor.u32 %v2004, %v2005
      %v2007 = vshll.u32 920167782, %v1992
      %v2008 = vshrl.u32 1326507024, %v1993
      %v2009 = vor.u32 %v2007, %v2008
      %vm2010 = vcmp.lt.s32.totalorder %v1991, 1
      %vm2011 = vcmp.lt.s32.totalorder %v1991, 2
      %vm2012 = vcmp.lt.s32.totalorder %v1991, 3
      %vm2013 = vcmp.lt.s32.totalorder %v1991, 4
      %v2014 = vsel %vm2010, %v1994, %v1997
      %v2015 = vsel %vm2013, %v2003, 2102212464
      %v2016 = vsel %vm2012, %v2000, %v2015
      %v2017 = vsel %vm2011, %v2014, %v2016
      %v2018 = vsel %vm2010, %v1997, %v2000
      %v2019 = vsel %vm2013, %v2006, 920167782
      %v2020 = vsel %vm2012, %v2003, %v2019
      %v2021 = vsel %vm2011, %v2018, %v2020
      %v2022 = vsel %vm2010, %v2000, %v2003
      %v2023 = vsel %vm2013, %v2009, 1326507024
      %v2024 = vsel %vm2012, %v2006, %v2023
      %v2025 = vsel %vm2011, %v2022, %v2024
      %v2026 = vshll.u32 %v1986, 8
      %v2027 = vmul.u32.u64.compose %v2026, %v2025
      %v2028 = vextract.low.u32 %v2027
      %v2029 = vextract.high.u32 %v2027
      %v2030 = vmul.u32.u64.compose %v2026, %v2021
      %v2031 = vextract.low.u32 %v2030
      %v2032 = vextract.high.u32 %v2030
      %v2033 = vmul.u32 %v2026, %v2017
      %v2034 = vadd.s32 %v2029, %v2031
      %vm2035 = vc.u32 %v2029, %v2031
      %v2036 = vadd.s32 %v2032, 1
      %v2037 = vsel %vm2035, %v2036, %v2032
      %v2038 = vadd.s32 %v2033, %v2037
      %v2039 = vadd.s32 %v2038, 536870912
      %v2040 = vshrl.u32 %v2039, 30
      %v2041 = vshll.u32 %v2040, 30
      %v2042 = vsub.s32 %v2038, %v2041
      %vm2043 = vcmp.lt.s32.totalorder %v2042, 0
      %v2044 = vsub.s32 0, %v2042
      %v2045 = vsel %vm2043, %v2044, %v2042
      %v2046 = vclz %v2045
      %v2047 = vsub.s32 %v2046, 2
      %vm2048 = vcmp.gt.s32.totalorder 0, %v2047
      %v2049 = vsel %vm2048, 0, %v2047
      %v2050 = vsub.s32 32, %v2049
      %v2051 = vshll.u32 %v2042, %v2049
      %v2052 = vshrl.u32 %v2034, %v2050
      %v2053 = vor.u32 %v2051, %v2052
      %v2054 = vsub.s32 4294967266, %v2049
      %v2055 = vadd.s32 %v2054, 127
      %v2056 = vshll.u32 %v2055, 23
      %v2057 = vor.u32 4788187, %v2056
      %v2058 = vand.u32 2147483647, %v2057
      %v2060 = vcvt.s32.f32 %v2053
      %v2061 = vmul.f32 %v2060, %v2058
      %v2062 = vxor.u32 %v2061, 2147483648
      %v2063 = vsel %vm1980, %v2062, %v2061
      %v2064 = vsub.s32 4, %v2040
      %v2065 = vsel %vm1980, %v2064, %v2040
      %v2066 = vsel %vm1979, %v712, %v2063
      %v2067 = vsel %vm1979, 0, %v2065
      %v2068 = vcosq.f32.pop %v2066
      %v2069 = vsinq.f32.pop %v2066
      %vm2070 = vweird.f32 %v712
      %v2071 = vadd.s32 %v2067, 3
      %v2072 = vand.u32 %v2071, 3
      %vm2073 = vcmp.lt.s32.totalorder %v2072, 2
      %vm2074 = vcmp.eq.s32.totalorder %v2072, 0
      %v2075 = vxor.u32 %v2069, 2147483648
      %v2076 = vsel %vm2074, %v2068, %v2075
      %vm2077 = vcmp.eq.s32.totalorder %v2072, 2
      %v2078 = vxor.u32 %v2068, 2147483648
      %v2079 = vsel %vm2077, %v2078, %v2069
      %v2080 = vsel %vm2073, %v2076, %v2079
      %v2081 = vsel %vm2070, nan, %v2080
      %v2082 = vand.u32 2147483647, %v717
      %vm2083 = vcmp.le.f32.partialorder %v2082, 0.7853982
      %vm2084 = vcmp.lt.s32.totalorder %v717, 0
      %v2085 = vand.u32 %v717, 2139095040
      %v2086 = vshrl.u32 %v2085, 23
      %v2087 = vsub.s32 %v2086, 127
      %v2088 = vand.u32 2147483647, %v717
      %v2089 = vand.u32 %v2088, 8388607
      %v2090 = vor.u32 %v2089, 8388608
      %v2091 = vsub.s32 0, %v2090
      %v2092 = vadd.s32 %v2087, 1
      %vm2093 = vcmp.gt.s32.totalorder %v2092, 0
      %v2094 = vsel %vm2093, %v2092, 0
      %v2095 = vshrl.u32 %v2094, 5
      %v2096 = vand.u32 %v2094, 31
      %v2097 = vsub.s32 32, %v2096
      %v2098 = vshrl.u32 683565275, %v2097
      %v2099 = vshll.u32 683565275, %v2096
      %v2100 = vshrl.u32 2475754826, %v2097
      %v2101 = vor.u32 %v2099, %v2100
      %v2102 = vshll.u32 2475754826, %v2096
      %v2103 = vshrl.u32 2131351028, %v2097
      %v2104 = vor.u32 %v2102, %v2103
      %v2105 = vshll.u32 2131351028, %v2096
      %v2106 = vshrl.u32 2102212464, %v2097
      %v2107 = vor.u32 %v2105, %v2106
      %v2108 = vshll.u32 2102212464, %v2096
      %v2109 = vshrl.u32 920167782, %v2097
      %v2110 = vor.u32 %v2108, %v2109
      %v2111 = vshll.u32 920167782, %v2096
      %v2112 = vshrl.u32 1326507024, %v2097
      %v2113 = vor.u32 %v2111, %v2112
      %vm2114 = vcmp.lt.s32.totalorder %v2095, 1
      %vm2115 = vcmp.lt.s32.totalorder %v2095, 2
      %vm2116 = vcmp.lt.s32.totalorder %v2095, 3
      %vm2117 = vcmp.lt.s32.totalorder %v2095, 4
      %v2118 = vsel %vm2114, %v2098, %v2101
      %v2119 = vsel %vm2117, %v2107, 2102212464
      %v2120 = vsel %vm2116, %v2104, %v2119
      %v2121 = vsel %vm2115, %v2118, %v2120
      %v2122 = vsel %vm2114, %v2101, %v2104
      %v2123 = vsel %vm2117, %v2110, 920167782
      %v2124 = vsel %vm2116, %v2107, %v2123
      %v2125 = vsel %vm2115, %v2122, %v2124
      %v2126 = vsel %vm2114, %v2104, %v2107
      %v2127 = vsel %vm2117, %v2113, 1326507024
      %v2128 = vsel %vm2116, %v2110, %v2127
      %v2129 = vsel %vm2115, %v2126, %v2128
      %v2130 = vshll.u32 %v2090, 8
      %v2131 = vmul.u32.u64.compose %v2130, %v2129
      %v2132 = vextract.low.u32 %v2131
      %v2133 = vextract.high.u32 %v2131
      %v2134 = vmul.u32.u64.compose %v2130, %v2125
      %v2135 = vextract.low.u32 %v2134
      %v2136 = vextract.high.u32 %v2134
      %v2137 = vmul.u32 %v2130, %v2121
      %v2138 = vadd.s32 %v2133, %v2135
      %vm2139 = vc.u32 %v2133, %v2135
      %v2140 = vadd.s32 %v2136, 1
      %v2141 = vsel %vm2139, %v2140, %v2136
      %v2142 = vadd.s32 %v2137, %v2141
      %v2143 = vadd.s32 %v2142, 536870912
      %v2144 = vshrl.u32 %v2143, 30
      %v2145 = vshll.u32 %v2144, 30
      %v2146 = vsub.s32 %v2142, %v2145
      %vm2147 = vcmp.lt.s32.totalorder %v2146, 0
      %v2148 = vsub.s32 0, %v2146
      %v2149 = vsel %vm2147, %v2148, %v2146
      %v2150 = vclz %v2149
      %v2151 = vsub.s32 %v2150, 2
      %vm2152 = vcmp.gt.s32.totalorder 0, %v2151
      %v2153 = vsel %vm2152, 0, %v2151
      %v2154 = vsub.s32 32, %v2153
      %v2155 = vshll.u32 %v2146, %v2153
      %v2156 = vshrl.u32 %v2138, %v2154
      %v2157 = vor.u32 %v2155, %v2156
      %v2158 = vsub.s32 4294967266, %v2153
      %v2159 = vadd.s32 %v2158, 127
      %v2160 = vshll.u32 %v2159, 23
      %v2161 = vor.u32 4788187, %v2160
      %v2162 = vand.u32 2147483647, %v2161
      %v2164 = vcvt.s32.f32 %v2157
      %v2165 = vmul.f32 %v2164, %v2162
      %v2166 = vxor.u32 %v2165, 2147483648
      %v2167 = vsel %vm2084, %v2166, %v2165
      %v2168 = vsub.s32 4, %v2144
      %v2169 = vsel %vm2084, %v2168, %v2144
      %v2170 = vsel %vm2083, %v717, %v2167
      %v2171 = vsel %vm2083, 0, %v2169
      %v2172 = vcosq.f32.pop %v2170
      %v2173 = vsinq.f32.pop %v2170
      %vm2174 = vweird.f32 %v717
      %v2175 = vadd.s32 %v2171, 3
      %v2176 = vand.u32 %v2175, 3
      %vm2177 = vcmp.lt.s32.totalorder %v2176, 2
      %vm2178 = vcmp.eq.s32.totalorder %v2176, 0
      %v2179 = vxor.u32 %v2173, 2147483648
      %v2180 = vsel %vm2178, %v2172, %v2179
      %vm2181 = vcmp.eq.s32.totalorder %v2176, 2
      %v2182 = vxor.u32 %v2172, 2147483648
      %v2183 = vsel %vm2181, %v2182, %v2173
      %v2184 = vsel %vm2177, %v2180, %v2183
      %v2185 = vsel %vm2174, nan, %v2184
      %v2186 = vand.u32 2147483647, %v722
      %vm2187 = vcmp.le.f32.partialorder %v2186, 0.7853982
      %vm2188 = vcmp.lt.s32.totalorder %v722, 0
      %v2189 = vand.u32 %v722, 2139095040
      %v2190 = vshrl.u32 %v2189, 23
      %v2191 = vsub.s32 %v2190, 127
      %v2192 = vand.u32 2147483647, %v722
      %v2193 = vand.u32 %v2192, 8388607
      %v2194 = vor.u32 %v2193, 8388608
      %v2195 = vsub.s32 0, %v2194
      %v2196 = vadd.s32 %v2191, 1
      %vm2197 = vcmp.gt.s32.totalorder %v2196, 0
      %v2198 = vsel %vm2197, %v2196, 0
      %v2199 = vshrl.u32 %v2198, 5
      %v2200 = vand.u32 %v2198, 31
      %v2201 = vsub.s32 32, %v2200
      %v2202 = vshrl.u32 683565275, %v2201
      %v2203 = vshll.u32 683565275, %v2200
      %v2204 = vshrl.u32 2475754826, %v2201
      %v2205 = vor.u32 %v2203, %v2204
      %v2206 = vshll.u32 2475754826, %v2200
      %v2207 = vshrl.u32 2131351028, %v2201
      %v2208 = vor.u32 %v2206, %v2207
      %v2209 = vshll.u32 2131351028, %v2200
      %v2210 = vshrl.u32 2102212464, %v2201
      %v2211 = vor.u32 %v2209, %v2210
      %v2212 = vshll.u32 2102212464, %v2200
      %v2213 = vshrl.u32 920167782, %v2201
      %v2214 = vor.u32 %v2212, %v2213
      %v2215 = vshll.u32 920167782, %v2200
      %v2216 = vshrl.u32 1326507024, %v2201
      %v2217 = vor.u32 %v2215, %v2216
      %vm2218 = vcmp.lt.s32.totalorder %v2199, 1
      %vm2219 = vcmp.lt.s32.totalorder %v2199, 2
      %vm2220 = vcmp.lt.s32.totalorder %v2199, 3
      %vm2221 = vcmp.lt.s32.totalorder %v2199, 4
      %v2222 = vsel %vm2218, %v2202, %v2205
      %v2223 = vsel %vm2221, %v2211, 2102212464
      %v2224 = vsel %vm2220, %v2208, %v2223
      %v2225 = vsel %vm2219, %v2222, %v2224
      %v2226 = vsel %vm2218, %v2205, %v2208
      %v2227 = vsel %vm2221, %v2214, 920167782
      %v2228 = vsel %vm2220, %v2211, %v2227
      %v2229 = vsel %vm2219, %v2226, %v2228
      %v2230 = vsel %vm2218, %v2208, %v2211
      %v2231 = vsel %vm2221, %v2217, 1326507024
      %v2232 = vsel %vm2220, %v2214, %v2231
      %v2233 = vsel %vm2219, %v2230, %v2232
      %v2234 = vshll.u32 %v2194, 8
      %v2235 = vmul.u32.u64.compose %v2234, %v2233
      %v2236 = vextract.low.u32 %v2235
      %v2237 = vextract.high.u32 %v2235
      %v2238 = vmul.u32.u64.compose %v2234, %v2229
      %v2239 = vextract.low.u32 %v2238
      %v2240 = vextract.high.u32 %v2238
      %v2241 = vmul.u32 %v2234, %v2225
      %v2242 = vadd.s32 %v2237, %v2239
      %vm2243 = vc.u32 %v2237, %v2239
      %v2244 = vadd.s32 %v2240, 1
      %v2245 = vsel %vm2243, %v2244, %v2240
      %v2246 = vadd.s32 %v2241, %v2245
      %v2247 = vadd.s32 %v2246, 536870912
      %v2248 = vshrl.u32 %v2247, 30
      %v2249 = vshll.u32 %v2248, 30
      %v2250 = vsub.s32 %v2246, %v2249
      %vm2251 = vcmp.lt.s32.totalorder %v2250, 0
      %v2252 = vsub.s32 0, %v2250
      %v2253 = vsel %vm2251, %v2252, %v2250
      %v2254 = vclz %v2253
      %v2255 = vsub.s32 %v2254, 2
      %vm2256 = vcmp.gt.s32.totalorder 0, %v2255
      %v2257 = vsel %vm2256, 0, %v2255
      %v2258 = vsub.s32 32, %v2257
      %v2259 = vshll.u32 %v2250, %v2257
      %v2260 = vshrl.u32 %v2242, %v2258
      %v2261 = vor.u32 %v2259, %v2260
      %v2262 = vsub.s32 4294967266, %v2257
      %v2263 = vadd.s32 %v2262, 127
      %v2264 = vshll.u32 %v2263, 23
      %v2265 = vor.u32 4788187, %v2264
      %v2266 = vand.u32 2147483647, %v2265
      %v2268 = vcvt.s32.f32 %v2261
      %v2269 = vmul.f32 %v2268, %v2266
      %v2270 = vxor.u32 %v2269, 2147483648
      %v2271 = vsel %vm2188, %v2270, %v2269
      %v2272 = vsub.s32 4, %v2248
      %v2273 = vsel %vm2188, %v2272, %v2248
      %v2274 = vsel %vm2187, %v722, %v2271
      %v2275 = vsel %vm2187, 0, %v2273
      %v2276 = vcosq.f32.pop %v2274
      %v2277 = vsinq.f32.pop %v2274
      %vm2278 = vweird.f32 %v722
      %v2279 = vadd.s32 %v2275, 3
      %v2280 = vand.u32 %v2279, 3
      %vm2281 = vcmp.lt.s32.totalorder %v2280, 2
      %vm2282 = vcmp.eq.s32.totalorder %v2280, 0
      %v2283 = vxor.u32 %v2277, 2147483648
      %v2284 = vsel %vm2282, %v2276, %v2283
      %vm2285 = vcmp.eq.s32.totalorder %v2280, 2
      %v2286 = vxor.u32 %v2276, 2147483648
      %v2287 = vsel %vm2285, %v2286, %v2277
      %v2288 = vsel %vm2281, %v2284, %v2287
      %v2289 = vsel %vm2278, nan, %v2288
      %v2290 = vand.u32 2147483647, %v727
      %vm2291 = vcmp.le.f32.partialorder %v2290, 0.7853982
      %vm2292 = vcmp.lt.s32.totalorder %v727, 0
      %v2293 = vand.u32 %v727, 2139095040
      %v2294 = vshrl.u32 %v2293, 23
      %v2295 = vsub.s32 %v2294, 127
      %v2296 = vand.u32 2147483647, %v727
      %v2297 = vand.u32 %v2296, 8388607
      %v2298 = vor.u32 %v2297, 8388608
      %v2299 = vsub.s32 0, %v2298
      %v2300 = vadd.s32 %v2295, 1
      %vm2301 = vcmp.gt.s32.totalorder %v2300, 0
      %v2302 = vsel %vm2301, %v2300, 0
      %v2303 = vshrl.u32 %v2302, 5
      %v2304 = vand.u32 %v2302, 31
      %v2305 = vsub.s32 32, %v2304
      %v2306 = vshrl.u32 683565275, %v2305
      %v2307 = vshll.u32 683565275, %v2304
      %v2308 = vshrl.u32 2475754826, %v2305
      %v2309 = vor.u32 %v2307, %v2308
      %v2310 = vshll.u32 2475754826, %v2304
      %v2311 = vshrl.u32 2131351028, %v2305
      %v2312 = vor.u32 %v2310, %v2311
      %v2313 = vshll.u32 2131351028, %v2304
      %v2314 = vshrl.u32 2102212464, %v2305
      %v2315 = vor.u32 %v2313, %v2314
      %v2316 = vshll.u32 2102212464, %v2304
      %v2317 = vshrl.u32 920167782, %v2305
      %v2318 = vor.u32 %v2316, %v2317
      %v2319 = vshll.u32 920167782, %v2304
      %v2320 = vshrl.u32 1326507024, %v2305
      %v2321 = vor.u32 %v2319, %v2320
      %vm2322 = vcmp.lt.s32.totalorder %v2303, 1
      %vm2323 = vcmp.lt.s32.totalorder %v2303, 2
      %vm2324 = vcmp.lt.s32.totalorder %v2303, 3
      %vm2325 = vcmp.lt.s32.totalorder %v2303, 4
      %v2326 = vsel %vm2322, %v2306, %v2309
      %v2327 = vsel %vm2325, %v2315, 2102212464
      %v2328 = vsel %vm2324, %v2312, %v2327
      %v2329 = vsel %vm2323, %v2326, %v2328
      %v2330 = vsel %vm2322, %v2309, %v2312
      %v2331 = vsel %vm2325, %v2318, 920167782
      %v2332 = vsel %vm2324, %v2315, %v2331
      %v2333 = vsel %vm2323, %v2330, %v2332
      %v2334 = vsel %vm2322, %v2312, %v2315
      %v2335 = vsel %vm2325, %v2321, 1326507024
      %v2336 = vsel %vm2324, %v2318, %v2335
      %v2337 = vsel %vm2323, %v2334, %v2336
      %v2338 = vshll.u32 %v2298, 8
      %v2339 = vmul.u32.u64.compose %v2338, %v2337
      %v2340 = vextract.low.u32 %v2339
      %v2341 = vextract.high.u32 %v2339
      %v2342 = vmul.u32.u64.compose %v2338, %v2333
      %v2343 = vextract.low.u32 %v2342
      %v2344 = vextract.high.u32 %v2342
      %v2345 = vmul.u32 %v2338, %v2329
      %v2346 = vadd.s32 %v2341, %v2343
      %vm2347 = vc.u32 %v2341, %v2343
      %v2348 = vadd.s32 %v2344, 1
      %v2349 = vsel %vm2347, %v2348, %v2344
      %v2350 = vadd.s32 %v2345, %v2349
      %v2351 = vadd.s32 %v2350, 536870912
      %v2352 = vshrl.u32 %v2351, 30
      %v2353 = vshll.u32 %v2352, 30
      %v2354 = vsub.s32 %v2350, %v2353
      %vm2355 = vcmp.lt.s32.totalorder %v2354, 0
      %v2356 = vsub.s32 0, %v2354
      %v2357 = vsel %vm2355, %v2356, %v2354
      %v2358 = vclz %v2357
      %v2359 = vsub.s32 %v2358, 2
      %vm2360 = vcmp.gt.s32.totalorder 0, %v2359
      %v2361 = vsel %vm2360, 0, %v2359
      %v2362 = vsub.s32 32, %v2361
      %v2363 = vshll.u32 %v2354, %v2361
      %v2364 = vshrl.u32 %v2346, %v2362
      %v2365 = vor.u32 %v2363, %v2364
      %v2366 = vsub.s32 4294967266, %v2361
      %v2367 = vadd.s32 %v2366, 127
      %v2368 = vshll.u32 %v2367, 23
      %v2369 = vor.u32 4788187, %v2368
      %v2370 = vand.u32 2147483647, %v2369
      %v2372 = vcvt.s32.f32 %v2365
      %v2373 = vmul.f32 %v2372, %v2370
      %v2374 = vxor.u32 %v2373, 2147483648
      %v2375 = vsel %vm2292, %v2374, %v2373
      %v2376 = vsub.s32 4, %v2352
      %v2377 = vsel %vm2292, %v2376, %v2352
      %v2378 = vsel %vm2291, %v727, %v2375
      %v2379 = vsel %vm2291, 0, %v2377
      %v2380 = vcosq.f32.pop %v2378
      %v2381 = vsinq.f32.pop %v2378
      %vm2382 = vweird.f32 %v727
      %v2383 = vadd.s32 %v2379, 3
      %v2384 = vand.u32 %v2383, 3
      %vm2385 = vcmp.lt.s32.totalorder %v2384, 2
      %vm2386 = vcmp.eq.s32.totalorder %v2384, 0
      %v2387 = vxor.u32 %v2381, 2147483648
      %v2388 = vsel %vm2386, %v2380, %v2387
      %vm2389 = vcmp.eq.s32.totalorder %v2384, 2
      %v2390 = vxor.u32 %v2380, 2147483648
      %v2391 = vsel %vm2389, %v2390, %v2381
      %v2392 = vsel %vm2385, %v2388, %v2391
      %v2393 = vsel %vm2382, nan, %v2392
      %v2394 = vpack.c.bf16 %v937, %v833
      %v2395 = vpack.c.bf16 %v1145, %v1041
      %v2396 = vpack.c.bf16 %v1353, %v1249
      %v2397 = vpack.c.bf16 %v1561, %v1457
      %v2398 = vpack.c.bf16 %v1769, %v1665
      %v2399 = vpack.c.bf16 %v1977, %v1873
      %v2400 = vpack.c.bf16 %v2185, %v2081
      %v2401 = vpack.c.bf16 %v2393, %v2289
      %v2402 = vld [vmem:[%s4] sm:$0xf]
      %v2403 = vld [vmem:[%s4 + $0x4] sm:$0xf]
      %v2404 = vld [vmem:[%s4 + $0x8] sm:$0xf]
      %v2408 = vunpack.c.l.b16 %v2402
      %v2409 = vunpack.c.l.b16 %v2403
      %v2410 = vunpack.c.l.b16 %v2404
      %v2411 = vpack.c.b16 %v2409, %v2408
      %v2412 = vpack.c.b16 %v2410, %v2410
      %vm2414 = vcmask 195584
      %v2416 = vsel %vm2414, %v2394, 0
      %v2419 = vsel %vm2414, %v2395, 0
      %v2422 = vsel %vm2414, %v2396, 0
      %v2425 = vsel %vm2414, %v2397, 0
      %v2428 = vsel %vm2414, %v2398, 0
      %v2431 = vsel %vm2414, %v2399, 0
      %v2434 = vsel %vm2414, %v2400, 0
      %v2437 = vsel %vm2414, %v2401, 0
      %vm2439 = vcmask 1043456
      %v2441 = vsel %vm2439, %v2412, 0
      %2443 = vmatprep.subr.bf16.mxu0 0
      %2444 = vmatpush1.bf16.msra.mxu0 0
      %2445 = vmatprep.subr.bf16.mxu0 0
      %2446 = vmatpush1.bf16.msra.mxu0 0
      %2447 = vmatprep.subr.bf16.mxu0 0
      %2448 = vmatpush1.bf16.msra.mxu0 0
      %2449 = vmatprep.subr.bf16.mxu0 0
      %2450 = vmatpush1.bf16.msra.mxu0 0
      %2451 = vmatprep.subr.bf16.mxu0 0
      %2452 = vmatpush1.bf16.msra.mxu0 0
      %2453 = vmatprep.subr.bf16.mxu0 0
      %2454 = vmatpush1.bf16.msra.mxu0 0
      %2455 = vmatprep.subr.bf16.mxu0 0
      %2456 = vmatpush1.bf16.msra.mxu0 %v2441
      %2457 = vmatprep.subr.bf16.mxu0 0
      %2458 = vmatpush1.bf16.msra.mxu0 %v2411
      %2459 = vmatprep.subr.bf16.mxu0 0
      %2460 = vmatpush2.bf16.msra.mxu0 0
      %2461 = vmatprep.subr.bf16.mxu0 0
      %2462 = vmatpush2.bf16.msra.mxu0 0
      %2463 = vmatprep.subr.bf16.mxu0 0
      %2464 = vmatpush2.bf16.msra.mxu0 0
      %2465 = vmatprep.subr.bf16.mxu0 0
      %2466 = vmatpush2.bf16.msra.mxu0 0
      %2467 = vmatprep.subr.bf16.mxu0 0
      %2468 = vmatpush2.bf16.msra.mxu0 0
      %2469 = vmatprep.subr.bf16.mxu0 0
      %2470 = vmatpush2.bf16.msra.mxu0 0
      %2471 = vmatprep.subr.bf16.mxu0 0
      %2472 = vmatpush2.bf16.msra.mxu0 0
      %2473 = vmatprep.subr.bf16.mxu0 0
      %2474 = vmatpush2.bf16.msra.mxu0 0
      %2475 = vmatprep.mubr.bf16.mxu0 0
      %2476 = vmatmul.mubr.bf16.gmra.mxu0 %v2416
      %v2477 = vpop.f32.mrf.mxu0
      %v2478 = vadd.f32 0.0, %v2477
      %v2479 = vpop.f32.mrf.mxu0
      %v2480 = vpop.f32.mrf.mxu0
      %v2481 = vadd.f32 0.0, %v2480
      %v2482 = vpop.f32.mrf.mxu0
      %2483 = vmatprep.mubr.bf16.mxu0 0
      %2484 = vmatmul.mubr.bf16.gmra.mxu0 %v2419
      %v2485 = vpop.f32.mrf.mxu0
      %v2486 = vadd.f32 0.0, %v2485
      %v2487 = vpop.f32.mrf.mxu0
      %v2488 = vpop.f32.mrf.mxu0
      %v2489 = vadd.f32 0.0, %v2488
      %v2490 = vpop.f32.mrf.mxu0
      %2491 = vmatprep.mubr.bf16.mxu0 0
      %2492 = vmatmul.mubr.bf16.gmra.mxu0 %v2422
      %v2493 = vpop.f32.mrf.mxu0
      %v2494 = vadd.f32 0.0, %v2493
      %v2495 = vpop.f32.mrf.mxu0
      %v2496 = vpop.f32.mrf.mxu0
      %v2497 = vadd.f32 0.0, %v2496
      %v2498 = vpop.f32.mrf.mxu0
      %2499 = vmatprep.mubr.bf16.mxu0 0
      %2500 = vmatmul.mubr.bf16.gmra.mxu0 %v2425
      %v2501 = vpop.f32.mrf.mxu0
      %v2502 = vadd.f32 0.0, %v2501
      %v2503 = vpop.f32.mrf.mxu0
      %v2504 = vpop.f32.mrf.mxu0
      %v2505 = vadd.f32 0.0, %v2504
      %v2506 = vpop.f32.mrf.mxu0
      %2507 = vmatprep.mubr.bf16.mxu0 0
      %2508 = vmatmul.mubr.bf16.gmra.mxu0 %v2428
      %v2509 = vpop.f32.mrf.mxu0
      %v2510 = vadd.f32 0.0, %v2509
      %v2511 = vpop.f32.mrf.mxu0
      %v2512 = vpop.f32.mrf.mxu0
      %v2513 = vadd.f32 0.0, %v2512
      %v2514 = vpop.f32.mrf.mxu0
      %2515 = vmatprep.mubr.bf16.mxu0 0
      %2516 = vmatmul.mubr.bf16.gmra.mxu0 %v2431
      %v2517 = vpop.f32.mrf.mxu0
      %v2518 = vadd.f32 0.0, %v2517
      %v2519 = vpop.f32.mrf.mxu0
      %v2520 = vpop.f32.mrf.mxu0
      %v2521 = vadd.f32 0.0, %v2520
      %v2522 = vpop.f32.mrf.mxu0
      %2523 = vmatprep.mubr.bf16.mxu0 0
      %2524 = vmatmul.mubr.bf16.gmra.mxu0 %v2434
      %v2525 = vpop.f32.mrf.mxu0
      %v2526 = vadd.f32 0.0, %v2525
      %v2527 = vpop.f32.mrf.mxu0
      %v2528 = vpop.f32.mrf.mxu0
      %v2529 = vadd.f32 0.0, %v2528
      %v2530 = vpop.f32.mrf.mxu0
      %2531 = vmatprep.mubr.bf16.mxu0 0
      %2532 = vmatmul.mubr.bf16.gmra.mxu0 %v2437
      %v2533 = vpop.f32.mrf.mxu0
      %v2534 = vadd.f32 0.0, %v2533
      %v2535 = vpop.f32.mrf.mxu0
      %v2536 = vpop.f32.mrf.mxu0
      %v2537 = vadd.f32 0.0, %v2536
      %v2538 = vpop.f32.mrf.mxu0
      %2539 = vdwg.mxu0
      %v2540 = vadd.f32 %v463, %v2478
      %v2541 = vadd.f32 %v466, %v2481
      %v2542 = vadd.f32 %v471, %v2486
      %v2543 = vadd.f32 %v474, %v2489
      %v2544 = vadd.f32 %v479, %v2494
      %v2545 = vadd.f32 %v482, %v2497
      %v2546 = vadd.f32 %v487, %v2502
      %v2547 = vadd.f32 %v490, %v2505
      %v2548 = vadd.f32 %v495, %v2510
      %v2549 = vadd.f32 %v498, %v2513
      %v2550 = vadd.f32 %v503, %v2518
      %v2551 = vadd.f32 %v506, %v2521
      %v2552 = vadd.f32 %v511, %v2526
      %v2553 = vadd.f32 %v514, %v2529
      %v2554 = vadd.f32 %v519, %v2534
      %v2555 = vadd.f32 %v522, %v2537
      %v2556 = vmul.f32 %v364, 0.5
      %v2557 = vmul.f32 %v365, 0.5
      %v2558 = vmul.f32 %v366, 0.5
      %v2559 = vmul.f32 %v367, 0.5
      %v2560 = vmul.f32 %v368, 0.5
      %v2561 = vmul.f32 %v369, 0.5
      %v2562 = vmul.f32 %v370, 0.5
      %v2563 = vmul.f32 %v371, 0.5
      %v2564 = vmul.f32 %v372, 0.5
      %v2565 = vmul.f32 %v373, 0.5
      %v2566 = vmul.f32 %v374, 0.5
      %v2567 = vmul.f32 %v375, 0.5
      %v2568 = vmul.f32 %v376, 0.5
      %v2569 = vmul.f32 %v377, 0.5
      %v2570 = vmul.f32 %v378, 0.5
      %v2571 = vmul.f32 %v379, 0.5
      %v2572 = vadd.f32 %v2556, 0.5
      %v2573 = vadd.f32 %v2557, 0.5
      %v2574 = vadd.f32 %v2558, 0.5
      %v2575 = vadd.f32 %v2559, 0.5
      %v2576 = vadd.f32 %v2560, 0.5
      %v2577 = vadd.f32 %v2561, 0.5
      %v2578 = vadd.f32 %v2562, 0.5
      %v2579 = vadd.f32 %v2563, 0.5
      %v2580 = vadd.f32 %v2564, 0.5
      %v2581 = vadd.f32 %v2565, 0.5
      %v2582 = vadd.f32 %v2566, 0.5
      %v2583 = vadd.f32 %v2567, 0.5
      %v2584 = vadd.f32 %v2568, 0.5
      %v2585 = vadd.f32 %v2569, 0.5
      %v2586 = vadd.f32 %v2570, 0.5
      %v2587 = vadd.f32 %v2571, 0.5
      %v2588 = vmul.f32 %v2572, 3.0
      %v2589 = vmul.f32 %v2573, 3.0
      %v2590 = vmul.f32 %v2574, 3.0
      %v2591 = vmul.f32 %v2575, 3.0
      %v2592 = vmul.f32 %v2576, 3.0
      %v2593 = vmul.f32 %v2577, 3.0
      %v2594 = vmul.f32 %v2578, 3.0
      %v2595 = vmul.f32 %v2579, 3.0
      %v2596 = vmul.f32 %v2580, 3.0
      %v2597 = vmul.f32 %v2581, 3.0
      %v2598 = vmul.f32 %v2582, 3.0
      %v2599 = vmul.f32 %v2583, 3.0
      %v2600 = vmul.f32 %v2584, 3.0
      %v2601 = vmul.f32 %v2585, 3.0
      %v2602 = vmul.f32 %v2586, 3.0
      %v2603 = vmul.f32 %v2587, 3.0
      %v2604 = vfloor.f32 %v2588
      %v2605 = vfloor.f32 %v2589
      %v2606 = vfloor.f32 %v2590
      %v2607 = vfloor.f32 %v2591
      %v2608 = vfloor.f32 %v2592
      %v2609 = vfloor.f32 %v2593
      %v2610 = vfloor.f32 %v2594
      %v2611 = vfloor.f32 %v2595
      %v2612 = vfloor.f32 %v2596
      %v2613 = vfloor.f32 %v2597
      %v2614 = vfloor.f32 %v2598
      %v2615 = vfloor.f32 %v2599
      %v2616 = vfloor.f32 %v2600
      %v2617 = vfloor.f32 %v2601
      %v2618 = vfloor.f32 %v2602
      %v2619 = vfloor.f32 %v2603
      %v2620 = vmax.f32 %v2604, 0.0
      %v2621 = vmax.f32 %v2605, 0.0
      %v2622 = vmax.f32 %v2606, 0.0
      %v2623 = vmax.f32 %v2607, 0.0
      %v2624 = vmax.f32 %v2608, 0.0
      %v2625 = vmax.f32 %v2609, 0.0
      %v2626 = vmax.f32 %v2610, 0.0
      %v2627 = vmax.f32 %v2611, 0.0
      %v2628 = vmax.f32 %v2612, 0.0
      %v2629 = vmax.f32 %v2613, 0.0
      %v2630 = vmax.f32 %v2614, 0.0
      %v2631 = vmax.f32 %v2615, 0.0
      %v2632 = vmax.f32 %v2616, 0.0
      %v2633 = vmax.f32 %v2617, 0.0
      %v2634 = vmax.f32 %v2618, 0.0
      %v2635 = vmax.f32 %v2619, 0.0
      %v2636 = vmin.f32 %v2620, 2.0
      %v2637 = vmin.f32 %v2621, 2.0
      %v2638 = vmin.f32 %v2622, 2.0
      %v2639 = vmin.f32 %v2623, 2.0
      %v2640 = vmin.f32 %v2624, 2.0
      %v2641 = vmin.f32 %v2625, 2.0
      %v2642 = vmin.f32 %v2626, 2.0
      %v2643 = vmin.f32 %v2627, 2.0
      %v2644 = vmin.f32 %v2628, 2.0
      %v2645 = vmin.f32 %v2629, 2.0
      %v2646 = vmin.f32 %v2630, 2.0
      %v2647 = vmin.f32 %v2631, 2.0
      %v2648 = vmin.f32 %v2632, 2.0
      %v2649 = vmin.f32 %v2633, 2.0
      %v2650 = vmin.f32 %v2634, 2.0
      %v2651 = vmin.f32 %v2635, 2.0
      %v2652 = vsub.f32 %v2588, %v2636
      %v2653 = vsub.f32 %v2589, %v2637
      %v2654 = vsub.f32 %v2590, %v2638
      %v2655 = vsub.f32 %v2591, %v2639
      %v2656 = vsub.f32 %v2592, %v2640
      %v2657 = vsub.f32 %v2593, %v2641
      %v2658 = vsub.f32 %v2594, %v2642
      %v2659 = vsub.f32 %v2595, %v2643
      %v2660 = vsub.f32 %v2596, %v2644
      %v2661 = vsub.f32 %v2597, %v2645
      %v2662 = vsub.f32 %v2598, %v2646
      %v2663 = vsub.f32 %v2599, %v2647
      %v2664 = vsub.f32 %v2600, %v2648
      %v2665 = vsub.f32 %v2601, %v2649
      %v2666 = vsub.f32 %v2602, %v2650
      %v2667 = vsub.f32 %v2603, %v2651
      %v2668 = vcvt.f32.s32.to.zero.pseudo %v2636
      %v2669 = vcvt.f32.s32.to.zero.pseudo %v2637
      %v2670 = vcvt.f32.s32.to.zero.pseudo %v2638
      %v2671 = vcvt.f32.s32.to.zero.pseudo %v2639
      %v2672 = vcvt.f32.s32.to.zero.pseudo %v2640
      %v2673 = vcvt.f32.s32.to.zero.pseudo %v2641
      %v2674 = vcvt.f32.s32.to.zero.pseudo %v2642
      %v2675 = vcvt.f32.s32.to.zero.pseudo %v2643
      %v2676 = vcvt.f32.s32.to.zero.pseudo %v2644
      %v2677 = vcvt.f32.s32.to.zero.pseudo %v2645
      %v2678 = vcvt.f32.s32.to.zero.pseudo %v2646
      %v2679 = vcvt.f32.s32.to.zero.pseudo %v2647
      %v2680 = vcvt.f32.s32.to.zero.pseudo %v2648
      %v2681 = vcvt.f32.s32.to.zero.pseudo %v2649
      %v2682 = vcvt.f32.s32.to.zero.pseudo %v2650
      %v2683 = vcvt.f32.s32.to.zero.pseudo %v2651
      %v2684 = vlaneseq
      %v2685 = vand.u32 %v2684, 127
      %v2686 = vshra.s32 %v2685, 2
      %v2687 = vand.u32 %v2685, 3
      %2688 = vset.pattern.permute.xlu0 1
      %2689 = vperm.xlu0 %2688, %v2668
      %v2690 = vpop.permute.xlu0 %2689
      %2691 = vset.pattern.permute.xlu0 1
      %2692 = vperm.xlu0 %2691, %v2669
      %v2693 = vpop.permute.xlu0 %2692
      %2694 = vset.pattern.permute.xlu0 1
      %2695 = vperm.xlu0 %2694, %v2670
      %v2696 = vpop.permute.xlu0 %2695
      %2697 = vset.pattern.permute.xlu0 1
      %2698 = vperm.xlu0 %2697, %v2671
      %v2699 = vpop.permute.xlu0 %2698
      %2700 = vset.pattern.permute.xlu0 1
      %2701 = vperm.xlu0 %2700, %v2672
      %v2702 = vpop.permute.xlu0 %2701
      %2703 = vset.pattern.permute.xlu0 1
      %2704 = vperm.xlu0 %2703, %v2673
      %v2705 = vpop.permute.xlu0 %2704
      %2706 = vset.pattern.permute.xlu0 1
      %2707 = vperm.xlu0 %2706, %v2674
      %v2708 = vpop.permute.xlu0 %2707
      %2709 = vset.pattern.permute.xlu0 1
      %2710 = vperm.xlu0 %2709, %v2675
      %v2711 = vpop.permute.xlu0 %2710
      %2712 = vset.pattern.permute.xlu0 1
      %2713 = vperm.xlu0 %2712, %v2676
      %v2714 = vpop.permute.xlu0 %2713
      %2715 = vset.pattern.permute.xlu0 1
      %2716 = vperm.xlu0 %2715, %v2677
      %v2717 = vpop.permute.xlu0 %2716
      %2718 = vset.pattern.permute.xlu0 1
      %2719 = vperm.xlu0 %2718, %v2678
      %v2720 = vpop.permute.xlu0 %2719
      %2721 = vset.pattern.permute.xlu0 1
      %2722 = vperm.xlu0 %2721, %v2679
      %v2723 = vpop.permute.xlu0 %2722
      %2724 = vset.pattern.permute.xlu0 1
      %2725 = vperm.xlu0 %2724, %v2680
      %v2726 = vpop.permute.xlu0 %2725
      %2727 = vset.pattern.permute.xlu0 1
      %2728 = vperm.xlu0 %2727, %v2681
      %v2729 = vpop.permute.xlu0 %2728
      %2730 = vset.pattern.permute.xlu0 1
      %2731 = vperm.xlu0 %2730, %v2682
      %v2732 = vpop.permute.xlu0 %2731
      %2733 = vset.pattern.permute.xlu0 1
      %2734 = vperm.xlu0 %2733, %v2683
      %v2735 = vpop.permute.xlu0 %2734
      %vm2736 = vcmp.eq.s32.totalorder %v2686, %v2690
      %vm2737 = vcmp.eq.s32.totalorder %v2686, %v2693
      %vm2738 = vcmp.eq.s32.totalorder %v2686, %v2696
      %vm2739 = vcmp.eq.s32.totalorder %v2686, %v2699
      %vm2740 = vcmp.eq.s32.totalorder %v2686, %v2702
      %vm2741 = vcmp.eq.s32.totalorder %v2686, %v2705
      %vm2742 = vcmp.eq.s32.totalorder %v2686, %v2708
      %vm2743 = vcmp.eq.s32.totalorder %v2686, %v2711
      %vm2744 = vcmp.eq.s32.totalorder %v2686, %v2714
      %vm2745 = vcmp.eq.s32.totalorder %v2686, %v2717
      %vm2746 = vcmp.eq.s32.totalorder %v2686, %v2720
      %vm2747 = vcmp.eq.s32.totalorder %v2686, %v2723
      %vm2748 = vcmp.eq.s32.totalorder %v2686, %v2726
      %vm2749 = vcmp.eq.s32.totalorder %v2686, %v2729
      %vm2750 = vcmp.eq.s32.totalorder %v2686, %v2732
      %vm2751 = vcmp.eq.s32.totalorder %v2686, %v2735
      %v2752 = vsub.f32 1.0, %v2652
      %v2753 = vsub.f32 1.0, %v2653
      %v2754 = vsub.f32 1.0, %v2654
      %v2755 = vsub.f32 1.0, %v2655
      %v2756 = vsub.f32 1.0, %v2656
      %v2757 = vsub.f32 1.0, %v2657
      %v2758 = vsub.f32 1.0, %v2658
      %v2759 = vsub.f32 1.0, %v2659
      %v2760 = vsub.f32 1.0, %v2660
      %v2761 = vsub.f32 1.0, %v2661
      %v2762 = vsub.f32 1.0, %v2662
      %v2763 = vsub.f32 1.0, %v2663
      %v2764 = vsub.f32 1.0, %v2664
      %v2765 = vsub.f32 1.0, %v2665
      %v2766 = vsub.f32 1.0, %v2666
      %v2767 = vsub.f32 1.0, %v2667
      %2769 = vset.pattern.permute.xlu0 1
      %2770 = vperm.xlu0 %2769, %v2752
      %v2771 = vpop.permute.xlu0 %2770
      %2774 = vset.pattern.permute.xlu0 1
      %2775 = vperm.xlu0 %2774, %v2753
      %v2776 = vpop.permute.xlu0 %2775
      %2779 = vset.pattern.permute.xlu0 1
      %2780 = vperm.xlu0 %2779, %v2754
      %v2781 = vpop.permute.xlu0 %2780
      %2784 = vset.pattern.permute.xlu0 1
      %2785 = vperm.xlu0 %2784, %v2755
      %v2786 = vpop.permute.xlu0 %2785
      %2789 = vset.pattern.permute.xlu0 1
      %2790 = vperm.xlu0 %2789, %v2756
      %v2791 = vpop.permute.xlu0 %2790
      %2794 = vset.pattern.permute.xlu0 1
      %2795 = vperm.xlu0 %2794, %v2757
      %v2796 = vpop.permute.xlu0 %2795
      %2799 = vset.pattern.permute.xlu0 1
      %2800 = vperm.xlu0 %2799, %v2758
      %v2801 = vpop.permute.xlu0 %2800
      %2804 = vset.pattern.permute.xlu0 1
      %2805 = vperm.xlu0 %2804, %v2759
      %v2806 = vpop.permute.xlu0 %2805
      %2809 = vset.pattern.permute.xlu0 1
      %2810 = vperm.xlu0 %2809, %v2760
      %v2811 = vpop.permute.xlu0 %2810
      %2814 = vset.pattern.permute.xlu0 1
      %2815 = vperm.xlu0 %2814, %v2761
      %v2816 = vpop.permute.xlu0 %2815
      %2819 = vset.pattern.permute.xlu0 1
      %2820 = vperm.xlu0 %2819, %v2762
      %v2821 = vpop.permute.xlu0 %2820
      %2824 = vset.pattern.permute.xlu0 1
      %2825 = vperm.xlu0 %2824, %v2763
      %v2826 = vpop.permute.xlu0 %2825
      %2829 = vset.pattern.permute.xlu0 1
      %2830 = vperm.xlu0 %2829, %v2764
      %v2831 = vpop.permute.xlu0 %2830
      %2834 = vset.pattern.permute.xlu0 1
      %2835 = vperm.xlu0 %2834, %v2765
      %v2836 = vpop.permute.xlu0 %2835
      %2839 = vset.pattern.permute.xlu0 1
      %2840 = vperm.xlu0 %2839, %v2766
      %v2841 = vpop.permute.xlu0 %2840
      %2844 = vset.pattern.permute.xlu0 1
      %2845 = vperm.xlu0 %2844, %v2767
      %v2846 = vpop.permute.xlu0 %2845
      %v2848 = vsel %vm2736, %v2771, 0.0
      %v2849 = vsel %vm2737, %v2776, 0.0
      %v2850 = vsel %vm2738, %v2781, 0.0
      %v2851 = vsel %vm2739, %v2786, 0.0
      %v2852 = vsel %vm2740, %v2791, 0.0
      %v2853 = vsel %vm2741, %v2796, 0.0
      %v2854 = vsel %vm2742, %v2801, 0.0
      %v2855 = vsel %vm2743, %v2806, 0.0
      %v2856 = vsel %vm2744, %v2811, 0.0
      %v2857 = vsel %vm2745, %v2816, 0.0
      %v2858 = vsel %vm2746, %v2821, 0.0
      %v2859 = vsel %vm2747, %v2826, 0.0
      %v2860 = vsel %vm2748, %v2831, 0.0
      %v2861 = vsel %vm2749, %v2836, 0.0
      %v2862 = vsel %vm2750, %v2841, 0.0
      %v2863 = vsel %vm2751, %v2846, 0.0
      %v2864 = vadd.s32 %v2668, 1
      %v2865 = vadd.s32 %v2669, 1
      %v2866 = vadd.s32 %v2670, 1
      %v2867 = vadd.s32 %v2671, 1
      %v2868 = vadd.s32 %v2672, 1
      %v2869 = vadd.s32 %v2673, 1
      %v2870 = vadd.s32 %v2674, 1
      %v2871 = vadd.s32 %v2675, 1
      %v2872 = vadd.s32 %v2676, 1
      %v2873 = vadd.s32 %v2677, 1
      %v2874 = vadd.s32 %v2678, 1
      %v2875 = vadd.s32 %v2679, 1
      %v2876 = vadd.s32 %v2680, 1
      %v2877 = vadd.s32 %v2681, 1
      %v2878 = vadd.s32 %v2682, 1
      %v2879 = vadd.s32 %v2683, 1
      %2880 = vset.pattern.permute.xlu0 1
      %2881 = vperm.xlu0 %2880, %v2864
      %v2882 = vpop.permute.xlu0 %2881
      %2883 = vset.pattern.permute.xlu0 1
      %2884 = vperm.xlu0 %2883, %v2865
      %v2885 = vpop.permute.xlu0 %2884
      %2886 = vset.pattern.permute.xlu0 1
      %2887 = vperm.xlu0 %2886, %v2866
      %v2888 = vpop.permute.xlu0 %2887
      %2889 = vset.pattern.permute.xlu0 1
      %2890 = vperm.xlu0 %2889, %v2867
      %v2891 = vpop.permute.xlu0 %2890
      %2892 = vset.pattern.permute.xlu0 1
      %2893 = vperm.xlu0 %2892, %v2868
      %v2894 = vpop.permute.xlu0 %2893
      %2895 = vset.pattern.permute.xlu0 1
      %2896 = vperm.xlu0 %2895, %v2869
      %v2897 = vpop.permute.xlu0 %2896
      %2898 = vset.pattern.permute.xlu0 1
      %2899 = vperm.xlu0 %2898, %v2870
      %v2900 = vpop.permute.xlu0 %2899
      %2901 = vset.pattern.permute.xlu0 1
      %2902 = vperm.xlu0 %2901, %v2871
      %v2903 = vpop.permute.xlu0 %2902
      %2904 = vset.pattern.permute.xlu0 1
      %2905 = vperm.xlu0 %2904, %v2872
      %v2906 = vpop.permute.xlu0 %2905
      %2907 = vset.pattern.permute.xlu0 1
      %2908 = vperm.xlu0 %2907, %v2873
      %v2909 = vpop.permute.xlu0 %2908
      %2910 = vset.pattern.permute.xlu0 1
      %2911 = vperm.xlu0 %2910, %v2874
      %v2912 = vpop.permute.xlu0 %2911
      %2913 = vset.pattern.permute.xlu0 1
      %2914 = vperm.xlu0 %2913, %v2875
      %v2915 = vpop.permute.xlu0 %2914
      %2916 = vset.pattern.permute.xlu0 1
      %2917 = vperm.xlu0 %2916, %v2876
      %v2918 = vpop.permute.xlu0 %2917
      %2919 = vset.pattern.permute.xlu0 1
      %2920 = vperm.xlu0 %2919, %v2877
      %v2921 = vpop.permute.xlu0 %2920
      %2922 = vset.pattern.permute.xlu0 1
      %2923 = vperm.xlu0 %2922, %v2878
      %v2924 = vpop.permute.xlu0 %2923
      %2925 = vset.pattern.permute.xlu0 1
      %2926 = vperm.xlu0 %2925, %v2879
      %v2927 = vpop.permute.xlu0 %2926
      %vm2928 = vcmp.eq.s32.totalorder %v2686, %v2882
      %vm2929 = vcmp.eq.s32.totalorder %v2686, %v2885
      %vm2930 = vcmp.eq.s32.totalorder %v2686, %v2888
      %vm2931 = vcmp.eq.s32.totalorder %v2686, %v2891
      %vm2932 = vcmp.eq.s32.totalorder %v2686, %v2894
      %vm2933 = vcmp.eq.s32.totalorder %v2686, %v2897
      %vm2934 = vcmp.eq.s32.totalorder %v2686, %v2900
      %vm2935 = vcmp.eq.s32.totalorder %v2686, %v2903
      %vm2936 = vcmp.eq.s32.totalorder %v2686, %v2906
      %vm2937 = vcmp.eq.s32.totalorder %v2686, %v2909
      %vm2938 = vcmp.eq.s32.totalorder %v2686, %v2912
      %vm2939 = vcmp.eq.s32.totalorder %v2686, %v2915
      %vm2940 = vcmp.eq.s32.totalorder %v2686, %v2918
      %vm2941 = vcmp.eq.s32.totalorder %v2686, %v2921
      %vm2942 = vcmp.eq.s32.totalorder %v2686, %v2924
      %vm2943 = vcmp.eq.s32.totalorder %v2686, %v2927
      %2945 = vset.pattern.permute.xlu0 1
      %2946 = vperm.xlu0 %2945, %v2652
      %v2947 = vpop.permute.xlu0 %2946
      %2950 = vset.pattern.permute.xlu0 1
      %2951 = vperm.xlu0 %2950, %v2653
      %v2952 = vpop.permute.xlu0 %2951
      %2955 = vset.pattern.permute.xlu0 1
      %2956 = vperm.xlu0 %2955, %v2654
      %v2957 = vpop.permute.xlu0 %2956
      %2960 = vset.pattern.permute.xlu0 1
      %2961 = vperm.xlu0 %2960, %v2655
      %v2962 = vpop.permute.xlu0 %2961
      %2965 = vset.pattern.permute.xlu0 1
      %2966 = vperm.xlu0 %2965, %v2656
      %v2967 = vpop.permute.xlu0 %2966
      %2970 = vset.pattern.permute.xlu0 1
      %2971 = vperm.xlu0 %2970, %v2657
      %v2972 = vpop.permute.xlu0 %2971
      %2975 = vset.pattern.permute.xlu0 1
      %2976 = vperm.xlu0 %2975, %v2658
      %v2977 = vpop.permute.xlu0 %2976
      %2980 = vset.pattern.permute.xlu0 1
      %2981 = vperm.xlu0 %2980, %v2659
      %v2982 = vpop.permute.xlu0 %2981
      %2985 = vset.pattern.permute.xlu0 1
      %2986 = vperm.xlu0 %2985, %v2660
      %v2987 = vpop.permute.xlu0 %2986
      %2990 = vset.pattern.permute.xlu0 1
      %2991 = vperm.xlu0 %2990, %v2661
      %v2992 = vpop.permute.xlu0 %2991
      %2995 = vset.pattern.permute.xlu0 1
      %2996 = vperm.xlu0 %2995, %v2662
      %v2997 = vpop.permute.xlu0 %2996
      %3000 = vset.pattern.permute.xlu0 1
      %3001 = vperm.xlu0 %3000, %v2663
      %v3002 = vpop.permute.xlu0 %3001
      %3005 = vset.pattern.permute.xlu0 1
      %3006 = vperm.xlu0 %3005, %v2664
      %v3007 = vpop.permute.xlu0 %3006
      %3010 = vset.pattern.permute.xlu0 1
      %3011 = vperm.xlu0 %3010, %v2665
      %v3012 = vpop.permute.xlu0 %3011
      %3015 = vset.pattern.permute.xlu0 1
      %3016 = vperm.xlu0 %3015, %v2666
      %v3017 = vpop.permute.xlu0 %3016
      %3020 = vset.pattern.permute.xlu0 1
      %3021 = vperm.xlu0 %3020, %v2667
      %v3022 = vpop.permute.xlu0 %3021
      %v3024 = vsel %vm2928, %v2947, 0.0
      %v3025 = vsel %vm2929, %v2952, 0.0
      %v3026 = vsel %vm2930, %v2957, 0.0
      %v3027 = vsel %vm2931, %v2962, 0.0
      %v3028 = vsel %vm2932, %v2967, 0.0
      %v3029 = vsel %vm2933, %v2972, 0.0
      %v3030 = vsel %vm2934, %v2977, 0.0
      %v3031 = vsel %vm2935, %v2982, 0.0
      %v3032 = vsel %vm2936, %v2987, 0.0
      %v3033 = vsel %vm2937, %v2992, 0.0
      %v3034 = vsel %vm2938, %v2997, 0.0
      %v3035 = vsel %vm2939, %v3002, 0.0
      %v3036 = vsel %vm2940, %v3007, 0.0
      %v3037 = vsel %vm2941, %v3012, 0.0
      %v3038 = vsel %vm2942, %v3017, 0.0
      %v3039 = vsel %vm2943, %v3022, 0.0
      %v3040 = vadd.f32 %v2848, %v3024
      %v3041 = vadd.f32 %v2849, %v3025
      %v3042 = vadd.f32 %v2850, %v3026
      %v3043 = vadd.f32 %v2851, %v3027
      %v3044 = vadd.f32 %v2852, %v3028
      %v3045 = vadd.f32 %v2853, %v3029
      %v3046 = vadd.f32 %v2854, %v3030
      %v3047 = vadd.f32 %v2855, %v3031
      %v3048 = vadd.f32 %v2856, %v3032
      %v3049 = vadd.f32 %v2857, %v3033
      %v3050 = vadd.f32 %v2858, %v3034
      %v3051 = vadd.f32 %v2859, %v3035
      %v3052 = vadd.f32 %v2860, %v3036
      %v3053 = vadd.f32 %v2861, %v3037
      %v3054 = vadd.f32 %v2862, %v3038
      %v3055 = vadd.f32 %v2863, %v3039
      %3056 = vset.pattern.permute.xlu0 2
      %3057 = vperm.xlu0 %3056, %v2668
      %v3058 = vpop.permute.xlu0 %3057
      %3059 = vset.pattern.permute.xlu0 2
      %3060 = vperm.xlu0 %3059, %v2669
      %v3061 = vpop.permute.xlu0 %3060
      %3062 = vset.pattern.permute.xlu0 2
      %3063 = vperm.xlu0 %3062, %v2670
      %v3064 = vpop.permute.xlu0 %3063
      %3065 = vset.pattern.permute.xlu0 2
      %3066 = vperm.xlu0 %3065, %v2671
      %v3067 = vpop.permute.xlu0 %3066
      %3068 = vset.pattern.permute.xlu0 2
      %3069 = vperm.xlu0 %3068, %v2672
      %v3070 = vpop.permute.xlu0 %3069
      %3071 = vset.pattern.permute.xlu0 2
      %3072 = vperm.xlu0 %3071, %v2673
      %v3073 = vpop.permute.xlu0 %3072
      %3074 = vset.pattern.permute.xlu0 2
      %3075 = vperm.xlu0 %3074, %v2674
      %v3076 = vpop.permute.xlu0 %3075
      %3077 = vset.pattern.permute.xlu0 2
      %3078 = vperm.xlu0 %3077, %v2675
      %v3079 = vpop.permute.xlu0 %3078
      %3080 = vset.pattern.permute.xlu0 2
      %3081 = vperm.xlu0 %3080, %v2676
      %v3082 = vpop.permute.xlu0 %3081
      %3083 = vset.pattern.permute.xlu0 2
      %3084 = vperm.xlu0 %3083, %v2677
      %v3085 = vpop.permute.xlu0 %3084
      %3086 = vset.pattern.permute.xlu0 2
      %3087 = vperm.xlu0 %3086, %v2678
      %v3088 = vpop.permute.xlu0 %3087
      %3089 = vset.pattern.permute.xlu0 2
      %3090 = vperm.xlu0 %3089, %v2679
      %v3091 = vpop.permute.xlu0 %3090
      %3092 = vset.pattern.permute.xlu0 2
      %3093 = vperm.xlu0 %3092, %v2680
      %v3094 = vpop.permute.xlu0 %3093
      %3095 = vset.pattern.permute.xlu0 2
      %3096 = vperm.xlu0 %3095, %v2681
      %v3097 = vpop.permute.xlu0 %3096
      %3098 = vset.pattern.permute.xlu0 2
      %3099 = vperm.xlu0 %3098, %v2682
      %v3100 = vpop.permute.xlu0 %3099
      %3101 = vset.pattern.permute.xlu0 2
      %3102 = vperm.xlu0 %3101, %v2683
      %v3103 = vpop.permute.xlu0 %3102
      %vm3104 = vcmp.eq.s32.totalorder %v2687, %v3058
      %vm3105 = vcmp.eq.s32.totalorder %v2687, %v3061
      %vm3106 = vcmp.eq.s32.totalorder %v2687, %v3064
      %vm3107 = vcmp.eq.s32.totalorder %v2687, %v3067
      %vm3108 = vcmp.eq.s32.totalorder %v2687, %v3070
      %vm3109 = vcmp.eq.s32.totalorder %v2687, %v3073
      %vm3110 = vcmp.eq.s32.totalorder %v2687, %v3076
      %vm3111 = vcmp.eq.s32.totalorder %v2687, %v3079
      %vm3112 = vcmp.eq.s32.totalorder %v2687, %v3082
      %vm3113 = vcmp.eq.s32.totalorder %v2687, %v3085
      %vm3114 = vcmp.eq.s32.totalorder %v2687, %v3088
      %vm3115 = vcmp.eq.s32.totalorder %v2687, %v3091
      %vm3116 = vcmp.eq.s32.totalorder %v2687, %v3094
      %vm3117 = vcmp.eq.s32.totalorder %v2687, %v3097
      %vm3118 = vcmp.eq.s32.totalorder %v2687, %v3100
      %vm3119 = vcmp.eq.s32.totalorder %v2687, %v3103
      %3120 = vset.pattern.permute.xlu0 2
      %3121 = vperm.xlu0 %3120, %v2752
      %v3122 = vpop.permute.xlu0 %3121
      %3124 = vset.pattern.permute.xlu0 2
      %3125 = vperm.xlu0 %3124, %v2753
      %v3126 = vpop.permute.xlu0 %3125
      %3128 = vset.pattern.permute.xlu0 2
      %3129 = vperm.xlu0 %3128, %v2754
      %v3130 = vpop.permute.xlu0 %3129
      %3132 = vset.pattern.permute.xlu0 2
      %3133 = vperm.xlu0 %3132, %v2755
      %v3134 = vpop.permute.xlu0 %3133
      %3136 = vset.pattern.permute.xlu0 2
      %3137 = vperm.xlu0 %3136, %v2756
      %v3138 = vpop.permute.xlu0 %3137
      %3140 = vset.pattern.permute.xlu0 2
      %3141 = vperm.xlu0 %3140, %v2757
      %v3142 = vpop.permute.xlu0 %3141
      %3144 = vset.pattern.permute.xlu0 2
      %3145 = vperm.xlu0 %3144, %v2758
      %v3146 = vpop.permute.xlu0 %3145
      %3148 = vset.pattern.permute.xlu0 2
      %3149 = vperm.xlu0 %3148, %v2759
      %v3150 = vpop.permute.xlu0 %3149
      %3152 = vset.pattern.permute.xlu0 2
      %3153 = vperm.xlu0 %3152, %v2760
      %v3154 = vpop.permute.xlu0 %3153
      %3156 = vset.pattern.permute.xlu0 2
      %3157 = vperm.xlu0 %3156, %v2761
      %v3158 = vpop.permute.xlu0 %3157
      %3160 = vset.pattern.permute.xlu0 2
      %3161 = vperm.xlu0 %3160, %v2762
      %v3162 = vpop.permute.xlu0 %3161
      %3164 = vset.pattern.permute.xlu0 2
      %3165 = vperm.xlu0 %3164, %v2763
      %v3166 = vpop.permute.xlu0 %3165
      %3168 = vset.pattern.permute.xlu0 2
      %3169 = vperm.xlu0 %3168, %v2764
      %v3170 = vpop.permute.xlu0 %3169
      %3172 = vset.pattern.permute.xlu0 2
      %3173 = vperm.xlu0 %3172, %v2765
      %v3174 = vpop.permute.xlu0 %3173
      %3176 = vset.pattern.permute.xlu0 2
      %3177 = vperm.xlu0 %3176, %v2766
      %v3178 = vpop.permute.xlu0 %3177
      %3180 = vset.pattern.permute.xlu0 2
      %3181 = vperm.xlu0 %3180, %v2767
      %v3182 = vpop.permute.xlu0 %3181
      %v3184 = vsel %vm3104, %v3122, 0.0
      %v3185 = vsel %vm3105, %v3126, 0.0
      %v3186 = vsel %vm3106, %v3130, 0.0
      %v3187 = vsel %vm3107, %v3134, 0.0
      %v3188 = vsel %vm3108, %v3138, 0.0
      %v3189 = vsel %vm3109, %v3142, 0.0
      %v3190 = vsel %vm3110, %v3146, 0.0
      %v3191 = vsel %vm3111, %v3150, 0.0
      %v3192 = vsel %vm3112, %v3154, 0.0
      %v3193 = vsel %vm3113, %v3158, 0.0
      %v3194 = vsel %vm3114, %v3162, 0.0
      %v3195 = vsel %vm3115, %v3166, 0.0
      %v3196 = vsel %vm3116, %v3170, 0.0
      %v3197 = vsel %vm3117, %v3174, 0.0
      %v3198 = vsel %vm3118, %v3178, 0.0
      %v3199 = vsel %vm3119, %v3182, 0.0
      %3200 = vset.pattern.permute.xlu0 2
      %3201 = vperm.xlu0 %3200, %v2864
      %v3202 = vpop.permute.xlu0 %3201
      %3203 = vset.pattern.permute.xlu0 2
      %3204 = vperm.xlu0 %3203, %v2865
      %v3205 = vpop.permute.xlu0 %3204
      %3206 = vset.pattern.permute.xlu0 2
      %3207 = vperm.xlu0 %3206, %v2866
      %v3208 = vpop.permute.xlu0 %3207
      %3209 = vset.pattern.permute.xlu0 2
      %3210 = vperm.xlu0 %3209, %v2867
      %v3211 = vpop.permute.xlu0 %3210
      %3212 = vset.pattern.permute.xlu0 2
      %3213 = vperm.xlu0 %3212, %v2868
      %v3214 = vpop.permute.xlu0 %3213
      %3215 = vset.pattern.permute.xlu0 2
      %3216 = vperm.xlu0 %3215, %v2869
      %v3217 = vpop.permute.xlu0 %3216
      %3218 = vset.pattern.permute.xlu0 2
      %3219 = vperm.xlu0 %3218, %v2870
      %v3220 = vpop.permute.xlu0 %3219
      %3221 = vset.pattern.permute.xlu0 2
      %3222 = vperm.xlu0 %3221, %v2871
      %v3223 = vpop.permute.xlu0 %3222
      %3224 = vset.pattern.permute.xlu0 2
      %3225 = vperm.xlu0 %3224, %v2872
      %v3226 = vpop.permute.xlu0 %3225
      %3227 = vset.pattern.permute.xlu0 2
      %3228 = vperm.xlu0 %3227, %v2873
      %v3229 = vpop.permute.xlu0 %3228
      %3230 = vset.pattern.permute.xlu0 2
      %3231 = vperm.xlu0 %3230, %v2874
      %v3232 = vpop.permute.xlu0 %3231
      %3233 = vset.pattern.permute.xlu0 2
      %3234 = vperm.xlu0 %3233, %v2875
      %v3235 = vpop.permute.xlu0 %3234
      %3236 = vset.pattern.permute.xlu0 2
      %3237 = vperm.xlu0 %3236, %v2876
      %v3238 = vpop.permute.xlu0 %3237
      %3239 = vset.pattern.permute.xlu0 2
      %3240 = vperm.xlu0 %3239, %v2877
      %v3241 = vpop.permute.xlu0 %3240
      %3242 = vset.pattern.permute.xlu0 2
      %3243 = vperm.xlu0 %3242, %v2878
      %v3244 = vpop.permute.xlu0 %3243
      %3245 = vset.pattern.permute.xlu0 2
      %3246 = vperm.xlu0 %3245, %v2879
      %v3247 = vpop.permute.xlu0 %3246
      %vm3248 = vcmp.eq.s32.totalorder %v2687, %v3202
      %vm3249 = vcmp.eq.s32.totalorder %v2687, %v3205
      %vm3250 = vcmp.eq.s32.totalorder %v2687, %v3208
      %vm3251 = vcmp.eq.s32.totalorder %v2687, %v3211
      %vm3252 = vcmp.eq.s32.totalorder %v2687, %v3214
      %vm3253 = vcmp.eq.s32.totalorder %v2687, %v3217
      %vm3254 = vcmp.eq.s32.totalorder %v2687, %v3220
      %vm3255 = vcmp.eq.s32.totalorder %v2687, %v3223
      %vm3256 = vcmp.eq.s32.totalorder %v2687, %v3226
      %vm3257 = vcmp.eq.s32.totalorder %v2687, %v3229
      %vm3258 = vcmp.eq.s32.totalorder %v2687, %v3232
      %vm3259 = vcmp.eq.s32.totalorder %v2687, %v3235
      %vm3260 = vcmp.eq.s32.totalorder %v2687, %v3238
      %vm3261 = vcmp.eq.s32.totalorder %v2687, %v3241
      %vm3262 = vcmp.eq.s32.totalorder %v2687, %v3244
      %vm3263 = vcmp.eq.s32.totalorder %v2687, %v3247
      %3264 = vset.pattern.permute.xlu0 2
      %3265 = vperm.xlu0 %3264, %v2652
      %v3266 = vpop.permute.xlu0 %3265
      %3268 = vset.pattern.permute.xlu0 2
      %3269 = vperm.xlu0 %3268, %v2653
      %v3270 = vpop.permute.xlu0 %3269
      %3272 = vset.pattern.permute.xlu0 2
      %3273 = vperm.xlu0 %3272, %v2654
      %v3274 = vpop.permute.xlu0 %3273
      %3276 = vset.pattern.permute.xlu0 2
      %3277 = vperm.xlu0 %3276, %v2655
      %v3278 = vpop.permute.xlu0 %3277
      %3280 = vset.pattern.permute.xlu0 2
      %3281 = vperm.xlu0 %3280, %v2656
      %v3282 = vpop.permute.xlu0 %3281
      %3284 = vset.pattern.permute.xlu0 2
      %3285 = vperm.xlu0 %3284, %v2657
      %v3286 = vpop.permute.xlu0 %3285
      %3288 = vset.pattern.permute.xlu0 2
      %3289 = vperm.xlu0 %3288, %v2658
      %v3290 = vpop.permute.xlu0 %3289
      %3292 = vset.pattern.permute.xlu0 2
      %3293 = vperm.xlu0 %3292, %v2659
      %v3294 = vpop.permute.xlu0 %3293
      %3296 = vset.pattern.permute.xlu0 2
      %3297 = vperm.xlu0 %3296, %v2660
      %v3298 = vpop.permute.xlu0 %3297
      %3300 = vset.pattern.permute.xlu0 2
      %3301 = vperm.xlu0 %3300, %v2661
      %v3302 = vpop.permute.xlu0 %3301
      %3304 = vset.pattern.permute.xlu0 2
      %3305 = vperm.xlu0 %3304, %v2662
      %v3306 = vpop.permute.xlu0 %3305
      %3308 = vset.pattern.permute.xlu0 2
      %3309 = vperm.xlu0 %3308, %v2663
      %v3310 = vpop.permute.xlu0 %3309
      %3312 = vset.pattern.permute.xlu0 2
      %3313 = vperm.xlu0 %3312, %v2664
      %v3314 = vpop.permute.xlu0 %3313
      %3316 = vset.pattern.permute.xlu0 2
      %3317 = vperm.xlu0 %3316, %v2665
      %v3318 = vpop.permute.xlu0 %3317
      %3320 = vset.pattern.permute.xlu0 2
      %3321 = vperm.xlu0 %3320, %v2666
      %v3322 = vpop.permute.xlu0 %3321
      %3324 = vset.pattern.permute.xlu0 2
      %3325 = vperm.xlu0 %3324, %v2667
      %v3326 = vpop.permute.xlu0 %3325
      %v3328 = vsel %vm3248, %v3266, 0.0
      %v3329 = vsel %vm3249, %v3270, 0.0
      %v3330 = vsel %vm3250, %v3274, 0.0
      %v3331 = vsel %vm3251, %v3278, 0.0
      %v3332 = vsel %vm3252, %v3282, 0.0
      %v3333 = vsel %vm3253, %v3286, 0.0
      %v3334 = vsel %vm3254, %v3290, 0.0
      %v3335 = vsel %vm3255, %v3294, 0.0
      %v3336 = vsel %vm3256, %v3298, 0.0
      %v3337 = vsel %vm3257, %v3302, 0.0
      %v3338 = vsel %vm3258, %v3306, 0.0
      %v3339 = vsel %vm3259, %v3310, 0.0
      %v3340 = vsel %vm3260, %v3314, 0.0
      %v3341 = vsel %vm3261, %v3318, 0.0
      %v3342 = vsel %vm3262, %v3322, 0.0
      %v3343 = vsel %vm3263, %v3326, 0.0
      %v3344 = vadd.f32 %v3184, %v3328
      %v3345 = vadd.f32 %v3185, %v3329
      %v3346 = vadd.f32 %v3186, %v3330
      %v3347 = vadd.f32 %v3187, %v3331
      %v3348 = vadd.f32 %v3188, %v3332
      %v3349 = vadd.f32 %v3189, %v3333
      %v3350 = vadd.f32 %v3190, %v3334
      %v3351 = vadd.f32 %v3191, %v3335
      %v3352 = vadd.f32 %v3192, %v3336
      %v3353 = vadd.f32 %v3193, %v3337
      %v3354 = vadd.f32 %v3194, %v3338
      %v3355 = vadd.f32 %v3195, %v3339
      %v3356 = vadd.f32 %v3196, %v3340
      %v3357 = vadd.f32 %v3197, %v3341
      %v3358 = vadd.f32 %v3198, %v3342
      %v3359 = vadd.f32 %v3199, %v3343
      %v3360 = vmul.f32 %v3040, %v3344
      %v3361 = vmul.f32 %v3041, %v3345
      %v3362 = vmul.f32 %v3042, %v3346
      %v3363 = vmul.f32 %v3043, %v3347
      %v3364 = vmul.f32 %v3044, %v3348
      %v3365 = vmul.f32 %v3045, %v3349
      %v3366 = vmul.f32 %v3046, %v3350
      %v3367 = vmul.f32 %v3047, %v3351
      %v3368 = vmul.f32 %v3048, %v3352
      %v3369 = vmul.f32 %v3049, %v3353
      %v3370 = vmul.f32 %v3050, %v3354
      %v3371 = vmul.f32 %v3051, %v3355
      %v3372 = vmul.f32 %v3052, %v3356
      %v3373 = vmul.f32 %v3053, %v3357
      %v3374 = vmul.f32 %v3054, %v3358
      %v3375 = vmul.f32 %v3055, %v3359
      %v3376 = vpack.c.bf16 %v3361, %v3360
      %v3377 = vpack.c.bf16 %v3363, %v3362
      %v3378 = vpack.c.bf16 %v3365, %v3364
      %v3379 = vpack.c.bf16 %v3367, %v3366
      %v3380 = vpack.c.bf16 %v3369, %v3368
      %v3381 = vpack.c.bf16 %v3371, %v3370
      %v3382 = vpack.c.bf16 %v3373, %v3372
      %v3383 = vpack.c.bf16 %v3375, %v3374
      %vm3384 = vcmp.eq.s32.totalorder %v2668, 0
      %vm3385 = vcmp.eq.s32.totalorder %v2669, 0
      %vm3386 = vcmp.eq.s32.totalorder %v2670, 0
      %vm3387 = vcmp.eq.s32.totalorder %v2671, 0
      %vm3388 = vcmp.eq.s32.totalorder %v2672, 0
      %vm3389 = vcmp.eq.s32.totalorder %v2673, 0
      %vm3390 = vcmp.eq.s32.totalorder %v2674, 0
      %vm3391 = vcmp.eq.s32.totalorder %v2675, 0
      %vm3392 = vcmp.eq.s32.totalorder %v2676, 0
      %vm3393 = vcmp.eq.s32.totalorder %v2677, 0
      %vm3394 = vcmp.eq.s32.totalorder %v2678, 0
      %vm3395 = vcmp.eq.s32.totalorder %v2679, 0
      %vm3396 = vcmp.eq.s32.totalorder %v2680, 0
      %vm3397 = vcmp.eq.s32.totalorder %v2681, 0
      %vm3398 = vcmp.eq.s32.totalorder %v2682, 0
      %vm3399 = vcmp.eq.s32.totalorder %v2683, 0
      %v3400 = vsel %vm3384, %v2752, 0.0
      %v3401 = vsel %vm3385, %v2753, 0.0
      %v3402 = vsel %vm3386, %v2754, 0.0
      %v3403 = vsel %vm3387, %v2755, 0.0
      %v3404 = vsel %vm3388, %v2756, 0.0
      %v3405 = vsel %vm3389, %v2757, 0.0
      %v3406 = vsel %vm3390, %v2758, 0.0
      %v3407 = vsel %vm3391, %v2759, 0.0
      %v3408 = vsel %vm3392, %v2760, 0.0
      %v3409 = vsel %vm3393, %v2761, 0.0
      %v3410 = vsel %vm3394, %v2762, 0.0
      %v3411 = vsel %vm3395, %v2763, 0.0
      %v3412 = vsel %vm3396, %v2764, 0.0
      %v3413 = vsel %vm3397, %v2765, 0.0
      %v3414 = vsel %vm3398, %v2766, 0.0
      %v3415 = vsel %vm3399, %v2767, 0.0
      %vm3416 = vcmp.eq.s32.totalorder %v2668, 4294967295
      %vm3417 = vcmp.eq.s32.totalorder %v2669, 4294967295
      %vm3418 = vcmp.eq.s32.totalorder %v2670, 4294967295
      %vm3419 = vcmp.eq.s32.totalorder %v2671, 4294967295
      %vm3420 = vcmp.eq.s32.totalorder %v2672, 4294967295
      %vm3421 = vcmp.eq.s32.totalorder %v2673, 4294967295
      %vm3422 = vcmp.eq.s32.totalorder %v2674, 4294967295
      %vm3423 = vcmp.eq.s32.totalorder %v2675, 4294967295
      %vm3424 = vcmp.eq.s32.totalorder %v2676, 4294967295
      %vm3425 = vcmp.eq.s32.totalorder %v2677, 4294967295
      %vm3426 = vcmp.eq.s32.totalorder %v2678, 4294967295
      %vm3427 = vcmp.eq.s32.totalorder %v2679, 4294967295
      %vm3428 = vcmp.eq.s32.totalorder %v2680, 4294967295
      %vm3429 = vcmp.eq.s32.totalorder %v2681, 4294967295
      %vm3430 = vcmp.eq.s32.totalorder %v2682, 4294967295
      %vm3431 = vcmp.eq.s32.totalorder %v2683, 4294967295
      %v3432 = vsel %vm3416, %v2652, 0.0
      %v3433 = vsel %vm3417, %v2653, 0.0
      %v3434 = vsel %vm3418, %v2654, 0.0
      %v3435 = vsel %vm3419, %v2655, 0.0
      %v3436 = vsel %vm3420, %v2656, 0.0
      %v3437 = vsel %vm3421, %v2657, 0.0
      %v3438 = vsel %vm3422, %v2658, 0.0
      %v3439 = vsel %vm3423, %v2659, 0.0
      %v3440 = vsel %vm3424, %v2660, 0.0
      %v3441 = vsel %vm3425, %v2661, 0.0
      %v3442 = vsel %vm3426, %v2662, 0.0
      %v3443 = vsel %vm3427, %v2663, 0.0
      %v3444 = vsel %vm3428, %v2664, 0.0
      %v3445 = vsel %vm3429, %v2665, 0.0
      %v3446 = vsel %vm3430, %v2666, 0.0
      %v3447 = vsel %vm3431, %v2667, 0.0
      %v3448 = vadd.f32 %v3400, %v3432
      %v3449 = vadd.f32 %v3401, %v3433
      %v3450 = vadd.f32 %v3402, %v3434
      %v3451 = vadd.f32 %v3403, %v3435
      %v3452 = vadd.f32 %v3404, %v3436
      %v3453 = vadd.f32 %v3405, %v3437
      %v3454 = vadd.f32 %v3406, %v3438
      %v3455 = vadd.f32 %v3407, %v3439
      %v3456 = vadd.f32 %v3408, %v3440
      %v3457 = vadd.f32 %v3409, %v3441
      %v3458 = vadd.f32 %v3410, %v3442
      %v3459 = vadd.f32 %v3411, %v3443
      %v3460 = vadd.f32 %v3412, %v3444
      %v3461 = vadd.f32 %v3413, %v3445
      %v3462 = vadd.f32 %v3414, %v3446
      %v3463 = vadd.f32 %v3415, %v3447
      %v3464 = vld [vmem:[%s5] sm:$0xf]
      %v3465 = vld [vmem:[%s5 + $0x4] sm:$0xf]
      %v3468 = vunpack.c.l.b16 %v3464
      %v3469 = vunpack.c.l.b16 %v3465
      %v3470 = vpack.c.b16 %v3469, %v3468
      %vm3472 = vcmask 130048
      %v3474 = vsel %vm3472, %v3376, 0
      %v3477 = vsel %vm3472, %v3377, 0
      %v3480 = vsel %vm3472, %v3378, 0
      %v3483 = vsel %vm3472, %v3379, 0
      %v3486 = vsel %vm3472, %v3380, 0
      %v3489 = vsel %vm3472, %v3381, 0
      %v3492 = vsel %vm3472, %v3382, 0
      %v3495 = vsel %vm3472, %v3383, 0
      %3497 = vmatprep.subr.bf16.mxu0 0
      %3498 = vmatpush1.bf16.msra.mxu0 0
      %3499 = vmatprep.subr.bf16.mxu0 0
      %3500 = vmatpush1.bf16.msra.mxu0 0
      %3501 = vmatprep.subr.bf16.mxu0 0
      %3502 = vmatpush1.bf16.msra.mxu0 0
      %3503 = vmatprep.subr.bf16.mxu0 0
      %3504 = vmatpush1.bf16.msra.mxu0 0
      %3505 = vmatprep.subr.bf16.mxu0 0
      %3506 = vmatpush1.bf16.msra.mxu0 0
      %3507 = vmatprep.subr.bf16.mxu0 0
      %3508 = vmatpush1.bf16.msra.mxu0 0
      %3509 = vmatprep.subr.bf16.mxu0 0
      %3510 = vmatpush1.bf16.msra.mxu0 0
      %3511 = vmatprep.subr.bf16.mxu0 0
      %3512 = vmatpush1.bf16.msra.mxu0 %v3470
      %3513 = vmatprep.subr.bf16.mxu0 0
      %3514 = vmatpush2.bf16.msra.mxu0 0
      %3515 = vmatprep.subr.bf16.mxu0 0
      %3516 = vmatpush2.bf16.msra.mxu0 0
      %3517 = vmatprep.subr.bf16.mxu0 0
      %3518 = vmatpush2.bf16.msra.mxu0 0
      %3519 = vmatprep.subr.bf16.mxu0 0
      %3520 = vmatpush2.bf16.msra.mxu0 0
      %3521 = vmatprep.subr.bf16.mxu0 0
      %3522 = vmatpush2.bf16.msra.mxu0 0
      %3523 = vmatprep.subr.bf16.mxu0 0
      %3524 = vmatpush2.bf16.msra.mxu0 0
      %3525 = vmatprep.subr.bf16.mxu0 0
      %3526 = vmatpush2.bf16.msra.mxu0 0
      %3527 = vmatprep.subr.bf16.mxu0 0
      %3528 = vmatpush2.bf16.msra.mxu0 0
      %3529 = vmatprep.mubr.bf16.mxu0 0
      %3530 = vmatmul.mubr.bf16.gmra.mxu0 %v3474
      %v3531 = vpop.f32.mrf.mxu0
      %v3532 = vadd.f32 0.0, %v3531
      %v3533 = vpop.f32.mrf.mxu0
      %v3534 = vpop.f32.mrf.mxu0
      %v3535 = vadd.f32 0.0, %v3534
      %v3536 = vpop.f32.mrf.mxu0
      %3537 = vmatprep.mubr.bf16.mxu0 0
      %3538 = vmatmul.mubr.bf16.gmra.mxu0 %v3477
      %v3539 = vpop.f32.mrf.mxu0
      %v3540 = vadd.f32 0.0, %v3539
      %v3541 = vpop.f32.mrf.mxu0
      %v3542 = vpop.f32.mrf.mxu0
      %v3543 = vadd.f32 0.0, %v3542
      %v3544 = vpop.f32.mrf.mxu0
      %3545 = vmatprep.mubr.bf16.mxu0 0
      %3546 = vmatmul.mubr.bf16.gmra.mxu0 %v3480
      %v3547 = vpop.f32.mrf.mxu0
      %v3548 = vadd.f32 0.0, %v3547
      %v3549 = vpop.f32.mrf.mxu0
      %v3550 = vpop.f32.mrf.mxu0
      %v3551 = vadd.f32 0.0, %v3550
      %v3552 = vpop.f32.mrf.mxu0
      %3553 = vmatprep.mubr.bf16.mxu0 0
      %3554 = vmatmul.mubr.bf16.gmra.mxu0 %v3483
      %v3555 = vpop.f32.mrf.mxu0
      %v3556 = vadd.f32 0.0, %v3555
      %v3557 = vpop.f32.mrf.mxu0
      %v3558 = vpop.f32.mrf.mxu0
      %v3559 = vadd.f32 0.0, %v3558
      %v3560 = vpop.f32.mrf.mxu0
      %3561 = vmatprep.mubr.bf16.mxu0 0
      %3562 = vmatmul.mubr.bf16.gmra.mxu0 %v3486
      %v3563 = vpop.f32.mrf.mxu0
      %v3564 = vadd.f32 0.0, %v3563
      %v3565 = vpop.f32.mrf.mxu0
      %v3566 = vpop.f32.mrf.mxu0
      %v3567 = vadd.f32 0.0, %v3566
      %v3568 = vpop.f32.mrf.mxu0
      %3569 = vmatprep.mubr.bf16.mxu0 0
      %3570 = vmatmul.mubr.bf16.gmra.mxu0 %v3489
      %v3571 = vpop.f32.mrf.mxu0
      %v3572 = vadd.f32 0.0, %v3571
      %v3573 = vpop.f32.mrf.mxu0
      %v3574 = vpop.f32.mrf.mxu0
      %v3575 = vadd.f32 0.0, %v3574
      %v3576 = vpop.f32.mrf.mxu0
      %3577 = vmatprep.mubr.bf16.mxu0 0
      %3578 = vmatmul.mubr.bf16.gmra.mxu0 %v3492
      %v3579 = vpop.f32.mrf.mxu0
      %v3580 = vadd.f32 0.0, %v3579
      %v3581 = vpop.f32.mrf.mxu0
      %v3582 = vpop.f32.mrf.mxu0
      %v3583 = vadd.f32 0.0, %v3582
      %v3584 = vpop.f32.mrf.mxu0
      %3585 = vmatprep.mubr.bf16.mxu0 0
      %3586 = vmatmul.mubr.bf16.gmra.mxu0 %v3495
      %v3587 = vpop.f32.mrf.mxu0
      %v3588 = vadd.f32 0.0, %v3587
      %v3589 = vpop.f32.mrf.mxu0
      %v3590 = vpop.f32.mrf.mxu0
      %v3591 = vadd.f32 0.0, %v3590
      %v3592 = vpop.f32.mrf.mxu0
      %3593 = vdwg.mxu0
      %3595 = vset.pattern.permute.xlu0 0
      %3596 = vperm.xlu0 %3595, %v3448
      %v3597 = vpop.permute.xlu0 %3596
      %3600 = vset.pattern.permute.xlu0 0
      %3601 = vperm.xlu0 %3600, %v3449
      %v3602 = vpop.permute.xlu0 %3601
      %3605 = vset.pattern.permute.xlu0 0
      %3606 = vperm.xlu0 %3605, %v3450
      %v3607 = vpop.permute.xlu0 %3606
      %3610 = vset.pattern.permute.xlu0 0
      %3611 = vperm.xlu0 %3610, %v3451
      %v3612 = vpop.permute.xlu0 %3611
      %3615 = vset.pattern.permute.xlu0 0
      %3616 = vperm.xlu0 %3615, %v3452
      %v3617 = vpop.permute.xlu0 %3616
      %3620 = vset.pattern.permute.xlu0 0
      %3621 = vperm.xlu0 %3620, %v3453
      %v3622 = vpop.permute.xlu0 %3621
      %3625 = vset.pattern.permute.xlu0 0
      %3626 = vperm.xlu0 %3625, %v3454
      %v3627 = vpop.permute.xlu0 %3626
      %3630 = vset.pattern.permute.xlu0 0
      %3631 = vperm.xlu0 %3630, %v3455
      %v3632 = vpop.permute.xlu0 %3631
      %3635 = vset.pattern.permute.xlu0 0
      %3636 = vperm.xlu0 %3635, %v3456
      %v3637 = vpop.permute.xlu0 %3636
      %3640 = vset.pattern.permute.xlu0 0
      %3641 = vperm.xlu0 %3640, %v3457
      %v3642 = vpop.permute.xlu0 %3641
      %3645 = vset.pattern.permute.xlu0 0
      %3646 = vperm.xlu0 %3645, %v3458
      %v3647 = vpop.permute.xlu0 %3646
      %3650 = vset.pattern.permute.xlu0 0
      %3651 = vperm.xlu0 %3650, %v3459
      %v3652 = vpop.permute.xlu0 %3651
      %3655 = vset.pattern.permute.xlu0 0
      %3656 = vperm.xlu0 %3655, %v3460
      %v3657 = vpop.permute.xlu0 %3656
      %3660 = vset.pattern.permute.xlu0 0
      %3661 = vperm.xlu0 %3660, %v3461
      %v3662 = vpop.permute.xlu0 %3661
      %3665 = vset.pattern.permute.xlu0 0
      %3666 = vperm.xlu0 %3665, %v3462
      %v3667 = vpop.permute.xlu0 %3666
      %3670 = vset.pattern.permute.xlu0 0
      %3671 = vperm.xlu0 %3670, %v3463
      %v3672 = vpop.permute.xlu0 %3671
      %v3674 = vmul.f32 %v3597, %v3532
      %v3675 = vmul.f32 %v3602, %v3535
      %v3676 = vmul.f32 %v3607, %v3540
      %v3677 = vmul.f32 %v3612, %v3543
      %v3678 = vmul.f32 %v3617, %v3548
      %v3679 = vmul.f32 %v3622, %v3551
      %v3680 = vmul.f32 %v3627, %v3556
      %v3681 = vmul.f32 %v3632, %v3559
      %v3682 = vmul.f32 %v3637, %v3564
      %v3683 = vmul.f32 %v3642, %v3567
      %v3684 = vmul.f32 %v3647, %v3572
      %v3685 = vmul.f32 %v3652, %v3575
      %v3686 = vmul.f32 %v3657, %v3580
      %v3687 = vmul.f32 %v3662, %v3583
      %v3688 = vmul.f32 %v3667, %v3588
      %v3689 = vmul.f32 %v3672, %v3591
      %v3690 = vadd.f32 %v2540, %v3674
      %v3691 = vadd.f32 %v2541, %v3675
      %v3692 = vadd.f32 %v2542, %v3676
      %v3693 = vadd.f32 %v2543, %v3677
      %v3694 = vadd.f32 %v2544, %v3678
      %v3695 = vadd.f32 %v2545, %v3679
      %v3696 = vadd.f32 %v2546, %v3680
      %v3697 = vadd.f32 %v2547, %v3681
      %v3698 = vadd.f32 %v2548, %v3682
      %v3699 = vadd.f32 %v2549, %v3683
      %v3700 = vadd.f32 %v2550, %v3684
      %v3701 = vadd.f32 %v2551, %v3685
      %v3702 = vadd.f32 %v2552, %v3686
      %v3703 = vadd.f32 %v2553, %v3687
      %v3704 = vadd.f32 %v2554, %v3688
      %v3705 = vadd.f32 %v2555, %v3689
      %vm3706 = vcmp.eq.s32.totalorder %v2668, 1
      %vm3707 = vcmp.eq.s32.totalorder %v2669, 1
      %vm3708 = vcmp.eq.s32.totalorder %v2670, 1
      %vm3709 = vcmp.eq.s32.totalorder %v2671, 1
      %vm3710 = vcmp.eq.s32.totalorder %v2672, 1
      %vm3711 = vcmp.eq.s32.totalorder %v2673, 1
      %vm3712 = vcmp.eq.s32.totalorder %v2674, 1
      %vm3713 = vcmp.eq.s32.totalorder %v2675, 1
      %vm3714 = vcmp.eq.s32.totalorder %v2676, 1
      %vm3715 = vcmp.eq.s32.totalorder %v2677, 1
      %vm3716 = vcmp.eq.s32.totalorder %v2678, 1
      %vm3717 = vcmp.eq.s32.totalorder %v2679, 1
      %vm3718 = vcmp.eq.s32.totalorder %v2680, 1
      %vm3719 = vcmp.eq.s32.totalorder %v2681, 1
      %vm3720 = vcmp.eq.s32.totalorder %v2682, 1
      %vm3721 = vcmp.eq.s32.totalorder %v2683, 1
      %v3722 = vsel %vm3706, %v2752, 0.0
      %v3723 = vsel %vm3707, %v2753, 0.0
      %v3724 = vsel %vm3708, %v2754, 0.0
      %v3725 = vsel %vm3709, %v2755, 0.0
      %v3726 = vsel %vm3710, %v2756, 0.0
      %v3727 = vsel %vm3711, %v2757, 0.0
      %v3728 = vsel %vm3712, %v2758, 0.0
      %v3729 = vsel %vm3713, %v2759, 0.0
      %v3730 = vsel %vm3714, %v2760, 0.0
      %v3731 = vsel %vm3715, %v2761, 0.0
      %v3732 = vsel %vm3716, %v2762, 0.0
      %v3733 = vsel %vm3717, %v2763, 0.0
      %v3734 = vsel %vm3718, %v2764, 0.0
      %v3735 = vsel %vm3719, %v2765, 0.0
      %v3736 = vsel %vm3720, %v2766, 0.0
      %v3737 = vsel %vm3721, %v2767, 0.0
      %v3738 = vsel %vm3384, %v2652, 0.0
      %v3739 = vsel %vm3385, %v2653, 0.0
      %v3740 = vsel %vm3386, %v2654, 0.0
      %v3741 = vsel %vm3387, %v2655, 0.0
      %v3742 = vsel %vm3388, %v2656, 0.0
      %v3743 = vsel %vm3389, %v2657, 0.0
      %v3744 = vsel %vm3390, %v2658, 0.0
      %v3745 = vsel %vm3391, %v2659, 0.0
      %v3746 = vsel %vm3392, %v2660, 0.0
      %v3747 = vsel %vm3393, %v2661, 0.0
      %v3748 = vsel %vm3394, %v2662, 0.0
      %v3749 = vsel %vm3395, %v2663, 0.0
      %v3750 = vsel %vm3396, %v2664, 0.0
      %v3751 = vsel %vm3397, %v2665, 0.0
      %v3752 = vsel %vm3398, %v2666, 0.0
      %v3753 = vsel %vm3399, %v2667, 0.0
      %v3754 = vadd.f32 %v3722, %v3738
      %v3755 = vadd.f32 %v3723, %v3739
      %v3756 = vadd.f32 %v3724, %v3740
      %v3757 = vadd.f32 %v3725, %v3741
      %v3758 = vadd.f32 %v3726, %v3742
      %v3759 = vadd.f32 %v3727, %v3743
      %v3760 = vadd.f32 %v3728, %v3744
      %v3761 = vadd.f32 %v3729, %v3745
      %v3762 = vadd.f32 %v3730, %v3746
      %v3763 = vadd.f32 %v3731, %v3747
      %v3764 = vadd.f32 %v3732, %v3748
      %v3765 = vadd.f32 %v3733, %v3749
      %v3766 = vadd.f32 %v3734, %v3750
      %v3767 = vadd.f32 %v3735, %v3751
      %v3768 = vadd.f32 %v3736, %v3752
      %v3769 = vadd.f32 %v3737, %v3753
      %v3770 = vld [vmem:[%s5 + $0x8] sm:$0xf]
      %v3771 = vld [vmem:[%s5 + $0xc] sm:$0xf]
      %v3774 = vunpack.c.l.b16 %v3770
      %v3775 = vunpack.c.l.b16 %v3771
      %v3776 = vpack.c.b16 %v3775, %v3774
      %3778 = vmatprep.subr.bf16.mxu0 0
      %3779 = vmatpush1.bf16.msra.mxu0 0
      %3780 = vmatprep.subr.bf16.mxu0 0
      %3781 = vmatpush1.bf16.msra.mxu0 0
      %3782 = vmatprep.subr.bf16.mxu0 0
      %3783 = vmatpush1.bf16.msra.mxu0 0
      %3784 = vmatprep.subr.bf16.mxu0 0
      %3785 = vmatpush1.bf16.msra.mxu0 0
      %3786 = vmatprep.subr.bf16.mxu0 0
      %3787 = vmatpush1.bf16.msra.mxu0 0
      %3788 = vmatprep.subr.bf16.mxu0 0
      %3789 = vmatpush1.bf16.msra.mxu0 0
      %3790 = vmatprep.subr.bf16.mxu0 0
      %3791 = vmatpush1.bf16.msra.mxu0 0
      %3792 = vmatprep.subr.bf16.mxu0 0
      %3793 = vmatpush1.bf16.msra.mxu0 %v3776
      %3794 = vmatprep.subr.bf16.mxu0 0
      %3795 = vmatpush2.bf16.msra.mxu0 0
      %3796 = vmatprep.subr.bf16.mxu0 0
      %3797 = vmatpush2.bf16.msra.mxu0 0
      %3798 = vmatprep.subr.bf16.mxu0 0
      %3799 = vmatpush2.bf16.msra.mxu0 0
      %3800 = vmatprep.subr.bf16.mxu0 0
      %3801 = vmatpush2.bf16.msra.mxu0 0
      %3802 = vmatprep.subr.bf16.mxu0 0
      %3803 = vmatpush2.bf16.msra.mxu0 0
      %3804 = vmatprep.subr.bf16.mxu0 0
      %3805 = vmatpush2.bf16.msra.mxu0 0
      %3806 = vmatprep.subr.bf16.mxu0 0
      %3807 = vmatpush2.bf16.msra.mxu0 0
      %3808 = vmatprep.subr.bf16.mxu0 0
      %3809 = vmatpush2.bf16.msra.mxu0 0
      %3810 = vmatprep.mubr.bf16.mxu0 0
      %3811 = vmatmul.mubr.bf16.gmra.mxu0 %v3474
      %v3812 = vpop.f32.mrf.mxu0
      %v3813 = vadd.f32 0.0, %v3812
      %v3814 = vpop.f32.mrf.mxu0
      %v3815 = vpop.f32.mrf.mxu0
      %v3816 = vadd.f32 0.0, %v3815
      %v3817 = vpop.f32.mrf.mxu0
      %3818 = vmatprep.mubr.bf16.mxu0 0
      %3819 = vmatmul.mubr.bf16.gmra.mxu0 %v3477
      %v3820 = vpop.f32.mrf.mxu0
      %v3821 = vadd.f32 0.0, %v3820
      %v3822 = vpop.f32.mrf.mxu0
      %v3823 = vpop.f32.mrf.mxu0
      %v3824 = vadd.f32 0.0, %v3823
      %v3825 = vpop.f32.mrf.mxu0
      %3826 = vmatprep.mubr.bf16.mxu0 0
      %3827 = vmatmul.mubr.bf16.gmra.mxu0 %v3480
      %v3828 = vpop.f32.mrf.mxu0
      %v3829 = vadd.f32 0.0, %v3828
      %v3830 = vpop.f32.mrf.mxu0
      %v3831 = vpop.f32.mrf.mxu0
      %v3832 = vadd.f32 0.0, %v3831
      %v3833 = vpop.f32.mrf.mxu0
      %3834 = vmatprep.mubr.bf16.mxu0 0
      %3835 = vmatmul.mubr.bf16.gmra.mxu0 %v3483
      %v3836 = vpop.f32.mrf.mxu0
      %v3837 = vadd.f32 0.0, %v3836
      %v3838 = vpop.f32.mrf.mxu0
      %v3839 = vpop.f32.mrf.mxu0
      %v3840 = vadd.f32 0.0, %v3839
      %v3841 = vpop.f32.mrf.mxu0
      %3842 = vmatprep.mubr.bf16.mxu0 0
      %3843 = vmatmul.mubr.bf16.gmra.mxu0 %v3486
      %v3844 = vpop.f32.mrf.mxu0
      %v3845 = vadd.f32 0.0, %v3844
      %v3846 = vpop.f32.mrf.mxu0
      %v3847 = vpop.f32.mrf.mxu0
      %v3848 = vadd.f32 0.0, %v3847
      %v3849 = vpop.f32.mrf.mxu0
      %3850 = vmatprep.mubr.bf16.mxu0 0
      %3851 = vmatmul.mubr.bf16.gmra.mxu0 %v3489
      %v3852 = vpop.f32.mrf.mxu0
      %v3853 = vadd.f32 0.0, %v3852
      %v3854 = vpop.f32.mrf.mxu0
      %v3855 = vpop.f32.mrf.mxu0
      %v3856 = vadd.f32 0.0, %v3855
      %v3857 = vpop.f32.mrf.mxu0
      %3858 = vmatprep.mubr.bf16.mxu0 0
      %3859 = vmatmul.mubr.bf16.gmra.mxu0 %v3492
      %v3860 = vpop.f32.mrf.mxu0
      %v3861 = vadd.f32 0.0, %v3860
      %v3862 = vpop.f32.mrf.mxu0
      %v3863 = vpop.f32.mrf.mxu0
      %v3864 = vadd.f32 0.0, %v3863
      %v3865 = vpop.f32.mrf.mxu0
      %3866 = vmatprep.mubr.bf16.mxu0 0
      %3867 = vmatmul.mubr.bf16.gmra.mxu0 %v3495
      %v3868 = vpop.f32.mrf.mxu0
      %v3869 = vadd.f32 0.0, %v3868
      %v3870 = vpop.f32.mrf.mxu0
      %v3871 = vpop.f32.mrf.mxu0
      %v3872 = vadd.f32 0.0, %v3871
      %v3873 = vpop.f32.mrf.mxu0
      %3874 = vdwg.mxu0
      %3876 = vset.pattern.permute.xlu0 0
      %3877 = vperm.xlu0 %3876, %v3754
      %v3878 = vpop.permute.xlu0 %3877
      %3881 = vset.pattern.permute.xlu0 0
      %3882 = vperm.xlu0 %3881, %v3755
      %v3883 = vpop.permute.xlu0 %3882
      %3886 = vset.pattern.permute.xlu0 0
      %3887 = vperm.xlu0 %3886, %v3756
      %v3888 = vpop.permute.xlu0 %3887
      %3891 = vset.pattern.permute.xlu0 0
      %3892 = vperm.xlu0 %3891, %v3757
      %v3893 = vpop.permute.xlu0 %3892
      %3896 = vset.pattern.permute.xlu0 0
      %3897 = vperm.xlu0 %3896, %v3758
      %v3898 = vpop.permute.xlu0 %3897
      %3901 = vset.pattern.permute.xlu0 0
      %3902 = vperm.xlu0 %3901, %v3759
      %v3903 = vpop.permute.xlu0 %3902
      %3906 = vset.pattern.permute.xlu0 0
      %3907 = vperm.xlu0 %3906, %v3760
      %v3908 = vpop.permute.xlu0 %3907
      %3911 = vset.pattern.permute.xlu0 0
      %3912 = vperm.xlu0 %3911, %v3761
      %v3913 = vpop.permute.xlu0 %3912
      %3916 = vset.pattern.permute.xlu0 0
      %3917 = vperm.xlu0 %3916, %v3762
      %v3918 = vpop.permute.xlu0 %3917
      %3921 = vset.pattern.permute.xlu0 0
      %3922 = vperm.xlu0 %3921, %v3763
      %v3923 = vpop.permute.xlu0 %3922
      %3926 = vset.pattern.permute.xlu0 0
      %3927 = vperm.xlu0 %3926, %v3764
      %v3928 = vpop.permute.xlu0 %3927
      %3931 = vset.pattern.permute.xlu0 0
      %3932 = vperm.xlu0 %3931, %v3765
      %v3933 = vpop.permute.xlu0 %3932
      %3936 = vset.pattern.permute.xlu0 0
      %3937 = vperm.xlu0 %3936, %v3766
      %v3938 = vpop.permute.xlu0 %3937
      %3941 = vset.pattern.permute.xlu0 0
      %3942 = vperm.xlu0 %3941, %v3767
      %v3943 = vpop.permute.xlu0 %3942
      %3946 = vset.pattern.permute.xlu0 0
      %3947 = vperm.xlu0 %3946, %v3768
      %v3948 = vpop.permute.xlu0 %3947
      %3951 = vset.pattern.permute.xlu0 0
      %3952 = vperm.xlu0 %3951, %v3769
      %v3953 = vpop.permute.xlu0 %3952
      %v3955 = vmul.f32 %v3878, %v3813
      %v3956 = vmul.f32 %v3883, %v3816
      %v3957 = vmul.f32 %v3888, %v3821
      %v3958 = vmul.f32 %v3893, %v3824
      %v3959 = vmul.f32 %v3898, %v3829
      %v3960 = vmul.f32 %v3903, %v3832
      %v3961 = vmul.f32 %v3908, %v3837
      %v3962 = vmul.f32 %v3913, %v3840
      %v3963 = vmul.f32 %v3918, %v3845
      %v3964 = vmul.f32 %v3923, %v3848
      %v3965 = vmul.f32 %v3928, %v3853
      %v3966 = vmul.f32 %v3933, %v3856
      %v3967 = vmul.f32 %v3938, %v3861
      %v3968 = vmul.f32 %v3943, %v3864
      %v3969 = vmul.f32 %v3948, %v3869
      %v3970 = vmul.f32 %v3953, %v3872
      %v3971 = vadd.f32 %v3690, %v3955
      %v3972 = vadd.f32 %v3691, %v3956
      %v3973 = vadd.f32 %v3692, %v3957
      %v3974 = vadd.f32 %v3693, %v3958
      %v3975 = vadd.f32 %v3694, %v3959
      %v3976 = vadd.f32 %v3695, %v3960
      %v3977 = vadd.f32 %v3696, %v3961
      %v3978 = vadd.f32 %v3697, %v3962
      %v3979 = vadd.f32 %v3698, %v3963
      %v3980 = vadd.f32 %v3699, %v3964
      %v3981 = vadd.f32 %v3700, %v3965
      %v3982 = vadd.f32 %v3701, %v3966
      %v3983 = vadd.f32 %v3702, %v3967
      %v3984 = vadd.f32 %v3703, %v3968
      %v3985 = vadd.f32 %v3704, %v3969
      %v3986 = vadd.f32 %v3705, %v3970
      %vm3987 = vcmp.eq.s32.totalorder %v2668, 2
      %vm3988 = vcmp.eq.s32.totalorder %v2669, 2
      %vm3989 = vcmp.eq.s32.totalorder %v2670, 2
      %vm3990 = vcmp.eq.s32.totalorder %v2671, 2
      %vm3991 = vcmp.eq.s32.totalorder %v2672, 2
      %vm3992 = vcmp.eq.s32.totalorder %v2673, 2
      %vm3993 = vcmp.eq.s32.totalorder %v2674, 2
      %vm3994 = vcmp.eq.s32.totalorder %v2675, 2
      %vm3995 = vcmp.eq.s32.totalorder %v2676, 2
      %vm3996 = vcmp.eq.s32.totalorder %v2677, 2
      %vm3997 = vcmp.eq.s32.totalorder %v2678, 2
      %vm3998 = vcmp.eq.s32.totalorder %v2679, 2
      %vm3999 = vcmp.eq.s32.totalorder %v2680, 2
      %vm4000 = vcmp.eq.s32.totalorder %v2681, 2
      %vm4001 = vcmp.eq.s32.totalorder %v2682, 2
      %vm4002 = vcmp.eq.s32.totalorder %v2683, 2
      %v4003 = vsel %vm3987, %v2752, 0.0
      %v4004 = vsel %vm3988, %v2753, 0.0
      %v4005 = vsel %vm3989, %v2754, 0.0
      %v4006 = vsel %vm3990, %v2755, 0.0
      %v4007 = vsel %vm3991, %v2756, 0.0
      %v4008 = vsel %vm3992, %v2757, 0.0
      %v4009 = vsel %vm3993, %v2758, 0.0
      %v4010 = vsel %vm3994, %v2759, 0.0
      %v4011 = vsel %vm3995, %v2760, 0.0
      %v4012 = vsel %vm3996, %v2761, 0.0
      %v4013 = vsel %vm3997, %v2762, 0.0
      %v4014 = vsel %vm3998, %v2763, 0.0
      %v4015 = vsel %vm3999, %v2764, 0.0
      %v4016 = vsel %vm4000, %v2765, 0.0
      %v4017 = vsel %vm4001, %v2766, 0.0
      %v4018 = vsel %vm4002, %v2767, 0.0
      %v4019 = vsel %vm3706, %v2652, 0.0
      %v4020 = vsel %vm3707, %v2653, 0.0
      %v4021 = vsel %vm3708, %v2654, 0.0
      %v4022 = vsel %vm3709, %v2655, 0.0
      %v4023 = vsel %vm3710, %v2656, 0.0
      %v4024 = vsel %vm3711, %v2657, 0.0
      %v4025 = vsel %vm3712, %v2658, 0.0
      %v4026 = vsel %vm3713, %v2659, 0.0
      %v4027 = vsel %vm3714, %v2660, 0.0
      %v4028 = vsel %vm3715, %v2661, 0.0
      %v4029 = vsel %vm3716, %v2662, 0.0
      %v4030 = vsel %vm3717, %v2663, 0.0
      %v4031 = vsel %vm3718, %v2664, 0.0
      %v4032 = vsel %vm3719, %v2665, 0.0
      %v4033 = vsel %vm3720, %v2666, 0.0
      %v4034 = vsel %vm3721, %v2667, 0.0
      %v4035 = vadd.f32 %v4003, %v4019
      %v4036 = vadd.f32 %v4004, %v4020
      %v4037 = vadd.f32 %v4005, %v4021
      %v4038 = vadd.f32 %v4006, %v4022
      %v4039 = vadd.f32 %v4007, %v4023
      %v4040 = vadd.f32 %v4008, %v4024
      %v4041 = vadd.f32 %v4009, %v4025
      %v4042 = vadd.f32 %v4010, %v4026
      %v4043 = vadd.f32 %v4011, %v4027
      %v4044 = vadd.f32 %v4012, %v4028
      %v4045 = vadd.f32 %v4013, %v4029
      %v4046 = vadd.f32 %v4014, %v4030
      %v4047 = vadd.f32 %v4015, %v4031
      %v4048 = vadd.f32 %v4016, %v4032
      %v4049 = vadd.f32 %v4017, %v4033
      %v4050 = vadd.f32 %v4018, %v4034
      %v4051 = vld [vmem:[%s5 + $0x10] sm:$0xf]
      %v4052 = vld [vmem:[%s5 + $0x14] sm:$0xf]
      %v4055 = vunpack.c.l.b16 %v4051
      %v4056 = vunpack.c.l.b16 %v4052
      %v4057 = vpack.c.b16 %v4056, %v4055
      %4059 = vmatprep.subr.bf16.mxu0 0
      %4060 = vmatpush1.bf16.msra.mxu0 0
      %4061 = vmatprep.subr.bf16.mxu0 0
      %4062 = vmatpush1.bf16.msra.mxu0 0
      %4063 = vmatprep.subr.bf16.mxu0 0
      %4064 = vmatpush1.bf16.msra.mxu0 0
      %4065 = vmatprep.subr.bf16.mxu0 0
      %4066 = vmatpush1.bf16.msra.mxu0 0
      %4067 = vmatprep.subr.bf16.mxu0 0
      %4068 = vmatpush1.bf16.msra.mxu0 0
      %4069 = vmatprep.subr.bf16.mxu0 0
      %4070 = vmatpush1.bf16.msra.mxu0 0
      %4071 = vmatprep.subr.bf16.mxu0 0
      %4072 = vmatpush1.bf16.msra.mxu0 0
      %4073 = vmatprep.subr.bf16.mxu0 0
      %4074 = vmatpush1.bf16.msra.mxu0 %v4057
      %4075 = vmatprep.subr.bf16.mxu0 0
      %4076 = vmatpush2.bf16.msra.mxu0 0
      %4077 = vmatprep.subr.bf16.mxu0 0
      %4078 = vmatpush2.bf16.msra.mxu0 0
      %4079 = vmatprep.subr.bf16.mxu0 0
      %4080 = vmatpush2.bf16.msra.mxu0 0
      %4081 = vmatprep.subr.bf16.mxu0 0
      %4082 = vmatpush2.bf16.msra.mxu0 0
      %4083 = vmatprep.subr.bf16.mxu0 0
      %4084 = vmatpush2.bf16.msra.mxu0 0
      %4085 = vmatprep.subr.bf16.mxu0 0
      %4086 = vmatpush2.bf16.msra.mxu0 0
      %4087 = vmatprep.subr.bf16.mxu0 0
      %4088 = vmatpush2.bf16.msra.mxu0 0
      %4089 = vmatprep.subr.bf16.mxu0 0
      %4090 = vmatpush2.bf16.msra.mxu0 0
      %4091 = vmatprep.mubr.bf16.mxu0 0
      %4092 = vmatmul.mubr.bf16.gmra.mxu0 %v3474
      %v4093 = vpop.f32.mrf.mxu0
      %v4094 = vadd.f32 0.0, %v4093
      %v4095 = vpop.f32.mrf.mxu0
      %v4096 = vpop.f32.mrf.mxu0
      %v4097 = vadd.f32 0.0, %v4096
      %v4098 = vpop.f32.mrf.mxu0
      %4099 = vmatprep.mubr.bf16.mxu0 0
      %4100 = vmatmul.mubr.bf16.gmra.mxu0 %v3477
      %v4101 = vpop.f32.mrf.mxu0
      %v4102 = vadd.f32 0.0, %v4101
      %v4103 = vpop.f32.mrf.mxu0
      %v4104 = vpop.f32.mrf.mxu0
      %v4105 = vadd.f32 0.0, %v4104
      %v4106 = vpop.f32.mrf.mxu0
      %4107 = vmatprep.mubr.bf16.mxu0 0
      %4108 = vmatmul.mubr.bf16.gmra.mxu0 %v3480
      %v4109 = vpop.f32.mrf.mxu0
      %v4110 = vadd.f32 0.0, %v4109
      %v4111 = vpop.f32.mrf.mxu0
      %v4112 = vpop.f32.mrf.mxu0
      %v4113 = vadd.f32 0.0, %v4112
      %v4114 = vpop.f32.mrf.mxu0
      %4115 = vmatprep.mubr.bf16.mxu0 0
      %4116 = vmatmul.mubr.bf16.gmra.mxu0 %v3483
      %v4117 = vpop.f32.mrf.mxu0
      %v4118 = vadd.f32 0.0, %v4117
      %v4119 = vpop.f32.mrf.mxu0
      %v4120 = vpop.f32.mrf.mxu0
      %v4121 = vadd.f32 0.0, %v4120
      %v4122 = vpop.f32.mrf.mxu0
      %4123 = vmatprep.mubr.bf16.mxu0 0
      %4124 = vmatmul.mubr.bf16.gmra.mxu0 %v3486
      %v4125 = vpop.f32.mrf.mxu0
      %v4126 = vadd.f32 0.0, %v4125
      %v4127 = vpop.f32.mrf.mxu0
      %v4128 = vpop.f32.mrf.mxu0
      %v4129 = vadd.f32 0.0, %v4128
      %v4130 = vpop.f32.mrf.mxu0
      %4131 = vmatprep.mubr.bf16.mxu0 0
      %4132 = vmatmul.mubr.bf16.gmra.mxu0 %v3489
      %v4133 = vpop.f32.mrf.mxu0
      %v4134 = vadd.f32 0.0, %v4133
      %v4135 = vpop.f32.mrf.mxu0
      %v4136 = vpop.f32.mrf.mxu0
      %v4137 = vadd.f32 0.0, %v4136
      %v4138 = vpop.f32.mrf.mxu0
      %4139 = vmatprep.mubr.bf16.mxu0 0
      %4140 = vmatmul.mubr.bf16.gmra.mxu0 %v3492
      %v4141 = vpop.f32.mrf.mxu0
      %v4142 = vadd.f32 0.0, %v4141
      %v4143 = vpop.f32.mrf.mxu0
      %v4144 = vpop.f32.mrf.mxu0
      %v4145 = vadd.f32 0.0, %v4144
      %v4146 = vpop.f32.mrf.mxu0
      %4147 = vmatprep.mubr.bf16.mxu0 0
      %4148 = vmatmul.mubr.bf16.gmra.mxu0 %v3495
      %v4149 = vpop.f32.mrf.mxu0
      %v4150 = vadd.f32 0.0, %v4149
      %v4151 = vpop.f32.mrf.mxu0
      %v4152 = vpop.f32.mrf.mxu0
      %v4153 = vadd.f32 0.0, %v4152
      %v4154 = vpop.f32.mrf.mxu0
      %4155 = vdwg.mxu0
      %4157 = vset.pattern.permute.xlu0 0
      %4158 = vperm.xlu0 %4157, %v4035
      %v4159 = vpop.permute.xlu0 %4158
      %4162 = vset.pattern.permute.xlu0 0
      %4163 = vperm.xlu0 %4162, %v4036
      %v4164 = vpop.permute.xlu0 %4163
      %4167 = vset.pattern.permute.xlu0 0
      %4168 = vperm.xlu0 %4167, %v4037
      %v4169 = vpop.permute.xlu0 %4168
      %4172 = vset.pattern.permute.xlu0 0
      %4173 = vperm.xlu0 %4172, %v4038
      %v4174 = vpop.permute.xlu0 %4173
      %4177 = vset.pattern.permute.xlu0 0
      %4178 = vperm.xlu0 %4177, %v4039
      %v4179 = vpop.permute.xlu0 %4178
      %4182 = vset.pattern.permute.xlu0 0
      %4183 = vperm.xlu0 %4182, %v4040
      %v4184 = vpop.permute.xlu0 %4183
      %4187 = vset.pattern.permute.xlu0 0
      %4188 = vperm.xlu0 %4187, %v4041
      %v4189 = vpop.permute.xlu0 %4188
      %4192 = vset.pattern.permute.xlu0 0
      %4193 = vperm.xlu0 %4192, %v4042
      %v4194 = vpop.permute.xlu0 %4193
      %4197 = vset.pattern.permute.xlu0 0
      %4198 = vperm.xlu0 %4197, %v4043
      %v4199 = vpop.permute.xlu0 %4198
      %4202 = vset.pattern.permute.xlu0 0
      %4203 = vperm.xlu0 %4202, %v4044
      %v4204 = vpop.permute.xlu0 %4203
      %4207 = vset.pattern.permute.xlu0 0
      %4208 = vperm.xlu0 %4207, %v4045
      %v4209 = vpop.permute.xlu0 %4208
      %4212 = vset.pattern.permute.xlu0 0
      %4213 = vperm.xlu0 %4212, %v4046
      %v4214 = vpop.permute.xlu0 %4213
      %4217 = vset.pattern.permute.xlu0 0
      %4218 = vperm.xlu0 %4217, %v4047
      %v4219 = vpop.permute.xlu0 %4218
      %4222 = vset.pattern.permute.xlu0 0
      %4223 = vperm.xlu0 %4222, %v4048
      %v4224 = vpop.permute.xlu0 %4223
      %4227 = vset.pattern.permute.xlu0 0
      %4228 = vperm.xlu0 %4227, %v4049
      %v4229 = vpop.permute.xlu0 %4228
      %4232 = vset.pattern.permute.xlu0 0
      %4233 = vperm.xlu0 %4232, %v4050
      %v4234 = vpop.permute.xlu0 %4233
      %v4236 = vmul.f32 %v4159, %v4094
      %v4237 = vmul.f32 %v4164, %v4097
      %v4238 = vmul.f32 %v4169, %v4102
      %v4239 = vmul.f32 %v4174, %v4105
      %v4240 = vmul.f32 %v4179, %v4110
      %v4241 = vmul.f32 %v4184, %v4113
      %v4242 = vmul.f32 %v4189, %v4118
      %v4243 = vmul.f32 %v4194, %v4121
      %v4244 = vmul.f32 %v4199, %v4126
      %v4245 = vmul.f32 %v4204, %v4129
      %v4246 = vmul.f32 %v4209, %v4134
      %v4247 = vmul.f32 %v4214, %v4137
      %v4248 = vmul.f32 %v4219, %v4142
      %v4249 = vmul.f32 %v4224, %v4145
      %v4250 = vmul.f32 %v4229, %v4150
      %v4251 = vmul.f32 %v4234, %v4153
      %v4252 = vadd.f32 %v3971, %v4236
      %v4253 = vadd.f32 %v3972, %v4237
      %v4254 = vadd.f32 %v3973, %v4238
      %v4255 = vadd.f32 %v3974, %v4239
      %v4256 = vadd.f32 %v3975, %v4240
      %v4257 = vadd.f32 %v3976, %v4241
      %v4258 = vadd.f32 %v3977, %v4242
      %v4259 = vadd.f32 %v3978, %v4243
      %v4260 = vadd.f32 %v3979, %v4244
      %v4261 = vadd.f32 %v3980, %v4245
      %v4262 = vadd.f32 %v3981, %v4246
      %v4263 = vadd.f32 %v3982, %v4247
      %v4264 = vadd.f32 %v3983, %v4248
      %v4265 = vadd.f32 %v3984, %v4249
      %v4266 = vadd.f32 %v3985, %v4250
      %v4267 = vadd.f32 %v3986, %v4251
      %vm4268 = vcmp.eq.s32.totalorder %v2668, 3
      %vm4269 = vcmp.eq.s32.totalorder %v2669, 3
      %vm4270 = vcmp.eq.s32.totalorder %v2670, 3
      %vm4271 = vcmp.eq.s32.totalorder %v2671, 3
      %vm4272 = vcmp.eq.s32.totalorder %v2672, 3
      %vm4273 = vcmp.eq.s32.totalorder %v2673, 3
      %vm4274 = vcmp.eq.s32.totalorder %v2674, 3
      %vm4275 = vcmp.eq.s32.totalorder %v2675, 3
      %vm4276 = vcmp.eq.s32.totalorder %v2676, 3
      %vm4277 = vcmp.eq.s32.totalorder %v2677, 3
      %vm4278 = vcmp.eq.s32.totalorder %v2678, 3
      %vm4279 = vcmp.eq.s32.totalorder %v2679, 3
      %vm4280 = vcmp.eq.s32.totalorder %v2680, 3
      %vm4281 = vcmp.eq.s32.totalorder %v2681, 3
      %vm4282 = vcmp.eq.s32.totalorder %v2682, 3
      %vm4283 = vcmp.eq.s32.totalorder %v2683, 3
      %v4284 = vsel %vm4268, %v2752, 0.0
      %v4285 = vsel %vm4269, %v2753, 0.0
      %v4286 = vsel %vm4270, %v2754, 0.0
      %v4287 = vsel %vm4271, %v2755, 0.0
      %v4288 = vsel %vm4272, %v2756, 0.0
      %v4289 = vsel %vm4273, %v2757, 0.0
      %v4290 = vsel %vm4274, %v2758, 0.0
      %v4291 = vsel %vm4275, %v2759, 0.0
      %v4292 = vsel %vm4276, %v2760, 0.0
      %v4293 = vsel %vm4277, %v2761, 0.0
      %v4294 = vsel %vm4278, %v2762, 0.0
      %v4295 = vsel %vm4279, %v2763, 0.0
      %v4296 = vsel %vm4280, %v2764, 0.0
      %v4297 = vsel %vm4281, %v2765, 0.0
      %v4298 = vsel %vm4282, %v2766, 0.0
      %v4299 = vsel %vm4283, %v2767, 0.0
      %v4300 = vsel %vm3987, %v2652, 0.0
      %v4301 = vsel %vm3988, %v2653, 0.0
      %v4302 = vsel %vm3989, %v2654, 0.0
      %v4303 = vsel %vm3990, %v2655, 0.0
      %v4304 = vsel %vm3991, %v2656, 0.0
      %v4305 = vsel %vm3992, %v2657, 0.0
      %v4306 = vsel %vm3993, %v2658, 0.0
      %v4307 = vsel %vm3994, %v2659, 0.0
      %v4308 = vsel %vm3995, %v2660, 0.0
      %v4309 = vsel %vm3996, %v2661, 0.0
      %v4310 = vsel %vm3997, %v2662, 0.0
      %v4311 = vsel %vm3998, %v2663, 0.0
      %v4312 = vsel %vm3999, %v2664, 0.0
      %v4313 = vsel %vm4000, %v2665, 0.0
      %v4314 = vsel %vm4001, %v2666, 0.0
      %v4315 = vsel %vm4002, %v2667, 0.0
      %v4316 = vadd.f32 %v4284, %v4300
      %v4317 = vadd.f32 %v4285, %v4301
      %v4318 = vadd.f32 %v4286, %v4302
      %v4319 = vadd.f32 %v4287, %v4303
      %v4320 = vadd.f32 %v4288, %v4304
      %v4321 = vadd.f32 %v4289, %v4305
      %v4322 = vadd.f32 %v4290, %v4306
      %v4323 = vadd.f32 %v4291, %v4307
      %v4324 = vadd.f32 %v4292, %v4308
      %v4325 = vadd.f32 %v4293, %v4309
      %v4326 = vadd.f32 %v4294, %v4310
      %v4327 = vadd.f32 %v4295, %v4311
      %v4328 = vadd.f32 %v4296, %v4312
      %v4329 = vadd.f32 %v4297, %v4313
      %v4330 = vadd.f32 %v4298, %v4314
      %v4331 = vadd.f32 %v4299, %v4315
      %v4332 = vld [vmem:[%s5 + $0x18] sm:$0xf]
      %v4333 = vld [vmem:[%s5 + $0x1c] sm:$0xf]
      %v4336 = vunpack.c.l.b16 %v4332
      %v4337 = vunpack.c.l.b16 %v4333
      %v4338 = vpack.c.b16 %v4337, %v4336
      %4340 = vmatprep.subr.bf16.mxu0 0
      %4341 = vmatpush1.bf16.msra.mxu0 0
      %4342 = vmatprep.subr.bf16.mxu0 0
      %4343 = vmatpush1.bf16.msra.mxu0 0
      %4344 = vmatprep.subr.bf16.mxu0 0
      %4345 = vmatpush1.bf16.msra.mxu0 0
      %4346 = vmatprep.subr.bf16.mxu0 0
      %4347 = vmatpush1.bf16.msra.mxu0 0
      %4348 = vmatprep.subr.bf16.mxu0 0
      %4349 = vmatpush1.bf16.msra.mxu0 0
      %4350 = vmatprep.subr.bf16.mxu0 0
      %4351 = vmatpush1.bf16.msra.mxu0 0
      %4352 = vmatprep.subr.bf16.mxu0 0
      %4353 = vmatpush1.bf16.msra.mxu0 0
      %4354 = vmatprep.subr.bf16.mxu0 0
      %4355 = vmatpush1.bf16.msra.mxu0 %v4338
      %4356 = vmatprep.subr.bf16.mxu0 0
      %4357 = vmatpush2.bf16.msra.mxu0 0
      %4358 = vmatprep.subr.bf16.mxu0 0
      %4359 = vmatpush2.bf16.msra.mxu0 0
      %4360 = vmatprep.subr.bf16.mxu0 0
      %4361 = vmatpush2.bf16.msra.mxu0 0
      %4362 = vmatprep.subr.bf16.mxu0 0
      %4363 = vmatpush2.bf16.msra.mxu0 0
      %4364 = vmatprep.subr.bf16.mxu0 0
      %4365 = vmatpush2.bf16.msra.mxu0 0
      %4366 = vmatprep.subr.bf16.mxu0 0
      %4367 = vmatpush2.bf16.msra.mxu0 0
      %4368 = vmatprep.subr.bf16.mxu0 0
      %4369 = vmatpush2.bf16.msra.mxu0 0
      %4370 = vmatprep.subr.bf16.mxu0 0
      %4371 = vmatpush2.bf16.msra.mxu0 0
      %4372 = vmatprep.mubr.bf16.mxu0 0
      %4373 = vmatmul.mubr.bf16.gmra.mxu0 %v3474
      %v4374 = vpop.f32.mrf.mxu0
      %v4375 = vadd.f32 0.0, %v4374
      %v4376 = vpop.f32.mrf.mxu0
      %v4377 = vpop.f32.mrf.mxu0
      %v4378 = vadd.f32 0.0, %v4377
      %v4379 = vpop.f32.mrf.mxu0
      %4380 = vmatprep.mubr.bf16.mxu0 0
      %4381 = vmatmul.mubr.bf16.gmra.mxu0 %v3477
      %v4382 = vpop.f32.mrf.mxu0
      %v4383 = vadd.f32 0.0, %v4382
      %v4384 = vpop.f32.mrf.mxu0
      %v4385 = vpop.f32.mrf.mxu0
      %v4386 = vadd.f32 0.0, %v4385
      %v4387 = vpop.f32.mrf.mxu0
      %4388 = vmatprep.mubr.bf16.mxu0 0
      %4389 = vmatmul.mubr.bf16.gmra.mxu0 %v3480
      %v4390 = vpop.f32.mrf.mxu0
      %v4391 = vadd.f32 0.0, %v4390
      %v4392 = vpop.f32.mrf.mxu0
      %v4393 = vpop.f32.mrf.mxu0
      %v4394 = vadd.f32 0.0, %v4393
      %v4395 = vpop.f32.mrf.mxu0
      %4396 = vmatprep.mubr.bf16.mxu0 0
      %4397 = vmatmul.mubr.bf16.gmra.mxu0 %v3483
      %v4398 = vpop.f32.mrf.mxu0
      %v4399 = vadd.f32 0.0, %v4398
      %v4400 = vpop.f32.mrf.mxu0
      %v4401 = vpop.f32.mrf.mxu0
      %v4402 = vadd.f32 0.0, %v4401
      %v4403 = vpop.f32.mrf.mxu0
      %4404 = vmatprep.mubr.bf16.mxu0 0
      %4405 = vmatmul.mubr.bf16.gmra.mxu0 %v3486
      %v4406 = vpop.f32.mrf.mxu0
      %v4407 = vadd.f32 0.0, %v4406
      %v4408 = vpop.f32.mrf.mxu0
      %v4409 = vpop.f32.mrf.mxu0
      %v4410 = vadd.f32 0.0, %v4409
      %v4411 = vpop.f32.mrf.mxu0
      %4412 = vmatprep.mubr.bf16.mxu0 0
      %4413 = vmatmul.mubr.bf16.gmra.mxu0 %v3489
      %v4414 = vpop.f32.mrf.mxu0
      %v4415 = vadd.f32 0.0, %v4414
      %v4416 = vpop.f32.mrf.mxu0
      %v4417 = vpop.f32.mrf.mxu0
      %v4418 = vadd.f32 0.0, %v4417
      %v4419 = vpop.f32.mrf.mxu0
      %4420 = vmatprep.mubr.bf16.mxu0 0
      %4421 = vmatmul.mubr.bf16.gmra.mxu0 %v3492
      %v4422 = vpop.f32.mrf.mxu0
      %v4423 = vadd.f32 0.0, %v4422
      %v4424 = vpop.f32.mrf.mxu0
      %v4425 = vpop.f32.mrf.mxu0
      %v4426 = vadd.f32 0.0, %v4425
      %v4427 = vpop.f32.mrf.mxu0
      %4428 = vmatprep.mubr.bf16.mxu0 0
      %4429 = vmatmul.mubr.bf16.gmra.mxu0 %v3495
      %v4430 = vpop.f32.mrf.mxu0
      %v4431 = vadd.f32 0.0, %v4430
      %v4432 = vpop.f32.mrf.mxu0
      %v4433 = vpop.f32.mrf.mxu0
      %v4434 = vadd.f32 0.0, %v4433
      %v4435 = vpop.f32.mrf.mxu0
      %4436 = vdwg.mxu0
      %4438 = vset.pattern.permute.xlu0 0
      %4439 = vperm.xlu0 %4438, %v4316
      %v4440 = vpop.permute.xlu0 %4439
      %4443 = vset.pattern.permute.xlu0 0
      %4444 = vperm.xlu0 %4443, %v4317
      %v4445 = vpop.permute.xlu0 %4444
      %4448 = vset.pattern.permute.xlu0 0
      %4449 = vperm.xlu0 %4448, %v4318
      %v4450 = vpop.permute.xlu0 %4449
      %4453 = vset.pattern.permute.xlu0 0
      %4454 = vperm.xlu0 %4453, %v4319
      %v4455 = vpop.permute.xlu0 %4454
      %4458 = vset.pattern.permute.xlu0 0
      %4459 = vperm.xlu0 %4458, %v4320
      %v4460 = vpop.permute.xlu0 %4459
      %4463 = vset.pattern.permute.xlu0 0
      %4464 = vperm.xlu0 %4463, %v4321
      %v4465 = vpop.permute.xlu0 %4464
      %4468 = vset.pattern.permute.xlu0 0
      %4469 = vperm.xlu0 %4468, %v4322
      %v4470 = vpop.permute.xlu0 %4469
      %4473 = vset.pattern.permute.xlu0 0
      %4474 = vperm.xlu0 %4473, %v4323
      %v4475 = vpop.permute.xlu0 %4474
      %4478 = vset.pattern.permute.xlu0 0
      %4479 = vperm.xlu0 %4478, %v4324
      %v4480 = vpop.permute.xlu0 %4479
      %4483 = vset.pattern.permute.xlu0 0
      %4484 = vperm.xlu0 %4483, %v4325
      %v4485 = vpop.permute.xlu0 %4484
      %4488 = vset.pattern.permute.xlu0 0
      %4489 = vperm.xlu0 %4488, %v4326
      %v4490 = vpop.permute.xlu0 %4489
      %4493 = vset.pattern.permute.xlu0 0
      %4494 = vperm.xlu0 %4493, %v4327
      %v4495 = vpop.permute.xlu0 %4494
      %4498 = vset.pattern.permute.xlu0 0
      %4499 = vperm.xlu0 %4498, %v4328
      %v4500 = vpop.permute.xlu0 %4499
      %4503 = vset.pattern.permute.xlu0 0
      %4504 = vperm.xlu0 %4503, %v4329
      %v4505 = vpop.permute.xlu0 %4504
      %4508 = vset.pattern.permute.xlu0 0
      %4509 = vperm.xlu0 %4508, %v4330
      %v4510 = vpop.permute.xlu0 %4509
      %4513 = vset.pattern.permute.xlu0 0
      %4514 = vperm.xlu0 %4513, %v4331
      %v4515 = vpop.permute.xlu0 %4514
      %v4517 = vmul.f32 %v4440, %v4375
      %v4518 = vmul.f32 %v4445, %v4378
      %v4519 = vmul.f32 %v4450, %v4383
      %v4520 = vmul.f32 %v4455, %v4386
      %v4521 = vmul.f32 %v4460, %v4391
      %v4522 = vmul.f32 %v4465, %v4394
      %v4523 = vmul.f32 %v4470, %v4399
      %v4524 = vmul.f32 %v4475, %v4402
      %v4525 = vmul.f32 %v4480, %v4407
      %v4526 = vmul.f32 %v4485, %v4410
      %v4527 = vmul.f32 %v4490, %v4415
      %v4528 = vmul.f32 %v4495, %v4418
      %v4529 = vmul.f32 %v4500, %v4423
      %v4530 = vmul.f32 %v4505, %v4426
      %v4531 = vmul.f32 %v4510, %v4431
      %v4532 = vmul.f32 %v4515, %v4434
      %v4533 = vadd.f32 %v4252, %v4517
      %v4534 = vadd.f32 %v4253, %v4518
      %v4535 = vadd.f32 %v4254, %v4519
      %v4536 = vadd.f32 %v4255, %v4520
      %v4537 = vadd.f32 %v4256, %v4521
      %v4538 = vadd.f32 %v4257, %v4522
      %v4539 = vadd.f32 %v4258, %v4523
      %v4540 = vadd.f32 %v4259, %v4524
      %v4541 = vadd.f32 %v4260, %v4525
      %v4542 = vadd.f32 %v4261, %v4526
      %v4543 = vadd.f32 %v4262, %v4527
      %v4544 = vadd.f32 %v4263, %v4528
      %v4545 = vadd.f32 %v4264, %v4529
      %v4546 = vadd.f32 %v4265, %v4530
      %v4547 = vadd.f32 %v4266, %v4531
      %v4548 = vadd.f32 %v4267, %v4532
      %v4549 = vmul.f32 %v2572, 7.0
      %v4550 = vmul.f32 %v2573, 7.0
      %v4551 = vmul.f32 %v2574, 7.0
      %v4552 = vmul.f32 %v2575, 7.0
      %v4553 = vmul.f32 %v2576, 7.0
      %v4554 = vmul.f32 %v2577, 7.0
      %v4555 = vmul.f32 %v2578, 7.0
      %v4556 = vmul.f32 %v2579, 7.0
      %v4557 = vmul.f32 %v2580, 7.0
      %v4558 = vmul.f32 %v2581, 7.0
      %v4559 = vmul.f32 %v2582, 7.0
      %v4560 = vmul.f32 %v2583, 7.0
      %v4561 = vmul.f32 %v2584, 7.0
      %v4562 = vmul.f32 %v2585, 7.0
      %v4563 = vmul.f32 %v2586, 7.0
      %v4564 = vmul.f32 %v2587, 7.0
      %v4565 = vfloor.f32 %v4549
      %v4566 = vfloor.f32 %v4550
      %v4567 = vfloor.f32 %v4551
      %v4568 = vfloor.f32 %v4552
      %v4569 = vfloor.f32 %v4553
      %v4570 = vfloor.f32 %v4554
      %v4571 = vfloor.f32 %v4555
      %v4572 = vfloor.f32 %v4556
      %v4573 = vfloor.f32 %v4557
      %v4574 = vfloor.f32 %v4558
      %v4575 = vfloor.f32 %v4559
      %v4576 = vfloor.f32 %v4560
      %v4577 = vfloor.f32 %v4561
      %v4578 = vfloor.f32 %v4562
      %v4579 = vfloor.f32 %v4563
      %v4580 = vfloor.f32 %v4564
      %v4581 = vmax.f32 %v4565, 0.0
      %v4582 = vmax.f32 %v4566, 0.0
      %v4583 = vmax.f32 %v4567, 0.0
      %v4584 = vmax.f32 %v4568, 0.0
      %v4585 = vmax.f32 %v4569, 0.0
      %v4586 = vmax.f32 %v4570, 0.0
      %v4587 = vmax.f32 %v4571, 0.0
      %v4588 = vmax.f32 %v4572, 0.0
      %v4589 = vmax.f32 %v4573, 0.0
      %v4590 = vmax.f32 %v4574, 0.0
      %v4591 = vmax.f32 %v4575, 0.0
      %v4592 = vmax.f32 %v4576, 0.0
      %v4593 = vmax.f32 %v4577, 0.0
      %v4594 = vmax.f32 %v4578, 0.0
      %v4595 = vmax.f32 %v4579, 0.0
      %v4596 = vmax.f32 %v4580, 0.0
      %v4597 = vmin.f32 %v4581, 6.0
      %v4598 = vmin.f32 %v4582, 6.0
      %v4599 = vmin.f32 %v4583, 6.0
      %v4600 = vmin.f32 %v4584, 6.0
      %v4601 = vmin.f32 %v4585, 6.0
      %v4602 = vmin.f32 %v4586, 6.0
      %v4603 = vmin.f32 %v4587, 6.0
      %v4604 = vmin.f32 %v4588, 6.0
      %v4605 = vmin.f32 %v4589, 6.0
      %v4606 = vmin.f32 %v4590, 6.0
      %v4607 = vmin.f32 %v4591, 6.0
      %v4608 = vmin.f32 %v4592, 6.0
      %v4609 = vmin.f32 %v4593, 6.0
      %v4610 = vmin.f32 %v4594, 6.0
      %v4611 = vmin.f32 %v4595, 6.0
      %v4612 = vmin.f32 %v4596, 6.0
      %v4613 = vsub.f32 %v4549, %v4597
      %v4614 = vsub.f32 %v4550, %v4598
      %v4615 = vsub.f32 %v4551, %v4599
      %v4616 = vsub.f32 %v4552, %v4600
      %v4617 = vsub.f32 %v4553, %v4601
      %v4618 = vsub.f32 %v4554, %v4602
      %v4619 = vsub.f32 %v4555, %v4603
      %v4620 = vsub.f32 %v4556, %v4604
      %v4621 = vsub.f32 %v4557, %v4605
      %v4622 = vsub.f32 %v4558, %v4606
      %v4623 = vsub.f32 %v4559, %v4607
      %v4624 = vsub.f32 %v4560, %v4608
      %v4625 = vsub.f32 %v4561, %v4609
      %v4626 = vsub.f32 %v4562, %v4610
      %v4627 = vsub.f32 %v4563, %v4611
      %v4628 = vsub.f32 %v4564, %v4612
      %v4629 = vcvt.f32.s32.to.zero.pseudo %v4597
      %v4630 = vcvt.f32.s32.to.zero.pseudo %v4598
      %v4631 = vcvt.f32.s32.to.zero.pseudo %v4599
      %v4632 = vcvt.f32.s32.to.zero.pseudo %v4600
      %v4633 = vcvt.f32.s32.to.zero.pseudo %v4601
      %v4634 = vcvt.f32.s32.to.zero.pseudo %v4602
      %v4635 = vcvt.f32.s32.to.zero.pseudo %v4603
      %v4636 = vcvt.f32.s32.to.zero.pseudo %v4604
      %v4637 = vcvt.f32.s32.to.zero.pseudo %v4605
      %v4638 = vcvt.f32.s32.to.zero.pseudo %v4606
      %v4639 = vcvt.f32.s32.to.zero.pseudo %v4607
      %v4640 = vcvt.f32.s32.to.zero.pseudo %v4608
      %v4641 = vcvt.f32.s32.to.zero.pseudo %v4609
      %v4642 = vcvt.f32.s32.to.zero.pseudo %v4610
      %v4643 = vcvt.f32.s32.to.zero.pseudo %v4611
      %v4644 = vcvt.f32.s32.to.zero.pseudo %v4612
      %v4645 = vshra.s32 %v2685, 3
      %v4646 = vand.u32 %v2685, 7
      %4647 = vset.pattern.permute.xlu0 1
      %4648 = vperm.xlu0 %4647, %v4629
      %v4649 = vpop.permute.xlu0 %4648
      %4650 = vset.pattern.permute.xlu0 1
      %4651 = vperm.xlu0 %4650, %v4630
      %v4652 = vpop.permute.xlu0 %4651
      %4653 = vset.pattern.permute.xlu0 1
      %4654 = vperm.xlu0 %4653, %v4631
      %v4655 = vpop.permute.xlu0 %4654
      %4656 = vset.pattern.permute.xlu0 1
      %4657 = vperm.xlu0 %4656, %v4632
      %v4658 = vpop.permute.xlu0 %4657
      %4659 = vset.pattern.permute.xlu0 1
      %4660 = vperm.xlu0 %4659, %v4633
      %v4661 = vpop.permute.xlu0 %4660
      %4662 = vset.pattern.permute.xlu0 1
      %4663 = vperm.xlu0 %4662, %v4634
      %v4664 = vpop.permute.xlu0 %4663
      %4665 = vset.pattern.permute.xlu0 1
      %4666 = vperm.xlu0 %4665, %v4635
      %v4667 = vpop.permute.xlu0 %4666
      %4668 = vset.pattern.permute.xlu0 1
      %4669 = vperm.xlu0 %4668, %v4636
      %v4670 = vpop.permute.xlu0 %4669
      %4671 = vset.pattern.permute.xlu0 1
      %4672 = vperm.xlu0 %4671, %v4637
      %v4673 = vpop.permute.xlu0 %4672
      %4674 = vset.pattern.permute.xlu0 1
      %4675 = vperm.xlu0 %4674, %v4638
      %v4676 = vpop.permute.xlu0 %4675
      %4677 = vset.pattern.permute.xlu0 1
      %4678 = vperm.xlu0 %4677, %v4639
      %v4679 = vpop.permute.xlu0 %4678
      %4680 = vset.pattern.permute.xlu0 1
      %4681 = vperm.xlu0 %4680, %v4640
      %v4682 = vpop.permute.xlu0 %4681
      %4683 = vset.pattern.permute.xlu0 1
      %4684 = vperm.xlu0 %4683, %v4641
      %v4685 = vpop.permute.xlu0 %4684
      %4686 = vset.pattern.permute.xlu0 1
      %4687 = vperm.xlu0 %4686, %v4642
      %v4688 = vpop.permute.xlu0 %4687
      %4689 = vset.pattern.permute.xlu0 1
      %4690 = vperm.xlu0 %4689, %v4643
      %v4691 = vpop.permute.xlu0 %4690
      %4692 = vset.pattern.permute.xlu0 1
      %4693 = vperm.xlu0 %4692, %v4644
      %v4694 = vpop.permute.xlu0 %4693
      %vm4695 = vcmp.eq.s32.totalorder %v4645, %v4649
      %vm4696 = vcmp.eq.s32.totalorder %v4645, %v4652
      %vm4697 = vcmp.eq.s32.totalorder %v4645, %v4655
      %vm4698 = vcmp.eq.s32.totalorder %v4645, %v4658
      %vm4699 = vcmp.eq.s32.totalorder %v4645, %v4661
      %vm4700 = vcmp.eq.s32.totalorder %v4645, %v4664
      %vm4701 = vcmp.eq.s32.totalorder %v4645, %v4667
      %vm4702 = vcmp.eq.s32.totalorder %v4645, %v4670
      %vm4703 = vcmp.eq.s32.totalorder %v4645, %v4673
      %vm4704 = vcmp.eq.s32.totalorder %v4645, %v4676
      %vm4705 = vcmp.eq.s32.totalorder %v4645, %v4679
      %vm4706 = vcmp.eq.s32.totalorder %v4645, %v4682
      %vm4707 = vcmp.eq.s32.totalorder %v4645, %v4685
      %vm4708 = vcmp.eq.s32.totalorder %v4645, %v4688
      %vm4709 = vcmp.eq.s32.totalorder %v4645, %v4691
      %vm4710 = vcmp.eq.s32.totalorder %v4645, %v4694
      %v4711 = vsub.f32 1.0, %v4613
      %v4712 = vsub.f32 1.0, %v4614
      %v4713 = vsub.f32 1.0, %v4615
      %v4714 = vsub.f32 1.0, %v4616
      %v4715 = vsub.f32 1.0, %v4617
      %v4716 = vsub.f32 1.0, %v4618
      %v4717 = vsub.f32 1.0, %v4619
      %v4718 = vsub.f32 1.0, %v4620
      %v4719 = vsub.f32 1.0, %v4621
      %v4720 = vsub.f32 1.0, %v4622
      %v4721 = vsub.f32 1.0, %v4623
      %v4722 = vsub.f32 1.0, %v4624
      %v4723 = vsub.f32 1.0, %v4625
      %v4724 = vsub.f32 1.0, %v4626
      %v4725 = vsub.f32 1.0, %v4627
      %v4726 = vsub.f32 1.0, %v4628
      %4728 = vset.pattern.permute.xlu0 1
      %4729 = vperm.xlu0 %4728, %v4711
      %v4730 = vpop.permute.xlu0 %4729
      %4733 = vset.pattern.permute.xlu0 1
      %4734 = vperm.xlu0 %4733, %v4712
      %v4735 = vpop.permute.xlu0 %4734
      %4738 = vset.pattern.permute.xlu0 1
      %4739 = vperm.xlu0 %4738, %v4713
      %v4740 = vpop.permute.xlu0 %4739
      %4743 = vset.pattern.permute.xlu0 1
      %4744 = vperm.xlu0 %4743, %v4714
      %v4745 = vpop.permute.xlu0 %4744
      %4748 = vset.pattern.permute.xlu0 1
      %4749 = vperm.xlu0 %4748, %v4715
      %v4750 = vpop.permute.xlu0 %4749
      %4753 = vset.pattern.permute.xlu0 1
      %4754 = vperm.xlu0 %4753, %v4716
      %v4755 = vpop.permute.xlu0 %4754
      %4758 = vset.pattern.permute.xlu0 1
      %4759 = vperm.xlu0 %4758, %v4717
      %v4760 = vpop.permute.xlu0 %4759
      %4763 = vset.pattern.permute.xlu0 1
      %4764 = vperm.xlu0 %4763, %v4718
      %v4765 = vpop.permute.xlu0 %4764
      %4768 = vset.pattern.permute.xlu0 1
      %4769 = vperm.xlu0 %4768, %v4719
      %v4770 = vpop.permute.xlu0 %4769
      %4773 = vset.pattern.permute.xlu0 1
      %4774 = vperm.xlu0 %4773, %v4720
      %v4775 = vpop.permute.xlu0 %4774
      %4778 = vset.pattern.permute.xlu0 1
      %4779 = vperm.xlu0 %4778, %v4721
      %v4780 = vpop.permute.xlu0 %4779
      %4783 = vset.pattern.permute.xlu0 1
      %4784 = vperm.xlu0 %4783, %v4722
      %v4785 = vpop.permute.xlu0 %4784
      %4788 = vset.pattern.permute.xlu0 1
      %4789 = vperm.xlu0 %4788, %v4723
      %v4790 = vpop.permute.xlu0 %4789
      %4793 = vset.pattern.permute.xlu0 1
      %4794 = vperm.xlu0 %4793, %v4724
      %v4795 = vpop.permute.xlu0 %4794
      %4798 = vset.pattern.permute.xlu0 1
      %4799 = vperm.xlu0 %4798, %v4725
      %v4800 = vpop.permute.xlu0 %4799
      %4803 = vset.pattern.permute.xlu0 1
      %4804 = vperm.xlu0 %4803, %v4726
      %v4805 = vpop.permute.xlu0 %4804
      %v4807 = vsel %vm4695, %v4730, 0.0
      %v4808 = vsel %vm4696, %v4735, 0.0
      %v4809 = vsel %vm4697, %v4740, 0.0
      %v4810 = vsel %vm4698, %v4745, 0.0
      %v4811 = vsel %vm4699, %v4750, 0.0
      %v4812 = vsel %vm4700, %v4755, 0.0
      %v4813 = vsel %vm4701, %v4760, 0.0
      %v4814 = vsel %vm4702, %v4765, 0.0
      %v4815 = vsel %vm4703, %v4770, 0.0
      %v4816 = vsel %vm4704, %v4775, 0.0
      %v4817 = vsel %vm4705, %v4780, 0.0
      %v4818 = vsel %vm4706, %v4785, 0.0
      %v4819 = vsel %vm4707, %v4790, 0.0
      %v4820 = vsel %vm4708, %v4795, 0.0
      %v4821 = vsel %vm4709, %v4800, 0.0
      %v4822 = vsel %vm4710, %v4805, 0.0
      %v4823 = vadd.s32 %v4629, 1
      %v4824 = vadd.s32 %v4630, 1
      %v4825 = vadd.s32 %v4631, 1
      %v4826 = vadd.s32 %v4632, 1
      %v4827 = vadd.s32 %v4633, 1
      %v4828 = vadd.s32 %v4634, 1
      %v4829 = vadd.s32 %v4635, 1
      %v4830 = vadd.s32 %v4636, 1
      %v4831 = vadd.s32 %v4637, 1
      %v4832 = vadd.s32 %v4638, 1
      %v4833 = vadd.s32 %v4639, 1
      %v4834 = vadd.s32 %v4640, 1
      %v4835 = vadd.s32 %v4641, 1
      %v4836 = vadd.s32 %v4642, 1
      %v4837 = vadd.s32 %v4643, 1
      %v4838 = vadd.s32 %v4644, 1
      %4839 = vset.pattern.permute.xlu0 1
      %4840 = vperm.xlu0 %4839, %v4823
      %v4841 = vpop.permute.xlu0 %4840
      %4842 = vset.pattern.permute.xlu0 1
      %4843 = vperm.xlu0 %4842, %v4824
      %v4844 = vpop.permute.xlu0 %4843
      %4845 = vset.pattern.permute.xlu0 1
      %4846 = vperm.xlu0 %4845, %v4825
      %v4847 = vpop.permute.xlu0 %4846
      %4848 = vset.pattern.permute.xlu0 1
      %4849 = vperm.xlu0 %4848, %v4826
      %v4850 = vpop.permute.xlu0 %4849
      %4851 = vset.pattern.permute.xlu0 1
      %4852 = vperm.xlu0 %4851, %v4827
      %v4853 = vpop.permute.xlu0 %4852
      %4854 = vset.pattern.permute.xlu0 1
      %4855 = vperm.xlu0 %4854, %v4828
      %v4856 = vpop.permute.xlu0 %4855
      %4857 = vset.pattern.permute.xlu0 1
      %4858 = vperm.xlu0 %4857, %v4829
      %v4859 = vpop.permute.xlu0 %4858
      %4860 = vset.pattern.permute.xlu0 1
      %4861 = vperm.xlu0 %4860, %v4830
      %v4862 = vpop.permute.xlu0 %4861
      %4863 = vset.pattern.permute.xlu0 1
      %4864 = vperm.xlu0 %4863, %v4831
      %v4865 = vpop.permute.xlu0 %4864
      %4866 = vset.pattern.permute.xlu0 1
      %4867 = vperm.xlu0 %4866, %v4832
      %v4868 = vpop.permute.xlu0 %4867
      %4869 = vset.pattern.permute.xlu0 1
      %4870 = vperm.xlu0 %4869, %v4833
      %v4871 = vpop.permute.xlu0 %4870
      %4872 = vset.pattern.permute.xlu0 1
      %4873 = vperm.xlu0 %4872, %v4834
      %v4874 = vpop.permute.xlu0 %4873
      %4875 = vset.pattern.permute.xlu0 1
      %4876 = vperm.xlu0 %4875, %v4835
      %v4877 = vpop.permute.xlu0 %4876
      %4878 = vset.pattern.permute.xlu0 1
      %4879 = vperm.xlu0 %4878, %v4836
      %v4880 = vpop.permute.xlu0 %4879
      %4881 = vset.pattern.permute.xlu0 1
      %4882 = vperm.xlu0 %4881, %v4837
      %v4883 = vpop.permute.xlu0 %4882
      %4884 = vset.pattern.permute.xlu0 1
      %4885 = vperm.xlu0 %4884, %v4838
      %v4886 = vpop.permute.xlu0 %4885
      %vm4887 = vcmp.eq.s32.totalorder %v4645, %v4841
      %vm4888 = vcmp.eq.s32.totalorder %v4645, %v4844
      %vm4889 = vcmp.eq.s32.totalorder %v4645, %v4847
      %vm4890 = vcmp.eq.s32.totalorder %v4645, %v4850
      %vm4891 = vcmp.eq.s32.totalorder %v4645, %v4853
      %vm4892 = vcmp.eq.s32.totalorder %v4645, %v4856
      %vm4893 = vcmp.eq.s32.totalorder %v4645, %v4859
      %vm4894 = vcmp.eq.s32.totalorder %v4645, %v4862
      %vm4895 = vcmp.eq.s32.totalorder %v4645, %v4865
      %vm4896 = vcmp.eq.s32.totalorder %v4645, %v4868
      %vm4897 = vcmp.eq.s32.totalorder %v4645, %v4871
      %vm4898 = vcmp.eq.s32.totalorder %v4645, %v4874
      %vm4899 = vcmp.eq.s32.totalorder %v4645, %v4877
      %vm4900 = vcmp.eq.s32.totalorder %v4645, %v4880
      %vm4901 = vcmp.eq.s32.totalorder %v4645, %v4883
      %vm4902 = vcmp.eq.s32.totalorder %v4645, %v4886
      %4904 = vset.pattern.permute.xlu0 1
      %4905 = vperm.xlu0 %4904, %v4613
      %v4906 = vpop.permute.xlu0 %4905
      %4909 = vset.pattern.permute.xlu0 1
      %4910 = vperm.xlu0 %4909, %v4614
      %v4911 = vpop.permute.xlu0 %4910
      %4914 = vset.pattern.permute.xlu0 1
      %4915 = vperm.xlu0 %4914, %v4615
      %v4916 = vpop.permute.xlu0 %4915
      %4919 = vset.pattern.permute.xlu0 1
      %4920 = vperm.xlu0 %4919, %v4616
      %v4921 = vpop.permute.xlu0 %4920
      %4924 = vset.pattern.permute.xlu0 1
      %4925 = vperm.xlu0 %4924, %v4617
      %v4926 = vpop.permute.xlu0 %4925
      %4929 = vset.pattern.permute.xlu0 1
      %4930 = vperm.xlu0 %4929, %v4618
      %v4931 = vpop.permute.xlu0 %4930
      %4934 = vset.pattern.permute.xlu0 1
      %4935 = vperm.xlu0 %4934, %v4619
      %v4936 = vpop.permute.xlu0 %4935
      %4939 = vset.pattern.permute.xlu0 1
      %4940 = vperm.xlu0 %4939, %v4620
      %v4941 = vpop.permute.xlu0 %4940
      %4944 = vset.pattern.permute.xlu0 1
      %4945 = vperm.xlu0 %4944, %v4621
      %v4946 = vpop.permute.xlu0 %4945
      %4949 = vset.pattern.permute.xlu0 1
      %4950 = vperm.xlu0 %4949, %v4622
      %v4951 = vpop.permute.xlu0 %4950
      %4954 = vset.pattern.permute.xlu0 1
      %4955 = vperm.xlu0 %4954, %v4623
      %v4956 = vpop.permute.xlu0 %4955
      %4959 = vset.pattern.permute.xlu0 1
      %4960 = vperm.xlu0 %4959, %v4624
      %v4961 = vpop.permute.xlu0 %4960
      %4964 = vset.pattern.permute.xlu0 1
      %4965 = vperm.xlu0 %4964, %v4625
      %v4966 = vpop.permute.xlu0 %4965
      %4969 = vset.pattern.permute.xlu0 1
      %4970 = vperm.xlu0 %4969, %v4626
      %v4971 = vpop.permute.xlu0 %4970
      %4974 = vset.pattern.permute.xlu0 1
      %4975 = vperm.xlu0 %4974, %v4627
      %v4976 = vpop.permute.xlu0 %4975
      %4979 = vset.pattern.permute.xlu0 1
      %4980 = vperm.xlu0 %4979, %v4628
      %v4981 = vpop.permute.xlu0 %4980
      %v4983 = vsel %vm4887, %v4906, 0.0
      %v4984 = vsel %vm4888, %v4911, 0.0
      %v4985 = vsel %vm4889, %v4916, 0.0
      %v4986 = vsel %vm4890, %v4921, 0.0
      %v4987 = vsel %vm4891, %v4926, 0.0
      %v4988 = vsel %vm4892, %v4931, 0.0
      %v4989 = vsel %vm4893, %v4936, 0.0
      %v4990 = vsel %vm4894, %v4941, 0.0
      %v4991 = vsel %vm4895, %v4946, 0.0
      %v4992 = vsel %vm4896, %v4951, 0.0
      %v4993 = vsel %vm4897, %v4956, 0.0
      %v4994 = vsel %vm4898, %v4961, 0.0
      %v4995 = vsel %vm4899, %v4966, 0.0
      %v4996 = vsel %vm4900, %v4971, 0.0
      %v4997 = vsel %vm4901, %v4976, 0.0
      %v4998 = vsel %vm4902, %v4981, 0.0
      %v4999 = vadd.f32 %v4807, %v4983
      %v5000 = vadd.f32 %v4808, %v4984
      %v5001 = vadd.f32 %v4809, %v4985
      %v5002 = vadd.f32 %v4810, %v4986
      %v5003 = vadd.f32 %v4811, %v4987
      %v5004 = vadd.f32 %v4812, %v4988
      %v5005 = vadd.f32 %v4813, %v4989
      %v5006 = vadd.f32 %v4814, %v4990
      %v5007 = vadd.f32 %v4815, %v4991
      %v5008 = vadd.f32 %v4816, %v4992
      %v5009 = vadd.f32 %v4817, %v4993
      %v5010 = vadd.f32 %v4818, %v4994
      %v5011 = vadd.f32 %v4819, %v4995
      %v5012 = vadd.f32 %v4820, %v4996
      %v5013 = vadd.f32 %v4821, %v4997
      %v5014 = vadd.f32 %v4822, %v4998
      %5015 = vset.pattern.permute.xlu0 2
      %5016 = vperm.xlu0 %5015, %v4629
      %v5017 = vpop.permute.xlu0 %5016
      %5018 = vset.pattern.permute.xlu0 2
      %5019 = vperm.xlu0 %5018, %v4630
      %v5020 = vpop.permute.xlu0 %5019
      %5021 = vset.pattern.permute.xlu0 2
      %5022 = vperm.xlu0 %5021, %v4631
      %v5023 = vpop.permute.xlu0 %5022
      %5024 = vset.pattern.permute.xlu0 2
      %5025 = vperm.xlu0 %5024, %v4632
      %v5026 = vpop.permute.xlu0 %5025
      %5027 = vset.pattern.permute.xlu0 2
      %5028 = vperm.xlu0 %5027, %v4633
      %v5029 = vpop.permute.xlu0 %5028
      %5030 = vset.pattern.permute.xlu0 2
      %5031 = vperm.xlu0 %5030, %v4634
      %v5032 = vpop.permute.xlu0 %5031
      %5033 = vset.pattern.permute.xlu0 2
      %5034 = vperm.xlu0 %5033, %v4635
      %v5035 = vpop.permute.xlu0 %5034
      %5036 = vset.pattern.permute.xlu0 2
      %5037 = vperm.xlu0 %5036, %v4636
      %v5038 = vpop.permute.xlu0 %5037
      %5039 = vset.pattern.permute.xlu0 2
      %5040 = vperm.xlu0 %5039, %v4637
      %v5041 = vpop.permute.xlu0 %5040
      %5042 = vset.pattern.permute.xlu0 2
      %5043 = vperm.xlu0 %5042, %v4638
      %v5044 = vpop.permute.xlu0 %5043
      %5045 = vset.pattern.permute.xlu0 2
      %5046 = vperm.xlu0 %5045, %v4639
      %v5047 = vpop.permute.xlu0 %5046
      %5048 = vset.pattern.permute.xlu0 2
      %5049 = vperm.xlu0 %5048, %v4640
      %v5050 = vpop.permute.xlu0 %5049
      %5051 = vset.pattern.permute.xlu0 2
      %5052 = vperm.xlu0 %5051, %v4641
      %v5053 = vpop.permute.xlu0 %5052
      %5054 = vset.pattern.permute.xlu0 2
      %5055 = vperm.xlu0 %5054, %v4642
      %v5056 = vpop.permute.xlu0 %5055
      %5057 = vset.pattern.permute.xlu0 2
      %5058 = vperm.xlu0 %5057, %v4643
      %v5059 = vpop.permute.xlu0 %5058
      %5060 = vset.pattern.permute.xlu0 2
      %5061 = vperm.xlu0 %5060, %v4644
      %v5062 = vpop.permute.xlu0 %5061
      %vm5063 = vcmp.eq.s32.totalorder %v4646, %v5017
      %vm5064 = vcmp.eq.s32.totalorder %v4646, %v5020
      %vm5065 = vcmp.eq.s32.totalorder %v4646, %v5023
      %vm5066 = vcmp.eq.s32.totalorder %v4646, %v5026
      %vm5067 = vcmp.eq.s32.totalorder %v4646, %v5029
      %vm5068 = vcmp.eq.s32.totalorder %v4646, %v5032
      %vm5069 = vcmp.eq.s32.totalorder %v4646, %v5035
      %vm5070 = vcmp.eq.s32.totalorder %v4646, %v5038
      %vm5071 = vcmp.eq.s32.totalorder %v4646, %v5041
      %vm5072 = vcmp.eq.s32.totalorder %v4646, %v5044
      %vm5073 = vcmp.eq.s32.totalorder %v4646, %v5047
      %vm5074 = vcmp.eq.s32.totalorder %v4646, %v5050
      %vm5075 = vcmp.eq.s32.totalorder %v4646, %v5053
      %vm5076 = vcmp.eq.s32.totalorder %v4646, %v5056
      %vm5077 = vcmp.eq.s32.totalorder %v4646, %v5059
      %vm5078 = vcmp.eq.s32.totalorder %v4646, %v5062
      %5079 = vset.pattern.permute.xlu0 2
      %5080 = vperm.xlu0 %5079, %v4711
      %v5081 = vpop.permute.xlu0 %5080
      %5083 = vset.pattern.permute.xlu0 2
      %5084 = vperm.xlu0 %5083, %v4712
      %v5085 = vpop.permute.xlu0 %5084
      %5087 = vset.pattern.permute.xlu0 2
      %5088 = vperm.xlu0 %5087, %v4713
      %v5089 = vpop.permute.xlu0 %5088
      %5091 = vset.pattern.permute.xlu0 2
      %5092 = vperm.xlu0 %5091, %v4714
      %v5093 = vpop.permute.xlu0 %5092
      %5095 = vset.pattern.permute.xlu0 2
      %5096 = vperm.xlu0 %5095, %v4715
      %v5097 = vpop.permute.xlu0 %5096
      %5099 = vset.pattern.permute.xlu0 2
      %5100 = vperm.xlu0 %5099, %v4716
      %v5101 = vpop.permute.xlu0 %5100
      %5103 = vset.pattern.permute.xlu0 2
      %5104 = vperm.xlu0 %5103, %v4717
      %v5105 = vpop.permute.xlu0 %5104
      %5107 = vset.pattern.permute.xlu0 2
      %5108 = vperm.xlu0 %5107, %v4718
      %v5109 = vpop.permute.xlu0 %5108
      %5111 = vset.pattern.permute.xlu0 2
      %5112 = vperm.xlu0 %5111, %v4719
      %v5113 = vpop.permute.xlu0 %5112
      %5115 = vset.pattern.permute.xlu0 2
      %5116 = vperm.xlu0 %5115, %v4720
      %v5117 = vpop.permute.xlu0 %5116
      %5119 = vset.pattern.permute.xlu0 2
      %5120 = vperm.xlu0 %5119, %v4721
      %v5121 = vpop.permute.xlu0 %5120
      %5123 = vset.pattern.permute.xlu0 2
      %5124 = vperm.xlu0 %5123, %v4722
      %v5125 = vpop.permute.xlu0 %5124
      %5127 = vset.pattern.permute.xlu0 2
      %5128 = vperm.xlu0 %5127, %v4723
      %v5129 = vpop.permute.xlu0 %5128
      %5131 = vset.pattern.permute.xlu0 2
      %5132 = vperm.xlu0 %5131, %v4724
      %v5133 = vpop.permute.xlu0 %5132
      %5135 = vset.pattern.permute.xlu0 2
      %5136 = vperm.xlu0 %5135, %v4725
      %v5137 = vpop.permute.xlu0 %5136
      %5139 = vset.pattern.permute.xlu0 2
      %5140 = vperm.xlu0 %5139, %v4726
      %v5141 = vpop.permute.xlu0 %5140
      %v5143 = vsel %vm5063, %v5081, 0.0
      %v5144 = vsel %vm5064, %v5085, 0.0
      %v5145 = vsel %vm5065, %v5089, 0.0
      %v5146 = vsel %vm5066, %v5093, 0.0
      %v5147 = vsel %vm5067, %v5097, 0.0
      %v5148 = vsel %vm5068, %v5101, 0.0
      %v5149 = vsel %vm5069, %v5105, 0.0
      %v5150 = vsel %vm5070, %v5109, 0.0
      %v5151 = vsel %vm5071, %v5113, 0.0
      %v5152 = vsel %vm5072, %v5117, 0.0
      %v5153 = vsel %vm5073, %v5121, 0.0
      %v5154 = vsel %vm5074, %v5125, 0.0
      %v5155 = vsel %vm5075, %v5129, 0.0
      %v5156 = vsel %vm5076, %v5133, 0.0
      %v5157 = vsel %vm5077, %v5137, 0.0
      %v5158 = vsel %vm5078, %v5141, 0.0
      %5159 = vset.pattern.permute.xlu0 2
      %5160 = vperm.xlu0 %5159, %v4823
      %v5161 = vpop.permute.xlu0 %5160
      %5162 = vset.pattern.permute.xlu0 2
      %5163 = vperm.xlu0 %5162, %v4824
      %v5164 = vpop.permute.xlu0 %5163
      %5165 = vset.pattern.permute.xlu0 2
      %5166 = vperm.xlu0 %5165, %v4825
      %v5167 = vpop.permute.xlu0 %5166
      %5168 = vset.pattern.permute.xlu0 2
      %5169 = vperm.xlu0 %5168, %v4826
      %v5170 = vpop.permute.xlu0 %5169
      %5171 = vset.pattern.permute.xlu0 2
      %5172 = vperm.xlu0 %5171, %v4827
      %v5173 = vpop.permute.xlu0 %5172
      %5174 = vset.pattern.permute.xlu0 2
      %5175 = vperm.xlu0 %5174, %v4828
      %v5176 = vpop.permute.xlu0 %5175
      %5177 = vset.pattern.permute.xlu0 2
      %5178 = vperm.xlu0 %5177, %v4829
      %v5179 = vpop.permute.xlu0 %5178
      %5180 = vset.pattern.permute.xlu0 2
      %5181 = vperm.xlu0 %5180, %v4830
      %v5182 = vpop.permute.xlu0 %5181
      %5183 = vset.pattern.permute.xlu0 2
      %5184 = vperm.xlu0 %5183, %v4831
      %v5185 = vpop.permute.xlu0 %5184
      %5186 = vset.pattern.permute.xlu0 2
      %5187 = vperm.xlu0 %5186, %v4832
      %v5188 = vpop.permute.xlu0 %5187
      %5189 = vset.pattern.permute.xlu0 2
      %5190 = vperm.xlu0 %5189, %v4833
      %v5191 = vpop.permute.xlu0 %5190
      %5192 = vset.pattern.permute.xlu0 2
      %5193 = vperm.xlu0 %5192, %v4834
      %v5194 = vpop.permute.xlu0 %5193
      %5195 = vset.pattern.permute.xlu0 2
      %5196 = vperm.xlu0 %5195, %v4835
      %v5197 = vpop.permute.xlu0 %5196
      %5198 = vset.pattern.permute.xlu0 2
      %5199 = vperm.xlu0 %5198, %v4836
      %v5200 = vpop.permute.xlu0 %5199
      %5201 = vset.pattern.permute.xlu0 2
      %5202 = vperm.xlu0 %5201, %v4837
      %v5203 = vpop.permute.xlu0 %5202
      %5204 = vset.pattern.permute.xlu0 2
      %5205 = vperm.xlu0 %5204, %v4838
      %v5206 = vpop.permute.xlu0 %5205
      %vm5207 = vcmp.eq.s32.totalorder %v4646, %v5161
      %vm5208 = vcmp.eq.s32.totalorder %v4646, %v5164
      %vm5209 = vcmp.eq.s32.totalorder %v4646, %v5167
      %vm5210 = vcmp.eq.s32.totalorder %v4646, %v5170
      %vm5211 = vcmp.eq.s32.totalorder %v4646, %v5173
      %vm5212 = vcmp.eq.s32.totalorder %v4646, %v5176
      %vm5213 = vcmp.eq.s32.totalorder %v4646, %v5179
      %vm5214 = vcmp.eq.s32.totalorder %v4646, %v5182
      %vm5215 = vcmp.eq.s32.totalorder %v4646, %v5185
      %vm5216 = vcmp.eq.s32.totalorder %v4646, %v5188
      %vm5217 = vcmp.eq.s32.totalorder %v4646, %v5191
      %vm5218 = vcmp.eq.s32.totalorder %v4646, %v5194
      %vm5219 = vcmp.eq.s32.totalorder %v4646, %v5197
      %vm5220 = vcmp.eq.s32.totalorder %v4646, %v5200
      %vm5221 = vcmp.eq.s32.totalorder %v4646, %v5203
      %vm5222 = vcmp.eq.s32.totalorder %v4646, %v5206
      %5223 = vset.pattern.permute.xlu0 2
      %5224 = vperm.xlu0 %5223, %v4613
      %v5225 = vpop.permute.xlu0 %5224
      %5227 = vset.pattern.permute.xlu0 2
      %5228 = vperm.xlu0 %5227, %v4614
      %v5229 = vpop.permute.xlu0 %5228
      %5231 = vset.pattern.permute.xlu0 2
      %5232 = vperm.xlu0 %5231, %v4615
      %v5233 = vpop.permute.xlu0 %5232
      %5235 = vset.pattern.permute.xlu0 2
      %5236 = vperm.xlu0 %5235, %v4616
      %v5237 = vpop.permute.xlu0 %5236
      %5239 = vset.pattern.permute.xlu0 2
      %5240 = vperm.xlu0 %5239, %v4617
      %v5241 = vpop.permute.xlu0 %5240
      %5243 = vset.pattern.permute.xlu0 2
      %5244 = vperm.xlu0 %5243, %v4618
      %v5245 = vpop.permute.xlu0 %5244
      %5247 = vset.pattern.permute.xlu0 2
      %5248 = vperm.xlu0 %5247, %v4619
      %v5249 = vpop.permute.xlu0 %5248
      %5251 = vset.pattern.permute.xlu0 2
      %5252 = vperm.xlu0 %5251, %v4620
      %v5253 = vpop.permute.xlu0 %5252
      %5255 = vset.pattern.permute.xlu0 2
      %5256 = vperm.xlu0 %5255, %v4621
      %v5257 = vpop.permute.xlu0 %5256
      %5259 = vset.pattern.permute.xlu0 2
      %5260 = vperm.xlu0 %5259, %v4622
      %v5261 = vpop.permute.xlu0 %5260
      %5263 = vset.pattern.permute.xlu0 2
      %5264 = vperm.xlu0 %5263, %v4623
      %v5265 = vpop.permute.xlu0 %5264
      %5267 = vset.pattern.permute.xlu0 2
      %5268 = vperm.xlu0 %5267, %v4624
      %v5269 = vpop.permute.xlu0 %5268
      %5271 = vset.pattern.permute.xlu0 2
      %5272 = vperm.xlu0 %5271, %v4625
      %v5273 = vpop.permute.xlu0 %5272
      %5275 = vset.pattern.permute.xlu0 2
      %5276 = vperm.xlu0 %5275, %v4626
      %v5277 = vpop.permute.xlu0 %5276
      %5279 = vset.pattern.permute.xlu0 2
      %5280 = vperm.xlu0 %5279, %v4627
      %v5281 = vpop.permute.xlu0 %5280
      %5283 = vset.pattern.permute.xlu0 2
      %5284 = vperm.xlu0 %5283, %v4628
      %v5285 = vpop.permute.xlu0 %5284
      %v5287 = vsel %vm5207, %v5225, 0.0
      %v5288 = vsel %vm5208, %v5229, 0.0
      %v5289 = vsel %vm5209, %v5233, 0.0
      %v5290 = vsel %vm5210, %v5237, 0.0
      %v5291 = vsel %vm5211, %v5241, 0.0
      %v5292 = vsel %vm5212, %v5245, 0.0
      %v5293 = vsel %vm5213, %v5249, 0.0
      %v5294 = vsel %vm5214, %v5253, 0.0
      %v5295 = vsel %vm5215, %v5257, 0.0
      %v5296 = vsel %vm5216, %v5261, 0.0
      %v5297 = vsel %vm5217, %v5265, 0.0
      %v5298 = vsel %vm5218, %v5269, 0.0
      %v5299 = vsel %vm5219, %v5273, 0.0
      %v5300 = vsel %vm5220, %v5277, 0.0
      %v5301 = vsel %vm5221, %v5281, 0.0
      %v5302 = vsel %vm5222, %v5285, 0.0
      %v5303 = vadd.f32 %v5143, %v5287
      %v5304 = vadd.f32 %v5144, %v5288
      %v5305 = vadd.f32 %v5145, %v5289
      %v5306 = vadd.f32 %v5146, %v5290
      %v5307 = vadd.f32 %v5147, %v5291
      %v5308 = vadd.f32 %v5148, %v5292
      %v5309 = vadd.f32 %v5149, %v5293
      %v5310 = vadd.f32 %v5150, %v5294
      %v5311 = vadd.f32 %v5151, %v5295
      %v5312 = vadd.f32 %v5152, %v5296
      %v5313 = vadd.f32 %v5153, %v5297
      %v5314 = vadd.f32 %v5154, %v5298
      %v5315 = vadd.f32 %v5155, %v5299
      %v5316 = vadd.f32 %v5156, %v5300
      %v5317 = vadd.f32 %v5157, %v5301
      %v5318 = vadd.f32 %v5158, %v5302
      %v5319 = vmul.f32 %v4999, %v5303
      %v5320 = vmul.f32 %v5000, %v5304
      %v5321 = vmul.f32 %v5001, %v5305
      %v5322 = vmul.f32 %v5002, %v5306
      %v5323 = vmul.f32 %v5003, %v5307
      %v5324 = vmul.f32 %v5004, %v5308
      %v5325 = vmul.f32 %v5005, %v5309
      %v5326 = vmul.f32 %v5006, %v5310
      %v5327 = vmul.f32 %v5007, %v5311
      %v5328 = vmul.f32 %v5008, %v5312
      %v5329 = vmul.f32 %v5009, %v5313
      %v5330 = vmul.f32 %v5010, %v5314
      %v5331 = vmul.f32 %v5011, %v5315
      %v5332 = vmul.f32 %v5012, %v5316
      %v5333 = vmul.f32 %v5013, %v5317
      %v5334 = vmul.f32 %v5014, %v5318
      %v5335 = vpack.c.bf16 %v5320, %v5319
      %v5336 = vpack.c.bf16 %v5322, %v5321
      %v5337 = vpack.c.bf16 %v5324, %v5323
      %v5338 = vpack.c.bf16 %v5326, %v5325
      %v5339 = vpack.c.bf16 %v5328, %v5327
      %v5340 = vpack.c.bf16 %v5330, %v5329
      %v5341 = vpack.c.bf16 %v5332, %v5331
      %v5342 = vpack.c.bf16 %v5334, %v5333
      %vm5343 = vcmp.eq.s32.totalorder %v4629, 0
      %vm5344 = vcmp.eq.s32.totalorder %v4630, 0
      %vm5345 = vcmp.eq.s32.totalorder %v4631, 0
      %vm5346 = vcmp.eq.s32.totalorder %v4632, 0
      %vm5347 = vcmp.eq.s32.totalorder %v4633, 0
      %vm5348 = vcmp.eq.s32.totalorder %v4634, 0
      %vm5349 = vcmp.eq.s32.totalorder %v4635, 0
      %vm5350 = vcmp.eq.s32.totalorder %v4636, 0
      %vm5351 = vcmp.eq.s32.totalorder %v4637, 0
      %vm5352 = vcmp.eq.s32.totalorder %v4638, 0
      %vm5353 = vcmp.eq.s32.totalorder %v4639, 0
      %vm5354 = vcmp.eq.s32.totalorder %v4640, 0
      %vm5355 = vcmp.eq.s32.totalorder %v4641, 0
      %vm5356 = vcmp.eq.s32.totalorder %v4642, 0
      %vm5357 = vcmp.eq.s32.totalorder %v4643, 0
      %vm5358 = vcmp.eq.s32.totalorder %v4644, 0
      %v5359 = vsel %vm5343, %v4711, 0.0
      %v5360 = vsel %vm5344, %v4712, 0.0
      %v5361 = vsel %vm5345, %v4713, 0.0
      %v5362 = vsel %vm5346, %v4714, 0.0
      %v5363 = vsel %vm5347, %v4715, 0.0
      %v5364 = vsel %vm5348, %v4716, 0.0
      %v5365 = vsel %vm5349, %v4717, 0.0
      %v5366 = vsel %vm5350, %v4718, 0.0
      %v5367 = vsel %vm5351, %v4719, 0.0
      %v5368 = vsel %vm5352, %v4720, 0.0
      %v5369 = vsel %vm5353, %v4721, 0.0
      %v5370 = vsel %vm5354, %v4722, 0.0
      %v5371 = vsel %vm5355, %v4723, 0.0
      %v5372 = vsel %vm5356, %v4724, 0.0
      %v5373 = vsel %vm5357, %v4725, 0.0
      %v5374 = vsel %vm5358, %v4726, 0.0
      %vm5375 = vcmp.eq.s32.totalorder %v4629, 4294967295
      %vm5376 = vcmp.eq.s32.totalorder %v4630, 4294967295
      %vm5377 = vcmp.eq.s32.totalorder %v4631, 4294967295
      %vm5378 = vcmp.eq.s32.totalorder %v4632, 4294967295
      %vm5379 = vcmp.eq.s32.totalorder %v4633, 4294967295
      %vm5380 = vcmp.eq.s32.totalorder %v4634, 4294967295
      %vm5381 = vcmp.eq.s32.totalorder %v4635, 4294967295
      %vm5382 = vcmp.eq.s32.totalorder %v4636, 4294967295
      %vm5383 = vcmp.eq.s32.totalorder %v4637, 4294967295
      %vm5384 = vcmp.eq.s32.totalorder %v4638, 4294967295
      %vm5385 = vcmp.eq.s32.totalorder %v4639, 4294967295
      %vm5386 = vcmp.eq.s32.totalorder %v4640, 4294967295
      %vm5387 = vcmp.eq.s32.totalorder %v4641, 4294967295
      %vm5388 = vcmp.eq.s32.totalorder %v4642, 4294967295
      %vm5389 = vcmp.eq.s32.totalorder %v4643, 4294967295
      %vm5390 = vcmp.eq.s32.totalorder %v4644, 4294967295
      %v5391 = vsel %vm5375, %v4613, 0.0
      %v5392 = vsel %vm5376, %v4614, 0.0
      %v5393 = vsel %vm5377, %v4615, 0.0
      %v5394 = vsel %vm5378, %v4616, 0.0
      %v5395 = vsel %vm5379, %v4617, 0.0
      %v5396 = vsel %vm5380, %v4618, 0.0
      %v5397 = vsel %vm5381, %v4619, 0.0
      %v5398 = vsel %vm5382, %v4620, 0.0
      %v5399 = vsel %vm5383, %v4621, 0.0
      %v5400 = vsel %vm5384, %v4622, 0.0
      %v5401 = vsel %vm5385, %v4623, 0.0
      %v5402 = vsel %vm5386, %v4624, 0.0
      %v5403 = vsel %vm5387, %v4625, 0.0
      %v5404 = vsel %vm5388, %v4626, 0.0
      %v5405 = vsel %vm5389, %v4627, 0.0
      %v5406 = vsel %vm5390, %v4628, 0.0
      %v5407 = vadd.f32 %v5359, %v5391
      %v5408 = vadd.f32 %v5360, %v5392
      %v5409 = vadd.f32 %v5361, %v5393
      %v5410 = vadd.f32 %v5362, %v5394
      %v5411 = vadd.f32 %v5363, %v5395
      %v5412 = vadd.f32 %v5364, %v5396
      %v5413 = vadd.f32 %v5365, %v5397
      %v5414 = vadd.f32 %v5366, %v5398
      %v5415 = vadd.f32 %v5367, %v5399
      %v5416 = vadd.f32 %v5368, %v5400
      %v5417 = vadd.f32 %v5369, %v5401
      %v5418 = vadd.f32 %v5370, %v5402
      %v5419 = vadd.f32 %v5371, %v5403
      %v5420 = vadd.f32 %v5372, %v5404
      %v5421 = vadd.f32 %v5373, %v5405
      %v5422 = vadd.f32 %v5374, %v5406
      %v5423 = vld [vmem:[%s6] sm:$0xf]
      %v5424 = vld [vmem:[%s6 + $0x4] sm:$0xf]
      %v5425 = vld [vmem:[%s6 + $0x8] sm:$0xf]
      %v5426 = vld [vmem:[%s6 + $0xc] sm:$0xf]
      %v5427 = vld [vmem:[%s6 + $0x10] sm:$0xf]
      %v5428 = vld [vmem:[%s6 + $0x14] sm:$0xf]
      %v5429 = vld [vmem:[%s6 + $0x18] sm:$0xf]
      %v5430 = vld [vmem:[%s6 + $0x1c] sm:$0xf]
      %v5439 = vunpack.c.l.b16 %v5423
      %v5440 = vunpack.c.l.b16 %v5424
      %v5441 = vunpack.c.l.b16 %v5425
      %v5442 = vunpack.c.l.b16 %v5426
      %v5443 = vunpack.c.l.b16 %v5427
      %v5444 = vunpack.c.l.b16 %v5428
      %v5445 = vunpack.c.l.b16 %v5429
      %v5446 = vunpack.c.l.b16 %v5430
      %v5447 = vpack.c.b16 %v5440, %v5439
      %v5448 = vpack.c.b16 %v5442, %v5441
      %v5449 = vpack.c.b16 %v5444, %v5443
      %v5450 = vpack.c.b16 %v5446, %v5445
      %vm5455 = vcmask 523264
      %v5457 = vsel %vm5455, %v5335, 0
      %v5460 = vsel %vm5455, %v5336, 0
      %v5463 = vsel %vm5455, %v5337, 0
      %v5466 = vsel %vm5455, %v5338, 0
      %v5469 = vsel %vm5455, %v5339, 0
      %v5472 = vsel %vm5455, %v5340, 0
      %v5475 = vsel %vm5455, %v5341, 0
      %v5478 = vsel %vm5455, %v5342, 0
      %5480 = vmatprep.subr.bf16.mxu0 0
      %5481 = vmatpush1.bf16.msra.mxu0 0
      %5482 = vmatprep.subr.bf16.mxu0 0
      %5483 = vmatpush1.bf16.msra.mxu0 0
      %5484 = vmatprep.subr.bf16.mxu0 0
      %5485 = vmatpush1.bf16.msra.mxu0 0
      %5486 = vmatprep.subr.bf16.mxu0 0
      %5487 = vmatpush1.bf16.msra.mxu0 0
      %5488 = vmatprep.subr.bf16.mxu0 0
      %5489 = vmatpush1.bf16.msra.mxu0 %v5450
      %5490 = vmatprep.subr.bf16.mxu0 0
      %5491 = vmatpush1.bf16.msra.mxu0 %v5449
      %5492 = vmatprep.subr.bf16.mxu0 0
      %5493 = vmatpush1.bf16.msra.mxu0 %v5448
      %5494 = vmatprep.subr.bf16.mxu0 0
      %5495 = vmatpush1.bf16.msra.mxu0 %v5447
      %5496 = vmatprep.subr.bf16.mxu0 0
      %5497 = vmatpush2.bf16.msra.mxu0 0
      %5498 = vmatprep.subr.bf16.mxu0 0
      %5499 = vmatpush2.bf16.msra.mxu0 0
      %5500 = vmatprep.subr.bf16.mxu0 0
      %5501 = vmatpush2.bf16.msra.mxu0 0
      %5502 = vmatprep.subr.bf16.mxu0 0
      %5503 = vmatpush2.bf16.msra.mxu0 0
      %5504 = vmatprep.subr.bf16.mxu0 0
      %5505 = vmatpush2.bf16.msra.mxu0 0
      %5506 = vmatprep.subr.bf16.mxu0 0
      %5507 = vmatpush2.bf16.msra.mxu0 0
      %5508 = vmatprep.subr.bf16.mxu0 0
      %5509 = vmatpush2.bf16.msra.mxu0 0
      %5510 = vmatprep.subr.bf16.mxu0 0
      %5511 = vmatpush2.bf16.msra.mxu0 0
      %5512 = vmatprep.mubr.bf16.mxu0 0
      %5513 = vmatmul.mubr.bf16.gmra.mxu0 %v5457
      %v5514 = vpop.f32.mrf.mxu0
      %v5515 = vadd.f32 0.0, %v5514
      %v5516 = vpop.f32.mrf.mxu0
      %v5517 = vpop.f32.mrf.mxu0
      %v5518 = vadd.f32 0.0, %v5517
      %v5519 = vpop.f32.mrf.mxu0
      %5520 = vmatprep.mubr.bf16.mxu0 0
      %5521 = vmatmul.mubr.bf16.gmra.mxu0 %v5460
      %v5522 = vpop.f32.mrf.mxu0
      %v5523 = vadd.f32 0.0, %v5522
      %v5524 = vpop.f32.mrf.mxu0
      %v5525 = vpop.f32.mrf.mxu0
      %v5526 = vadd.f32 0.0, %v5525
      %v5527 = vpop.f32.mrf.mxu0
      %5528 = vmatprep.mubr.bf16.mxu0 0
      %5529 = vmatmul.mubr.bf16.gmra.mxu0 %v5463
      %v5530 = vpop.f32.mrf.mxu0
      %v5531 = vadd.f32 0.0, %v5530
      %v5532 = vpop.f32.mrf.mxu0
      %v5533 = vpop.f32.mrf.mxu0
      %v5534 = vadd.f32 0.0, %v5533
      %v5535 = vpop.f32.mrf.mxu0
      %5536 = vmatprep.mubr.bf16.mxu0 0
      %5537 = vmatmul.mubr.bf16.gmra.mxu0 %v5466
      %v5538 = vpop.f32.mrf.mxu0
      %v5539 = vadd.f32 0.0, %v5538
      %v5540 = vpop.f32.mrf.mxu0
      %v5541 = vpop.f32.mrf.mxu0
      %v5542 = vadd.f32 0.0, %v5541
      %v5543 = vpop.f32.mrf.mxu0
      %5544 = vmatprep.mubr.bf16.mxu0 0
      %5545 = vmatmul.mubr.bf16.gmra.mxu0 %v5469
      %v5546 = vpop.f32.mrf.mxu0
      %v5547 = vadd.f32 0.0, %v5546
      %v5548 = vpop.f32.mrf.mxu0
      %v5549 = vpop.f32.mrf.mxu0
      %v5550 = vadd.f32 0.0, %v5549
      %v5551 = vpop.f32.mrf.mxu0
      %5552 = vmatprep.mubr.bf16.mxu0 0
      %5553 = vmatmul.mubr.bf16.gmra.mxu0 %v5472
      %v5554 = vpop.f32.mrf.mxu0
      %v5555 = vadd.f32 0.0, %v5554
      %v5556 = vpop.f32.mrf.mxu0
      %v5557 = vpop.f32.mrf.mxu0
      %v5558 = vadd.f32 0.0, %v5557
      %v5559 = vpop.f32.mrf.mxu0
      %5560 = vmatprep.mubr.bf16.mxu0 0
      %5561 = vmatmul.mubr.bf16.gmra.mxu0 %v5475
      %v5562 = vpop.f32.mrf.mxu0
      %v5563 = vadd.f32 0.0, %v5562
      %v5564 = vpop.f32.mrf.mxu0
      %v5565 = vpop.f32.mrf.mxu0
      %v5566 = vadd.f32 0.0, %v5565
      %v5567 = vpop.f32.mrf.mxu0
      %5568 = vmatprep.mubr.bf16.mxu0 0
      %5569 = vmatmul.mubr.bf16.gmra.mxu0 %v5478
      %v5570 = vpop.f32.mrf.mxu0
      %v5571 = vadd.f32 0.0, %v5570
      %v5572 = vpop.f32.mrf.mxu0
      %v5573 = vpop.f32.mrf.mxu0
      %v5574 = vadd.f32 0.0, %v5573
      %v5575 = vpop.f32.mrf.mxu0
      %5576 = vdwg.mxu0
      %5578 = vset.pattern.permute.xlu0 0
      %5579 = vperm.xlu0 %5578, %v5407
      %v5580 = vpop.permute.xlu0 %5579
      %5583 = vset.pattern.permute.xlu0 0
      %5584 = vperm.xlu0 %5583, %v5408
      %v5585 = vpop.permute.xlu0 %5584
      %5588 = vset.pattern.permute.xlu0 0
      %5589 = vperm.xlu0 %5588, %v5409
      %v5590 = vpop.permute.xlu0 %5589
      %5593 = vset.pattern.permute.xlu0 0
      %5594 = vperm.xlu0 %5593, %v5410
      %v5595 = vpop.permute.xlu0 %5594
      %5598 = vset.pattern.permute.xlu0 0
      %5599 = vperm.xlu0 %5598, %v5411
      %v5600 = vpop.permute.xlu0 %5599
      %5603 = vset.pattern.permute.xlu0 0
      %5604 = vperm.xlu0 %5603, %v5412
      %v5605 = vpop.permute.xlu0 %5604
      %5608 = vset.pattern.permute.xlu0 0
      %5609 = vperm.xlu0 %5608, %v5413
      %v5610 = vpop.permute.xlu0 %5609
      %5613 = vset.pattern.permute.xlu0 0
      %5614 = vperm.xlu0 %5613, %v5414
      %v5615 = vpop.permute.xlu0 %5614
      %5618 = vset.pattern.permute.xlu0 0
      %5619 = vperm.xlu0 %5618, %v5415
      %v5620 = vpop.permute.xlu0 %5619
      %5623 = vset.pattern.permute.xlu0 0
      %5624 = vperm.xlu0 %5623, %v5416
      %v5625 = vpop.permute.xlu0 %5624
      %5628 = vset.pattern.permute.xlu0 0
      %5629 = vperm.xlu0 %5628, %v5417
      %v5630 = vpop.permute.xlu0 %5629
      %5633 = vset.pattern.permute.xlu0 0
      %5634 = vperm.xlu0 %5633, %v5418
      %v5635 = vpop.permute.xlu0 %5634
      %5638 = vset.pattern.permute.xlu0 0
      %5639 = vperm.xlu0 %5638, %v5419
      %v5640 = vpop.permute.xlu0 %5639
      %5643 = vset.pattern.permute.xlu0 0
      %5644 = vperm.xlu0 %5643, %v5420
      %v5645 = vpop.permute.xlu0 %5644
      %5648 = vset.pattern.permute.xlu0 0
      %5649 = vperm.xlu0 %5648, %v5421
      %v5650 = vpop.permute.xlu0 %5649
      %5653 = vset.pattern.permute.xlu0 0
      %5654 = vperm.xlu0 %5653, %v5422
      %v5655 = vpop.permute.xlu0 %5654
      %v5657 = vmul.f32 %v5580, %v5515
      %v5658 = vmul.f32 %v5585, %v5518
      %v5659 = vmul.f32 %v5590, %v5523
      %v5660 = vmul.f32 %v5595, %v5526
      %v5661 = vmul.f32 %v5600, %v5531
      %v5662 = vmul.f32 %v5605, %v5534
      %v5663 = vmul.f32 %v5610, %v5539
      %v5664 = vmul.f32 %v5615, %v5542
      %v5665 = vmul.f32 %v5620, %v5547
      %v5666 = vmul.f32 %v5625, %v5550
      %v5667 = vmul.f32 %v5630, %v5555
      %v5668 = vmul.f32 %v5635, %v5558
      %v5669 = vmul.f32 %v5640, %v5563
      %v5670 = vmul.f32 %v5645, %v5566
      %v5671 = vmul.f32 %v5650, %v5571
      %v5672 = vmul.f32 %v5655, %v5574
      %v5673 = vadd.f32 %v4533, %v5657
      %v5674 = vadd.f32 %v4534, %v5658
      %v5675 = vadd.f32 %v4535, %v5659
      %v5676 = vadd.f32 %v4536, %v5660
      %v5677 = vadd.f32 %v4537, %v5661
      %v5678 = vadd.f32 %v4538, %v5662
      %v5679 = vadd.f32 %v4539, %v5663
      %v5680 = vadd.f32 %v4540, %v5664
      %v5681 = vadd.f32 %v4541, %v5665
      %v5682 = vadd.f32 %v4542, %v5666
      %v5683 = vadd.f32 %v4543, %v5667
      %v5684 = vadd.f32 %v4544, %v5668
      %v5685 = vadd.f32 %v4545, %v5669
      %v5686 = vadd.f32 %v4546, %v5670
      %v5687 = vadd.f32 %v4547, %v5671
      %v5688 = vadd.f32 %v4548, %v5672
      %vm5689 = vcmp.eq.s32.totalorder %v4629, 1
      %vm5690 = vcmp.eq.s32.totalorder %v4630, 1
      %vm5691 = vcmp.eq.s32.totalorder %v4631, 1
      %vm5692 = vcmp.eq.s32.totalorder %v4632, 1
      %vm5693 = vcmp.eq.s32.totalorder %v4633, 1
      %vm5694 = vcmp.eq.s32.totalorder %v4634, 1
      %vm5695 = vcmp.eq.s32.totalorder %v4635, 1
      %vm5696 = vcmp.eq.s32.totalorder %v4636, 1
      %vm5697 = vcmp.eq.s32.totalorder %v4637, 1
      %vm5698 = vcmp.eq.s32.totalorder %v4638, 1
      %vm5699 = vcmp.eq.s32.totalorder %v4639, 1
      %vm5700 = vcmp.eq.s32.totalorder %v4640, 1
      %vm5701 = vcmp.eq.s32.totalorder %v4641, 1
      %vm5702 = vcmp.eq.s32.totalorder %v4642, 1
      %vm5703 = vcmp.eq.s32.totalorder %v4643, 1
      %vm5704 = vcmp.eq.s32.totalorder %v4644, 1
      %v5705 = vsel %vm5689, %v4711, 0.0
      %v5706 = vsel %vm5690, %v4712, 0.0
      %v5707 = vsel %vm5691, %v4713, 0.0
      %v5708 = vsel %vm5692, %v4714, 0.0
      %v5709 = vsel %vm5693, %v4715, 0.0
      %v5710 = vsel %vm5694, %v4716, 0.0
      %v5711 = vsel %vm5695, %v4717, 0.0
      %v5712 = vsel %vm5696, %v4718, 0.0
      %v5713 = vsel %vm5697, %v4719, 0.0
      %v5714 = vsel %vm5698, %v4720, 0.0
      %v5715 = vsel %vm5699, %v4721, 0.0
      %v5716 = vsel %vm5700, %v4722, 0.0
      %v5717 = vsel %vm5701, %v4723, 0.0
      %v5718 = vsel %vm5702, %v4724, 0.0
      %v5719 = vsel %vm5703, %v4725, 0.0
      %v5720 = vsel %vm5704, %v4726, 0.0
      %v5721 = vsel %vm5343, %v4613, 0.0
      %v5722 = vsel %vm5344, %v4614, 0.0
      %v5723 = vsel %vm5345, %v4615, 0.0
      %v5724 = vsel %vm5346, %v4616, 0.0
      %v5725 = vsel %vm5347, %v4617, 0.0
      %v5726 = vsel %vm5348, %v4618, 0.0
      %v5727 = vsel %vm5349, %v4619, 0.0
      %v5728 = vsel %vm5350, %v4620, 0.0
      %v5729 = vsel %vm5351, %v4621, 0.0
      %v5730 = vsel %vm5352, %v4622, 0.0
      %v5731 = vsel %vm5353, %v4623, 0.0
      %v5732 = vsel %vm5354, %v4624, 0.0
      %v5733 = vsel %vm5355, %v4625, 0.0
      %v5734 = vsel %vm5356, %v4626, 0.0
      %v5735 = vsel %vm5357, %v4627, 0.0
      %v5736 = vsel %vm5358, %v4628, 0.0
      %v5737 = vadd.f32 %v5705, %v5721
      %v5738 = vadd.f32 %v5706, %v5722
      %v5739 = vadd.f32 %v5707, %v5723
      %v5740 = vadd.f32 %v5708, %v5724
      %v5741 = vadd.f32 %v5709, %v5725
      %v5742 = vadd.f32 %v5710, %v5726
      %v5743 = vadd.f32 %v5711, %v5727
      %v5744 = vadd.f32 %v5712, %v5728
      %v5745 = vadd.f32 %v5713, %v5729
      %v5746 = vadd.f32 %v5714, %v5730
      %v5747 = vadd.f32 %v5715, %v5731
      %v5748 = vadd.f32 %v5716, %v5732
      %v5749 = vadd.f32 %v5717, %v5733
      %v5750 = vadd.f32 %v5718, %v5734
      %v5751 = vadd.f32 %v5719, %v5735
      %v5752 = vadd.f32 %v5720, %v5736
      %v5753 = vld [vmem:[%s6 + $0x20] sm:$0xf]
      %v5754 = vld [vmem:[%s6 + $0x24] sm:$0xf]
      %v5755 = vld [vmem:[%s6 + $0x28] sm:$0xf]
      %v5756 = vld [vmem:[%s6 + $0x2c] sm:$0xf]
      %v5757 = vld [vmem:[%s6 + $0x30] sm:$0xf]
      %v5758 = vld [vmem:[%s6 + $0x34] sm:$0xf]
      %v5759 = vld [vmem:[%s6 + $0x38] sm:$0xf]
      %v5760 = vld [vmem:[%s6 + $0x3c] sm:$0xf]
      %v5769 = vunpack.c.l.b16 %v5753
      %v5770 = vunpack.c.l.b16 %v5754
      %v5771 = vunpack.c.l.b16 %v5755
      %v5772 = vunpack.c.l.b16 %v5756
      %v5773 = vunpack.c.l.b16 %v5757
      %v5774 = vunpack.c.l.b16 %v5758
      %v5775 = vunpack.c.l.b16 %v5759
      %v5776 = vunpack.c.l.b16 %v5760
      %v5777 = vpack.c.b16 %v5770, %v5769
      %v5778 = vpack.c.b16 %v5772, %v5771
      %v5779 = vpack.c.b16 %v5774, %v5773
      %v5780 = vpack.c.b16 %v5776, %v5775
      %5785 = vmatprep.subr.bf16.mxu0 0
      %5786 = vmatpush1.bf16.msra.mxu0 0
      %5787 = vmatprep.subr.bf16.mxu0 0
      %5788 = vmatpush1.bf16.msra.mxu0 0
      %5789 = vmatprep.subr.bf16.mxu0 0
      %5790 = vmatpush1.bf16.msra.mxu0 0
      %5791 = vmatprep.subr.bf16.mxu0 0
      %5792 = vmatpush1.bf16.msra.mxu0 0
      %5793 = vmatprep.subr.bf16.mxu0 0
      %5794 = vmatpush1.bf16.msra.mxu0 %v5780
      %5795 = vmatprep.subr.bf16.mxu0 0
      %5796 = vmatpush1.bf16.msra.mxu0 %v5779
      %5797 = vmatprep.subr.bf16.mxu0 0
      %5798 = vmatpush1.bf16.msra.mxu0 %v5778
      %5799 = vmatprep.subr.bf16.mxu0 0
      %5800 = vmatpush1.bf16.msra.mxu0 %v5777
      %5801 = vmatprep.subr.bf16.mxu0 0
      %5802 = vmatpush2.bf16.msra.mxu0 0
      %5803 = vmatprep.subr.bf16.mxu0 0
      %5804 = vmatpush2.bf16.msra.mxu0 0
      %5805 = vmatprep.subr.bf16.mxu0 0
      %5806 = vmatpush2.bf16.msra.mxu0 0
      %5807 = vmatprep.subr.bf16.mxu0 0
      %5808 = vmatpush2.bf16.msra.mxu0 0
      %5809 = vmatprep.subr.bf16.mxu0 0
      %5810 = vmatpush2.bf16.msra.mxu0 0
      %5811 = vmatprep.subr.bf16.mxu0 0
      %5812 = vmatpush2.bf16.msra.mxu0 0
      %5813 = vmatprep.subr.bf16.mxu0 0
      %5814 = vmatpush2.bf16.msra.mxu0 0
      %5815 = vmatprep.subr.bf16.mxu0 0
      %5816 = vmatpush2.bf16.msra.mxu0 0
      %5817 = vmatprep.mubr.bf16.mxu0 0
      %5818 = vmatmul.mubr.bf16.gmra.mxu0 %v5457
      %v5819 = vpop.f32.mrf.mxu0
      %v5820 = vadd.f32 0.0, %v5819
      %v5821 = vpop.f32.mrf.mxu0
      %v5822 = vpop.f32.mrf.mxu0
      %v5823 = vadd.f32 0.0, %v5822
      %v5824 = vpop.f32.mrf.mxu0
      %5825 = vmatprep.mubr.bf16.mxu0 0
      %5826 = vmatmul.mubr.bf16.gmra.mxu0 %v5460
      %v5827 = vpop.f32.mrf.mxu0
      %v5828 = vadd.f32 0.0, %v5827
      %v5829 = vpop.f32.mrf.mxu0
      %v5830 = vpop.f32.mrf.mxu0
      %v5831 = vadd.f32 0.0, %v5830
      %v5832 = vpop.f32.mrf.mxu0
      %5833 = vmatprep.mubr.bf16.mxu0 0
      %5834 = vmatmul.mubr.bf16.gmra.mxu0 %v5463
      %v5835 = vpop.f32.mrf.mxu0
      %v5836 = vadd.f32 0.0, %v5835
      %v5837 = vpop.f32.mrf.mxu0
      %v5838 = vpop.f32.mrf.mxu0
      %v5839 = vadd.f32 0.0, %v5838
      %v5840 = vpop.f32.mrf.mxu0
      %5841 = vmatprep.mubr.bf16.mxu0 0
      %5842 = vmatmul.mubr.bf16.gmra.mxu0 %v5466
      %v5843 = vpop.f32.mrf.mxu0
      %v5844 = vadd.f32 0.0, %v5843
      %v5845 = vpop.f32.mrf.mxu0
      %v5846 = vpop.f32.mrf.mxu0
      %v5847 = vadd.f32 0.0, %v5846
      %v5848 = vpop.f32.mrf.mxu0
      %5849 = vmatprep.mubr.bf16.mxu0 0
      %5850 = vmatmul.mubr.bf16.gmra.mxu0 %v5469
      %v5851 = vpop.f32.mrf.mxu0
      %v5852 = vadd.f32 0.0, %v5851
      %v5853 = vpop.f32.mrf.mxu0
      %v5854 = vpop.f32.mrf.mxu0
      %v5855 = vadd.f32 0.0, %v5854
      %v5856 = vpop.f32.mrf.mxu0
      %5857 = vmatprep.mubr.bf16.mxu0 0
      %5858 = vmatmul.mubr.bf16.gmra.mxu0 %v5472
      %v5859 = vpop.f32.mrf.mxu0
      %v5860 = vadd.f32 0.0, %v5859
      %v5861 = vpop.f32.mrf.mxu0
      %v5862 = vpop.f32.mrf.mxu0
      %v5863 = vadd.f32 0.0, %v5862
      %v5864 = vpop.f32.mrf.mxu0
      %5865 = vmatprep.mubr.bf16.mxu0 0
      %5866 = vmatmul.mubr.bf16.gmra.mxu0 %v5475
      %v5867 = vpop.f32.mrf.mxu0
      %v5868 = vadd.f32 0.0, %v5867
      %v5869 = vpop.f32.mrf.mxu0
      %v5870 = vpop.f32.mrf.mxu0
      %v5871 = vadd.f32 0.0, %v5870
      %v5872 = vpop.f32.mrf.mxu0
      %5873 = vmatprep.mubr.bf16.mxu0 0
      %5874 = vmatmul.mubr.bf16.gmra.mxu0 %v5478
      %v5875 = vpop.f32.mrf.mxu0
      %v5876 = vadd.f32 0.0, %v5875
      %v5877 = vpop.f32.mrf.mxu0
      %v5878 = vpop.f32.mrf.mxu0
      %v5879 = vadd.f32 0.0, %v5878
      %v5880 = vpop.f32.mrf.mxu0
      %5881 = vdwg.mxu0
      %5883 = vset.pattern.permute.xlu0 0
      %5884 = vperm.xlu0 %5883, %v5737
      %v5885 = vpop.permute.xlu0 %5884
      %5888 = vset.pattern.permute.xlu0 0
      %5889 = vperm.xlu0 %5888, %v5738
      %v5890 = vpop.permute.xlu0 %5889
      %5893 = vset.pattern.permute.xlu0 0
      %5894 = vperm.xlu0 %5893, %v5739
      %v5895 = vpop.permute.xlu0 %5894
      %5898 = vset.pattern.permute.xlu0 0
      %5899 = vperm.xlu0 %5898, %v5740
      %v5900 = vpop.permute.xlu0 %5899
      %5903 = vset.pattern.permute.xlu0 0
      %5904 = vperm.xlu0 %5903, %v5741
      %v5905 = vpop.permute.xlu0 %5904
      %5908 = vset.pattern.permute.xlu0 0
      %5909 = vperm.xlu0 %5908, %v5742
      %v5910 = vpop.permute.xlu0 %5909
      %5913 = vset.pattern.permute.xlu0 0
      %5914 = vperm.xlu0 %5913, %v5743
      %v5915 = vpop.permute.xlu0 %5914
      %5918 = vset.pattern.permute.xlu0 0
      %5919 = vperm.xlu0 %5918, %v5744
      %v5920 = vpop.permute.xlu0 %5919
      %5923 = vset.pattern.permute.xlu0 0
      %5924 = vperm.xlu0 %5923, %v5745
      %v5925 = vpop.permute.xlu0 %5924
      %5928 = vset.pattern.permute.xlu0 0
      %5929 = vperm.xlu0 %5928, %v5746
      %v5930 = vpop.permute.xlu0 %5929
      %5933 = vset.pattern.permute.xlu0 0
      %5934 = vperm.xlu0 %5933, %v5747
      %v5935 = vpop.permute.xlu0 %5934
      %5938 = vset.pattern.permute.xlu0 0
      %5939 = vperm.xlu0 %5938, %v5748
      %v5940 = vpop.permute.xlu0 %5939
      %5943 = vset.pattern.permute.xlu0 0
      %5944 = vperm.xlu0 %5943, %v5749
      %v5945 = vpop.permute.xlu0 %5944
      %5948 = vset.pattern.permute.xlu0 0
      %5949 = vperm.xlu0 %5948, %v5750
      %v5950 = vpop.permute.xlu0 %5949
      %5953 = vset.pattern.permute.xlu0 0
      %5954 = vperm.xlu0 %5953, %v5751
      %v5955 = vpop.permute.xlu0 %5954
      %5958 = vset.pattern.permute.xlu0 0
      %5959 = vperm.xlu0 %5958, %v5752
      %v5960 = vpop.permute.xlu0 %5959
      %v5962 = vmul.f32 %v5885, %v5820
      %v5963 = vmul.f32 %v5890, %v5823
      %v5964 = vmul.f32 %v5895, %v5828
      %v5965 = vmul.f32 %v5900, %v5831
      %v5966 = vmul.f32 %v5905, %v5836
      %v5967 = vmul.f32 %v5910, %v5839
      %v5968 = vmul.f32 %v5915, %v5844
      %v5969 = vmul.f32 %v5920, %v5847
      %v5970 = vmul.f32 %v5925, %v5852
      %v5971 = vmul.f32 %v5930, %v5855
      %v5972 = vmul.f32 %v5935, %v5860
      %v5973 = vmul.f32 %v5940, %v5863
      %v5974 = vmul.f32 %v5945, %v5868
      %v5975 = vmul.f32 %v5950, %v5871
      %v5976 = vmul.f32 %v5955, %v5876
      %v5977 = vmul.f32 %v5960, %v5879
      %v5978 = vadd.f32 %v5673, %v5962
      %v5979 = vadd.f32 %v5674, %v5963
      %v5980 = vadd.f32 %v5675, %v5964
      %v5981 = vadd.f32 %v5676, %v5965
      %v5982 = vadd.f32 %v5677, %v5966
      %v5983 = vadd.f32 %v5678, %v5967
      %v5984 = vadd.f32 %v5679, %v5968
      %v5985 = vadd.f32 %v5680, %v5969
      %v5986 = vadd.f32 %v5681, %v5970
      %v5987 = vadd.f32 %v5682, %v5971
      %v5988 = vadd.f32 %v5683, %v5972
      %v5989 = vadd.f32 %v5684, %v5973
      %v5990 = vadd.f32 %v5685, %v5974
      %v5991 = vadd.f32 %v5686, %v5975
      %v5992 = vadd.f32 %v5687, %v5976
      %v5993 = vadd.f32 %v5688, %v5977
      %vm5994 = vcmp.eq.s32.totalorder %v4629, 2
      %vm5995 = vcmp.eq.s32.totalorder %v4630, 2
      %vm5996 = vcmp.eq.s32.totalorder %v4631, 2
      %vm5997 = vcmp.eq.s32.totalorder %v4632, 2
      %vm5998 = vcmp.eq.s32.totalorder %v4633, 2
      %vm5999 = vcmp.eq.s32.totalorder %v4634, 2
      %vm6000 = vcmp.eq.s32.totalorder %v4635, 2
      %vm6001 = vcmp.eq.s32.totalorder %v4636, 2
      %vm6002 = vcmp.eq.s32.totalorder %v4637, 2
      %vm6003 = vcmp.eq.s32.totalorder %v4638, 2
      %vm6004 = vcmp.eq.s32.totalorder %v4639, 2
      %vm6005 = vcmp.eq.s32.totalorder %v4640, 2
      %vm6006 = vcmp.eq.s32.totalorder %v4641, 2
      %vm6007 = vcmp.eq.s32.totalorder %v4642, 2
      %vm6008 = vcmp.eq.s32.totalorder %v4643, 2
      %vm6009 = vcmp.eq.s32.totalorder %v4644, 2
      %v6010 = vsel %vm5994, %v4711, 0.0
      %v6011 = vsel %vm5995, %v4712, 0.0
      %v6012 = vsel %vm5996, %v4713, 0.0
      %v6013 = vsel %vm5997, %v4714, 0.0
      %v6014 = vsel %vm5998, %v4715, 0.0
      %v6015 = vsel %vm5999, %v4716, 0.0
      %v6016 = vsel %vm6000, %v4717, 0.0
      %v6017 = vsel %vm6001, %v4718, 0.0
      %v6018 = vsel %vm6002, %v4719, 0.0
      %v6019 = vsel %vm6003, %v4720, 0.0
      %v6020 = vsel %vm6004, %v4721, 0.0
      %v6021 = vsel %vm6005, %v4722, 0.0
      %v6022 = vsel %vm6006, %v4723, 0.0
      %v6023 = vsel %vm6007, %v4724, 0.0
      %v6024 = vsel %vm6008, %v4725, 0.0
      %v6025 = vsel %vm6009, %v4726, 0.0
      %v6026 = vsel %vm5689, %v4613, 0.0
      %v6027 = vsel %vm5690, %v4614, 0.0
      %v6028 = vsel %vm5691, %v4615, 0.0
      %v6029 = vsel %vm5692, %v4616, 0.0
      %v6030 = vsel %vm5693, %v4617, 0.0
      %v6031 = vsel %vm5694, %v4618, 0.0
      %v6032 = vsel %vm5695, %v4619, 0.0
      %v6033 = vsel %vm5696, %v4620, 0.0
      %v6034 = vsel %vm5697, %v4621, 0.0
      %v6035 = vsel %vm5698, %v4622, 0.0
      %v6036 = vsel %vm5699, %v4623, 0.0
      %v6037 = vsel %vm5700, %v4624, 0.0
      %v6038 = vsel %vm5701, %v4625, 0.0
      %v6039 = vsel %vm5702, %v4626, 0.0
      %v6040 = vsel %vm5703, %v4627, 0.0
      %v6041 = vsel %vm5704, %v4628, 0.0
      %v6042 = vadd.f32 %v6010, %v6026
      %v6043 = vadd.f32 %v6011, %v6027
      %v6044 = vadd.f32 %v6012, %v6028
      %v6045 = vadd.f32 %v6013, %v6029
      %v6046 = vadd.f32 %v6014, %v6030
      %v6047 = vadd.f32 %v6015, %v6031
      %v6048 = vadd.f32 %v6016, %v6032
      %v6049 = vadd.f32 %v6017, %v6033
      %v6050 = vadd.f32 %v6018, %v6034
      %v6051 = vadd.f32 %v6019, %v6035
      %v6052 = vadd.f32 %v6020, %v6036
      %v6053 = vadd.f32 %v6021, %v6037
      %v6054 = vadd.f32 %v6022, %v6038
      %v6055 = vadd.f32 %v6023, %v6039
      %v6056 = vadd.f32 %v6024, %v6040
      %v6057 = vadd.f32 %v6025, %v6041
      %v6058 = vld [vmem:[%s6 + $0x40] sm:$0xf]
      %v6059 = vld [vmem:[%s6 + $0x44] sm:$0xf]
      %v6060 = vld [vmem:[%s6 + $0x48] sm:$0xf]
      %v6061 = vld [vmem:[%s6 + $0x4c] sm:$0xf]
      %v6062 = vld [vmem:[%s6 + $0x50] sm:$0xf]
      %v6063 = vld [vmem:[%s6 + $0x54] sm:$0xf]
      %v6064 = vld [vmem:[%s6 + $0x58] sm:$0xf]
      %v6065 = vld [vmem:[%s6 + $0x5c] sm:$0xf]
      %v6074 = vunpack.c.l.b16 %v6058
      %v6075 = vunpack.c.l.b16 %v6059
      %v6076 = vunpack.c.l.b16 %v6060
      %v6077 = vunpack.c.l.b16 %v6061
      %v6078 = vunpack.c.l.b16 %v6062
      %v6079 = vunpack.c.l.b16 %v6063
      %v6080 = vunpack.c.l.b16 %v6064
      %v6081 = vunpack.c.l.b16 %v6065
      %v6082 = vpack.c.b16 %v6075, %v6074
      %v6083 = vpack.c.b16 %v6077, %v6076
      %v6084 = vpack.c.b16 %v6079, %v6078
      %v6085 = vpack.c.b16 %v6081, %v6080
      %6090 = vmatprep.subr.bf16.mxu0 0
      %6091 = vmatpush1.bf16.msra.mxu0 0
      %6092 = vmatprep.subr.bf16.mxu0 0
      %6093 = vmatpush1.bf16.msra.mxu0 0
      %6094 = vmatprep.subr.bf16.mxu0 0
      %6095 = vmatpush1.bf16.msra.mxu0 0
      %6096 = vmatprep.subr.bf16.mxu0 0
      %6097 = vmatpush1.bf16.msra.mxu0 0
      %6098 = vmatprep.subr.bf16.mxu0 0
      %6099 = vmatpush1.bf16.msra.mxu0 %v6085
      %6100 = vmatprep.subr.bf16.mxu0 0
      %6101 = vmatpush1.bf16.msra.mxu0 %v6084
      %6102 = vmatprep.subr.bf16.mxu0 0
      %6103 = vmatpush1.bf16.msra.mxu0 %v6083
      %6104 = vmatprep.subr.bf16.mxu0 0
      %6105 = vmatpush1.bf16.msra.mxu0 %v6082
      %6106 = vmatprep.subr.bf16.mxu0 0
      %6107 = vmatpush2.bf16.msra.mxu0 0
      %6108 = vmatprep.subr.bf16.mxu0 0
      %6109 = vmatpush2.bf16.msra.mxu0 0
      %6110 = vmatprep.subr.bf16.mxu0 0
      %6111 = vmatpush2.bf16.msra.mxu0 0
      %6112 = vmatprep.subr.bf16.mxu0 0
      %6113 = vmatpush2.bf16.msra.mxu0 0
      %6114 = vmatprep.subr.bf16.mxu0 0
      %6115 = vmatpush2.bf16.msra.mxu0 0
      %6116 = vmatprep.subr.bf16.mxu0 0
      %6117 = vmatpush2.bf16.msra.mxu0 0
      %6118 = vmatprep.subr.bf16.mxu0 0
      %6119 = vmatpush2.bf16.msra.mxu0 0
      %6120 = vmatprep.subr.bf16.mxu0 0
      %6121 = vmatpush2.bf16.msra.mxu0 0
      %6122 = vmatprep.mubr.bf16.mxu0 0
      %6123 = vmatmul.mubr.bf16.gmra.mxu0 %v5457
      %v6124 = vpop.f32.mrf.mxu0
      %v6125 = vadd.f32 0.0, %v6124
      %v6126 = vpop.f32.mrf.mxu0
      %v6127 = vpop.f32.mrf.mxu0
      %v6128 = vadd.f32 0.0, %v6127
      %v6129 = vpop.f32.mrf.mxu0
      %6130 = vmatprep.mubr.bf16.mxu0 0
      %6131 = vmatmul.mubr.bf16.gmra.mxu0 %v5460
      %v6132 = vpop.f32.mrf.mxu0
      %v6133 = vadd.f32 0.0, %v6132
      %v6134 = vpop.f32.mrf.mxu0
      %v6135 = vpop.f32.mrf.mxu0
      %v6136 = vadd.f32 0.0, %v6135
      %v6137 = vpop.f32.mrf.mxu0
      %6138 = vmatprep.mubr.bf16.mxu0 0
      %6139 = vmatmul.mubr.bf16.gmra.mxu0 %v5463
      %v6140 = vpop.f32.mrf.mxu0
      %v6141 = vadd.f32 0.0, %v6140
      %v6142 = vpop.f32.mrf.mxu0
      %v6143 = vpop.f32.mrf.mxu0
      %v6144 = vadd.f32 0.0, %v6143
      %v6145 = vpop.f32.mrf.mxu0
      %6146 = vmatprep.mubr.bf16.mxu0 0
      %6147 = vmatmul.mubr.bf16.gmra.mxu0 %v5466
      %v6148 = vpop.f32.mrf.mxu0
      %v6149 = vadd.f32 0.0, %v6148
      %v6150 = vpop.f32.mrf.mxu0
      %v6151 = vpop.f32.mrf.mxu0
      %v6152 = vadd.f32 0.0, %v6151
      %v6153 = vpop.f32.mrf.mxu0
      %6154 = vmatprep.mubr.bf16.mxu0 0
      %6155 = vmatmul.mubr.bf16.gmra.mxu0 %v5469
      %v6156 = vpop.f32.mrf.mxu0
      %v6157 = vadd.f32 0.0, %v6156
      %v6158 = vpop.f32.mrf.mxu0
      %v6159 = vpop.f32.mrf.mxu0
      %v6160 = vadd.f32 0.0, %v6159
      %v6161 = vpop.f32.mrf.mxu0
      %6162 = vmatprep.mubr.bf16.mxu0 0
      %6163 = vmatmul.mubr.bf16.gmra.mxu0 %v5472
      %v6164 = vpop.f32.mrf.mxu0
      %v6165 = vadd.f32 0.0, %v6164
      %v6166 = vpop.f32.mrf.mxu0
      %v6167 = vpop.f32.mrf.mxu0
      %v6168 = vadd.f32 0.0, %v6167
      %v6169 = vpop.f32.mrf.mxu0
      %6170 = vmatprep.mubr.bf16.mxu0 0
      %6171 = vmatmul.mubr.bf16.gmra.mxu0 %v5475
      %v6172 = vpop.f32.mrf.mxu0
      %v6173 = vadd.f32 0.0, %v6172
      %v6174 = vpop.f32.mrf.mxu0
      %v6175 = vpop.f32.mrf.mxu0
      %v6176 = vadd.f32 0.0, %v6175
      %v6177 = vpop.f32.mrf.mxu0
      %6178 = vmatprep.mubr.bf16.mxu0 0
      %6179 = vmatmul.mubr.bf16.gmra.mxu0 %v5478
      %v6180 = vpop.f32.mrf.mxu0
      %v6181 = vadd.f32 0.0, %v6180
      %v6182 = vpop.f32.mrf.mxu0
      %v6183 = vpop.f32.mrf.mxu0
      %v6184 = vadd.f32 0.0, %v6183
      %v6185 = vpop.f32.mrf.mxu0
      %6186 = vdwg.mxu0
      %6188 = vset.pattern.permute.xlu0 0
      %6189 = vperm.xlu0 %6188, %v6042
      %v6190 = vpop.permute.xlu0 %6189
      %6193 = vset.pattern.permute.xlu0 0
      %6194 = vperm.xlu0 %6193, %v6043
      %v6195 = vpop.permute.xlu0 %6194
      %6198 = vset.pattern.permute.xlu0 0
      %6199 = vperm.xlu0 %6198, %v6044
      %v6200 = vpop.permute.xlu0 %6199
      %6203 = vset.pattern.permute.xlu0 0
      %6204 = vperm.xlu0 %6203, %v6045
      %v6205 = vpop.permute.xlu0 %6204
      %6208 = vset.pattern.permute.xlu0 0
      %6209 = vperm.xlu0 %6208, %v6046
      %v6210 = vpop.permute.xlu0 %6209
      %6213 = vset.pattern.permute.xlu0 0
      %6214 = vperm.xlu0 %6213, %v6047
      %v6215 = vpop.permute.xlu0 %6214
      %6218 = vset.pattern.permute.xlu0 0
      %6219 = vperm.xlu0 %6218, %v6048
      %v6220 = vpop.permute.xlu0 %6219
      %6223 = vset.pattern.permute.xlu0 0
      %6224 = vperm.xlu0 %6223, %v6049
      %v6225 = vpop.permute.xlu0 %6224
      %6228 = vset.pattern.permute.xlu0 0
      %6229 = vperm.xlu0 %6228, %v6050
      %v6230 = vpop.permute.xlu0 %6229
      %6233 = vset.pattern.permute.xlu0 0
      %6234 = vperm.xlu0 %6233, %v6051
      %v6235 = vpop.permute.xlu0 %6234
      %6238 = vset.pattern.permute.xlu0 0
      %6239 = vperm.xlu0 %6238, %v6052
      %v6240 = vpop.permute.xlu0 %6239
      %6243 = vset.pattern.permute.xlu0 0
      %6244 = vperm.xlu0 %6243, %v6053
      %v6245 = vpop.permute.xlu0 %6244
      %6248 = vset.pattern.permute.xlu0 0
      %6249 = vperm.xlu0 %6248, %v6054
      %v6250 = vpop.permute.xlu0 %6249
      %6253 = vset.pattern.permute.xlu0 0
      %6254 = vperm.xlu0 %6253, %v6055
      %v6255 = vpop.permute.xlu0 %6254
      %6258 = vset.pattern.permute.xlu0 0
      %6259 = vperm.xlu0 %6258, %v6056
      %v6260 = vpop.permute.xlu0 %6259
      %6263 = vset.pattern.permute.xlu0 0
      %6264 = vperm.xlu0 %6263, %v6057
      %v6265 = vpop.permute.xlu0 %6264
      %v6267 = vmul.f32 %v6190, %v6125
      %v6268 = vmul.f32 %v6195, %v6128
      %v6269 = vmul.f32 %v6200, %v6133
      %v6270 = vmul.f32 %v6205, %v6136
      %v6271 = vmul.f32 %v6210, %v6141
      %v6272 = vmul.f32 %v6215, %v6144
      %v6273 = vmul.f32 %v6220, %v6149
      %v6274 = vmul.f32 %v6225, %v6152
      %v6275 = vmul.f32 %v6230, %v6157
      %v6276 = vmul.f32 %v6235, %v6160
      %v6277 = vmul.f32 %v6240, %v6165
      %v6278 = vmul.f32 %v6245, %v6168
      %v6279 = vmul.f32 %v6250, %v6173
      %v6280 = vmul.f32 %v6255, %v6176
      %v6281 = vmul.f32 %v6260, %v6181
      %v6282 = vmul.f32 %v6265, %v6184
      %v6283 = vadd.f32 %v5978, %v6267
      %v6284 = vadd.f32 %v5979, %v6268
      %v6285 = vadd.f32 %v5980, %v6269
      %v6286 = vadd.f32 %v5981, %v6270
      %v6287 = vadd.f32 %v5982, %v6271
      %v6288 = vadd.f32 %v5983, %v6272
      %v6289 = vadd.f32 %v5984, %v6273
      %v6290 = vadd.f32 %v5985, %v6274
      %v6291 = vadd.f32 %v5986, %v6275
      %v6292 = vadd.f32 %v5987, %v6276
      %v6293 = vadd.f32 %v5988, %v6277
      %v6294 = vadd.f32 %v5989, %v6278
      %v6295 = vadd.f32 %v5990, %v6279
      %v6296 = vadd.f32 %v5991, %v6280
      %v6297 = vadd.f32 %v5992, %v6281
      %v6298 = vadd.f32 %v5993, %v6282
      %vm6299 = vcmp.eq.s32.totalorder %v4629, 3
      %vm6300 = vcmp.eq.s32.totalorder %v4630, 3
      %vm6301 = vcmp.eq.s32.totalorder %v4631, 3
      %vm6302 = vcmp.eq.s32.totalorder %v4632, 3
      %vm6303 = vcmp.eq.s32.totalorder %v4633, 3
      %vm6304 = vcmp.eq.s32.totalorder %v4634, 3
      %vm6305 = vcmp.eq.s32.totalorder %v4635, 3
      %vm6306 = vcmp.eq.s32.totalorder %v4636, 3
      %vm6307 = vcmp.eq.s32.totalorder %v4637, 3
      %vm6308 = vcmp.eq.s32.totalorder %v4638, 3
      %vm6309 = vcmp.eq.s32.totalorder %v4639, 3
      %vm6310 = vcmp.eq.s32.totalorder %v4640, 3
      %vm6311 = vcmp.eq.s32.totalorder %v4641, 3
      %vm6312 = vcmp.eq.s32.totalorder %v4642, 3
      %vm6313 = vcmp.eq.s32.totalorder %v4643, 3
      %vm6314 = vcmp.eq.s32.totalorder %v4644, 3
      %v6315 = vsel %vm6299, %v4711, 0.0
      %v6316 = vsel %vm6300, %v4712, 0.0
      %v6317 = vsel %vm6301, %v4713, 0.0
      %v6318 = vsel %vm6302, %v4714, 0.0
      %v6319 = vsel %vm6303, %v4715, 0.0
      %v6320 = vsel %vm6304, %v4716, 0.0
      %v6321 = vsel %vm6305, %v4717, 0.0
      %v6322 = vsel %vm6306, %v4718, 0.0
      %v6323 = vsel %vm6307, %v4719, 0.0
      %v6324 = vsel %vm6308, %v4720, 0.0
      %v6325 = vsel %vm6309, %v4721, 0.0
      %v6326 = vsel %vm6310, %v4722, 0.0
      %v6327 = vsel %vm6311, %v4723, 0.0
      %v6328 = vsel %vm6312, %v4724, 0.0
      %v6329 = vsel %vm6313, %v4725, 0.0
      %v6330 = vsel %vm6314, %v4726, 0.0
      %v6331 = vsel %vm5994, %v4613, 0.0
      %v6332 = vsel %vm5995, %v4614, 0.0
      %v6333 = vsel %vm5996, %v4615, 0.0
      %v6334 = vsel %vm5997, %v4616, 0.0
      %v6335 = vsel %vm5998, %v4617, 0.0
      %v6336 = vsel %vm5999, %v4618, 0.0
      %v6337 = vsel %vm6000, %v4619, 0.0
      %v6338 = vsel %vm6001, %v4620, 0.0
      %v6339 = vsel %vm6002, %v4621, 0.0
      %v6340 = vsel %vm6003, %v4622, 0.0
      %v6341 = vsel %vm6004, %v4623, 0.0
      %v6342 = vsel %vm6005, %v4624, 0.0
      %v6343 = vsel %vm6006, %v4625, 0.0
      %v6344 = vsel %vm6007, %v4626, 0.0
      %v6345 = vsel %vm6008, %v4627, 0.0
      %v6346 = vsel %vm6009, %v4628, 0.0
      %v6347 = vadd.f32 %v6315, %v6331
      %v6348 = vadd.f32 %v6316, %v6332
      %v6349 = vadd.f32 %v6317, %v6333
      %v6350 = vadd.f32 %v6318, %v6334
      %v6351 = vadd.f32 %v6319, %v6335
      %v6352 = vadd.f32 %v6320, %v6336
      %v6353 = vadd.f32 %v6321, %v6337
      %v6354 = vadd.f32 %v6322, %v6338
      %v6355 = vadd.f32 %v6323, %v6339
      %v6356 = vadd.f32 %v6324, %v6340
      %v6357 = vadd.f32 %v6325, %v6341
      %v6358 = vadd.f32 %v6326, %v6342
      %v6359 = vadd.f32 %v6327, %v6343
      %v6360 = vadd.f32 %v6328, %v6344
      %v6361 = vadd.f32 %v6329, %v6345
      %v6362 = vadd.f32 %v6330, %v6346
      %v6363 = vld [vmem:[%s6 + $0x60] sm:$0xf]
      %v6364 = vld [vmem:[%s6 + $0x64] sm:$0xf]
      %v6365 = vld [vmem:[%s6 + $0x68] sm:$0xf]
      %v6366 = vld [vmem:[%s6 + $0x6c] sm:$0xf]
      %v6367 = vld [vmem:[%s6 + $0x70] sm:$0xf]
      %v6368 = vld [vmem:[%s6 + $0x74] sm:$0xf]
      %v6369 = vld [vmem:[%s6 + $0x78] sm:$0xf]
      %v6370 = vld [vmem:[%s6 + $0x7c] sm:$0xf]
      %v6379 = vunpack.c.l.b16 %v6363
      %v6380 = vunpack.c.l.b16 %v6364
      %v6381 = vunpack.c.l.b16 %v6365
      %v6382 = vunpack.c.l.b16 %v6366
      %v6383 = vunpack.c.l.b16 %v6367
      %v6384 = vunpack.c.l.b16 %v6368
      %v6385 = vunpack.c.l.b16 %v6369
      %v6386 = vunpack.c.l.b16 %v6370
      %v6387 = vpack.c.b16 %v6380, %v6379
      %v6388 = vpack.c.b16 %v6382, %v6381
      %v6389 = vpack.c.b16 %v6384, %v6383
      %v6390 = vpack.c.b16 %v6386, %v6385
      %6395 = vmatprep.subr.bf16.mxu0 0
      %6396 = vmatpush1.bf16.msra.mxu0 0
      %6397 = vmatprep.subr.bf16.mxu0 0
      %6398 = vmatpush1.bf16.msra.mxu0 0
      %6399 = vmatprep.subr.bf16.mxu0 0
      %6400 = vmatpush1.bf16.msra.mxu0 0
      %6401 = vmatprep.subr.bf16.mxu0 0
      %6402 = vmatpush1.bf16.msra.mxu0 0
      %6403 = vmatprep.subr.bf16.mxu0 0
      %6404 = vmatpush1.bf16.msra.mxu0 %v6390
      %6405 = vmatprep.subr.bf16.mxu0 0
      %6406 = vmatpush1.bf16.msra.mxu0 %v6389
      %6407 = vmatprep.subr.bf16.mxu0 0
      %6408 = vmatpush1.bf16.msra.mxu0 %v6388
      %6409 = vmatprep.subr.bf16.mxu0 0
      %6410 = vmatpush1.bf16.msra.mxu0 %v6387
      %6411 = vmatprep.subr.bf16.mxu0 0
      %6412 = vmatpush2.bf16.msra.mxu0 0
      %6413 = vmatprep.subr.bf16.mxu0 0
      %6414 = vmatpush2.bf16.msra.mxu0 0
      %6415 = vmatprep.subr.bf16.mxu0 0
      %6416 = vmatpush2.bf16.msra.mxu0 0
      %6417 = vmatprep.subr.bf16.mxu0 0
      %6418 = vmatpush2.bf16.msra.mxu0 0
      %6419 = vmatprep.subr.bf16.mxu0 0
      %6420 = vmatpush2.bf16.msra.mxu0 0
      %6421 = vmatprep.subr.bf16.mxu0 0
      %6422 = vmatpush2.bf16.msra.mxu0 0
      %6423 = vmatprep.subr.bf16.mxu0 0
      %6424 = vmatpush2.bf16.msra.mxu0 0
      %6425 = vmatprep.subr.bf16.mxu0 0
      %6426 = vmatpush2.bf16.msra.mxu0 0
      %6427 = vmatprep.mubr.bf16.mxu0 0
      %6428 = vmatmul.mubr.bf16.gmra.mxu0 %v5457
      %v6429 = vpop.f32.mrf.mxu0
      %v6430 = vadd.f32 0.0, %v6429
      %v6431 = vpop.f32.mrf.mxu0
      %v6432 = vpop.f32.mrf.mxu0
      %v6433 = vadd.f32 0.0, %v6432
      %v6434 = vpop.f32.mrf.mxu0
      %6435 = vmatprep.mubr.bf16.mxu0 0
      %6436 = vmatmul.mubr.bf16.gmra.mxu0 %v5460
      %v6437 = vpop.f32.mrf.mxu0
      %v6438 = vadd.f32 0.0, %v6437
      %v6439 = vpop.f32.mrf.mxu0
      %v6440 = vpop.f32.mrf.mxu0
      %v6441 = vadd.f32 0.0, %v6440
      %v6442 = vpop.f32.mrf.mxu0
      %6443 = vmatprep.mubr.bf16.mxu0 0
      %6444 = vmatmul.mubr.bf16.gmra.mxu0 %v5463
      %v6445 = vpop.f32.mrf.mxu0
      %v6446 = vadd.f32 0.0, %v6445
      %v6447 = vpop.f32.mrf.mxu0
      %v6448 = vpop.f32.mrf.mxu0
      %v6449 = vadd.f32 0.0, %v6448
      %v6450 = vpop.f32.mrf.mxu0
      %6451 = vmatprep.mubr.bf16.mxu0 0
      %6452 = vmatmul.mubr.bf16.gmra.mxu0 %v5466
      %v6453 = vpop.f32.mrf.mxu0
      %v6454 = vadd.f32 0.0, %v6453
      %v6455 = vpop.f32.mrf.mxu0
      %v6456 = vpop.f32.mrf.mxu0
      %v6457 = vadd.f32 0.0, %v6456
      %v6458 = vpop.f32.mrf.mxu0
      %6459 = vmatprep.mubr.bf16.mxu0 0
      %6460 = vmatmul.mubr.bf16.gmra.mxu0 %v5469
      %v6461 = vpop.f32.mrf.mxu0
      %v6462 = vadd.f32 0.0, %v6461
      %v6463 = vpop.f32.mrf.mxu0
      %v6464 = vpop.f32.mrf.mxu0
      %v6465 = vadd.f32 0.0, %v6464
      %v6466 = vpop.f32.mrf.mxu0
      %6467 = vmatprep.mubr.bf16.mxu0 0
      %6468 = vmatmul.mubr.bf16.gmra.mxu0 %v5472
      %v6469 = vpop.f32.mrf.mxu0
      %v6470 = vadd.f32 0.0, %v6469
      %v6471 = vpop.f32.mrf.mxu0
      %v6472 = vpop.f32.mrf.mxu0
      %v6473 = vadd.f32 0.0, %v6472
      %v6474 = vpop.f32.mrf.mxu0
      %6475 = vmatprep.mubr.bf16.mxu0 0
      %6476 = vmatmul.mubr.bf16.gmra.mxu0 %v5475
      %v6477 = vpop.f32.mrf.mxu0
      %v6478 = vadd.f32 0.0, %v6477
      %v6479 = vpop.f32.mrf.mxu0
      %v6480 = vpop.f32.mrf.mxu0
      %v6481 = vadd.f32 0.0, %v6480
      %v6482 = vpop.f32.mrf.mxu0
      %6483 = vmatprep.mubr.bf16.mxu0 0
      %6484 = vmatmul.mubr.bf16.gmra.mxu0 %v5478
      %v6485 = vpop.f32.mrf.mxu0
      %v6486 = vadd.f32 0.0, %v6485
      %v6487 = vpop.f32.mrf.mxu0
      %v6488 = vpop.f32.mrf.mxu0
      %v6489 = vadd.f32 0.0, %v6488
      %v6490 = vpop.f32.mrf.mxu0
      %6491 = vdwg.mxu0
      %6493 = vset.pattern.permute.xlu0 0
      %6494 = vperm.xlu0 %6493, %v6347
      %v6495 = vpop.permute.xlu0 %6494
      %6498 = vset.pattern.permute.xlu0 0
      %6499 = vperm.xlu0 %6498, %v6348
      %v6500 = vpop.permute.xlu0 %6499
      %6503 = vset.pattern.permute.xlu0 0
      %6504 = vperm.xlu0 %6503, %v6349
      %v6505 = vpop.permute.xlu0 %6504
      %6508 = vset.pattern.permute.xlu0 0
      %6509 = vperm.xlu0 %6508, %v6350
      %v6510 = vpop.permute.xlu0 %6509
      %6513 = vset.pattern.permute.xlu0 0
      %6514 = vperm.xlu0 %6513, %v6351
      %v6515 = vpop.permute.xlu0 %6514
      %6518 = vset.pattern.permute.xlu0 0
      %6519 = vperm.xlu0 %6518, %v6352
      %v6520 = vpop.permute.xlu0 %6519
      %6523 = vset.pattern.permute.xlu0 0
      %6524 = vperm.xlu0 %6523, %v6353
      %v6525 = vpop.permute.xlu0 %6524
      %6528 = vset.pattern.permute.xlu0 0
      %6529 = vperm.xlu0 %6528, %v6354
      %v6530 = vpop.permute.xlu0 %6529
      %6533 = vset.pattern.permute.xlu0 0
      %6534 = vperm.xlu0 %6533, %v6355
      %v6535 = vpop.permute.xlu0 %6534
      %6538 = vset.pattern.permute.xlu0 0
      %6539 = vperm.xlu0 %6538, %v6356
      %v6540 = vpop.permute.xlu0 %6539
      %6543 = vset.pattern.permute.xlu0 0
      %6544 = vperm.xlu0 %6543, %v6357
      %v6545 = vpop.permute.xlu0 %6544
      %6548 = vset.pattern.permute.xlu0 0
      %6549 = vperm.xlu0 %6548, %v6358
      %v6550 = vpop.permute.xlu0 %6549
      %6553 = vset.pattern.permute.xlu0 0
      %6554 = vperm.xlu0 %6553, %v6359
      %v6555 = vpop.permute.xlu0 %6554
      %6558 = vset.pattern.permute.xlu0 0
      %6559 = vperm.xlu0 %6558, %v6360
      %v6560 = vpop.permute.xlu0 %6559
      %6563 = vset.pattern.permute.xlu0 0
      %6564 = vperm.xlu0 %6563, %v6361
      %v6565 = vpop.permute.xlu0 %6564
      %6568 = vset.pattern.permute.xlu0 0
      %6569 = vperm.xlu0 %6568, %v6362
      %v6570 = vpop.permute.xlu0 %6569
      %v6572 = vmul.f32 %v6495, %v6430
      %v6573 = vmul.f32 %v6500, %v6433
      %v6574 = vmul.f32 %v6505, %v6438
      %v6575 = vmul.f32 %v6510, %v6441
      %v6576 = vmul.f32 %v6515, %v6446
      %v6577 = vmul.f32 %v6520, %v6449
      %v6578 = vmul.f32 %v6525, %v6454
      %v6579 = vmul.f32 %v6530, %v6457
      %v6580 = vmul.f32 %v6535, %v6462
      %v6581 = vmul.f32 %v6540, %v6465
      %v6582 = vmul.f32 %v6545, %v6470
      %v6583 = vmul.f32 %v6550, %v6473
      %v6584 = vmul.f32 %v6555, %v6478
      %v6585 = vmul.f32 %v6560, %v6481
      %v6586 = vmul.f32 %v6565, %v6486
      %v6587 = vmul.f32 %v6570, %v6489
      %v6588 = vadd.f32 %v6283, %v6572
      %v6589 = vadd.f32 %v6284, %v6573
      %v6590 = vadd.f32 %v6285, %v6574
      %v6591 = vadd.f32 %v6286, %v6575
      %v6592 = vadd.f32 %v6287, %v6576
      %v6593 = vadd.f32 %v6288, %v6577
      %v6594 = vadd.f32 %v6289, %v6578
      %v6595 = vadd.f32 %v6290, %v6579
      %v6596 = vadd.f32 %v6291, %v6580
      %v6597 = vadd.f32 %v6292, %v6581
      %v6598 = vadd.f32 %v6293, %v6582
      %v6599 = vadd.f32 %v6294, %v6583
      %v6600 = vadd.f32 %v6295, %v6584
      %v6601 = vadd.f32 %v6296, %v6585
      %v6602 = vadd.f32 %v6297, %v6586
      %v6603 = vadd.f32 %v6298, %v6587
      %vm6604 = vcmp.eq.s32.totalorder %v4629, 4
      %vm6605 = vcmp.eq.s32.totalorder %v4630, 4
      %vm6606 = vcmp.eq.s32.totalorder %v4631, 4
      %vm6607 = vcmp.eq.s32.totalorder %v4632, 4
      %vm6608 = vcmp.eq.s32.totalorder %v4633, 4
      %vm6609 = vcmp.eq.s32.totalorder %v4634, 4
      %vm6610 = vcmp.eq.s32.totalorder %v4635, 4
      %vm6611 = vcmp.eq.s32.totalorder %v4636, 4
      %vm6612 = vcmp.eq.s32.totalorder %v4637, 4
      %vm6613 = vcmp.eq.s32.totalorder %v4638, 4
      %vm6614 = vcmp.eq.s32.totalorder %v4639, 4
      %vm6615 = vcmp.eq.s32.totalorder %v4640, 4
      %vm6616 = vcmp.eq.s32.totalorder %v4641, 4
      %vm6617 = vcmp.eq.s32.totalorder %v4642, 4
      %vm6618 = vcmp.eq.s32.totalorder %v4643, 4
      %vm6619 = vcmp.eq.s32.totalorder %v4644, 4
      %v6620 = vsel %vm6604, %v4711, 0.0
      %v6621 = vsel %vm6605, %v4712, 0.0
      %v6622 = vsel %vm6606, %v4713, 0.0
      %v6623 = vsel %vm6607, %v4714, 0.0
      %v6624 = vsel %vm6608, %v4715, 0.0
      %v6625 = vsel %vm6609, %v4716, 0.0
      %v6626 = vsel %vm6610, %v4717, 0.0
      %v6627 = vsel %vm6611, %v4718, 0.0
      %v6628 = vsel %vm6612, %v4719, 0.0
      %v6629 = vsel %vm6613, %v4720, 0.0
      %v6630 = vsel %vm6614, %v4721, 0.0
      %v6631 = vsel %vm6615, %v4722, 0.0
      %v6632 = vsel %vm6616, %v4723, 0.0
      %v6633 = vsel %vm6617, %v4724, 0.0
      %v6634 = vsel %vm6618, %v4725, 0.0
      %v6635 = vsel %vm6619, %v4726, 0.0
      %v6636 = vsel %vm6299, %v4613, 0.0
      %v6637 = vsel %vm6300, %v4614, 0.0
      %v6638 = vsel %vm6301, %v4615, 0.0
      %v6639 = vsel %vm6302, %v4616, 0.0
      %v6640 = vsel %vm6303, %v4617, 0.0
      %v6641 = vsel %vm6304, %v4618, 0.0
      %v6642 = vsel %vm6305, %v4619, 0.0
      %v6643 = vsel %vm6306, %v4620, 0.0
      %v6644 = vsel %vm6307, %v4621, 0.0
      %v6645 = vsel %vm6308, %v4622, 0.0
      %v6646 = vsel %vm6309, %v4623, 0.0
      %v6647 = vsel %vm6310, %v4624, 0.0
      %v6648 = vsel %vm6311, %v4625, 0.0
      %v6649 = vsel %vm6312, %v4626, 0.0
      %v6650 = vsel %vm6313, %v4627, 0.0
      %v6651 = vsel %vm6314, %v4628, 0.0
      %v6652 = vadd.f32 %v6620, %v6636
      %v6653 = vadd.f32 %v6621, %v6637
      %v6654 = vadd.f32 %v6622, %v6638
      %v6655 = vadd.f32 %v6623, %v6639
      %v6656 = vadd.f32 %v6624, %v6640
      %v6657 = vadd.f32 %v6625, %v6641
      %v6658 = vadd.f32 %v6626, %v6642
      %v6659 = vadd.f32 %v6627, %v6643
      %v6660 = vadd.f32 %v6628, %v6644
      %v6661 = vadd.f32 %v6629, %v6645
      %v6662 = vadd.f32 %v6630, %v6646
      %v6663 = vadd.f32 %v6631, %v6647
      %v6664 = vadd.f32 %v6632, %v6648
      %v6665 = vadd.f32 %v6633, %v6649
      %v6666 = vadd.f32 %v6634, %v6650
      %v6667 = vadd.f32 %v6635, %v6651
      %v6668 = vld [vmem:[%s6 + $0x80] sm:$0xf]
      %v6669 = vld [vmem:[%s6 + $0x84] sm:$0xf]
      %v6670 = vld [vmem:[%s6 + $0x88] sm:$0xf]
      %v6671 = vld [vmem:[%s6 + $0x8c] sm:$0xf]
      %v6672 = vld [vmem:[%s6 + $0x90] sm:$0xf]
      %v6673 = vld [vmem:[%s6 + $0x94] sm:$0xf]
      %v6674 = vld [vmem:[%s6 + $0x98] sm:$0xf]
      %v6675 = vld [vmem:[%s6 + $0x9c] sm:$0xf]
      %v6684 = vunpack.c.l.b16 %v6668
      %v6685 = vunpack.c.l.b16 %v6669
      %v6686 = vunpack.c.l.b16 %v6670
      %v6687 = vunpack.c.l.b16 %v6671
      %v6688 = vunpack.c.l.b16 %v6672
      %v6689 = vunpack.c.l.b16 %v6673
      %v6690 = vunpack.c.l.b16 %v6674
      %v6691 = vunpack.c.l.b16 %v6675
      %v6692 = vpack.c.b16 %v6685, %v6684
      %v6693 = vpack.c.b16 %v6687, %v6686
      %v6694 = vpack.c.b16 %v6689, %v6688
      %v6695 = vpack.c.b16 %v6691, %v6690
      %6700 = vmatprep.subr.bf16.mxu0 0
      %6701 = vmatpush1.bf16.msra.mxu0 0
      %6702 = vmatprep.subr.bf16.mxu0 0
      %6703 = vmatpush1.bf16.msra.mxu0 0
      %6704 = vmatprep.subr.bf16.mxu0 0
      %6705 = vmatpush1.bf16.msra.mxu0 0
      %6706 = vmatprep.subr.bf16.mxu0 0
      %6707 = vmatpush1.bf16.msra.mxu0 0
      %6708 = vmatprep.subr.bf16.mxu0 0
      %6709 = vmatpush1.bf16.msra.mxu0 %v6695
      %6710 = vmatprep.subr.bf16.mxu0 0
      %6711 = vmatpush1.bf16.msra.mxu0 %v6694
      %6712 = vmatprep.subr.bf16.mxu0 0
      %6713 = vmatpush1.bf16.msra.mxu0 %v6693
      %6714 = vmatprep.subr.bf16.mxu0 0
      %6715 = vmatpush1.bf16.msra.mxu0 %v6692
      %6716 = vmatprep.subr.bf16.mxu0 0
      %6717 = vmatpush2.bf16.msra.mxu0 0
      %6718 = vmatprep.subr.bf16.mxu0 0
      %6719 = vmatpush2.bf16.msra.mxu0 0
      %6720 = vmatprep.subr.bf16.mxu0 0
      %6721 = vmatpush2.bf16.msra.mxu0 0
      %6722 = vmatprep.subr.bf16.mxu0 0
      %6723 = vmatpush2.bf16.msra.mxu0 0
      %6724 = vmatprep.subr.bf16.mxu0 0
      %6725 = vmatpush2.bf16.msra.mxu0 0
      %6726 = vmatprep.subr.bf16.mxu0 0
      %6727 = vmatpush2.bf16.msra.mxu0 0
      %6728 = vmatprep.subr.bf16.mxu0 0
      %6729 = vmatpush2.bf16.msra.mxu0 0
      %6730 = vmatprep.subr.bf16.mxu0 0
      %6731 = vmatpush2.bf16.msra.mxu0 0
      %6732 = vmatprep.mubr.bf16.mxu0 0
      %6733 = vmatmul.mubr.bf16.gmra.mxu0 %v5457
      %v6734 = vpop.f32.mrf.mxu0
      %v6735 = vadd.f32 0.0, %v6734
      %v6736 = vpop.f32.mrf.mxu0
      %v6737 = vpop.f32.mrf.mxu0
      %v6738 = vadd.f32 0.0, %v6737
      %v6739 = vpop.f32.mrf.mxu0
      %6740 = vmatprep.mubr.bf16.mxu0 0
      %6741 = vmatmul.mubr.bf16.gmra.mxu0 %v5460
      %v6742 = vpop.f32.mrf.mxu0
      %v6743 = vadd.f32 0.0, %v6742
      %v6744 = vpop.f32.mrf.mxu0
      %v6745 = vpop.f32.mrf.mxu0
      %v6746 = vadd.f32 0.0, %v6745
      %v6747 = vpop.f32.mrf.mxu0
      %6748 = vmatprep.mubr.bf16.mxu0 0
      %6749 = vmatmul.mubr.bf16.gmra.mxu0 %v5463
      %v6750 = vpop.f32.mrf.mxu0
      %v6751 = vadd.f32 0.0, %v6750
      %v6752 = vpop.f32.mrf.mxu0
      %v6753 = vpop.f32.mrf.mxu0
      %v6754 = vadd.f32 0.0, %v6753
      %v6755 = vpop.f32.mrf.mxu0
      %6756 = vmatprep.mubr.bf16.mxu0 0
      %6757 = vmatmul.mubr.bf16.gmra.mxu0 %v5466
      %v6758 = vpop.f32.mrf.mxu0
      %v6759 = vadd.f32 0.0, %v6758
      %v6760 = vpop.f32.mrf.mxu0
      %v6761 = vpop.f32.mrf.mxu0
      %v6762 = vadd.f32 0.0, %v6761
      %v6763 = vpop.f32.mrf.mxu0
      %6764 = vmatprep.mubr.bf16.mxu0 0
      %6765 = vmatmul.mubr.bf16.gmra.mxu0 %v5469
      %v6766 = vpop.f32.mrf.mxu0
      %v6767 = vadd.f32 0.0, %v6766
      %v6768 = vpop.f32.mrf.mxu0
      %v6769 = vpop.f32.mrf.mxu0
      %v6770 = vadd.f32 0.0, %v6769
      %v6771 = vpop.f32.mrf.mxu0
      %6772 = vmatprep.mubr.bf16.mxu0 0
      %6773 = vmatmul.mubr.bf16.gmra.mxu0 %v5472
      %v6774 = vpop.f32.mrf.mxu0
      %v6775 = vadd.f32 0.0, %v6774
      %v6776 = vpop.f32.mrf.mxu0
      %v6777 = vpop.f32.mrf.mxu0
      %v6778 = vadd.f32 0.0, %v6777
      %v6779 = vpop.f32.mrf.mxu0
      %6780 = vmatprep.mubr.bf16.mxu0 0
      %6781 = vmatmul.mubr.bf16.gmra.mxu0 %v5475
      %v6782 = vpop.f32.mrf.mxu0
      %v6783 = vadd.f32 0.0, %v6782
      %v6784 = vpop.f32.mrf.mxu0
      %v6785 = vpop.f32.mrf.mxu0
      %v6786 = vadd.f32 0.0, %v6785
      %v6787 = vpop.f32.mrf.mxu0
      %6788 = vmatprep.mubr.bf16.mxu0 0
      %6789 = vmatmul.mubr.bf16.gmra.mxu0 %v5478
      %v6790 = vpop.f32.mrf.mxu0
      %v6791 = vadd.f32 0.0, %v6790
      %v6792 = vpop.f32.mrf.mxu0
      %v6793 = vpop.f32.mrf.mxu0
      %v6794 = vadd.f32 0.0, %v6793
      %v6795 = vpop.f32.mrf.mxu0
      %6796 = vdwg.mxu0
      %6798 = vset.pattern.permute.xlu0 0
      %6799 = vperm.xlu0 %6798, %v6652
      %v6800 = vpop.permute.xlu0 %6799
      %6803 = vset.pattern.permute.xlu0 0
      %6804 = vperm.xlu0 %6803, %v6653
      %v6805 = vpop.permute.xlu0 %6804
      %6808 = vset.pattern.permute.xlu0 0
      %6809 = vperm.xlu0 %6808, %v6654
      %v6810 = vpop.permute.xlu0 %6809
      %6813 = vset.pattern.permute.xlu0 0
      %6814 = vperm.xlu0 %6813, %v6655
      %v6815 = vpop.permute.xlu0 %6814
      %6818 = vset.pattern.permute.xlu0 0
      %6819 = vperm.xlu0 %6818, %v6656
      %v6820 = vpop.permute.xlu0 %6819
      %6823 = vset.pattern.permute.xlu0 0
      %6824 = vperm.xlu0 %6823, %v6657
      %v6825 = vpop.permute.xlu0 %6824
      %6828 = vset.pattern.permute.xlu0 0
      %6829 = vperm.xlu0 %6828, %v6658
      %v6830 = vpop.permute.xlu0 %6829
      %6833 = vset.pattern.permute.xlu0 0
      %6834 = vperm.xlu0 %6833, %v6659
      %v6835 = vpop.permute.xlu0 %6834
      %6838 = vset.pattern.permute.xlu0 0
      %6839 = vperm.xlu0 %6838, %v6660
      %v6840 = vpop.permute.xlu0 %6839
      %6843 = vset.pattern.permute.xlu0 0
      %6844 = vperm.xlu0 %6843, %v6661
      %v6845 = vpop.permute.xlu0 %6844
      %6848 = vset.pattern.permute.xlu0 0
      %6849 = vperm.xlu0 %6848, %v6662
      %v6850 = vpop.permute.xlu0 %6849
      %6853 = vset.pattern.permute.xlu0 0
      %6854 = vperm.xlu0 %6853, %v6663
      %v6855 = vpop.permute.xlu0 %6854
      %6858 = vset.pattern.permute.xlu0 0
      %6859 = vperm.xlu0 %6858, %v6664
      %v6860 = vpop.permute.xlu0 %6859
      %6863 = vset.pattern.permute.xlu0 0
      %6864 = vperm.xlu0 %6863, %v6665
      %v6865 = vpop.permute.xlu0 %6864
      %6868 = vset.pattern.permute.xlu0 0
      %6869 = vperm.xlu0 %6868, %v6666
      %v6870 = vpop.permute.xlu0 %6869
      %6873 = vset.pattern.permute.xlu0 0
      %6874 = vperm.xlu0 %6873, %v6667
      %v6875 = vpop.permute.xlu0 %6874
      %v6877 = vmul.f32 %v6800, %v6735
      %v6878 = vmul.f32 %v6805, %v6738
      %v6879 = vmul.f32 %v6810, %v6743
      %v6880 = vmul.f32 %v6815, %v6746
      %v6881 = vmul.f32 %v6820, %v6751
      %v6882 = vmul.f32 %v6825, %v6754
      %v6883 = vmul.f32 %v6830, %v6759
      %v6884 = vmul.f32 %v6835, %v6762
      %v6885 = vmul.f32 %v6840, %v6767
      %v6886 = vmul.f32 %v6845, %v6770
      %v6887 = vmul.f32 %v6850, %v6775
      %v6888 = vmul.f32 %v6855, %v6778
      %v6889 = vmul.f32 %v6860, %v6783
      %v6890 = vmul.f32 %v6865, %v6786
      %v6891 = vmul.f32 %v6870, %v6791
      %v6892 = vmul.f32 %v6875, %v6794
      %v6893 = vadd.f32 %v6588, %v6877
      %v6894 = vadd.f32 %v6589, %v6878
      %v6895 = vadd.f32 %v6590, %v6879
      %v6896 = vadd.f32 %v6591, %v6880
      %v6897 = vadd.f32 %v6592, %v6881
      %v6898 = vadd.f32 %v6593, %v6882
      %v6899 = vadd.f32 %v6594, %v6883
      %v6900 = vadd.f32 %v6595, %v6884
      %v6901 = vadd.f32 %v6596, %v6885
      %v6902 = vadd.f32 %v6597, %v6886
      %v6903 = vadd.f32 %v6598, %v6887
      %v6904 = vadd.f32 %v6599, %v6888
      %v6905 = vadd.f32 %v6600, %v6889
      %v6906 = vadd.f32 %v6601, %v6890
      %v6907 = vadd.f32 %v6602, %v6891
      %v6908 = vadd.f32 %v6603, %v6892
      %vm6909 = vcmp.eq.s32.totalorder %v4629, 5
      %vm6910 = vcmp.eq.s32.totalorder %v4630, 5
      %vm6911 = vcmp.eq.s32.totalorder %v4631, 5
      %vm6912 = vcmp.eq.s32.totalorder %v4632, 5
      %vm6913 = vcmp.eq.s32.totalorder %v4633, 5
      %vm6914 = vcmp.eq.s32.totalorder %v4634, 5
      %vm6915 = vcmp.eq.s32.totalorder %v4635, 5
      %vm6916 = vcmp.eq.s32.totalorder %v4636, 5
      %vm6917 = vcmp.eq.s32.totalorder %v4637, 5
      %vm6918 = vcmp.eq.s32.totalorder %v4638, 5
      %vm6919 = vcmp.eq.s32.totalorder %v4639, 5
      %vm6920 = vcmp.eq.s32.totalorder %v4640, 5
      %vm6921 = vcmp.eq.s32.totalorder %v4641, 5
      %vm6922 = vcmp.eq.s32.totalorder %v4642, 5
      %vm6923 = vcmp.eq.s32.totalorder %v4643, 5
      %vm6924 = vcmp.eq.s32.totalorder %v4644, 5
      %v6925 = vsel %vm6909, %v4711, 0.0
      %v6926 = vsel %vm6910, %v4712, 0.0
      %v6927 = vsel %vm6911, %v4713, 0.0
      %v6928 = vsel %vm6912, %v4714, 0.0
      %v6929 = vsel %vm6913, %v4715, 0.0
      %v6930 = vsel %vm6914, %v4716, 0.0
      %v6931 = vsel %vm6915, %v4717, 0.0
      %v6932 = vsel %vm6916, %v4718, 0.0
      %v6933 = vsel %vm6917, %v4719, 0.0
      %v6934 = vsel %vm6918, %v4720, 0.0
      %v6935 = vsel %vm6919, %v4721, 0.0
      %v6936 = vsel %vm6920, %v4722, 0.0
      %v6937 = vsel %vm6921, %v4723, 0.0
      %v6938 = vsel %vm6922, %v4724, 0.0
      %v6939 = vsel %vm6923, %v4725, 0.0
      %v6940 = vsel %vm6924, %v4726, 0.0
      %v6941 = vsel %vm6604, %v4613, 0.0
      %v6942 = vsel %vm6605, %v4614, 0.0
      %v6943 = vsel %vm6606, %v4615, 0.0
      %v6944 = vsel %vm6607, %v4616, 0.0
      %v6945 = vsel %vm6608, %v4617, 0.0
      %v6946 = vsel %vm6609, %v4618, 0.0
      %v6947 = vsel %vm6610, %v4619, 0.0
      %v6948 = vsel %vm6611, %v4620, 0.0
      %v6949 = vsel %vm6612, %v4621, 0.0
      %v6950 = vsel %vm6613, %v4622, 0.0
      %v6951 = vsel %vm6614, %v4623, 0.0
      %v6952 = vsel %vm6615, %v4624, 0.0
      %v6953 = vsel %vm6616, %v4625, 0.0
      %v6954 = vsel %vm6617, %v4626, 0.0
      %v6955 = vsel %vm6618, %v4627, 0.0
      %v6956 = vsel %vm6619, %v4628, 0.0
      %v6957 = vadd.f32 %v6925, %v6941
      %v6958 = vadd.f32 %v6926, %v6942
      %v6959 = vadd.f32 %v6927, %v6943
      %v6960 = vadd.f32 %v6928, %v6944
      %v6961 = vadd.f32 %v6929, %v6945
      %v6962 = vadd.f32 %v6930, %v6946
      %v6963 = vadd.f32 %v6931, %v6947
      %v6964 = vadd.f32 %v6932, %v6948
      %v6965 = vadd.f32 %v6933, %v6949
      %v6966 = vadd.f32 %v6934, %v6950
      %v6967 = vadd.f32 %v6935, %v6951
      %v6968 = vadd.f32 %v6936, %v6952
      %v6969 = vadd.f32 %v6937, %v6953
      %v6970 = vadd.f32 %v6938, %v6954
      %v6971 = vadd.f32 %v6939, %v6955
      %v6972 = vadd.f32 %v6940, %v6956
      %v6973 = vld [vmem:[%s6 + $0xa0] sm:$0xf]
      %v6974 = vld [vmem:[%s6 + $0xa4] sm:$0xf]
      %v6975 = vld [vmem:[%s6 + $0xa8] sm:$0xf]
      %v6976 = vld [vmem:[%s6 + $0xac] sm:$0xf]
      %v6977 = vld [vmem:[%s6 + $0xb0] sm:$0xf]
      %v6978 = vld [vmem:[%s6 + $0xb4] sm:$0xf]
      %v6979 = vld [vmem:[%s6 + $0xb8] sm:$0xf]
      %v6980 = vld [vmem:[%s6 + $0xbc] sm:$0xf]
      %v6989 = vunpack.c.l.b16 %v6973
      %v6990 = vunpack.c.l.b16 %v6974
      %v6991 = vunpack.c.l.b16 %v6975
      %v6992 = vunpack.c.l.b16 %v6976
      %v6993 = vunpack.c.l.b16 %v6977
      %v6994 = vunpack.c.l.b16 %v6978
      %v6995 = vunpack.c.l.b16 %v6979
      %v6996 = vunpack.c.l.b16 %v6980
      %v6997 = vpack.c.b16 %v6990, %v6989
      %v6998 = vpack.c.b16 %v6992, %v6991
      %v6999 = vpack.c.b16 %v6994, %v6993
      %v7000 = vpack.c.b16 %v6996, %v6995
      %7005 = vmatprep.subr.bf16.mxu0 0
      %7006 = vmatpush1.bf16.msra.mxu0 0
      %7007 = vmatprep.subr.bf16.mxu0 0
      %7008 = vmatpush1.bf16.msra.mxu0 0
      %7009 = vmatprep.subr.bf16.mxu0 0
      %7010 = vmatpush1.bf16.msra.mxu0 0
      %7011 = vmatprep.subr.bf16.mxu0 0
      %7012 = vmatpush1.bf16.msra.mxu0 0
      %7013 = vmatprep.subr.bf16.mxu0 0
      %7014 = vmatpush1.bf16.msra.mxu0 %v7000
      %7015 = vmatprep.subr.bf16.mxu0 0
      %7016 = vmatpush1.bf16.msra.mxu0 %v6999
      %7017 = vmatprep.subr.bf16.mxu0 0
      %7018 = vmatpush1.bf16.msra.mxu0 %v6998
      %7019 = vmatprep.subr.bf16.mxu0 0
      %7020 = vmatpush1.bf16.msra.mxu0 %v6997
      %7021 = vmatprep.subr.bf16.mxu0 0
      %7022 = vmatpush2.bf16.msra.mxu0 0
      %7023 = vmatprep.subr.bf16.mxu0 0
      %7024 = vmatpush2.bf16.msra.mxu0 0
      %7025 = vmatprep.subr.bf16.mxu0 0
      %7026 = vmatpush2.bf16.msra.mxu0 0
      %7027 = vmatprep.subr.bf16.mxu0 0
      %7028 = vmatpush2.bf16.msra.mxu0 0
      %7029 = vmatprep.subr.bf16.mxu0 0
      %7030 = vmatpush2.bf16.msra.mxu0 0
      %7031 = vmatprep.subr.bf16.mxu0 0
      %7032 = vmatpush2.bf16.msra.mxu0 0
      %7033 = vmatprep.subr.bf16.mxu0 0
      %7034 = vmatpush2.bf16.msra.mxu0 0
      %7035 = vmatprep.subr.bf16.mxu0 0
      %7036 = vmatpush2.bf16.msra.mxu0 0
      %7037 = vmatprep.mubr.bf16.mxu0 0
      %7038 = vmatmul.mubr.bf16.gmra.mxu0 %v5457
      %v7039 = vpop.f32.mrf.mxu0
      %v7040 = vadd.f32 0.0, %v7039
      %v7041 = vpop.f32.mrf.mxu0
      %v7042 = vpop.f32.mrf.mxu0
      %v7043 = vadd.f32 0.0, %v7042
      %v7044 = vpop.f32.mrf.mxu0
      %7045 = vmatprep.mubr.bf16.mxu0 0
      %7046 = vmatmul.mubr.bf16.gmra.mxu0 %v5460
      %v7047 = vpop.f32.mrf.mxu0
      %v7048 = vadd.f32 0.0, %v7047
      %v7049 = vpop.f32.mrf.mxu0
      %v7050 = vpop.f32.mrf.mxu0
      %v7051 = vadd.f32 0.0, %v7050
      %v7052 = vpop.f32.mrf.mxu0
      %7053 = vmatprep.mubr.bf16.mxu0 0
      %7054 = vmatmul.mubr.bf16.gmra.mxu0 %v5463
      %v7055 = vpop.f32.mrf.mxu0
      %v7056 = vadd.f32 0.0, %v7055
      %v7057 = vpop.f32.mrf.mxu0
      %v7058 = vpop.f32.mrf.mxu0
      %v7059 = vadd.f32 0.0, %v7058
      %v7060 = vpop.f32.mrf.mxu0
      %7061 = vmatprep.mubr.bf16.mxu0 0
      %7062 = vmatmul.mubr.bf16.gmra.mxu0 %v5466
      %v7063 = vpop.f32.mrf.mxu0
      %v7064 = vadd.f32 0.0, %v7063
      %v7065 = vpop.f32.mrf.mxu0
      %v7066 = vpop.f32.mrf.mxu0
      %v7067 = vadd.f32 0.0, %v7066
      %v7068 = vpop.f32.mrf.mxu0
      %7069 = vmatprep.mubr.bf16.mxu0 0
      %7070 = vmatmul.mubr.bf16.gmra.mxu0 %v5469
      %v7071 = vpop.f32.mrf.mxu0
      %v7072 = vadd.f32 0.0, %v7071
      %v7073 = vpop.f32.mrf.mxu0
      %v7074 = vpop.f32.mrf.mxu0
      %v7075 = vadd.f32 0.0, %v7074
      %v7076 = vpop.f32.mrf.mxu0
      %7077 = vmatprep.mubr.bf16.mxu0 0
      %7078 = vmatmul.mubr.bf16.gmra.mxu0 %v5472
      %v7079 = vpop.f32.mrf.mxu0
      %v7080 = vadd.f32 0.0, %v7079
      %v7081 = vpop.f32.mrf.mxu0
      %v7082 = vpop.f32.mrf.mxu0
      %v7083 = vadd.f32 0.0, %v7082
      %v7084 = vpop.f32.mrf.mxu0
      %7085 = vmatprep.mubr.bf16.mxu0 0
      %7086 = vmatmul.mubr.bf16.gmra.mxu0 %v5475
      %v7087 = vpop.f32.mrf.mxu0
      %v7088 = vadd.f32 0.0, %v7087
      %v7089 = vpop.f32.mrf.mxu0
      %v7090 = vpop.f32.mrf.mxu0
      %v7091 = vadd.f32 0.0, %v7090
      %v7092 = vpop.f32.mrf.mxu0
      %7093 = vmatprep.mubr.bf16.mxu0 0
      %7094 = vmatmul.mubr.bf16.gmra.mxu0 %v5478
      %v7095 = vpop.f32.mrf.mxu0
      %v7096 = vadd.f32 0.0, %v7095
      %v7097 = vpop.f32.mrf.mxu0
      %v7098 = vpop.f32.mrf.mxu0
      %v7099 = vadd.f32 0.0, %v7098
      %v7100 = vpop.f32.mrf.mxu0
      %7101 = vdwg.mxu0
      %7103 = vset.pattern.permute.xlu0 0
      %7104 = vperm.xlu0 %7103, %v6957
      %v7105 = vpop.permute.xlu0 %7104
      %7108 = vset.pattern.permute.xlu0 0
      %7109 = vperm.xlu0 %7108, %v6958
      %v7110 = vpop.permute.xlu0 %7109
      %7113 = vset.pattern.permute.xlu0 0
      %7114 = vperm.xlu0 %7113, %v6959
      %v7115 = vpop.permute.xlu0 %7114
      %7118 = vset.pattern.permute.xlu0 0
      %7119 = vperm.xlu0 %7118, %v6960
      %v7120 = vpop.permute.xlu0 %7119
      %7123 = vset.pattern.permute.xlu0 0
      %7124 = vperm.xlu0 %7123, %v6961
      %v7125 = vpop.permute.xlu0 %7124
      %7128 = vset.pattern.permute.xlu0 0
      %7129 = vperm.xlu0 %7128, %v6962
      %v7130 = vpop.permute.xlu0 %7129
      %7133 = vset.pattern.permute.xlu0 0
      %7134 = vperm.xlu0 %7133, %v6963
      %v7135 = vpop.permute.xlu0 %7134
      %7138 = vset.pattern.permute.xlu0 0
      %7139 = vperm.xlu0 %7138, %v6964
      %v7140 = vpop.permute.xlu0 %7139
      %7143 = vset.pattern.permute.xlu0 0
      %7144 = vperm.xlu0 %7143, %v6965
      %v7145 = vpop.permute.xlu0 %7144
      %7148 = vset.pattern.permute.xlu0 0
      %7149 = vperm.xlu0 %7148, %v6966
      %v7150 = vpop.permute.xlu0 %7149
      %7153 = vset.pattern.permute.xlu0 0
      %7154 = vperm.xlu0 %7153, %v6967
      %v7155 = vpop.permute.xlu0 %7154
      %7158 = vset.pattern.permute.xlu0 0
      %7159 = vperm.xlu0 %7158, %v6968
      %v7160 = vpop.permute.xlu0 %7159
      %7163 = vset.pattern.permute.xlu0 0
      %7164 = vperm.xlu0 %7163, %v6969
      %v7165 = vpop.permute.xlu0 %7164
      %7168 = vset.pattern.permute.xlu0 0
      %7169 = vperm.xlu0 %7168, %v6970
      %v7170 = vpop.permute.xlu0 %7169
      %7173 = vset.pattern.permute.xlu0 0
      %7174 = vperm.xlu0 %7173, %v6971
      %v7175 = vpop.permute.xlu0 %7174
      %7178 = vset.pattern.permute.xlu0 0
      %7179 = vperm.xlu0 %7178, %v6972
      %v7180 = vpop.permute.xlu0 %7179
      %v7182 = vmul.f32 %v7105, %v7040
      %v7183 = vmul.f32 %v7110, %v7043
      %v7184 = vmul.f32 %v7115, %v7048
      %v7185 = vmul.f32 %v7120, %v7051
      %v7186 = vmul.f32 %v7125, %v7056
      %v7187 = vmul.f32 %v7130, %v7059
      %v7188 = vmul.f32 %v7135, %v7064
      %v7189 = vmul.f32 %v7140, %v7067
      %v7190 = vmul.f32 %v7145, %v7072
      %v7191 = vmul.f32 %v7150, %v7075
      %v7192 = vmul.f32 %v7155, %v7080
      %v7193 = vmul.f32 %v7160, %v7083
      %v7194 = vmul.f32 %v7165, %v7088
      %v7195 = vmul.f32 %v7170, %v7091
      %v7196 = vmul.f32 %v7175, %v7096
      %v7197 = vmul.f32 %v7180, %v7099
      %v7198 = vadd.f32 %v6893, %v7182
      %v7199 = vadd.f32 %v6894, %v7183
      %v7200 = vadd.f32 %v6895, %v7184
      %v7201 = vadd.f32 %v6896, %v7185
      %v7202 = vadd.f32 %v6897, %v7186
      %v7203 = vadd.f32 %v6898, %v7187
      %v7204 = vadd.f32 %v6899, %v7188
      %v7205 = vadd.f32 %v6900, %v7189
      %v7206 = vadd.f32 %v6901, %v7190
      %v7207 = vadd.f32 %v6902, %v7191
      %v7208 = vadd.f32 %v6903, %v7192
      %v7209 = vadd.f32 %v6904, %v7193
      %v7210 = vadd.f32 %v6905, %v7194
      %v7211 = vadd.f32 %v6906, %v7195
      %v7212 = vadd.f32 %v6907, %v7196
      %v7213 = vadd.f32 %v6908, %v7197
      %vm7214 = vcmp.eq.s32.totalorder %v4629, 6
      %vm7215 = vcmp.eq.s32.totalorder %v4630, 6
      %vm7216 = vcmp.eq.s32.totalorder %v4631, 6
      %vm7217 = vcmp.eq.s32.totalorder %v4632, 6
      %vm7218 = vcmp.eq.s32.totalorder %v4633, 6
      %vm7219 = vcmp.eq.s32.totalorder %v4634, 6
      %vm7220 = vcmp.eq.s32.totalorder %v4635, 6
      %vm7221 = vcmp.eq.s32.totalorder %v4636, 6
      %vm7222 = vcmp.eq.s32.totalorder %v4637, 6
      %vm7223 = vcmp.eq.s32.totalorder %v4638, 6
      %vm7224 = vcmp.eq.s32.totalorder %v4639, 6
      %vm7225 = vcmp.eq.s32.totalorder %v4640, 6
      %vm7226 = vcmp.eq.s32.totalorder %v4641, 6
      %vm7227 = vcmp.eq.s32.totalorder %v4642, 6
      %vm7228 = vcmp.eq.s32.totalorder %v4643, 6
      %vm7229 = vcmp.eq.s32.totalorder %v4644, 6
      %v7230 = vsel %vm7214, %v4711, 0.0
      %v7231 = vsel %vm7215, %v4712, 0.0
      %v7232 = vsel %vm7216, %v4713, 0.0
      %v7233 = vsel %vm7217, %v4714, 0.0
      %v7234 = vsel %vm7218, %v4715, 0.0
      %v7235 = vsel %vm7219, %v4716, 0.0
      %v7236 = vsel %vm7220, %v4717, 0.0
      %v7237 = vsel %vm7221, %v4718, 0.0
      %v7238 = vsel %vm7222, %v4719, 0.0
      %v7239 = vsel %vm7223, %v4720, 0.0
      %v7240 = vsel %vm7224, %v4721, 0.0
      %v7241 = vsel %vm7225, %v4722, 0.0
      %v7242 = vsel %vm7226, %v4723, 0.0
      %v7243 = vsel %vm7227, %v4724, 0.0
      %v7244 = vsel %vm7228, %v4725, 0.0
      %v7245 = vsel %vm7229, %v4726, 0.0
      %v7246 = vsel %vm6909, %v4613, 0.0
      %v7247 = vsel %vm6910, %v4614, 0.0
      %v7248 = vsel %vm6911, %v4615, 0.0
      %v7249 = vsel %vm6912, %v4616, 0.0
      %v7250 = vsel %vm6913, %v4617, 0.0
      %v7251 = vsel %vm6914, %v4618, 0.0
      %v7252 = vsel %vm6915, %v4619, 0.0
      %v7253 = vsel %vm6916, %v4620, 0.0
      %v7254 = vsel %vm6917, %v4621, 0.0
      %v7255 = vsel %vm6918, %v4622, 0.0
      %v7256 = vsel %vm6919, %v4623, 0.0
      %v7257 = vsel %vm6920, %v4624, 0.0
      %v7258 = vsel %vm6921, %v4625, 0.0
      %v7259 = vsel %vm6922, %v4626, 0.0
      %v7260 = vsel %vm6923, %v4627, 0.0
      %v7261 = vsel %vm6924, %v4628, 0.0
      %v7262 = vadd.f32 %v7230, %v7246
      %v7263 = vadd.f32 %v7231, %v7247
      %v7264 = vadd.f32 %v7232, %v7248
      %v7265 = vadd.f32 %v7233, %v7249
      %v7266 = vadd.f32 %v7234, %v7250
      %v7267 = vadd.f32 %v7235, %v7251
      %v7268 = vadd.f32 %v7236, %v7252
      %v7269 = vadd.f32 %v7237, %v7253
      %v7270 = vadd.f32 %v7238, %v7254
      %v7271 = vadd.f32 %v7239, %v7255
      %v7272 = vadd.f32 %v7240, %v7256
      %v7273 = vadd.f32 %v7241, %v7257
      %v7274 = vadd.f32 %v7242, %v7258
      %v7275 = vadd.f32 %v7243, %v7259
      %v7276 = vadd.f32 %v7244, %v7260
      %v7277 = vadd.f32 %v7245, %v7261
      %v7278 = vld [vmem:[%s6 + $0xc0] sm:$0xf]
      %v7279 = vld [vmem:[%s6 + $0xc4] sm:$0xf]
      %v7280 = vld [vmem:[%s6 + $0xc8] sm:$0xf]
      %v7281 = vld [vmem:[%s6 + $0xcc] sm:$0xf]
      %v7282 = vld [vmem:[%s6 + $0xd0] sm:$0xf]
      %v7283 = vld [vmem:[%s6 + $0xd4] sm:$0xf]
      %v7284 = vld [vmem:[%s6 + $0xd8] sm:$0xf]
      %v7285 = vld [vmem:[%s6 + $0xdc] sm:$0xf]
      %v7294 = vunpack.c.l.b16 %v7278
      %v7295 = vunpack.c.l.b16 %v7279
      %v7296 = vunpack.c.l.b16 %v7280
      %v7297 = vunpack.c.l.b16 %v7281
      %v7298 = vunpack.c.l.b16 %v7282
      %v7299 = vunpack.c.l.b16 %v7283
      %v7300 = vunpack.c.l.b16 %v7284
      %v7301 = vunpack.c.l.b16 %v7285
      %v7302 = vpack.c.b16 %v7295, %v7294
      %v7303 = vpack.c.b16 %v7297, %v7296
      %v7304 = vpack.c.b16 %v7299, %v7298
      %v7305 = vpack.c.b16 %v7301, %v7300
      %7310 = vmatprep.subr.bf16.mxu0 0
      %7311 = vmatpush1.bf16.msra.mxu0 0
      %7312 = vmatprep.subr.bf16.mxu0 0
      %7313 = vmatpush1.bf16.msra.mxu0 0
      %7314 = vmatprep.subr.bf16.mxu0 0
      %7315 = vmatpush1.bf16.msra.mxu0 0
      %7316 = vmatprep.subr.bf16.mxu0 0
      %7317 = vmatpush1.bf16.msra.mxu0 0
      %7318 = vmatprep.subr.bf16.mxu0 0
      %7319 = vmatpush1.bf16.msra.mxu0 %v7305
      %7320 = vmatprep.subr.bf16.mxu0 0
      %7321 = vmatpush1.bf16.msra.mxu0 %v7304
      %7322 = vmatprep.subr.bf16.mxu0 0
      %7323 = vmatpush1.bf16.msra.mxu0 %v7303
      %7324 = vmatprep.subr.bf16.mxu0 0
      %7325 = vmatpush1.bf16.msra.mxu0 %v7302
      %7326 = vmatprep.subr.bf16.mxu0 0
      %7327 = vmatpush2.bf16.msra.mxu0 0
      %7328 = vmatprep.subr.bf16.mxu0 0
      %7329 = vmatpush2.bf16.msra.mxu0 0
      %7330 = vmatprep.subr.bf16.mxu0 0
      %7331 = vmatpush2.bf16.msra.mxu0 0
      %7332 = vmatprep.subr.bf16.mxu0 0
      %7333 = vmatpush2.bf16.msra.mxu0 0
      %7334 = vmatprep.subr.bf16.mxu0 0
      %7335 = vmatpush2.bf16.msra.mxu0 0
      %7336 = vmatprep.subr.bf16.mxu0 0
      %7337 = vmatpush2.bf16.msra.mxu0 0
      %7338 = vmatprep.subr.bf16.mxu0 0
      %7339 = vmatpush2.bf16.msra.mxu0 0
      %7340 = vmatprep.subr.bf16.mxu0 0
      %7341 = vmatpush2.bf16.msra.mxu0 0
      %7342 = vmatprep.mubr.bf16.mxu0 0
      %7343 = vmatmul.mubr.bf16.gmra.mxu0 %v5457
      %v7344 = vpop.f32.mrf.mxu0
      %v7345 = vadd.f32 0.0, %v7344
      %v7346 = vpop.f32.mrf.mxu0
      %v7347 = vpop.f32.mrf.mxu0
      %v7348 = vadd.f32 0.0, %v7347
      %v7349 = vpop.f32.mrf.mxu0
      %7350 = vmatprep.mubr.bf16.mxu0 0
      %7351 = vmatmul.mubr.bf16.gmra.mxu0 %v5460
      %v7352 = vpop.f32.mrf.mxu0
      %v7353 = vadd.f32 0.0, %v7352
      %v7354 = vpop.f32.mrf.mxu0
      %v7355 = vpop.f32.mrf.mxu0
      %v7356 = vadd.f32 0.0, %v7355
      %v7357 = vpop.f32.mrf.mxu0
      %7358 = vmatprep.mubr.bf16.mxu0 0
      %7359 = vmatmul.mubr.bf16.gmra.mxu0 %v5463
      %v7360 = vpop.f32.mrf.mxu0
      %v7361 = vadd.f32 0.0, %v7360
      %v7362 = vpop.f32.mrf.mxu0
      %v7363 = vpop.f32.mrf.mxu0
      %v7364 = vadd.f32 0.0, %v7363
      %v7365 = vpop.f32.mrf.mxu0
      %7366 = vmatprep.mubr.bf16.mxu0 0
      %7367 = vmatmul.mubr.bf16.gmra.mxu0 %v5466
      %v7368 = vpop.f32.mrf.mxu0
      %v7369 = vadd.f32 0.0, %v7368
      %v7370 = vpop.f32.mrf.mxu0
      %v7371 = vpop.f32.mrf.mxu0
      %v7372 = vadd.f32 0.0, %v7371
      %v7373 = vpop.f32.mrf.mxu0
      %7374 = vmatprep.mubr.bf16.mxu0 0
      %7375 = vmatmul.mubr.bf16.gmra.mxu0 %v5469
      %v7376 = vpop.f32.mrf.mxu0
      %v7377 = vadd.f32 0.0, %v7376
      %v7378 = vpop.f32.mrf.mxu0
      %v7379 = vpop.f32.mrf.mxu0
      %v7380 = vadd.f32 0.0, %v7379
      %v7381 = vpop.f32.mrf.mxu0
      %7382 = vmatprep.mubr.bf16.mxu0 0
      %7383 = vmatmul.mubr.bf16.gmra.mxu0 %v5472
      %v7384 = vpop.f32.mrf.mxu0
      %v7385 = vadd.f32 0.0, %v7384
      %v7386 = vpop.f32.mrf.mxu0
      %v7387 = vpop.f32.mrf.mxu0
      %v7388 = vadd.f32 0.0, %v7387
      %v7389 = vpop.f32.mrf.mxu0
      %7390 = vmatprep.mubr.bf16.mxu0 0
      %7391 = vmatmul.mubr.bf16.gmra.mxu0 %v5475
      %v7392 = vpop.f32.mrf.mxu0
      %v7393 = vadd.f32 0.0, %v7392
      %v7394 = vpop.f32.mrf.mxu0
      %v7395 = vpop.f32.mrf.mxu0
      %v7396 = vadd.f32 0.0, %v7395
      %v7397 = vpop.f32.mrf.mxu0
      %7398 = vmatprep.mubr.bf16.mxu0 0
      %7399 = vmatmul.mubr.bf16.gmra.mxu0 %v5478
      %v7400 = vpop.f32.mrf.mxu0
      %v7401 = vadd.f32 0.0, %v7400
      %v7402 = vpop.f32.mrf.mxu0
      %v7403 = vpop.f32.mrf.mxu0
      %v7404 = vadd.f32 0.0, %v7403
      %v7405 = vpop.f32.mrf.mxu0
      %7406 = vdwg.mxu0
      %7408 = vset.pattern.permute.xlu0 0
      %7409 = vperm.xlu0 %7408, %v7262
      %v7410 = vpop.permute.xlu0 %7409
      %7413 = vset.pattern.permute.xlu0 0
      %7414 = vperm.xlu0 %7413, %v7263
      %v7415 = vpop.permute.xlu0 %7414
      %7418 = vset.pattern.permute.xlu0 0
      %7419 = vperm.xlu0 %7418, %v7264
      %v7420 = vpop.permute.xlu0 %7419
      %7423 = vset.pattern.permute.xlu0 0
      %7424 = vperm.xlu0 %7423, %v7265
      %v7425 = vpop.permute.xlu0 %7424
      %7428 = vset.pattern.permute.xlu0 0
      %7429 = vperm.xlu0 %7428, %v7266
      %v7430 = vpop.permute.xlu0 %7429
      %7433 = vset.pattern.permute.xlu0 0
      %7434 = vperm.xlu0 %7433, %v7267
      %v7435 = vpop.permute.xlu0 %7434
      %7438 = vset.pattern.permute.xlu0 0
      %7439 = vperm.xlu0 %7438, %v7268
      %v7440 = vpop.permute.xlu0 %7439
      %7443 = vset.pattern.permute.xlu0 0
      %7444 = vperm.xlu0 %7443, %v7269
      %v7445 = vpop.permute.xlu0 %7444
      %7448 = vset.pattern.permute.xlu0 0
      %7449 = vperm.xlu0 %7448, %v7270
      %v7450 = vpop.permute.xlu0 %7449
      %7453 = vset.pattern.permute.xlu0 0
      %7454 = vperm.xlu0 %7453, %v7271
      %v7455 = vpop.permute.xlu0 %7454
      %7458 = vset.pattern.permute.xlu0 0
      %7459 = vperm.xlu0 %7458, %v7272
      %v7460 = vpop.permute.xlu0 %7459
      %7463 = vset.pattern.permute.xlu0 0
      %7464 = vperm.xlu0 %7463, %v7273
      %v7465 = vpop.permute.xlu0 %7464
      %7468 = vset.pattern.permute.xlu0 0
      %7469 = vperm.xlu0 %7468, %v7274
      %v7470 = vpop.permute.xlu0 %7469
      %7473 = vset.pattern.permute.xlu0 0
      %7474 = vperm.xlu0 %7473, %v7275
      %v7475 = vpop.permute.xlu0 %7474
      %7478 = vset.pattern.permute.xlu0 0
      %7479 = vperm.xlu0 %7478, %v7276
      %v7480 = vpop.permute.xlu0 %7479
      %7483 = vset.pattern.permute.xlu0 0
      %7484 = vperm.xlu0 %7483, %v7277
      %v7485 = vpop.permute.xlu0 %7484
      %v7487 = vmul.f32 %v7410, %v7345
      %v7488 = vmul.f32 %v7415, %v7348
      %v7489 = vmul.f32 %v7420, %v7353
      %v7490 = vmul.f32 %v7425, %v7356
      %v7491 = vmul.f32 %v7430, %v7361
      %v7492 = vmul.f32 %v7435, %v7364
      %v7493 = vmul.f32 %v7440, %v7369
      %v7494 = vmul.f32 %v7445, %v7372
      %v7495 = vmul.f32 %v7450, %v7377
      %v7496 = vmul.f32 %v7455, %v7380
      %v7497 = vmul.f32 %v7460, %v7385
      %v7498 = vmul.f32 %v7465, %v7388
      %v7499 = vmul.f32 %v7470, %v7393
      %v7500 = vmul.f32 %v7475, %v7396
      %v7501 = vmul.f32 %v7480, %v7401
      %v7502 = vmul.f32 %v7485, %v7404
      %v7503 = vadd.f32 %v7198, %v7487
      %v7504 = vadd.f32 %v7199, %v7488
      %v7505 = vadd.f32 %v7200, %v7489
      %v7506 = vadd.f32 %v7201, %v7490
      %v7507 = vadd.f32 %v7202, %v7491
      %v7508 = vadd.f32 %v7203, %v7492
      %v7509 = vadd.f32 %v7204, %v7493
      %v7510 = vadd.f32 %v7205, %v7494
      %v7511 = vadd.f32 %v7206, %v7495
      %v7512 = vadd.f32 %v7207, %v7496
      %v7513 = vadd.f32 %v7208, %v7497
      %v7514 = vadd.f32 %v7209, %v7498
      %v7515 = vadd.f32 %v7210, %v7499
      %v7516 = vadd.f32 %v7211, %v7500
      %v7517 = vadd.f32 %v7212, %v7501
      %v7518 = vadd.f32 %v7213, %v7502
      %vm7519 = vcmp.eq.s32.totalorder %v4629, 7
      %vm7520 = vcmp.eq.s32.totalorder %v4630, 7
      %vm7521 = vcmp.eq.s32.totalorder %v4631, 7
      %vm7522 = vcmp.eq.s32.totalorder %v4632, 7
      %vm7523 = vcmp.eq.s32.totalorder %v4633, 7
      %vm7524 = vcmp.eq.s32.totalorder %v4634, 7
      %vm7525 = vcmp.eq.s32.totalorder %v4635, 7
      %vm7526 = vcmp.eq.s32.totalorder %v4636, 7
      %vm7527 = vcmp.eq.s32.totalorder %v4637, 7
      %vm7528 = vcmp.eq.s32.totalorder %v4638, 7
      %vm7529 = vcmp.eq.s32.totalorder %v4639, 7
      %vm7530 = vcmp.eq.s32.totalorder %v4640, 7
      %vm7531 = vcmp.eq.s32.totalorder %v4641, 7
      %vm7532 = vcmp.eq.s32.totalorder %v4642, 7
      %vm7533 = vcmp.eq.s32.totalorder %v4643, 7
      %vm7534 = vcmp.eq.s32.totalorder %v4644, 7
      %v7535 = vsel %vm7519, %v4711, 0.0
      %v7536 = vsel %vm7520, %v4712, 0.0
      %v7537 = vsel %vm7521, %v4713, 0.0
      %v7538 = vsel %vm7522, %v4714, 0.0
      %v7539 = vsel %vm7523, %v4715, 0.0
      %v7540 = vsel %vm7524, %v4716, 0.0
      %v7541 = vsel %vm7525, %v4717, 0.0
      %v7542 = vsel %vm7526, %v4718, 0.0
      %v7543 = vsel %vm7527, %v4719, 0.0
      %v7544 = vsel %vm7528, %v4720, 0.0
      %v7545 = vsel %vm7529, %v4721, 0.0
      %v7546 = vsel %vm7530, %v4722, 0.0
      %v7547 = vsel %vm7531, %v4723, 0.0
      %v7548 = vsel %vm7532, %v4724, 0.0
      %v7549 = vsel %vm7533, %v4725, 0.0
      %v7550 = vsel %vm7534, %v4726, 0.0
      %v7551 = vsel %vm7214, %v4613, 0.0
      %v7552 = vsel %vm7215, %v4614, 0.0
      %v7553 = vsel %vm7216, %v4615, 0.0
      %v7554 = vsel %vm7217, %v4616, 0.0
      %v7555 = vsel %vm7218, %v4617, 0.0
      %v7556 = vsel %vm7219, %v4618, 0.0
      %v7557 = vsel %vm7220, %v4619, 0.0
      %v7558 = vsel %vm7221, %v4620, 0.0
      %v7559 = vsel %vm7222, %v4621, 0.0
      %v7560 = vsel %vm7223, %v4622, 0.0
      %v7561 = vsel %vm7224, %v4623, 0.0
      %v7562 = vsel %vm7225, %v4624, 0.0
      %v7563 = vsel %vm7226, %v4625, 0.0
      %v7564 = vsel %vm7227, %v4626, 0.0
      %v7565 = vsel %vm7228, %v4627, 0.0
      %v7566 = vsel %vm7229, %v4628, 0.0
      %v7567 = vadd.f32 %v7535, %v7551
      %v7568 = vadd.f32 %v7536, %v7552
      %v7569 = vadd.f32 %v7537, %v7553
      %v7570 = vadd.f32 %v7538, %v7554
      %v7571 = vadd.f32 %v7539, %v7555
      %v7572 = vadd.f32 %v7540, %v7556
      %v7573 = vadd.f32 %v7541, %v7557
      %v7574 = vadd.f32 %v7542, %v7558
      %v7575 = vadd.f32 %v7543, %v7559
      %v7576 = vadd.f32 %v7544, %v7560
      %v7577 = vadd.f32 %v7545, %v7561
      %v7578 = vadd.f32 %v7546, %v7562
      %v7579 = vadd.f32 %v7547, %v7563
      %v7580 = vadd.f32 %v7548, %v7564
      %v7581 = vadd.f32 %v7549, %v7565
      %v7582 = vadd.f32 %v7550, %v7566
      %v7583 = vld [vmem:[%s6 + $0xe0] sm:$0xf]
      %v7584 = vld [vmem:[%s6 + $0xe4] sm:$0xf]
      %v7585 = vld [vmem:[%s6 + $0xe8] sm:$0xf]
      %v7586 = vld [vmem:[%s6 + $0xec] sm:$0xf]
      %v7587 = vld [vmem:[%s6 + $0xf0] sm:$0xf]
      %v7588 = vld [vmem:[%s6 + $0xf4] sm:$0xf]
      %v7589 = vld [vmem:[%s6 + $0xf8] sm:$0xf]
      %v7590 = vld [vmem:[%s6 + $0xfc] sm:$0xf]
      %v7599 = vunpack.c.l.b16 %v7583
      %v7600 = vunpack.c.l.b16 %v7584
      %v7601 = vunpack.c.l.b16 %v7585
      %v7602 = vunpack.c.l.b16 %v7586
      %v7603 = vunpack.c.l.b16 %v7587
      %v7604 = vunpack.c.l.b16 %v7588
      %v7605 = vunpack.c.l.b16 %v7589
      %v7606 = vunpack.c.l.b16 %v7590
      %v7607 = vpack.c.b16 %v7600, %v7599
      %v7608 = vpack.c.b16 %v7602, %v7601
      %v7609 = vpack.c.b16 %v7604, %v7603
      %v7610 = vpack.c.b16 %v7606, %v7605
      %7615 = vmatprep.subr.bf16.mxu0 0
      %7616 = vmatpush1.bf16.msra.mxu0 0
      %7617 = vmatprep.subr.bf16.mxu0 0
      %7618 = vmatpush1.bf16.msra.mxu0 0
      %7619 = vmatprep.subr.bf16.mxu0 0
      %7620 = vmatpush1.bf16.msra.mxu0 0
      %7621 = vmatprep.subr.bf16.mxu0 0
      %7622 = vmatpush1.bf16.msra.mxu0 0
      %7623 = vmatprep.subr.bf16.mxu0 0
      %7624 = vmatpush1.bf16.msra.mxu0 %v7610
      %7625 = vmatprep.subr.bf16.mxu0 0
      %7626 = vmatpush1.bf16.msra.mxu0 %v7609
      %7627 = vmatprep.subr.bf16.mxu0 0
      %7628 = vmatpush1.bf16.msra.mxu0 %v7608
      %7629 = vmatprep.subr.bf16.mxu0 0
      %7630 = vmatpush1.bf16.msra.mxu0 %v7607
      %7631 = vmatprep.subr.bf16.mxu0 0
      %7632 = vmatpush2.bf16.msra.mxu0 0
      %7633 = vmatprep.subr.bf16.mxu0 0
      %7634 = vmatpush2.bf16.msra.mxu0 0
      %7635 = vmatprep.subr.bf16.mxu0 0
      %7636 = vmatpush2.bf16.msra.mxu0 0
      %7637 = vmatprep.subr.bf16.mxu0 0
      %7638 = vmatpush2.bf16.msra.mxu0 0
      %7639 = vmatprep.subr.bf16.mxu0 0
      %7640 = vmatpush2.bf16.msra.mxu0 0
      %7641 = vmatprep.subr.bf16.mxu0 0
      %7642 = vmatpush2.bf16.msra.mxu0 0
      %7643 = vmatprep.subr.bf16.mxu0 0
      %7644 = vmatpush2.bf16.msra.mxu0 0
      %7645 = vmatprep.subr.bf16.mxu0 0
      %7646 = vmatpush2.bf16.msra.mxu0 0
      %7647 = vmatprep.mubr.bf16.mxu0 0
      %7648 = vmatmul.mubr.bf16.gmra.mxu0 %v5457
      %v7649 = vpop.f32.mrf.mxu0
      %v7650 = vadd.f32 0.0, %v7649
      %v7651 = vpop.f32.mrf.mxu0
      %v7652 = vpop.f32.mrf.mxu0
      %v7653 = vadd.f32 0.0, %v7652
      %v7654 = vpop.f32.mrf.mxu0
      %7655 = vmatprep.mubr.bf16.mxu0 0
      %7656 = vmatmul.mubr.bf16.gmra.mxu0 %v5460
      %v7657 = vpop.f32.mrf.mxu0
      %v7658 = vadd.f32 0.0, %v7657
      %v7659 = vpop.f32.mrf.mxu0
      %v7660 = vpop.f32.mrf.mxu0
      %v7661 = vadd.f32 0.0, %v7660
      %v7662 = vpop.f32.mrf.mxu0
      %7663 = vmatprep.mubr.bf16.mxu0 0
      %7664 = vmatmul.mubr.bf16.gmra.mxu0 %v5463
      %v7665 = vpop.f32.mrf.mxu0
      %v7666 = vadd.f32 0.0, %v7665
      %v7667 = vpop.f32.mrf.mxu0
      %v7668 = vpop.f32.mrf.mxu0
      %v7669 = vadd.f32 0.0, %v7668
      %v7670 = vpop.f32.mrf.mxu0
      %7671 = vmatprep.mubr.bf16.mxu0 0
      %7672 = vmatmul.mubr.bf16.gmra.mxu0 %v5466
      %v7673 = vpop.f32.mrf.mxu0
      %v7674 = vadd.f32 0.0, %v7673
      %v7675 = vpop.f32.mrf.mxu0
      %v7676 = vpop.f32.mrf.mxu0
      %v7677 = vadd.f32 0.0, %v7676
      %v7678 = vpop.f32.mrf.mxu0
      %7679 = vmatprep.mubr.bf16.mxu0 0
      %7680 = vmatmul.mubr.bf16.gmra.mxu0 %v5469
      %v7681 = vpop.f32.mrf.mxu0
      %v7682 = vadd.f32 0.0, %v7681
      %v7683 = vpop.f32.mrf.mxu0
      %v7684 = vpop.f32.mrf.mxu0
      %v7685 = vadd.f32 0.0, %v7684
      %v7686 = vpop.f32.mrf.mxu0
      %7687 = vmatprep.mubr.bf16.mxu0 0
      %7688 = vmatmul.mubr.bf16.gmra.mxu0 %v5472
      %v7689 = vpop.f32.mrf.mxu0
      %v7690 = vadd.f32 0.0, %v7689
      %v7691 = vpop.f32.mrf.mxu0
      %v7692 = vpop.f32.mrf.mxu0
      %v7693 = vadd.f32 0.0, %v7692
      %v7694 = vpop.f32.mrf.mxu0
      %7695 = vmatprep.mubr.bf16.mxu0 0
      %7696 = vmatmul.mubr.bf16.gmra.mxu0 %v5475
      %v7697 = vpop.f32.mrf.mxu0
      %v7698 = vadd.f32 0.0, %v7697
      %v7699 = vpop.f32.mrf.mxu0
      %v7700 = vpop.f32.mrf.mxu0
      %v7701 = vadd.f32 0.0, %v7700
      %v7702 = vpop.f32.mrf.mxu0
      %7703 = vmatprep.mubr.bf16.mxu0 0
      %7704 = vmatmul.mubr.bf16.gmra.mxu0 %v5478
      %v7705 = vpop.f32.mrf.mxu0
      %v7706 = vadd.f32 0.0, %v7705
      %v7707 = vpop.f32.mrf.mxu0
      %v7708 = vpop.f32.mrf.mxu0
      %v7709 = vadd.f32 0.0, %v7708
      %v7710 = vpop.f32.mrf.mxu0
      %7711 = vdwg.mxu0
      %7713 = vset.pattern.permute.xlu0 0
      %7714 = vperm.xlu0 %7713, %v7567
      %v7715 = vpop.permute.xlu0 %7714
      %7718 = vset.pattern.permute.xlu0 0
      %7719 = vperm.xlu0 %7718, %v7568
      %v7720 = vpop.permute.xlu0 %7719
      %7723 = vset.pattern.permute.xlu0 0
      %7724 = vperm.xlu0 %7723, %v7569
      %v7725 = vpop.permute.xlu0 %7724
      %7728 = vset.pattern.permute.xlu0 0
      %7729 = vperm.xlu0 %7728, %v7570
      %v7730 = vpop.permute.xlu0 %7729
      %7733 = vset.pattern.permute.xlu0 0
      %7734 = vperm.xlu0 %7733, %v7571
      %v7735 = vpop.permute.xlu0 %7734
      %7738 = vset.pattern.permute.xlu0 0
      %7739 = vperm.xlu0 %7738, %v7572
      %v7740 = vpop.permute.xlu0 %7739
      %7743 = vset.pattern.permute.xlu0 0
      %7744 = vperm.xlu0 %7743, %v7573
      %v7745 = vpop.permute.xlu0 %7744
      %7748 = vset.pattern.permute.xlu0 0
      %7749 = vperm.xlu0 %7748, %v7574
      %v7750 = vpop.permute.xlu0 %7749
      %7753 = vset.pattern.permute.xlu0 0
      %7754 = vperm.xlu0 %7753, %v7575
      %v7755 = vpop.permute.xlu0 %7754
      %7758 = vset.pattern.permute.xlu0 0
      %7759 = vperm.xlu0 %7758, %v7576
      %v7760 = vpop.permute.xlu0 %7759
      %7763 = vset.pattern.permute.xlu0 0
      %7764 = vperm.xlu0 %7763, %v7577
      %v7765 = vpop.permute.xlu0 %7764
      %7768 = vset.pattern.permute.xlu0 0
      %7769 = vperm.xlu0 %7768, %v7578
      %v7770 = vpop.permute.xlu0 %7769
      %7773 = vset.pattern.permute.xlu0 0
      %7774 = vperm.xlu0 %7773, %v7579
      %v7775 = vpop.permute.xlu0 %7774
      %7778 = vset.pattern.permute.xlu0 0
      %7779 = vperm.xlu0 %7778, %v7580
      %v7780 = vpop.permute.xlu0 %7779
      %7783 = vset.pattern.permute.xlu0 0
      %7784 = vperm.xlu0 %7783, %v7581
      %v7785 = vpop.permute.xlu0 %7784
      %7788 = vset.pattern.permute.xlu0 0
      %7789 = vperm.xlu0 %7788, %v7582
      %v7790 = vpop.permute.xlu0 %7789
      %v7792 = vmul.f32 %v7715, %v7650
      %v7793 = vmul.f32 %v7720, %v7653
      %v7794 = vmul.f32 %v7725, %v7658
      %v7795 = vmul.f32 %v7730, %v7661
      %v7796 = vmul.f32 %v7735, %v7666
      %v7797 = vmul.f32 %v7740, %v7669
      %v7798 = vmul.f32 %v7745, %v7674
      %v7799 = vmul.f32 %v7750, %v7677
      %v7800 = vmul.f32 %v7755, %v7682
      %v7801 = vmul.f32 %v7760, %v7685
      %v7802 = vmul.f32 %v7765, %v7690
      %v7803 = vmul.f32 %v7770, %v7693
      %v7804 = vmul.f32 %v7775, %v7698
      %v7805 = vmul.f32 %v7780, %v7701
      %v7806 = vmul.f32 %v7785, %v7706
      %v7807 = vmul.f32 %v7790, %v7709
      %v7808 = vadd.f32 %v7503, %v7792
      %v7809 = vadd.f32 %v7504, %v7793
      %v7810 = vadd.f32 %v7505, %v7794
      %v7811 = vadd.f32 %v7506, %v7795
      %v7812 = vadd.f32 %v7507, %v7796
      %v7813 = vadd.f32 %v7508, %v7797
      %v7814 = vadd.f32 %v7509, %v7798
      %v7815 = vadd.f32 %v7510, %v7799
      %v7816 = vadd.f32 %v7511, %v7800
      %v7817 = vadd.f32 %v7512, %v7801
      %v7818 = vadd.f32 %v7513, %v7802
      %v7819 = vadd.f32 %v7514, %v7803
      %v7820 = vadd.f32 %v7515, %v7804
      %v7821 = vadd.f32 %v7516, %v7805
      %v7822 = vadd.f32 %v7517, %v7806
      %v7823 = vadd.f32 %v7518, %v7807
      %v7824 = vmax.f32 %v7808, 0.0
      %v7825 = vmax.f32 %v7809, 0.0
      %v7826 = vmax.f32 %v7810, 0.0
      %v7827 = vmax.f32 %v7811, 0.0
      %v7828 = vmax.f32 %v7812, 0.0
      %v7829 = vmax.f32 %v7813, 0.0
      %v7830 = vmax.f32 %v7814, 0.0
      %v7831 = vmax.f32 %v7815, 0.0
      %v7832 = vmax.f32 %v7816, 0.0
      %v7833 = vmax.f32 %v7817, 0.0
      %v7834 = vmax.f32 %v7818, 0.0
      %v7835 = vmax.f32 %v7819, 0.0
      %v7836 = vmax.f32 %v7820, 0.0
      %v7837 = vmax.f32 %v7821, 0.0
      %v7838 = vmax.f32 %v7822, 0.0
      %v7839 = vmax.f32 %v7823, 0.0
      %v7840 = vpack.c.bf16 %v7825, %v7824
      %v7841 = vpack.c.bf16 %v7827, %v7826
      %v7842 = vpack.c.bf16 %v7829, %v7828
      %v7843 = vpack.c.bf16 %v7831, %v7830
      %v7844 = vpack.c.bf16 %v7833, %v7832
      %v7845 = vpack.c.bf16 %v7835, %v7834
      %v7846 = vpack.c.bf16 %v7837, %v7836
      %v7847 = vpack.c.bf16 %v7839, %v7838
      %v7848 = vld [vmem:[%s8] sm:$0xf]
      %v7849 = vld [vmem:[%s8 + $0x4] sm:$0xf]
      %v7850 = vld [vmem:[%s8 + $0x8] sm:$0xf]
      %v7851 = vld [vmem:[%s8 + $0xc] sm:$0xf]
      %v7852 = vld [vmem:[%s8 + $0x10] sm:$0xf]
      %v7853 = vld [vmem:[%s8 + $0x14] sm:$0xf]
      %v7854 = vld [vmem:[%s8 + $0x18] sm:$0xf]
      %v7855 = vld [vmem:[%s8 + $0x1c] sm:$0xf]
      %v7856 = vld [vmem:[%s9] sm:$0x1]
      %v7858 = vlaneseq
      %v7859 = vshrl.u32 %v7858, 7
      %v7860 = vsub.s32 0, %v7859
      %v7861 = vrot.slane %v7856, %v7860
      %v7871 = vunpack.c.l.b16 %v7848
      %v7872 = vunpack.c.l.b16 %v7849
      %v7873 = vunpack.c.l.b16 %v7850
      %v7874 = vunpack.c.l.b16 %v7851
      %v7875 = vunpack.c.l.b16 %v7852
      %v7876 = vunpack.c.l.b16 %v7853
      %v7877 = vunpack.c.l.b16 %v7854
      %v7878 = vunpack.c.l.b16 %v7855
      %v7879 = vpack.c.b16 %v7872, %v7871
      %v7880 = vpack.c.b16 %v7874, %v7873
      %v7881 = vpack.c.b16 %v7876, %v7875
      %v7882 = vpack.c.b16 %v7878, %v7877
      %v7888 = vsel %vm5455, %v7840, 0
      %v7891 = vsel %vm5455, %v7841, 0
      %v7894 = vsel %vm5455, %v7842, 0
      %v7897 = vsel %vm5455, %v7843, 0
      %v7900 = vsel %vm5455, %v7844, 0
      %v7903 = vsel %vm5455, %v7845, 0
      %v7906 = vsel %vm5455, %v7846, 0
      %v7909 = vsel %vm5455, %v7847, 0
      %7911 = vmatprep.subr.bf16.mxu0 0
      %7912 = vmatpush1.bf16.msra.mxu0 0
      %7913 = vmatprep.subr.bf16.mxu0 0
      %7914 = vmatpush1.bf16.msra.mxu0 0
      %7915 = vmatprep.subr.bf16.mxu0 0
      %7916 = vmatpush1.bf16.msra.mxu0 0
      %7917 = vmatprep.subr.bf16.mxu0 0
      %7918 = vmatpush1.bf16.msra.mxu0 0
      %7919 = vmatprep.subr.bf16.mxu0 0
      %7920 = vmatpush1.bf16.msra.mxu0 %v7882
      %7921 = vmatprep.subr.bf16.mxu0 0
      %7922 = vmatpush1.bf16.msra.mxu0 %v7881
      %7923 = vmatprep.subr.bf16.mxu0 0
      %7924 = vmatpush1.bf16.msra.mxu0 %v7880
      %7925 = vmatprep.subr.bf16.mxu0 0
      %7926 = vmatpush1.bf16.msra.mxu0 %v7879
      %7927 = vmatprep.subr.bf16.mxu0 0
      %7928 = vmatpush2.bf16.msra.mxu0 0
      %7929 = vmatprep.subr.bf16.mxu0 0
      %7930 = vmatpush2.bf16.msra.mxu0 0
      %7931 = vmatprep.subr.bf16.mxu0 0
      %7932 = vmatpush2.bf16.msra.mxu0 0
      %7933 = vmatprep.subr.bf16.mxu0 0
      %7934 = vmatpush2.bf16.msra.mxu0 0
      %7935 = vmatprep.subr.bf16.mxu0 0
      %7936 = vmatpush2.bf16.msra.mxu0 0
      %7937 = vmatprep.subr.bf16.mxu0 0
      %7938 = vmatpush2.bf16.msra.mxu0 0
      %7939 = vmatprep.subr.bf16.mxu0 0
      %7940 = vmatpush2.bf16.msra.mxu0 0
      %7941 = vmatprep.subr.bf16.mxu0 0
      %7942 = vmatpush2.bf16.msra.mxu0 0
      %7943 = vmatprep.mubr.bf16.mxu0 0
      %7944 = vmatmul.mubr.bf16.gmra.mxu0 %v7888
      %v7945 = vpop.f32.mrf.mxu0
      %v7946 = vadd.f32 %v7861, %v7945
      %v7947 = vpop.f32.mrf.mxu0
      %v7948 = vpop.f32.mrf.mxu0
      %v7949 = vadd.f32 %v7861, %v7948
      %v7950 = vpop.f32.mrf.mxu0
      %7951 = vmatprep.mubr.bf16.mxu0 0
      %7952 = vmatmul.mubr.bf16.gmra.mxu0 %v7891
      %v7953 = vpop.f32.mrf.mxu0
      %v7954 = vadd.f32 %v7861, %v7953
      %v7955 = vpop.f32.mrf.mxu0
      %v7956 = vpop.f32.mrf.mxu0
      %v7957 = vadd.f32 %v7861, %v7956
      %v7958 = vpop.f32.mrf.mxu0
      %7959 = vmatprep.mubr.bf16.mxu0 0
      %7960 = vmatmul.mubr.bf16.gmra.mxu0 %v7894
      %v7961 = vpop.f32.mrf.mxu0
      %v7962 = vadd.f32 %v7861, %v7961
      %v7963 = vpop.f32.mrf.mxu0
      %v7964 = vpop.f32.mrf.mxu0
      %v7965 = vadd.f32 %v7861, %v7964
      %v7966 = vpop.f32.mrf.mxu0
      %7967 = vmatprep.mubr.bf16.mxu0 0
      %7968 = vmatmul.mubr.bf16.gmra.mxu0 %v7897
      %v7969 = vpop.f32.mrf.mxu0
      %v7970 = vadd.f32 %v7861, %v7969
      %v7971 = vpop.f32.mrf.mxu0
      %v7972 = vpop.f32.mrf.mxu0
      %v7973 = vadd.f32 %v7861, %v7972
      %v7974 = vpop.f32.mrf.mxu0
      %7975 = vmatprep.mubr.bf16.mxu0 0
      %7976 = vmatmul.mubr.bf16.gmra.mxu0 %v7900
      %v7977 = vpop.f32.mrf.mxu0
      %v7978 = vadd.f32 %v7861, %v7977
      %v7979 = vpop.f32.mrf.mxu0
      %v7980 = vpop.f32.mrf.mxu0
      %v7981 = vadd.f32 %v7861, %v7980
      %v7982 = vpop.f32.mrf.mxu0
      %7983 = vmatprep.mubr.bf16.mxu0 0
      %7984 = vmatmul.mubr.bf16.gmra.mxu0 %v7903
      %v7985 = vpop.f32.mrf.mxu0
      %v7986 = vadd.f32 %v7861, %v7985
      %v7987 = vpop.f32.mrf.mxu0
      %v7988 = vpop.f32.mrf.mxu0
      %v7989 = vadd.f32 %v7861, %v7988
      %v7990 = vpop.f32.mrf.mxu0
      %7991 = vmatprep.mubr.bf16.mxu0 0
      %7992 = vmatmul.mubr.bf16.gmra.mxu0 %v7906
      %v7993 = vpop.f32.mrf.mxu0
      %v7994 = vadd.f32 %v7861, %v7993
      %v7995 = vpop.f32.mrf.mxu0
      %v7996 = vpop.f32.mrf.mxu0
      %v7997 = vadd.f32 %v7861, %v7996
      %v7998 = vpop.f32.mrf.mxu0
      %7999 = vmatprep.mubr.bf16.mxu0 0
      %8000 = vmatmul.mubr.bf16.gmra.mxu0 %v7909
      %v8001 = vpop.f32.mrf.mxu0
      %v8002 = vadd.f32 %v7861, %v8001
      %v8003 = vpop.f32.mrf.mxu0
      %v8004 = vpop.f32.mrf.mxu0
      %v8005 = vadd.f32 %v7861, %v8004
      %v8006 = vpop.f32.mrf.mxu0
      %8007 = vdwg.mxu0
      %8008 = vst.msk [vmem:[%s361] sm:$0xff] %vm3472, %v7946
      %8009 = vst.msk [vmem:[%s361 + $0x8] sm:$0xff] %vm3472, %v7949
      %8010 = vst.msk [vmem:[%s361 + $0x10] sm:$0xff] %vm3472, %v7954
      %8011 = vst.msk [vmem:[%s361 + $0x18] sm:$0xff] %vm3472, %v7957
      %8012 = vst.msk [vmem:[%s361 + $0x20] sm:$0xff] %vm3472, %v7962
      %8013 = vst.msk [vmem:[%s361 + $0x28] sm:$0xff] %vm3472, %v7965
      %8014 = vst.msk [vmem:[%s361 + $0x30] sm:$0xff] %vm3472, %v7970
      %8015 = vst.msk [vmem:[%s361 + $0x38] sm:$0xff] %vm3472, %v7973
      %8016 = vst.msk [vmem:[%s361 + $0x40] sm:$0xff] %vm3472, %v7978
      %8017 = vst.msk [vmem:[%s361 + $0x48] sm:$0xff] %vm3472, %v7981
      %8018 = vst.msk [vmem:[%s361 + $0x50] sm:$0xff] %vm3472, %v7986
      %8019 = vst.msk [vmem:[%s361 + $0x58] sm:$0xff] %vm3472, %v7989
      %8020 = vst.msk [vmem:[%s361 + $0x60] sm:$0xff] %vm3472, %v7994
      %8021 = vst.msk [vmem:[%s361 + $0x68] sm:$0xff] %vm3472, %v7997
      %8022 = vst.msk [vmem:[%s361 + $0x70] sm:$0xff] %vm3472, %v8002
      %8023 = vst.msk [vmem:[%s361 + $0x78] sm:$0xff] %vm3472, %v8005
      %s8024 = smul.u32 16, %s21
      %p8025 = scmp.lt.s32.totalorder %s8024, 31
      %s8026 = scalar_select %p8025, %s8024, 31
      %s8027 = smul.addr %s8026, 8
      %s8028 = scalar_lea.vmem %s10, %s8027
      // Predicated region
      $region61: #{lotd_sdf_forward.1} parent=59 // pred_check
        %p8029 = pneg %p254
      $region62: #{lotd_sdf_forward.1} parent=59 // pred_check_branch
        %8031 = sbr.rel (%p8029) target = $region64
      $region63: #{lotd_sdf_forward.1} parent=59 // pred_region
        %s8032 = smul.u32 16, %s21
      $region64: #{lotd_sdf_forward.1} parent=59 // pred_fallthru
        _
    $region60: #{lotd_sdf_forward.1} parent=5 // pred_fallthru
      _
    %p8033 = scmp.le.s32.totalorder 2, %s16
    // Predicated region
    $region65: #{lotd_sdf_forward.1} parent=5 // pred_check
      %p8034 = pneg %p8033
    $region66: #{lotd_sdf_forward.1} parent=5 // pred_check_branch
      %8036 = sbr.rel (%p8034) target = $region68
    $region67: #{lotd_sdf_forward.1} parent=5 // pred_region
      %s8037 = ssub.s32 %s16, 2
      // Predicated region
      $region69: #{lotd_sdf_forward.1} parent=67 // pred_check
        %p8038 = pneg %p260
      $region70: #{lotd_sdf_forward.1} parent=67 // pred_check_branch
        %8040 = sbr.rel (%p8038) target = $region72
      $region71: #{lotd_sdf_forward.1} parent=67 // pred_region
        %s8041 = smul.u32 16, %s22
        %p8042 = scmp.lt.s32.totalorder %s8041, 31
        %s8043 = scalar_select %p8042, %s8041, 31
        %s8044 = smul.addr %s8043, 8
        %s8045 = scalar_lea.vmem %s10, %s8044
      $region72: #{lotd_sdf_forward.1} parent=67 // pred_fallthru
        _
    $region68: #{lotd_sdf_forward.1} parent=5 // pred_fallthru
      _
  $region6: #{lotd_sdf_forward.1} parent=0 // loop_footer
    %s20 = sadd.s32 1, %s16
  $region7: #{lotd_sdf_forward.1} parent=0 // loop_footer_branch
    %15 = sbr.rel target = $region3
  $region8: #{lotd_sdf_forward.1} parent=0 // loop_exit
    _

</llo_original>
